<compile_context>
chip_gen: v7x
topology: tpu7x:2x2x1
jax: 0.10.0
libtpu: 0.0.40
codegen_flags: <defaults>
</compile_context>

<pallas_src>
import functools

import jax
import jax.numpy as jnp
from jax.experimental import pallas as pl
from jax.experimental.pallas import tpu as pltpu

_BN_EPS = 1e-5

# architecture constants (fixed by the PyTorch module)
_C1, _C2, _C3 = 32, 64, 128          # conv1/2/3 output channels
_K1, _S1 = 7, 2                      # conv1 kernel / stride
_K2, _S2 = 6, 3                      # conv2 kernel / stride
_K3, _S3 = 5, 4                      # conv3 kernel / stride


# ---------------------------------------------------------------------------
# Fused kernel: one grid step == one full Siamese branch (conv1->conv2->conv3)
# ---------------------------------------------------------------------------
def _siamese_kernel(p1_ref, w1_ref, w2_ref, w3_ref, g1_ref, be1_ref,
                    g2_ref, be2_ref, b3_ref, o_ref,
                    a1_ref, row_ref, p2_ref, a2_ref, p3_ref,
                    *, n, ho1, ho2, wo2):
    f32 = jnp.float32

    # ---------------- conv1: GEMM + training-mode BN + ReLU -----------------
    # conv bias omitted: exactly cancelled by BN's per-channel mean subtraction.
    y1 = jnp.dot(p1_ref[0, :, :], w1_ref[...], preferred_element_type=f32)
    mu1 = jnp.mean(y1, axis=0, keepdims=True)
    var1 = jnp.mean(y1 * y1, axis=0, keepdims=True) - mu1 * mu1
    sc1 = g1_ref[...] * jax.lax.rsqrt(var1 + _BN_EPS)
    sh1 = be1_ref[...] - mu1 * sc1
    a1_ref[...] = jnp.maximum(y1 * sc1 + sh1, 0.0)      # rows ordered (wo1, n, ho1)

    blk = n * ho1             # a1 rows sharing one wo1 index (ordered (n, ho1))
    rw = _K2 * _C1            # 192 lanes per conv2 kernel-row slab

    # ------- conv2: assemble im2col matrix entirely in VMEM scratch ---------
    for w2i in range(wo2):
        # row_ref[(s, h1), (kw, c)] = act1[s, c, h1, _S2*w2i + kw]
        for j in range(_K2):
            w1i = _S2 * w2i + j
            row_ref[:, pl.ds(_C1 * j, _C1)] = a1_ref[pl.ds(blk * w1i, blk), :]
        for h2i in range(ho2):
            p = h2i * wo2 + w2i
            for s in range(n):
                base = s * ho1 + _S2 * h2i
                for i in range(_K2):
                    p2_ref[pl.ds(n * p + s, 1), pl.ds(rw * i, rw)] = (
                        row_ref[pl.ds(base + i, 1), :])

    # ---------------- conv2: GEMM + training-mode BN + ReLU -----------------
    y2 = jnp.dot(p2_ref[...], w2_ref[...], preferred_element_type=f32)
    mu2 = jnp.mean(y2, axis=0, keepdims=True)
    var2 = jnp.mean(y2 * y2, axis=0, keepdims=True) - mu2 * mu2
    sc2 = g2_ref[...] * jax.lax.rsqrt(var2 + _BN_EPS)
    sh2 = be2_ref[...] - mu2 * sc2
    a2_ref[...] = jnp.maximum(y2 * sc2 + sh2, 0.0)       # rows ordered (h2*Wo2+w2, n)

    # ------ conv3 (5x5 -> 1x1): lane-flatten per sample, one GEMM + bias -----
    for p in range(ho2 * wo2):
        p3_ref[:, pl.ds(_C2 * p, _C2)] = a2_ref[pl.ds(n * p, n), :]
    o_ref[0, :, :] = (jnp.dot(p3_ref[...], w3_ref[...], preferred_element_type=f32)
                      + b3_ref[...])


# ---------------------------------------------------------------------------
# Wrappers
# ---------------------------------------------------------------------------
def _conv1_patches(x, ho1, wo1):
    """x: (N, 1, H, W) -> im2col rows ordered (wo1, n, ho1), cols ordered (kh, kw)."""
    # TODO(synk): conv1's im2col is built with XLA slicing outside the kernel
    # (Cin=1, ~127 KB); conv2/conv3 patches are assembled in-kernel from VMEM.
    n = x.shape[0]
    xs = x[:, 0, :, :]
    cols = [xs[:, i:i + _S1 * ho1:_S1, j:j + _S1 * wo1:_S1]
            for i in range(_K1) for j in range(_K1)]
    p = jnp.stack(cols, axis=-1)                 # (N, Ho1, Wo1, 49)
    p = p.transpose(2, 0, 1, 3)                  # (Wo1, N, Ho1, 49)
    return p.reshape(wo1 * n * ho1, _K1 * _K1)


def _fused_siamese_call(patches, w1m, w2m, w3m, g1, be1, g2, be2, b3,
                        *, n, ho1, ho2, wo2):
    bsz, m1, k1 = patches.shape
    pcount = ho2 * wo2
    kernel = functools.partial(_siamese_kernel, n=n, ho1=ho1, ho2=ho2, wo2=wo2)
    flops = 2 * bsz * (m1 * k1 * _C1
                       + (pcount * n) * (_K2 * _K2 * _C1) * _C2
                       + n * (pcount * _C2) * _C3)
    bytes_accessed = 4 * (patches.size + w1m.size + w2m.size + w3m.size
                          + 2 * (_C1 + _C2) + _C3 + bsz * n * _C3)
    return pl.pallas_call(
        kernel,
        out_shape=jax.ShapeDtypeStruct((bsz, n, _C3), jnp.float32),
        grid=(bsz,),
        in_specs=[
            pl.BlockSpec((1, m1, k1), lambda b: (b, 0, 0)),
            pl.BlockSpec(w1m.shape, lambda b: (0, 0)),
            pl.BlockSpec(w2m.shape, lambda b: (0, 0)),
            pl.BlockSpec(w3m.shape, lambda b: (0, 0)),
            pl.BlockSpec((1, _C1), lambda b: (0, 0)),
            pl.BlockSpec((1, _C1), lambda b: (0, 0)),
            pl.BlockSpec((1, _C2), lambda b: (0, 0)),
            pl.BlockSpec((1, _C2), lambda b: (0, 0)),
            pl.BlockSpec((1, _C3), lambda b: (0, 0)),
        ],
        out_specs=pl.BlockSpec((1, n, _C3), lambda b: (b, 0, 0)),
        scratch_shapes=[
            pltpu.VMEM((m1, _C1), jnp.float32),                      # a1 (conv1 act)
            pltpu.VMEM((n * ho1, _K2 * _C1), jnp.float32),           # kernel-row slab
            pltpu.VMEM((pcount * n, _K2 * _K2 * _C1), jnp.float32),  # conv2 im2col
            pltpu.VMEM((pcount * n, _C2), jnp.float32),              # a2 (conv2 act)
            pltpu.VMEM((n, pcount * _C2), jnp.float32),              # conv3 patch rows
        ],
        compiler_params=pltpu.CompilerParams(
            dimension_semantics=("parallel",),
            vmem_limit_bytes=32 * 1024 * 1024),
        cost_estimate=pl.CostEstimate(
            flops=flops,
            transcendentals=2 * bsz * (_C1 + _C2),
            bytes_accessed=bytes_accessed),
    )(patches, w1m, w2m, w3m, g1, be1, g2, be2, b3)


@jax.jit
def siamese_forward(params, input1, input2):
    w1, _b1, g1, be1 = params["conv1"]   # _b1/_b2 unused: cancelled by training BN
    w2, _b2, g2, be2 = params["conv2"]
    w3, b3 = params["conv3"]

    n, c, h, w = input1.shape
    assert c == 1 and input2.shape == input1.shape
    ho1, wo1 = (h - _K1) // _S1 + 1, (w - _K1) // _S1 + 1
    ho2, wo2 = (ho1 - _K2) // _S2 + 1, (wo1 - _K2) // _S2 + 1
    # TODO(synk): the in-kernel conv3 gather assumes conv3's 5x5 window covers its
    # whole input (1x1 output spatial); generalize for larger input sizes.
    assert ho2 == _K3 and wo2 == _K3

    patches = jnp.stack([_conv1_patches(input1, ho1, wo1),
                         _conv1_patches(input2, ho1, wo1)], axis=0)

    # weight matrices with rows ordered (kh, kw, cin) to match the in-kernel patches
    w1m = w1.transpose(2, 3, 1, 0).reshape(_K1 * _K1 * 1, _C1)
    w2m = w2.transpose(2, 3, 1, 0).reshape(_K2 * _K2 * _C1, _C2)
    w3m = w3.transpose(2, 3, 1, 0).reshape(_K3 * _K3 * _C2, _C3)

    out = _fused_siamese_call(
        patches, w1m, w2m, w3m,
        g1.reshape(1, _C1), be1.reshape(1, _C1),
        g2.reshape(1, _C2), be2.reshape(1, _C2), b3.reshape(1, _C3),
        n=n, ho1=ho1, ho2=ho2, wo2=wo2)
    return out[0], out[1]


# ---------------------------------------------------------------------------
# Params (PyTorch-like fan-in uniform; BN weight=1, bias=0) and pure-JAX reference
# ---------------------------------------------------------------------------
def init_params(key):
    def conv_init(key_, cout, cin, k):
        k1, k2 = jax.random.split(key_)
        bound = 1.0 / ((cin * k * k) ** 0.5)
        w_ = jax.random.uniform(k1, (cout, cin, k, k), jnp.float32, -bound, bound)
        b_ = jax.random.uniform(k2, (cout,), jnp.float32, -bound, bound)
        return w_, b_

    k1, k2, k3 = jax.random.split(key, 3)
    w1, b1 = conv_init(k1, _C1, 1, _K1)
    w2, b2 = conv_init(k2, _C2, _C1, _K2)
    w3, b3 = conv_init(k3, _C3, _C2, _K3)
    return {
        "conv1": (w1, b1, jnp.ones((_C1,), jnp.float32), jnp.zeros((_C1,), jnp.float32)),
        "conv2": (w2, b2, jnp.ones((_C2,), jnp.float32), jnp.zeros((_C2,), jnp.float32)),
        "conv3": (w3, b3),
    }


def _reference_forward_once(params, x):
    def conv(x_, w_, b_, s_):
        y = jax.lax.conv_general_dilated(
            x_, w_, (s_, s_), "VALID",
            dimension_numbers=("NCHW", "OIHW", "NCHW"),
            precision=jax.lax.Precision.HIGHEST)
        return y + b_.reshape(1, -1, 1, 1)

    def bn_relu(y, g, be):
        mu = jnp.mean(y, axis=(0, 2, 3), keepdims=True)
        var = jnp.mean((y - mu) ** 2, axis=(0, 2, 3), keepdims=True)
        yn = (y - mu) * jax.lax.rsqrt(var + _BN_EPS)
        return jnp.maximum(yn * g.reshape(1, -1, 1, 1) + be.reshape(1, -1, 1, 1), 0.0)

    w1, b1, g1, be1 = params["conv1"]
    w2, b2, g2, be2 = params["conv2"]
    w3, b3 = params["conv3"]
    x = bn_relu(conv(x, w1, b1, _S1), g1, be1)
    x = bn_relu(conv(x, w2, b2, _S2), g2, be2)
    x = conv(x, w3, b3, _S3)
    return x.reshape(x.shape[0], -1)


if __name__ == "__main__":
    key = jax.random.PRNGKey(0)
    kp, kx1, kx2 = jax.random.split(key, 3)
    params = init_params(kp)

    # 41x41 is the smallest spatial size surviving the stride-2/3/4 convs:
    # conv1: (41-7)//2+1=18 ; conv2: (18-6)//3+1=5 ; conv3: (5-5)//4+1=1
    x1 = jax.random.normal(kx1, (2, 1, 41, 41), jnp.float32)
    x2 = jax.random.normal(kx2, (2, 1, 41, 41), jnp.float32)

    out1, out2 = siamese_forward(params, x1, x2)
    jax.block_until_ready((out1, out2))
    assert out1.shape == (2, _C3) and out2.shape == (2, _C3)

    ref1 = _reference_forward_once(params, x1)
    ref2 = _reference_forward_once(params, x2)
    assert bool(jnp.allclose(out1, ref1, rtol=1e-2, atol=1e-2))
    assert bool(jnp.allclose(out2, ref2, rtol=1e-2, atol=1e-2))
    print("KERNEL_OK")
</pallas_src>

<mosaic_0001>
module attributes {stable_mosaic.version = 11 : i64} {
  func.func @_siamese_kernel(%arg0: i32, %arg1: memref<1x648x49xf32, #tpu.memory_space<vmem>>, %arg2: memref<49x32xf32, #tpu.memory_space<vmem>>, %arg3: memref<1152x64xf32, #tpu.memory_space<vmem>>, %arg4: memref<1600x128xf32, #tpu.memory_space<vmem>>, %arg5: memref<1x32xf32, #tpu.memory_space<vmem>>, %arg6: memref<1x32xf32, #tpu.memory_space<vmem>>, %arg7: memref<1x64xf32, #tpu.memory_space<vmem>>, %arg8: memref<1x64xf32, #tpu.memory_space<vmem>>, %arg9: memref<1x128xf32, #tpu.memory_space<vmem>>, %arg10: memref<1x2x128xf32, #tpu.memory_space<vmem>>, %arg11: memref<648x32xf32, #tpu.memory_space<vmem>>, %arg12: memref<36x192xf32, #tpu.memory_space<vmem>>, %arg13: memref<50x1152xf32, #tpu.memory_space<vmem>>, %arg14: memref<50x64xf32, #tpu.memory_space<vmem>>, %arg15: memref<2x1600xf32, #tpu.memory_space<vmem>>) attributes {dimension_semantics = [#tpu.dimension_semantics<parallel>], iteration_bounds = array<i64: 2>, scalar_prefetch = 0 : i64, scratch_operands = 5 : i64, tpu.core_type = #tpu.core_type<tc>, window_params = [{transform_indices = @transform_0, window_bounds = array<i64: 1, 648, 49>}, {pipeline_mode = #tpu.pipeline_mode<synchronous>, transform_indices = @transform_1, window_bounds = array<i64: 49, 32>}, {pipeline_mode = #tpu.pipeline_mode<synchronous>, transform_indices = @transform_2, window_bounds = array<i64: 1152, 64>}, {pipeline_mode = #tpu.pipeline_mode<synchronous>, transform_indices = @transform_3, window_bounds = array<i64: 1600, 128>}, {pipeline_mode = #tpu.pipeline_mode<synchronous>, transform_indices = @transform_4, window_bounds = array<i64: 1, 32>}, {pipeline_mode = #tpu.pipeline_mode<synchronous>, transform_indices = @transform_5, window_bounds = array<i64: 1, 32>}, {pipeline_mode = #tpu.pipeline_mode<synchronous>, transform_indices = @transform_6, window_bounds = array<i64: 1, 64>}, {pipeline_mode = #tpu.pipeline_mode<synchronous>, transform_indices = @transform_7, window_bounds = array<i64: 1, 64>}, {pipeline_mode = #tpu.pipeline_mode<synchronous>, transform_indices = @transform_8, window_bounds = array<i64: 1, 128>}, {transform_indices = @transform_9, window_bounds = array<i64: 1, 2, 128>}]} {
    %c0 = arith.constant 0 : index
    %c0_0 = arith.constant 0 : index
    %c0_1 = arith.constant 0 : index
    %0 = vector.load %arg1[%c0, %c0_0, %c0_1] : memref<1x648x49xf32, #tpu.memory_space<vmem>>, vector<1x648x49xf32>
    %1 = vector.shape_cast %0 : vector<1x648x49xf32> to vector<648x49xf32>
    %c0_2 = arith.constant 0 : index
    %c0_3 = arith.constant 0 : index
    %2 = vector.load %arg2[%c0_2, %c0_3] : memref<49x32xf32, #tpu.memory_space<vmem>>, vector<49x32xf32>
    %cst = arith.constant dense<0.000000e+00> : vector<648x32xf32>
    %3 = tpu.matmul %1, %2, %cst {dimension_numbers = #tpu.dot_dimension_numbers<[1], [0], [0], [1], [0, 0, 1, 1], [], []>} : vector<648x49xf32>, vector<49x32xf32>, vector<648x32xf32> -> vector<648x32xf32>
    %cst_4 = arith.constant dense<0.000000e+00> : vector<32xf32>
    %4 = vector.multi_reduction <add>, %3, %cst_4 [0] : vector<648x32xf32> to vector<32xf32>
    %5 = vector.shape_cast %4 : vector<32xf32> to vector<1x32xf32>
    %cst_5 = arith.constant 6.480000e+02 : f32
    %6 = vector.broadcast %cst_5 : f32 to vector<1x32xf32>
    %7 = arith.divf %5, %6 : vector<1x32xf32>
    %8 = arith.mulf %3, %3 : vector<648x32xf32>
    %cst_6 = arith.constant dense<0.000000e+00> : vector<32xf32>
    %9 = vector.multi_reduction <add>, %8, %cst_6 [0] : vector<648x32xf32> to vector<32xf32>
    %10 = vector.shape_cast %9 : vector<32xf32> to vector<1x32xf32>
    %cst_7 = arith.constant 6.480000e+02 : f32
    %11 = vector.broadcast %cst_7 : f32 to vector<1x32xf32>
    %12 = arith.divf %10, %11 : vector<1x32xf32>
    %13 = arith.mulf %7, %7 : vector<1x32xf32>
    %14 = arith.subf %12, %13 : vector<1x32xf32>
    %c0_8 = arith.constant 0 : index
    %c0_9 = arith.constant 0 : index
    %15 = vector.load %arg5[%c0_8, %c0_9] : memref<1x32xf32, #tpu.memory_space<vmem>>, vector<1x32xf32>
    %cst_10 = arith.constant 9.99999974E-6 : f32
    %16 = vector.broadcast %cst_10 : f32 to vector<1x32xf32>
    %17 = arith.addf %14, %16 : vector<1x32xf32>
    %18 = math.rsqrt %17 : vector<1x32xf32>
    %19 = arith.mulf %15, %18 : vector<1x32xf32>
    %c0_11 = arith.constant 0 : index
    %c0_12 = arith.constant 0 : index
    %20 = vector.load %arg6[%c0_11, %c0_12] : memref<1x32xf32, #tpu.memory_space<vmem>>, vector<1x32xf32>
    %21 = arith.mulf %7, %19 : vector<1x32xf32>
    %22 = arith.subf %20, %21 : vector<1x32xf32>
    %23 = vector.broadcast %19 : vector<1x32xf32> to vector<648x32xf32>
    %24 = arith.mulf %3, %23 : vector<648x32xf32>
    %25 = vector.broadcast %22 : vector<1x32xf32> to vector<648x32xf32>
    %26 = arith.addf %24, %25 : vector<648x32xf32>
    %cst_13 = arith.constant 0.000000e+00 : f32
    %27 = vector.broadcast %cst_13 : f32 to vector<648x32xf32>
    %28 = arith.maximumf %26, %27 : vector<648x32xf32>
    %c0_14 = arith.constant 0 : index
    %c0_15 = arith.constant 0 : index
    %29 = vector.load %arg11[%c0_14, %c0_15] : memref<648x32xf32, #tpu.memory_space<vmem>>, vector<648x32xf32>
    tpu.vector_store %arg11[%c0_14, %c0_15], %28 {strides = array<i32>} : memref<648x32xf32, #tpu.memory_space<vmem>>, vector<648x32xf32>,
    %c0_16 = arith.constant 0 : index
    %c0_17 = arith.constant 0 : index
    %30 = vector.load %arg11[%c0_16, %c0_17] : memref<648x32xf32, #tpu.memory_space<vmem>>, vector<36x32xf32>
    %c0_18 = arith.constant 0 : index
    %c0_19 = arith.constant 0 : index
    %31 = vector.load %arg12[%c0_18, %c0_19] : memref<36x192xf32, #tpu.memory_space<vmem>>, vector<36x32xf32>
    tpu.vector_store %arg12[%c0_18, %c0_19], %30 {strides = array<i32>} : memref<36x192xf32, #tpu.memory_space<vmem>>, vector<36x32xf32>,
    %c36 = arith.constant 36 : index
    %c0_20 = arith.constant 0 : index
    %32 = vector.load %arg11[%c36, %c0_20] : memref<648x32xf32, #tpu.memory_space<vmem>>, vector<36x32xf32>
    %c0_21 = arith.constant 0 : index
    %c32 = arith.constant 32 : index
    %33 = vector.load %arg12[%c0_21, %c32] : memref<36x192xf32, #tpu.memory_space<vmem>>, vector<36x32xf32>
    tpu.vector_store %arg12[%c0_21, %c32], %32 {strides = array<i32>} : memref<36x192xf32, #tpu.memory_space<vmem>>, vector<36x32xf32>,
    %c72 = arith.constant 72 : index
    %c0_22 = arith.constant 0 : index
    %34 = vector.load %arg11[%c72, %c0_22] : memref<648x32xf32, #tpu.memory_space<vmem>>, vector<36x32xf32>
    %c0_23 = arith.constant 0 : index
    %c64 = arith.constant 64 : index
    %35 = vector.load %arg12[%c0_23, %c64] : memref<36x192xf32, #tpu.memory_space<vmem>>, vector<36x32xf32>
    tpu.vector_store %arg12[%c0_23, %c64], %34 {strides = array<i32>} : memref<36x192xf32, #tpu.memory_space<vmem>>, vector<36x32xf32>,
    %c108 = arith.constant 108 : index
    %c0_24 = arith.constant 0 : index
    %36 = vector.load %arg11[%c108, %c0_24] : memref<648x32xf32, #tpu.memory_space<vmem>>, vector<36x32xf32>
    %c0_25 = arith.constant 0 : index
    %c96 = arith.constant 96 : index
    %37 = vector.load %arg12[%c0_25, %c96] : memref<36x192xf32, #tpu.memory_space<vmem>>, vector<36x32xf32>
    tpu.vector_store %arg12[%c0_25, %c96], %36 {strides = array<i32>} : memref<36x192xf32, #tpu.memory_space<vmem>>, vector<36x32xf32>,
    %c144 = arith.constant 144 : index
    %c0_26 = arith.constant 0 : index
    %38 = vector.load %arg11[%c144, %c0_26] : memref<648x32xf32, #tpu.memory_space<vmem>>, vector<36x32xf32>
    %c0_27 = arith.constant 0 : index
    %c128 = arith.constant 128 : index
    %39 = vector.load %arg12[%c0_27, %c128] : memref<36x192xf32, #tpu.memory_space<vmem>>, vector<36x32xf32>
    tpu.vector_store %arg12[%c0_27, %c128], %38 {strides = array<i32>} : memref<36x192xf32, #tpu.memory_space<vmem>>, vector<36x32xf32>,
    %c180 = arith.constant 180 : index
    %c0_28 = arith.constant 0 : index
    %40 = vector.load %arg11[%c180, %c0_28] : memref<648x32xf32, #tpu.memory_space<vmem>>, vector<36x32xf32>
    %c0_29 = arith.constant 0 : index
    %c160 = arith.constant 160 : index
    %41 = vector.load %arg12[%c0_29, %c160] : memref<36x192xf32, #tpu.memory_space<vmem>>, vector<36x32xf32>
    tpu.vector_store %arg12[%c0_29, %c160], %40 {strides = array<i32>} : memref<36x192xf32, #tpu.memory_space<vmem>>, vector<36x32xf32>,
    %c0_30 = arith.constant 0 : index
    %c0_31 = arith.constant 0 : index
    %42 = vector.load %arg12[%c0_30, %c0_31] : memref<36x192xf32, #tpu.memory_space<vmem>>, vector<1x192xf32>
    %c0_32 = arith.constant 0 : index
    %c0_33 = arith.constant 0 : index
    %43 = vector.load %arg13[%c0_32, %c0_33] : memref<50x1152xf32, #tpu.memory_space<vmem>>, vector<1x192xf32>
    tpu.vector_store %arg13[%c0_32, %c0_33], %42 {strides = array<i32>} : memref<50x1152xf32, #tpu.memory_space<vmem>>, vector<1x192xf32>,
    %c1 = arith.constant 1 : index
    %c0_34 = arith.constant 0 : index
    %44 = vector.load %arg12[%c1, %c0_34] : memref<36x192xf32, #tpu.memory_space<vmem>>, vector<1x192xf32>
    %c0_35 = arith.constant 0 : index
    %c192 = arith.constant 192 : index
    %45 = vector.load %arg13[%c0_35, %c192] : memref<50x1152xf32, #tpu.memory_space<vmem>>, vector<1x192xf32>
    tpu.vector_store %arg13[%c0_35, %c192], %44 {strides = array<i32>} : memref<50x1152xf32, #tpu.memory_space<vmem>>, vector<1x192xf32>,
    %c2 = arith.constant 2 : index
    %c0_36 = arith.constant 0 : index
    %46 = vector.load %arg12[%c2, %c0_36] : memref<36x192xf32, #tpu.memory_space<vmem>>, vector<1x192xf32>
    %c0_37 = arith.constant 0 : index
    %c384 = arith.constant 384 : index
    %47 = vector.load %arg13[%c0_37, %c384] : memref<50x1152xf32, #tpu.memory_space<vmem>>, vector<1x192xf32>
    tpu.vector_store %arg13[%c0_37, %c384], %46 {strides = array<i32>} : memref<50x1152xf32, #tpu.memory_space<vmem>>, vector<1x192xf32>,
    %c3 = arith.constant 3 : index
    %c0_38 = arith.constant 0 : index
    %48 = vector.load %arg12[%c3, %c0_38] : memref<36x192xf32, #tpu.memory_space<vmem>>, vector<1x192xf32>
    %c0_39 = arith.constant 0 : index
    %c576 = arith.constant 576 : index
    %49 = vector.load %arg13[%c0_39, %c576] : memref<50x1152xf32, #tpu.memory_space<vmem>>, vector<1x192xf32>
    tpu.vector_store %arg13[%c0_39, %c576], %48 {strides = array<i32>} : memref<50x1152xf32, #tpu.memory_space<vmem>>, vector<1x192xf32>,
    %c4 = arith.constant 4 : index
    %c0_40 = arith.constant 0 : index
    %50 = vector.load %arg12[%c4, %c0_40] : memref<36x192xf32, #tpu.memory_space<vmem>>, vector<1x192xf32>
    %c0_41 = arith.constant 0 : index
    %c768 = arith.constant 768 : index
    %51 = vector.load %arg13[%c0_41, %c768] : memref<50x1152xf32, #tpu.memory_space<vmem>>, vector<1x192xf32>
    tpu.vector_store %arg13[%c0_41, %c768], %50 {strides = array<i32>} : memref<50x1152xf32, #tpu.memory_space<vmem>>, vector<1x192xf32>,
    %c5 = arith.constant 5 : index
    %c0_42 = arith.constant 0 : index
    %52 = vector.load %arg12[%c5, %c0_42] : memref<36x192xf32, #tpu.memory_space<vmem>>, vector<1x192xf32>
    %c0_43 = arith.constant 0 : index
    %c960 = arith.constant 960 : index
    %53 = vector.load %arg13[%c0_43, %c960] : memref<50x1152xf32, #tpu.memory_space<vmem>>, vector<1x192xf32>
    tpu.vector_store %arg13[%c0_43, %c960], %52 {strides = array<i32>} : memref<50x1152xf32, #tpu.memory_space<vmem>>, vector<1x192xf32>,
    %c18 = arith.constant 18 : index
    %c0_44 = arith.constant 0 : index
    %54 = vector.load %arg12[%c18, %c0_44] : memref<36x192xf32, #tpu.memory_space<vmem>>, vector<1x192xf32>
    %c1_45 = arith.constant 1 : index
    %c0_46 = arith.constant 0 : index
    %55 = vector.load %arg13[%c1_45, %c0_46] : memref<50x1152xf32, #tpu.memory_space<vmem>>, vector<1x192xf32>
    tpu.vector_store %arg13[%c1_45, %c0_46], %54 {strides = array<i32>} : memref<50x1152xf32, #tpu.memory_space<vmem>>, vector<1x192xf32>,
    %c19 = arith.constant 19 : index
    %c0_47 = arith.constant 0 : index
    %56 = vector.load %arg12[%c19, %c0_47] : memref<36x192xf32, #tpu.memory_space<vmem>>, vector<1x192xf32>
    %c1_48 = arith.constant 1 : index
    %c192_49 = arith.constant 192 : index
    %57 = vector.load %arg13[%c1_48, %c192_49] : memref<50x1152xf32, #tpu.memory_space<vmem>>, vector<1x192xf32>
    tpu.vector_store %arg13[%c1_48, %c192_49], %56 {strides = array<i32>} : memref<50x1152xf32, #tpu.memory_space<vmem>>, vector<1x192xf32>,
    %c20 = arith.constant 20 : index
    %c0_50 = arith.constant 0 : index
    %58 = vector.load %arg12[%c20, %c0_50] : memref<36x192xf32, #tpu.memory_space<vmem>>, vector<1x192xf32>
    %c1_51 = arith.constant 1 : index
    %c384_52 = arith.constant 384 : index
    %59 = vector.load %arg13[%c1_51, %c384_52] : memref<50x1152xf32, #tpu.memory_space<vmem>>, vector<1x192xf32>
    tpu.vector_store %arg13[%c1_51, %c384_52], %58 {strides = array<i32>} : memref<50x1152xf32, #tpu.memory_space<vmem>>, vector<1x192xf32>,
    %c21 = arith.constant 21 : index
    %c0_53 = arith.constant 0 : index
    %60 = vector.load %arg12[%c21, %c0_53] : memref<36x192xf32, #tpu.memory_space<vmem>>, vector<1x192xf32>
    %c1_54 = arith.constant 1 : index
    %c576_55 = arith.constant 576 : index
    %61 = vector.load %arg13[%c1_54, %c576_55] : memref<50x1152xf32, #tpu.memory_space<vmem>>, vector<1x192xf32>
    tpu.vector_store %arg13[%c1_54, %c576_55], %60 {strides = array<i32>} : memref<50x1152xf32, #tpu.memory_space<vmem>>, vector<1x192xf32>,
    %c22 = arith.constant 22 : index
    %c0_56 = arith.constant 0 : index
    %62 = vector.load %arg12[%c22, %c0_56] : memref<36x192xf32, #tpu.memory_space<vmem>>, vector<1x192xf32>
    %c1_57 = arith.constant 1 : index
    %c768_58 = arith.constant 768 : index
    %63 = vector.load %arg13[%c1_57, %c768_58] : memref<50x1152xf32, #tpu.memory_space<vmem>>, vector<1x192xf32>
    tpu.vector_store %arg13[%c1_57, %c768_58], %62 {strides = array<i32>} : memref<50x1152xf32, #tpu.memory_space<vmem>>, vector<1x192xf32>,
    %c23 = arith.constant 23 : index
    %c0_59 = arith.constant 0 : index
    %64 = vector.load %arg12[%c23, %c0_59] : memref<36x192xf32, #tpu.memory_space<vmem>>, vector<1x192xf32>
    %c1_60 = arith.constant 1 : index
    %c960_61 = arith.constant 960 : index
    %65 = vector.load %arg13[%c1_60, %c960_61] : memref<50x1152xf32, #tpu.memory_space<vmem>>, vector<1x192xf32>
    tpu.vector_store %arg13[%c1_60, %c960_61], %64 {strides = array<i32>} : memref<50x1152xf32, #tpu.memory_space<vmem>>, vector<1x192xf32>,
    %c3_62 = arith.constant 3 : index
    %c0_63 = arith.constant 0 : index
    %66 = vector.load %arg12[%c3_62, %c0_63] : memref<36x192xf32, #tpu.memory_space<vmem>>, vector<1x192xf32>
    %c10 = arith.constant 10 : index
    %c0_64 = arith.constant 0 : index
    %67 = vector.load %arg13[%c10, %c0_64] : memref<50x1152xf32, #tpu.memory_space<vmem>>, vector<1x192xf32>
    tpu.vector_store %arg13[%c10, %c0_64], %66 {strides = array<i32>} : memref<50x1152xf32, #tpu.memory_space<vmem>>, vector<1x192xf32>,
    %c4_65 = arith.constant 4 : index
    %c0_66 = arith.constant 0 : index
    %68 = vector.load %arg12[%c4_65, %c0_66] : memref<36x192xf32, #tpu.memory_space<vmem>>, vector<1x192xf32>
    %c10_67 = arith.constant 10 : index
    %c192_68 = arith.constant 192 : index
    %69 = vector.load %arg13[%c10_67, %c192_68] : memref<50x1152xf32, #tpu.memory_space<vmem>>, vector<1x192xf32>
    tpu.vector_store %arg13[%c10_67, %c192_68], %68 {strides = array<i32>} : memref<50x1152xf32, #tpu.memory_space<vmem>>, vector<1x192xf32>,
    %c5_69 = arith.constant 5 : index
    %c0_70 = arith.constant 0 : index
    %70 = vector.load %arg12[%c5_69, %c0_70] : memref<36x192xf32, #tpu.memory_space<vmem>>, vector<1x192xf32>
    %c10_71 = arith.constant 10 : index
    %c384_72 = arith.constant 384 : index
    %71 = vector.load %arg13[%c10_71, %c384_72] : memref<50x1152xf32, #tpu.memory_space<vmem>>, vector<1x192xf32>
    tpu.vector_store %arg13[%c10_71, %c384_72], %70 {strides = array<i32>} : memref<50x1152xf32, #tpu.memory_space<vmem>>, vector<1x192xf32>,
    %c6 = arith.constant 6 : index
    %c0_73 = arith.constant 0 : index
    %72 = vector.load %arg12[%c6, %c0_73] : memref<36x192xf32, #tpu.memory_space<vmem>>, vector<1x192xf32>
    %c10_74 = arith.constant 10 : index
    %c576_75 = arith.constant 576 : index
    %73 = vector.load %arg13[%c10_74, %c576_75] : memref<50x1152xf32, #tpu.memory_space<vmem>>, vector<1x192xf32>
    tpu.vector_store %arg13[%c10_74, %c576_75], %72 {strides = array<i32>} : memref<50x1152xf32, #tpu.memory_space<vmem>>, vector<1x192xf32>,
    %c7 = arith.constant 7 : index
    %c0_76 = arith.constant 0 : index
    %74 = vector.load %arg12[%c7, %c0_76] : memref<36x192xf32, #tpu.memory_space<vmem>>, vector<1x192xf32>
    %c10_77 = arith.constant 10 : index
    %c768_78 = arith.constant 768 : index
    %75 = vector.load %arg13[%c10_77, %c768_78] : memref<50x1152xf32, #tpu.memory_space<vmem>>, vector<1x192xf32>
    tpu.vector_store %arg13[%c10_77, %c768_78], %74 {strides = array<i32>} : memref<50x1152xf32, #tpu.memory_space<vmem>>, vector<1x192xf32>,
    %c8 = arith.constant 8 : index
    %c0_79 = arith.constant 0 : index
    %76 = vector.load %arg12[%c8, %c0_79] : memref<36x192xf32, #tpu.memory_space<vmem>>, vector<1x192xf32>
    %c10_80 = arith.constant 10 : index
    %c960_81 = arith.constant 960 : index
    %77 = vector.load %arg13[%c10_80, %c960_81] : memref<50x1152xf32, #tpu.memory_space<vmem>>, vector<1x192xf32>
    tpu.vector_store %arg13[%c10_80, %c960_81], %76 {strides = array<i32>} : memref<50x1152xf32, #tpu.memory_space<vmem>>, vector<1x192xf32>,
    %c21_82 = arith.constant 21 : index
    %c0_83 = arith.constant 0 : index
    %78 = vector.load %arg12[%c21_82, %c0_83] : memref<36x192xf32, #tpu.memory_space<vmem>>, vector<1x192xf32>
    %c11 = arith.constant 11 : index
    %c0_84 = arith.constant 0 : index
    %79 = vector.load %arg13[%c11, %c0_84] : memref<50x1152xf32, #tpu.memory_space<vmem>>, vector<1x192xf32>
    tpu.vector_store %arg13[%c11, %c0_84], %78 {strides = array<i32>} : memref<50x1152xf32, #tpu.memory_space<vmem>>, vector<1x192xf32>,
    %c22_85 = arith.constant 22 : index
    %c0_86 = arith.constant 0 : index
    %80 = vector.load %arg12[%c22_85, %c0_86] : memref<36x192xf32, #tpu.memory_space<vmem>>, vector<1x192xf32>
    %c11_87 = arith.constant 11 : index
    %c192_88 = arith.constant 192 : index
    %81 = vector.load %arg13[%c11_87, %c192_88] : memref<50x1152xf32, #tpu.memory_space<vmem>>, vector<1x192xf32>
    tpu.vector_store %arg13[%c11_87, %c192_88], %80 {strides = array<i32>} : memref<50x1152xf32, #tpu.memory_space<vmem>>, vector<1x192xf32>,
    %c23_89 = arith.constant 23 : index
    %c0_90 = arith.constant 0 : index
    %82 = vector.load %arg12[%c23_89, %c0_90] : memref<36x192xf32, #tpu.memory_space<vmem>>, vector<1x192xf32>
    %c11_91 = arith.constant 11 : index
    %c384_92 = arith.constant 384 : index
    %83 = vector.load %arg13[%c11_91, %c384_92] : memref<50x1152xf32, #tpu.memory_space<vmem>>, vector<1x192xf32>
    tpu.vector_store %arg13[%c11_91, %c384_92], %82 {strides = array<i32>} : memref<50x1152xf32, #tpu.memory_space<vmem>>, vector<1x192xf32>,
    %c24 = arith.constant 24 : index
    %c0_93 = arith.constant 0 : index
    %84 = vector.load %arg12[%c24, %c0_93] : memref<36x192xf32, #tpu.memory_space<vmem>>, vector<1x192xf32>
    %c11_94 = arith.constant 11 : index
    %c576_95 = arith.constant 576 : index
    %85 = vector.load %arg13[%c11_94, %c576_95] : memref<50x1152xf32, #tpu.memory_space<vmem>>, vector<1x192xf32>
    tpu.vector_store %arg13[%c11_94, %c576_95], %84 {strides = array<i32>} : memref<50x1152xf32, #tpu.memory_space<vmem>>, vector<1x192xf32>,
    %c25 = arith.constant 25 : index
    %c0_96 = arith.constant 0 : index
    %86 = vector.load %arg12[%c25, %c0_96] : memref<36x192xf32, #tpu.memory_space<vmem>>, vector<1x192xf32>
    %c11_97 = arith.constant 11 : index
    %c768_98 = arith.constant 768 : index
    %87 = vector.load %arg13[%c11_97, %c768_98] : memref<50x1152xf32, #tpu.memory_space<vmem>>, vector<1x192xf32>
    tpu.vector_store %arg13[%c11_97, %c768_98], %86 {strides = array<i32>} : memref<50x1152xf32, #tpu.memory_space<vmem>>, vector<1x192xf32>,
    %c26 = arith.constant 26 : index
    %c0_99 = arith.constant 0 : index
    %88 = vector.load %arg12[%c26, %c0_99] : memref<36x192xf32, #tpu.memory_space<vmem>>, vector<1x192xf32>
    %c11_100 = arith.constant 11 : index
    %c960_101 = arith.constant 960 : index
    %89 = vector.load %arg13[%c11_100, %c960_101] : memref<50x1152xf32, #tpu.memory_space<vmem>>, vector<1x192xf32>
    tpu.vector_store %arg13[%c11_100, %c960_101], %88 {strides = array<i32>} : memref<50x1152xf32, #tpu.memory_space<vmem>>, vector<1x192xf32>,
    %c6_102 = arith.constant 6 : index
    %c0_103 = arith.constant 0 : index
    %90 = vector.load %arg12[%c6_102, %c0_103] : memref<36x192xf32, #tpu.memory_space<vmem>>, vector<1x192xf32>
    %c20_104 = arith.constant 20 : index
    %c0_105 = arith.constant 0 : index
    %91 = vector.load %arg13[%c20_104, %c0_105] : memref<50x1152xf32, #tpu.memory_space<vmem>>, vector<1x192xf32>
    tpu.vector_store %arg13[%c20_104, %c0_105], %90 {strides = array<i32>} : memref<50x1152xf32, #tpu.memory_space<vmem>>, vector<1x192xf32>,
    %c7_106 = arith.constant 7 : index
    %c0_107 = arith.constant 0 : index
    %92 = vector.load %arg12[%c7_106, %c0_107] : memref<36x192xf32, #tpu.memory_space<vmem>>, vector<1x192xf32>
    %c20_108 = arith.constant 20 : index
    %c192_109 = arith.constant 192 : index
    %93 = vector.load %arg13[%c20_108, %c192_109] : memref<50x1152xf32, #tpu.memory_space<vmem>>, vector<1x192xf32>
    tpu.vector_store %arg13[%c20_108, %c192_109], %92 {strides = array<i32>} : memref<50x1152xf32, #tpu.memory_space<vmem>>, vector<1x192xf32>,
    %c8_110 = arith.constant 8 : index
    %c0_111 = arith.constant 0 : index
    %94 = vector.load %arg12[%c8_110, %c0_111] : memref<36x192xf32, #tpu.memory_space<vmem>>, vector<1x192xf32>
    %c20_112 = arith.constant 20 : index
    %c384_113 = arith.constant 384 : index
    %95 = vector.load %arg13[%c20_112, %c384_113] : memref<50x1152xf32, #tpu.memory_space<vmem>>, vector<1x192xf32>
    tpu.vector_store %arg13[%c20_112, %c384_113], %94 {strides = array<i32>} : memref<50x1152xf32, #tpu.memory_space<vmem>>, vector<1x192xf32>,
    %c9 = arith.constant 9 : index
    %c0_114 = arith.constant 0 : index
    %96 = vector.load %arg12[%c9, %c0_114] : memref<36x192xf32, #tpu.memory_space<vmem>>, vector<1x192xf32>
    %c20_115 = arith.constant 20 : index
    %c576_116 = arith.constant 576 : index
    %97 = vector.load %arg13[%c20_115, %c576_116] : memref<50x1152xf32, #tpu.memory_space<vmem>>, vector<1x192xf32>
    tpu.vector_store %arg13[%c20_115, %c576_116], %96 {strides = array<i32>} : memref<50x1152xf32, #tpu.memory_space<vmem>>, vector<1x192xf32>,
    %c10_117 = arith.constant 10 : index
    %c0_118 = arith.constant 0 : index
    %98 = vector.load %arg12[%c10_117, %c0_118] : memref<36x192xf32, #tpu.memory_space<vmem>>, vector<1x192xf32>
    %c20_119 = arith.constant 20 : index
    %c768_120 = arith.constant 768 : index
    %99 = vector.load %arg13[%c20_119, %c768_120] : memref<50x1152xf32, #tpu.memory_space<vmem>>, vector<1x192xf32>
    tpu.vector_store %arg13[%c20_119, %c768_120], %98 {strides = array<i32>} : memref<50x1152xf32, #tpu.memory_space<vmem>>, vector<1x192xf32>,
    %c11_121 = arith.constant 11 : index
    %c0_122 = arith.constant 0 : index
    %100 = vector.load %arg12[%c11_121, %c0_122] : memref<36x192xf32, #tpu.memory_space<vmem>>, vector<1x192xf32>
    %c20_123 = arith.constant 20 : index
    %c960_124 = arith.constant 960 : index
    %101 = vector.load %arg13[%c20_123, %c960_124] : memref<50x1152xf32, #tpu.memory_space<vmem>>, vector<1x192xf32>
    tpu.vector_store %arg13[%c20_123, %c960_124], %100 {strides = array<i32>} : memref<50x1152xf32, #tpu.memory_space<vmem>>, vector<1x192xf32>,
    %c24_125 = arith.constant 24 : index
    %c0_126 = arith.constant 0 : index
    %102 = vector.load %arg12[%c24_125, %c0_126] : memref<36x192xf32, #tpu.memory_space<vmem>>, vector<1x192xf32>
    %c21_127 = arith.constant 21 : index
    %c0_128 = arith.constant 0 : index
    %103 = vector.load %arg13[%c21_127, %c0_128] : memref<50x1152xf32, #tpu.memory_space<vmem>>, vector<1x192xf32>
    tpu.vector_store %arg13[%c21_127, %c0_128], %102 {strides = array<i32>} : memref<50x1152xf32, #tpu.memory_space<vmem>>, vector<1x192xf32>,
    %c25_129 = arith.constant 25 : index
    %c0_130 = arith.constant 0 : index
    %104 = vector.load %arg12[%c25_129, %c0_130] : memref<36x192xf32, #tpu.memory_space<vmem>>, vector<1x192xf32>
    %c21_131 = arith.constant 21 : index
    %c192_132 = arith.constant 192 : index
    %105 = vector.load %arg13[%c21_131, %c192_132] : memref<50x1152xf32, #tpu.memory_space<vmem>>, vector<1x192xf32>
    tpu.vector_store %arg13[%c21_131, %c192_132], %104 {strides = array<i32>} : memref<50x1152xf32, #tpu.memory_space<vmem>>, vector<1x192xf32>,
    %c26_133 = arith.constant 26 : index
    %c0_134 = arith.constant 0 : index
    %106 = vector.load %arg12[%c26_133, %c0_134] : memref<36x192xf32, #tpu.memory_space<vmem>>, vector<1x192xf32>
    %c21_135 = arith.constant 21 : index
    %c384_136 = arith.constant 384 : index
    %107 = vector.load %arg13[%c21_135, %c384_136] : memref<50x1152xf32, #tpu.memory_space<vmem>>, vector<1x192xf32>
    tpu.vector_store %arg13[%c21_135, %c384_136], %106 {strides = array<i32>} : memref<50x1152xf32, #tpu.memory_space<vmem>>, vector<1x192xf32>,
    %c27 = arith.constant 27 : index
    %c0_137 = arith.constant 0 : index
    %108 = vector.load %arg12[%c27, %c0_137] : memref<36x192xf32, #tpu.memory_space<vmem>>, vector<1x192xf32>
    %c21_138 = arith.constant 21 : index
    %c576_139 = arith.constant 576 : index
    %109 = vector.load %arg13[%c21_138, %c576_139] : memref<50x1152xf32, #tpu.memory_space<vmem>>, vector<1x192xf32>
    tpu.vector_store %arg13[%c21_138, %c576_139], %108 {strides = array<i32>} : memref<50x1152xf32, #tpu.memory_space<vmem>>, vector<1x192xf32>,
    %c28 = arith.constant 28 : index
    %c0_140 = arith.constant 0 : index
    %110 = vector.load %arg12[%c28, %c0_140] : memref<36x192xf32, #tpu.memory_space<vmem>>, vector<1x192xf32>
    %c21_141 = arith.constant 21 : index
    %c768_142 = arith.constant 768 : index
    %111 = vector.load %arg13[%c21_141, %c768_142] : memref<50x1152xf32, #tpu.memory_space<vmem>>, vector<1x192xf32>
    tpu.vector_store %arg13[%c21_141, %c768_142], %110 {strides = array<i32>} : memref<50x1152xf32, #tpu.memory_space<vmem>>, vector<1x192xf32>,
    %c29 = arith.constant 29 : index
    %c0_143 = arith.constant 0 : index
    %112 = vector.load %arg12[%c29, %c0_143] : memref<36x192xf32, #tpu.memory_space<vmem>>, vector<1x192xf32>
    %c21_144 = arith.constant 21 : index
    %c960_145 = arith.constant 960 : index
    %113 = vector.load %arg13[%c21_144, %c960_145] : memref<50x1152xf32, #tpu.memory_space<vmem>>, vector<1x192xf32>
    tpu.vector_store %arg13[%c21_144, %c960_145], %112 {strides = array<i32>} : memref<50x1152xf32, #tpu.memory_space<vmem>>, vector<1x192xf32>,
    %c9_146 = arith.constant 9 : index
    %c0_147 = arith.constant 0 : index
    %114 = vector.load %arg12[%c9_146, %c0_147] : memref<36x192xf32, #tpu.memory_space<vmem>>, vector<1x192xf32>
    %c30 = arith.constant 30 : index
    %c0_148 = arith.constant 0 : index
    %115 = vector.load %arg13[%c30, %c0_148] : memref<50x1152xf32, #tpu.memory_space<vmem>>, vector<1x192xf32>
    tpu.vector_store %arg13[%c30, %c0_148], %114 {strides = array<i32>} : memref<50x1152xf32, #tpu.memory_space<vmem>>, vector<1x192xf32>,
    %c10_149 = arith.constant 10 : index
    %c0_150 = arith.constant 0 : index
    %116 = vector.load %arg12[%c10_149, %c0_150] : memref<36x192xf32, #tpu.memory_space<vmem>>, vector<1x192xf32>
    %c30_151 = arith.constant 30 : index
    %c192_152 = arith.constant 192 : index
    %117 = vector.load %arg13[%c30_151, %c192_152] : memref<50x1152xf32, #tpu.memory_space<vmem>>, vector<1x192xf32>
    tpu.vector_store %arg13[%c30_151, %c192_152], %116 {strides = array<i32>} : memref<50x1152xf32, #tpu.memory_space<vmem>>, vector<1x192xf32>,
    %c11_153 = arith.constant 11 : index
    %c0_154 = arith.constant 0 : index
    %118 = vector.load %arg12[%c11_153, %c0_154] : memref<36x192xf32, #tpu.memory_space<vmem>>, vector<1x192xf32>
    %c30_155 = arith.constant 30 : index
    %c384_156 = arith.constant 384 : index
    %119 = vector.load %arg13[%c30_155, %c384_156] : memref<50x1152xf32, #tpu.memory_space<vmem>>, vector<1x192xf32>
    tpu.vector_store %arg13[%c30_155, %c384_156], %118 {strides = array<i32>} : memref<50x1152xf32, #tpu.memory_space<vmem>>, vector<1x192xf32>,
    %c12 = arith.constant 12 : index
    %c0_157 = arith.constant 0 : index
    %120 = vector.load %arg12[%c12, %c0_157] : memref<36x192xf32, #tpu.memory_space<vmem>>, vector<1x192xf32>
    %c30_158 = arith.constant 30 : index
    %c576_159 = arith.constant 576 : index
    %121 = vector.load %arg13[%c30_158, %c576_159] : memref<50x1152xf32, #tpu.memory_space<vmem>>, vector<1x192xf32>
    tpu.vector_store %arg13[%c30_158, %c576_159], %120 {strides = array<i32>} : memref<50x1152xf32, #tpu.memory_space<vmem>>, vector<1x192xf32>,
    %c13 = arith.constant 13 : index
    %c0_160 = arith.constant 0 : index
    %122 = vector.load %arg12[%c13, %c0_160] : memref<36x192xf32, #tpu.memory_space<vmem>>, vector<1x192xf32>
    %c30_161 = arith.constant 30 : index
    %c768_162 = arith.constant 768 : index
    %123 = vector.load %arg13[%c30_161, %c768_162] : memref<50x1152xf32, #tpu.memory_space<vmem>>, vector<1x192xf32>
    tpu.vector_store %arg13[%c30_161, %c768_162], %122 {strides = array<i32>} : memref<50x1152xf32, #tpu.memory_space<vmem>>, vector<1x192xf32>,
    %c14 = arith.constant 14 : index
    %c0_163 = arith.constant 0 : index
    %124 = vector.load %arg12[%c14, %c0_163] : memref<36x192xf32, #tpu.memory_space<vmem>>, vector<1x192xf32>
    %c30_164 = arith.constant 30 : index
    %c960_165 = arith.constant 960 : index
    %125 = vector.load %arg13[%c30_164, %c960_165] : memref<50x1152xf32, #tpu.memory_space<vmem>>, vector<1x192xf32>
    tpu.vector_store %arg13[%c30_164, %c960_165], %124 {strides = array<i32>} : memref<50x1152xf32, #tpu.memory_space<vmem>>, vector<1x192xf32>,
    %c27_166 = arith.constant 27 : index
    %c0_167 = arith.constant 0 : index
    %126 = vector.load %arg12[%c27_166, %c0_167] : memref<36x192xf32, #tpu.memory_space<vmem>>, vector<1x192xf32>
    %c31 = arith.constant 31 : index
    %c0_168 = arith.constant 0 : index
    %127 = vector.load %arg13[%c31, %c0_168] : memref<50x1152xf32, #tpu.memory_space<vmem>>, vector<1x192xf32>
    tpu.vector_store %arg13[%c31, %c0_168], %126 {strides = array<i32>} : memref<50x1152xf32, #tpu.memory_space<vmem>>, vector<1x192xf32>,
    %c28_169 = arith.constant 28 : index
    %c0_170 = arith.constant 0 : index
    %128 = vector.load %arg12[%c28_169, %c0_170] : memref<36x192xf32, #tpu.memory_space<vmem>>, vector<1x192xf32>
    %c31_171 = arith.constant 31 : index
    %c192_172 = arith.constant 192 : index
    %129 = vector.load %arg13[%c31_171, %c192_172] : memref<50x1152xf32, #tpu.memory_space<vmem>>, vector<1x192xf32>
    tpu.vector_store %arg13[%c31_171, %c192_172], %128 {strides = array<i32>} : memref<50x1152xf32, #tpu.memory_space<vmem>>, vector<1x192xf32>,
    %c29_173 = arith.constant 29 : index
    %c0_174 = arith.constant 0 : index
    %130 = vector.load %arg12[%c29_173, %c0_174] : memref<36x192xf32, #tpu.memory_space<vmem>>, vector<1x192xf32>
    %c31_175 = arith.constant 31 : index
    %c384_176 = arith.constant 384 : index
    %131 = vector.load %arg13[%c31_175, %c384_176] : memref<50x1152xf32, #tpu.memory_space<vmem>>, vector<1x192xf32>
    tpu.vector_store %arg13[%c31_175, %c384_176], %130 {strides = array<i32>} : memref<50x1152xf32, #tpu.memory_space<vmem>>, vector<1x192xf32>,
    %c30_177 = arith.constant 30 : index
    %c0_178 = arith.constant 0 : index
    %132 = vector.load %arg12[%c30_177, %c0_178] : memref<36x192xf32, #tpu.memory_space<vmem>>, vector<1x192xf32>
    %c31_179 = arith.constant 31 : index
    %c576_180 = arith.constant 576 : index
    %133 = vector.load %arg13[%c31_179, %c576_180] : memref<50x1152xf32, #tpu.memory_space<vmem>>, vector<1x192xf32>
    tpu.vector_store %arg13[%c31_179, %c576_180], %132 {strides = array<i32>} : memref<50x1152xf32, #tpu.memory_space<vmem>>, vector<1x192xf32>,
    %c31_181 = arith.constant 31 : index
    %c0_182 = arith.constant 0 : index
    %134 = vector.load %arg12[%c31_181, %c0_182] : memref<36x192xf32, #tpu.memory_space<vmem>>, vector<1x192xf32>
    %c31_183 = arith.constant 31 : index
    %c768_184 = arith.constant 768 : index
    %135 = vector.load %arg13[%c31_183, %c768_184] : memref<50x1152xf32, #tpu.memory_space<vmem>>, vector<1x192xf32>
    tpu.vector_store %arg13[%c31_183, %c768_184], %134 {strides = array<i32>} : memref<50x1152xf32, #tpu.memory_space<vmem>>, vector<1x192xf32>,
    %c32_185 = arith.constant 32 : index
    %c0_186 = arith.constant 0 : index
    %136 = vector.load %arg12[%c32_185, %c0_186] : memref<36x192xf32, #tpu.memory_space<vmem>>, vector<1x192xf32>
    %c31_187 = arith.constant 31 : index
    %c960_188 = arith.constant 960 : index
    %137 = vector.load %arg13[%c31_187, %c960_188] : memref<50x1152xf32, #tpu.memory_space<vmem>>, vector<1x192xf32>
    tpu.vector_store %arg13[%c31_187, %c960_188], %136 {strides = array<i32>} : memref<50x1152xf32, #tpu.memory_space<vmem>>, vector<1x192xf32>,
    %c12_189 = arith.constant 12 : index
    %c0_190 = arith.constant 0 : index
    %138 = vector.load %arg12[%c12_189, %c0_190] : memref<36x192xf32, #tpu.memory_space<vmem>>, vector<1x192xf32>
    %c40 = arith.constant 40 : index
    %c0_191 = arith.constant 0 : index
    %139 = vector.load %arg13[%c40, %c0_191] : memref<50x1152xf32, #tpu.memory_space<vmem>>, vector<1x192xf32>
    tpu.vector_store %arg13[%c40, %c0_191], %138 {strides = array<i32>} : memref<50x1152xf32, #tpu.memory_space<vmem>>, vector<1x192xf32>,
    %c13_192 = arith.constant 13 : index
    %c0_193 = arith.constant 0 : index
    %140 = vector.load %arg12[%c13_192, %c0_193] : memref<36x192xf32, #tpu.memory_space<vmem>>, vector<1x192xf32>
    %c40_194 = arith.constant 40 : index
    %c192_195 = arith.constant 192 : index
    %141 = vector.load %arg13[%c40_194, %c192_195] : memref<50x1152xf32, #tpu.memory_space<vmem>>, vector<1x192xf32>
    tpu.vector_store %arg13[%c40_194, %c192_195], %140 {strides = array<i32>} : memref<50x1152xf32, #tpu.memory_space<vmem>>, vector<1x192xf32>,
    %c14_196 = arith.constant 14 : index
    %c0_197 = arith.constant 0 : index
    %142 = vector.load %arg12[%c14_196, %c0_197] : memref<36x192xf32, #tpu.memory_space<vmem>>, vector<1x192xf32>
    %c40_198 = arith.constant 40 : index
    %c384_199 = arith.constant 384 : index
    %143 = vector.load %arg13[%c40_198, %c384_199] : memref<50x1152xf32, #tpu.memory_space<vmem>>, vector<1x192xf32>
    tpu.vector_store %arg13[%c40_198, %c384_199], %142 {strides = array<i32>} : memref<50x1152xf32, #tpu.memory_space<vmem>>, vector<1x192xf32>,
    %c15 = arith.constant 15 : index
    %c0_200 = arith.constant 0 : index
    %144 = vector.load %arg12[%c15, %c0_200] : memref<36x192xf32, #tpu.memory_space<vmem>>, vector<1x192xf32>
    %c40_201 = arith.constant 40 : index
    %c576_202 = arith.constant 576 : index
    %145 = vector.load %arg13[%c40_201, %c576_202] : memref<50x1152xf32, #tpu.memory_space<vmem>>, vector<1x192xf32>
    tpu.vector_store %arg13[%c40_201, %c576_202], %144 {strides = array<i32>} : memref<50x1152xf32, #tpu.memory_space<vmem>>, vector<1x192xf32>,
    %c16 = arith.constant 16 : index
    %c0_203 = arith.constant 0 : index
    %146 = vector.load %arg12[%c16, %c0_203] : memref<36x192xf32, #tpu.memory_space<vmem>>, vector<1x192xf32>
    %c40_204 = arith.constant 40 : index
    %c768_205 = arith.constant 768 : index
    %147 = vector.load %arg13[%c40_204, %c768_205] : memref<50x1152xf32, #tpu.memory_space<vmem>>, vector<1x192xf32>
    tpu.vector_store %arg13[%c40_204, %c768_205], %146 {strides = array<i32>} : memref<50x1152xf32, #tpu.memory_space<vmem>>, vector<1x192xf32>,
    %c17 = arith.constant 17 : index
    %c0_206 = arith.constant 0 : index
    %148 = vector.load %arg12[%c17, %c0_206] : memref<36x192xf32, #tpu.memory_space<vmem>>, vector<1x192xf32>
    %c40_207 = arith.constant 40 : index
    %c960_208 = arith.constant 960 : index
    %149 = vector.load %arg13[%c40_207, %c960_208] : memref<50x1152xf32, #tpu.memory_space<vmem>>, vector<1x192xf32>
    tpu.vector_store %arg13[%c40_207, %c960_208], %148 {strides = array<i32>} : memref<50x1152xf32, #tpu.memory_space<vmem>>, vector<1x192xf32>,
    %c30_209 = arith.constant 30 : index
    %c0_210 = arith.constant 0 : index
    %150 = vector.load %arg12[%c30_209, %c0_210] : memref<36x192xf32, #tpu.memory_space<vmem>>, vector<1x192xf32>
    %c41 = arith.constant 41 : index
    %c0_211 = arith.constant 0 : index
    %151 = vector.load %arg13[%c41, %c0_211] : memref<50x1152xf32, #tpu.memory_space<vmem>>, vector<1x192xf32>
    tpu.vector_store %arg13[%c41, %c0_211], %150 {strides = array<i32>} : memref<50x1152xf32, #tpu.memory_space<vmem>>, vector<1x192xf32>,
    %c31_212 = arith.constant 31 : index
    %c0_213 = arith.constant 0 : index
    %152 = vector.load %arg12[%c31_212, %c0_213] : memref<36x192xf32, #tpu.memory_space<vmem>>, vector<1x192xf32>
    %c41_214 = arith.constant 41 : index
    %c192_215 = arith.constant 192 : index
    %153 = vector.load %arg13[%c41_214, %c192_215] : memref<50x1152xf32, #tpu.memory_space<vmem>>, vector<1x192xf32>
    tpu.vector_store %arg13[%c41_214, %c192_215], %152 {strides = array<i32>} : memref<50x1152xf32, #tpu.memory_space<vmem>>, vector<1x192xf32>,
    %c32_216 = arith.constant 32 : index
    %c0_217 = arith.constant 0 : index
    %154 = vector.load %arg12[%c32_216, %c0_217] : memref<36x192xf32, #tpu.memory_space<vmem>>, vector<1x192xf32>
    %c41_218 = arith.constant 41 : index
    %c384_219 = arith.constant 384 : index
    %155 = vector.load %arg13[%c41_218, %c384_219] : memref<50x1152xf32, #tpu.memory_space<vmem>>, vector<1x192xf32>
    tpu.vector_store %arg13[%c41_218, %c384_219], %154 {strides = array<i32>} : memref<50x1152xf32, #tpu.memory_space<vmem>>, vector<1x192xf32>,
    %c33 = arith.constant 33 : index
    %c0_220 = arith.constant 0 : index
    %156 = vector.load %arg12[%c33, %c0_220] : memref<36x192xf32, #tpu.memory_space<vmem>>, vector<1x192xf32>
    %c41_221 = arith.constant 41 : index
    %c576_222 = arith.constant 576 : index
    %157 = vector.load %arg13[%c41_221, %c576_222] : memref<50x1152xf32, #tpu.memory_space<vmem>>, vector<1x192xf32>
    tpu.vector_store %arg13[%c41_221, %c576_222], %156 {strides = array<i32>} : memref<50x1152xf32, #tpu.memory_space<vmem>>, vector<1x192xf32>,
    %c34 = arith.constant 34 : index
    %c0_223 = arith.constant 0 : index
    %158 = vector.load %arg12[%c34, %c0_223] : memref<36x192xf32, #tpu.memory_space<vmem>>, vector<1x192xf32>
    %c41_224 = arith.constant 41 : index
    %c768_225 = arith.constant 768 : index
    %159 = vector.load %arg13[%c41_224, %c768_225] : memref<50x1152xf32, #tpu.memory_space<vmem>>, vector<1x192xf32>
    tpu.vector_store %arg13[%c41_224, %c768_225], %158 {strides = array<i32>} : memref<50x1152xf32, #tpu.memory_space<vmem>>, vector<1x192xf32>,
    %c35 = arith.constant 35 : index
    %c0_226 = arith.constant 0 : index
    %160 = vector.load %arg12[%c35, %c0_226] : memref<36x192xf32, #tpu.memory_space<vmem>>, vector<1x192xf32>
    %c41_227 = arith.constant 41 : index
    %c960_228 = arith.constant 960 : index
    %161 = vector.load %arg13[%c41_227, %c960_228] : memref<50x1152xf32, #tpu.memory_space<vmem>>, vector<1x192xf32>
    tpu.vector_store %arg13[%c41_227, %c960_228], %160 {strides = array<i32>} : memref<50x1152xf32, #tpu.memory_space<vmem>>, vector<1x192xf32>,
    %c108_229 = arith.constant 108 : index
    %c0_230 = arith.constant 0 : index
    %162 = vector.load %arg11[%c108_229, %c0_230] : memref<648x32xf32, #tpu.memory_space<vmem>>, vector<36x32xf32>
    %c0_231 = arith.constant 0 : index
    %c0_232 = arith.constant 0 : index
    %163 = vector.load %arg12[%c0_231, %c0_232] : memref<36x192xf32, #tpu.memory_space<vmem>>, vector<36x32xf32>
    tpu.vector_store %arg12[%c0_231, %c0_232], %162 {strides = array<i32>} : memref<36x192xf32, #tpu.memory_space<vmem>>, vector<36x32xf32>,
    %c144_233 = arith.constant 144 : index
    %c0_234 = arith.constant 0 : index
    %164 = vector.load %arg11[%c144_233, %c0_234] : memref<648x32xf32, #tpu.memory_space<vmem>>, vector<36x32xf32>
    %c0_235 = arith.constant 0 : index
    %c32_236 = arith.constant 32 : index
    %165 = vector.load %arg12[%c0_235, %c32_236] : memref<36x192xf32, #tpu.memory_space<vmem>>, vector<36x32xf32>
    tpu.vector_store %arg12[%c0_235, %c32_236], %164 {strides = array<i32>} : memref<36x192xf32, #tpu.memory_space<vmem>>, vector<36x32xf32>,
    %c180_237 = arith.constant 180 : index
    %c0_238 = arith.constant 0 : index
    %166 = vector.load %arg11[%c180_237, %c0_238] : memref<648x32xf32, #tpu.memory_space<vmem>>, vector<36x32xf32>
    %c0_239 = arith.constant 0 : index
    %c64_240 = arith.constant 64 : index
    %167 = vector.load %arg12[%c0_239, %c64_240] : memref<36x192xf32, #tpu.memory_space<vmem>>, vector<36x32xf32>
    tpu.vector_store %arg12[%c0_239, %c64_240], %166 {strides = array<i32>} : memref<36x192xf32, #tpu.memory_space<vmem>>, vector<36x32xf32>,
    %c216 = arith.constant 216 : index
    %c0_241 = arith.constant 0 : index
    %168 = vector.load %arg11[%c216, %c0_241] : memref<648x32xf32, #tpu.memory_space<vmem>>, vector<36x32xf32>
    %c0_242 = arith.constant 0 : index
    %c96_243 = arith.constant 96 : index
    %169 = vector.load %arg12[%c0_242, %c96_243] : memref<36x192xf32, #tpu.memory_space<vmem>>, vector<36x32xf32>
    tpu.vector_store %arg12[%c0_242, %c96_243], %168 {strides = array<i32>} : memref<36x192xf32, #tpu.memory_space<vmem>>, vector<36x32xf32>,
    %c252 = arith.constant 252 : index
    %c0_244 = arith.constant 0 : index
    %170 = vector.load %arg11[%c252, %c0_244] : memref<648x32xf32, #tpu.memory_space<vmem>>, vector<36x32xf32>
    %c0_245 = arith.constant 0 : index
    %c128_246 = arith.constant 128 : index
    %171 = vector.load %arg12[%c0_245, %c128_246] : memref<36x192xf32, #tpu.memory_space<vmem>>, vector<36x32xf32>
    tpu.vector_store %arg12[%c0_245, %c128_246], %170 {strides = array<i32>} : memref<36x192xf32, #tpu.memory_space<vmem>>, vector<36x32xf32>,
    %c288 = arith.constant 288 : index
    %c0_247 = arith.constant 0 : index
    %172 = vector.load %arg11[%c288, %c0_247] : memref<648x32xf32, #tpu.memory_space<vmem>>, vector<36x32xf32>
    %c0_248 = arith.constant 0 : index
    %c160_249 = arith.constant 160 : index
    %173 = vector.load %arg12[%c0_248, %c160_249] : memref<36x192xf32, #tpu.memory_space<vmem>>, vector<36x32xf32>
    tpu.vector_store %arg12[%c0_248, %c160_249], %172 {strides = array<i32>} : memref<36x192xf32, #tpu.memory_space<vmem>>, vector<36x32xf32>,
    %c0_250 = arith.constant 0 : index
    %c0_251 = arith.constant 0 : index
    %174 = vector.load %arg12[%c0_250, %c0_251] : memref<36x192xf32, #tpu.memory_space<vmem>>, vector<1x192xf32>
    %c2_252 = arith.constant 2 : index
    %c0_253 = arith.constant 0 : index
    %175 = vector.load %arg13[%c2_252, %c0_253] : memref<50x1152xf32, #tpu.memory_space<vmem>>, vector<1x192xf32>
    tpu.vector_store %arg13[%c2_252, %c0_253], %174 {strides = array<i32>} : memref<50x1152xf32, #tpu.memory_space<vmem>>, vector<1x192xf32>,
    %c1_254 = arith.constant 1 : index
    %c0_255 = arith.constant 0 : index
    %176 = vector.load %arg12[%c1_254, %c0_255] : memref<36x192xf32, #tpu.memory_space<vmem>>, vector<1x192xf32>
    %c2_256 = arith.constant 2 : index
    %c192_257 = arith.constant 192 : index
    %177 = vector.load %arg13[%c2_256, %c192_257] : memref<50x1152xf32, #tpu.memory_space<vmem>>, vector<1x192xf32>
    tpu.vector_store %arg13[%c2_256, %c192_257], %176 {strides = array<i32>} : memref<50x1152xf32, #tpu.memory_space<vmem>>, vector<1x192xf32>,
    %c2_258 = arith.constant 2 : index
    %c0_259 = arith.constant 0 : index
    %178 = vector.load %arg12[%c2_258, %c0_259] : memref<36x192xf32, #tpu.memory_space<vmem>>, vector<1x192xf32>
    %c2_260 = arith.constant 2 : index
    %c384_261 = arith.constant 384 : index
    %179 = vector.load %arg13[%c2_260, %c384_261] : memref<50x1152xf32, #tpu.memory_space<vmem>>, vector<1x192xf32>
    tpu.vector_store %arg13[%c2_260, %c384_261], %178 {strides = array<i32>} : memref<50x1152xf32, #tpu.memory_space<vmem>>, vector<1x192xf32>,
    %c3_262 = arith.constant 3 : index
    %c0_263 = arith.constant 0 : index
    %180 = vector.load %arg12[%c3_262, %c0_263] : memref<36x192xf32, #tpu.memory_space<vmem>>, vector<1x192xf32>
    %c2_264 = arith.constant 2 : index
    %c576_265 = arith.constant 576 : index
    %181 = vector.load %arg13[%c2_264, %c576_265] : memref<50x1152xf32, #tpu.memory_space<vmem>>, vector<1x192xf32>
    tpu.vector_store %arg13[%c2_264, %c576_265], %180 {strides = array<i32>} : memref<50x1152xf32, #tpu.memory_space<vmem>>, vector<1x192xf32>,
    %c4_266 = arith.constant 4 : index
    %c0_267 = arith.constant 0 : index
    %182 = vector.load %arg12[%c4_266, %c0_267] : memref<36x192xf32, #tpu.memory_space<vmem>>, vector<1x192xf32>
    %c2_268 = arith.constant 2 : index
    %c768_269 = arith.constant 768 : index
    %183 = vector.load %arg13[%c2_268, %c768_269] : memref<50x1152xf32, #tpu.memory_space<vmem>>, vector<1x192xf32>
    tpu.vector_store %arg13[%c2_268, %c768_269], %182 {strides = array<i32>} : memref<50x1152xf32, #tpu.memory_space<vmem>>, vector<1x192xf32>,
    %c5_270 = arith.constant 5 : index
    %c0_271 = arith.constant 0 : index
    %184 = vector.load %arg12[%c5_270, %c0_271] : memref<36x192xf32, #tpu.memory_space<vmem>>, vector<1x192xf32>
    %c2_272 = arith.constant 2 : index
    %c960_273 = arith.constant 960 : index
    %185 = vector.load %arg13[%c2_272, %c960_273] : memref<50x1152xf32, #tpu.memory_space<vmem>>, vector<1x192xf32>
    tpu.vector_store %arg13[%c2_272, %c960_273], %184 {strides = array<i32>} : memref<50x1152xf32, #tpu.memory_space<vmem>>, vector<1x192xf32>,
    %c18_274 = arith.constant 18 : index
    %c0_275 = arith.constant 0 : index
    %186 = vector.load %arg12[%c18_274, %c0_275] : memref<36x192xf32, #tpu.memory_space<vmem>>, vector<1x192xf32>
    %c3_276 = arith.constant 3 : index
    %c0_277 = arith.constant 0 : index
    %187 = vector.load %arg13[%c3_276, %c0_277] : memref<50x1152xf32, #tpu.memory_space<vmem>>, vector<1x192xf32>
    tpu.vector_store %arg13[%c3_276, %c0_277], %186 {strides = array<i32>} : memref<50x1152xf32, #tpu.memory_space<vmem>>, vector<1x192xf32>,
    %c19_278 = arith.constant 19 : index
    %c0_279 = arith.constant 0 : index
    %188 = vector.load %arg12[%c19_278, %c0_279] : memref<36x192xf32, #tpu.memory_space<vmem>>, vector<1x192xf32>
    %c3_280 = arith.constant 3 : index
    %c192_281 = arith.constant 192 : index
    %189 = vector.load %arg13[%c3_280, %c192_281] : memref<50x1152xf32, #tpu.memory_space<vmem>>, vector<1x192xf32>
    tpu.vector_store %arg13[%c3_280, %c192_281], %188 {strides = array<i32>} : memref<50x1152xf32, #tpu.memory_space<vmem>>, vector<1x192xf32>,
    %c20_282 = arith.constant 20 : index
    %c0_283 = arith.constant 0 : index
    %190 = vector.load %arg12[%c20_282, %c0_283] : memref<36x192xf32, #tpu.memory_space<vmem>>, vector<1x192xf32>
    %c3_284 = arith.constant 3 : index
    %c384_285 = arith.constant 384 : index
    %191 = vector.load %arg13[%c3_284, %c384_285] : memref<50x1152xf32, #tpu.memory_space<vmem>>, vector<1x192xf32>
    tpu.vector_store %arg13[%c3_284, %c384_285], %190 {strides = array<i32>} : memref<50x1152xf32, #tpu.memory_space<vmem>>, vector<1x192xf32>,
    %c21_286 = arith.constant 21 : index
    %c0_287 = arith.constant 0 : index
    %192 = vector.load %arg12[%c21_286, %c0_287] : memref<36x192xf32, #tpu.memory_space<vmem>>, vector<1x192xf32>
    %c3_288 = arith.constant 3 : index
    %c576_289 = arith.constant 576 : index
    %193 = vector.load %arg13[%c3_288, %c576_289] : memref<50x1152xf32, #tpu.memory_space<vmem>>, vector<1x192xf32>
    tpu.vector_store %arg13[%c3_288, %c576_289], %192 {strides = array<i32>} : memref<50x1152xf32, #tpu.memory_space<vmem>>, vector<1x192xf32>,
    %c22_290 = arith.constant 22 : index
    %c0_291 = arith.constant 0 : index
    %194 = vector.load %arg12[%c22_290, %c0_291] : memref<36x192xf32, #tpu.memory_space<vmem>>, vector<1x192xf32>
    %c3_292 = arith.constant 3 : index
    %c768_293 = arith.constant 768 : index
    %195 = vector.load %arg13[%c3_292, %c768_293] : memref<50x1152xf32, #tpu.memory_space<vmem>>, vector<1x192xf32>
    tpu.vector_store %arg13[%c3_292, %c768_293], %194 {strides = array<i32>} : memref<50x1152xf32, #tpu.memory_space<vmem>>, vector<1x192xf32>,
    %c23_294 = arith.constant 23 : index
    %c0_295 = arith.constant 0 : index
    %196 = vector.load %arg12[%c23_294, %c0_295] : memref<36x192xf32, #tpu.memory_space<vmem>>, vector<1x192xf32>
    %c3_296 = arith.constant 3 : index
    %c960_297 = arith.constant 960 : index
    %197 = vector.load %arg13[%c3_296, %c960_297] : memref<50x1152xf32, #tpu.memory_space<vmem>>, vector<1x192xf32>
    tpu.vector_store %arg13[%c3_296, %c960_297], %196 {strides = array<i32>} : memref<50x1152xf32, #tpu.memory_space<vmem>>, vector<1x192xf32>,
    %c3_298 = arith.constant 3 : index
    %c0_299 = arith.constant 0 : index
    %198 = vector.load %arg12[%c3_298, %c0_299] : memref<36x192xf32, #tpu.memory_space<vmem>>, vector<1x192xf32>
    %c12_300 = arith.constant 12 : index
    %c0_301 = arith.constant 0 : index
    %199 = vector.load %arg13[%c12_300, %c0_301] : memref<50x1152xf32, #tpu.memory_space<vmem>>, vector<1x192xf32>
    tpu.vector_store %arg13[%c12_300, %c0_301], %198 {strides = array<i32>} : memref<50x1152xf32, #tpu.memory_space<vmem>>, vector<1x192xf32>,
    %c4_302 = arith.constant 4 : index
    %c0_303 = arith.constant 0 : index
    %200 = vector.load %arg12[%c4_302, %c0_303] : memref<36x192xf32, #tpu.memory_space<vmem>>, vector<1x192xf32>
    %c12_304 = arith.constant 12 : index
    %c192_305 = arith.constant 192 : index
    %201 = vector.load %arg13[%c12_304, %c192_305] : memref<50x1152xf32, #tpu.memory_space<vmem>>, vector<1x192xf32>
    tpu.vector_store %arg13[%c12_304, %c192_305], %200 {strides = array<i32>} : memref<50x1152xf32, #tpu.memory_space<vmem>>, vector<1x192xf32>,
    %c5_306 = arith.constant 5 : index
    %c0_307 = arith.constant 0 : index
    %202 = vector.load %arg12[%c5_306, %c0_307] : memref<36x192xf32, #tpu.memory_space<vmem>>, vector<1x192xf32>
    %c12_308 = arith.constant 12 : index
    %c384_309 = arith.constant 384 : index
    %203 = vector.load %arg13[%c12_308, %c384_309] : memref<50x1152xf32, #tpu.memory_space<vmem>>, vector<1x192xf32>
    tpu.vector_store %arg13[%c12_308, %c384_309], %202 {strides = array<i32>} : memref<50x1152xf32, #tpu.memory_space<vmem>>, vector<1x192xf32>,
    %c6_310 = arith.constant 6 : index
    %c0_311 = arith.constant 0 : index
    %204 = vector.load %arg12[%c6_310, %c0_311] : memref<36x192xf32, #tpu.memory_space<vmem>>, vector<1x192xf32>
    %c12_312 = arith.constant 12 : index
    %c576_313 = arith.constant 576 : index
    %205 = vector.load %arg13[%c12_312, %c576_313] : memref<50x1152xf32, #tpu.memory_space<vmem>>, vector<1x192xf32>
    tpu.vector_store %arg13[%c12_312, %c576_313], %204 {strides = array<i32>} : memref<50x1152xf32, #tpu.memory_space<vmem>>, vector<1x192xf32>,
    %c7_314 = arith.constant 7 : index
    %c0_315 = arith.constant 0 : index
    %206 = vector.load %arg12[%c7_314, %c0_315] : memref<36x192xf32, #tpu.memory_space<vmem>>, vector<1x192xf32>
    %c12_316 = arith.constant 12 : index
    %c768_317 = arith.constant 768 : index
    %207 = vector.load %arg13[%c12_316, %c768_317] : memref<50x1152xf32, #tpu.memory_space<vmem>>, vector<1x192xf32>
    tpu.vector_store %arg13[%c12_316, %c768_317], %206 {strides = array<i32>} : memref<50x1152xf32, #tpu.memory_space<vmem>>, vector<1x192xf32>,
    %c8_318 = arith.constant 8 : index
    %c0_319 = arith.constant 0 : index
    %208 = vector.load %arg12[%c8_318, %c0_319] : memref<36x192xf32, #tpu.memory_space<vmem>>, vector<1x192xf32>
    %c12_320 = arith.constant 12 : index
    %c960_321 = arith.constant 960 : index
    %209 = vector.load %arg13[%c12_320, %c960_321] : memref<50x1152xf32, #tpu.memory_space<vmem>>, vector<1x192xf32>
    tpu.vector_store %arg13[%c12_320, %c960_321], %208 {strides = array<i32>} : memref<50x1152xf32, #tpu.memory_space<vmem>>, vector<1x192xf32>,
    %c21_322 = arith.constant 21 : index
    %c0_323 = arith.constant 0 : index
    %210 = vector.load %arg12[%c21_322, %c0_323] : memref<36x192xf32, #tpu.memory_space<vmem>>, vector<1x192xf32>
    %c13_324 = arith.constant 13 : index
    %c0_325 = arith.constant 0 : index
    %211 = vector.load %arg13[%c13_324, %c0_325] : memref<50x1152xf32, #tpu.memory_space<vmem>>, vector<1x192xf32>
    tpu.vector_store %arg13[%c13_324, %c0_325], %210 {strides = array<i32>} : memref<50x1152xf32, #tpu.memory_space<vmem>>, vector<1x192xf32>,
    %c22_326 = arith.constant 22 : index
    %c0_327 = arith.constant 0 : index
    %212 = vector.load %arg12[%c22_326, %c0_327] : memref<36x192xf32, #tpu.memory_space<vmem>>, vector<1x192xf32>
    %c13_328 = arith.constant 13 : index
    %c192_329 = arith.constant 192 : index
    %213 = vector.load %arg13[%c13_328, %c192_329] : memref<50x1152xf32, #tpu.memory_space<vmem>>, vector<1x192xf32>
    tpu.vector_store %arg13[%c13_328, %c192_329], %212 {strides = array<i32>} : memref<50x1152xf32, #tpu.memory_space<vmem>>, vector<1x192xf32>,
    %c23_330 = arith.constant 23 : index
    %c0_331 = arith.constant 0 : index
    %214 = vector.load %arg12[%c23_330, %c0_331] : memref<36x192xf32, #tpu.memory_space<vmem>>, vector<1x192xf32>
    %c13_332 = arith.constant 13 : index
    %c384_333 = arith.constant 384 : index
    %215 = vector.load %arg13[%c13_332, %c384_333] : memref<50x1152xf32, #tpu.memory_space<vmem>>, vector<1x192xf32>
    tpu.vector_store %arg13[%c13_332, %c384_333], %214 {strides = array<i32>} : memref<50x1152xf32, #tpu.memory_space<vmem>>, vector<1x192xf32>,
    %c24_334 = arith.constant 24 : index
    %c0_335 = arith.constant 0 : index
    %216 = vector.load %arg12[%c24_334, %c0_335] : memref<36x192xf32, #tpu.memory_space<vmem>>, vector<1x192xf32>
    %c13_336 = arith.constant 13 : index
    %c576_337 = arith.constant 576 : index
    %217 = vector.load %arg13[%c13_336, %c576_337] : memref<50x1152xf32, #tpu.memory_space<vmem>>, vector<1x192xf32>
    tpu.vector_store %arg13[%c13_336, %c576_337], %216 {strides = array<i32>} : memref<50x1152xf32, #tpu.memory_space<vmem>>, vector<1x192xf32>,
    %c25_338 = arith.constant 25 : index
    %c0_339 = arith.constant 0 : index
    %218 = vector.load %arg12[%c25_338, %c0_339] : memref<36x192xf32, #tpu.memory_space<vmem>>, vector<1x192xf32>
    %c13_340 = arith.constant 13 : index
    %c768_341 = arith.constant 768 : index
    %219 = vector.load %arg13[%c13_340, %c768_341] : memref<50x1152xf32, #tpu.memory_space<vmem>>, vector<1x192xf32>
    tpu.vector_store %arg13[%c13_340, %c768_341], %218 {strides = array<i32>} : memref<50x1152xf32, #tpu.memory_space<vmem>>, vector<1x192xf32>,
    %c26_342 = arith.constant 26 : index
    %c0_343 = arith.constant 0 : index
    %220 = vector.load %arg12[%c26_342, %c0_343] : memref<36x192xf32, #tpu.memory_space<vmem>>, vector<1x192xf32>
    %c13_344 = arith.constant 13 : index
    %c960_345 = arith.constant 960 : index
    %221 = vector.load %arg13[%c13_344, %c960_345] : memref<50x1152xf32, #tpu.memory_space<vmem>>, vector<1x192xf32>
    tpu.vector_store %arg13[%c13_344, %c960_345], %220 {strides = array<i32>} : memref<50x1152xf32, #tpu.memory_space<vmem>>, vector<1x192xf32>,
    %c6_346 = arith.constant 6 : index
    %c0_347 = arith.constant 0 : index
    %222 = vector.load %arg12[%c6_346, %c0_347] : memref<36x192xf32, #tpu.memory_space<vmem>>, vector<1x192xf32>
    %c22_348 = arith.constant 22 : index
    %c0_349 = arith.constant 0 : index
    %223 = vector.load %arg13[%c22_348, %c0_349] : memref<50x1152xf32, #tpu.memory_space<vmem>>, vector<1x192xf32>
    tpu.vector_store %arg13[%c22_348, %c0_349], %222 {strides = array<i32>} : memref<50x1152xf32, #tpu.memory_space<vmem>>, vector<1x192xf32>,
    %c7_350 = arith.constant 7 : index
    %c0_351 = arith.constant 0 : index
    %224 = vector.load %arg12[%c7_350, %c0_351] : memref<36x192xf32, #tpu.memory_space<vmem>>, vector<1x192xf32>
    %c22_352 = arith.constant 22 : index
    %c192_353 = arith.constant 192 : index
    %225 = vector.load %arg13[%c22_352, %c192_353] : memref<50x1152xf32, #tpu.memory_space<vmem>>, vector<1x192xf32>
    tpu.vector_store %arg13[%c22_352, %c192_353], %224 {strides = array<i32>} : memref<50x1152xf32, #tpu.memory_space<vmem>>, vector<1x192xf32>,
    %c8_354 = arith.constant 8 : index
    %c0_355 = arith.constant 0 : index
    %226 = vector.load %arg12[%c8_354, %c0_355] : memref<36x192xf32, #tpu.memory_space<vmem>>, vector<1x192xf32>
    %c22_356 = arith.constant 22 : index
    %c384_357 = arith.constant 384 : index
    %227 = vector.load %arg13[%c22_356, %c384_357] : memref<50x1152xf32, #tpu.memory_space<vmem>>, vector<1x192xf32>
    tpu.vector_store %arg13[%c22_356, %c384_357], %226 {strides = array<i32>} : memref<50x1152xf32, #tpu.memory_space<vmem>>, vector<1x192xf32>,
    %c9_358 = arith.constant 9 : index
    %c0_359 = arith.constant 0 : index
    %228 = vector.load %arg12[%c9_358, %c0_359] : memref<36x192xf32, #tpu.memory_space<vmem>>, vector<1x192xf32>
    %c22_360 = arith.constant 22 : index
    %c576_361 = arith.constant 576 : index
    %229 = vector.load %arg13[%c22_360, %c576_361] : memref<50x1152xf32, #tpu.memory_space<vmem>>, vector<1x192xf32>
    tpu.vector_store %arg13[%c22_360, %c576_361], %228 {strides = array<i32>} : memref<50x1152xf32, #tpu.memory_space<vmem>>, vector<1x192xf32>,
    %c10_362 = arith.constant 10 : index
    %c0_363 = arith.constant 0 : index
    %230 = vector.load %arg12[%c10_362, %c0_363] : memref<36x192xf32, #tpu.memory_space<vmem>>, vector<1x192xf32>
    %c22_364 = arith.constant 22 : index
    %c768_365 = arith.constant 768 : index
    %231 = vector.load %arg13[%c22_364, %c768_365] : memref<50x1152xf32, #tpu.memory_space<vmem>>, vector<1x192xf32>
    tpu.vector_store %arg13[%c22_364, %c768_365], %230 {strides = array<i32>} : memref<50x1152xf32, #tpu.memory_space<vmem>>, vector<1x192xf32>,
    %c11_366 = arith.constant 11 : index
    %c0_367 = arith.constant 0 : index
    %232 = vector.load %arg12[%c11_366, %c0_367] : memref<36x192xf32, #tpu.memory_space<vmem>>, vector<1x192xf32>
    %c22_368 = arith.constant 22 : index
    %c960_369 = arith.constant 960 : index
    %233 = vector.load %arg13[%c22_368, %c960_369] : memref<50x1152xf32, #tpu.memory_space<vmem>>, vector<1x192xf32>
    tpu.vector_store %arg13[%c22_368, %c960_369], %232 {strides = array<i32>} : memref<50x1152xf32, #tpu.memory_space<vmem>>, vector<1x192xf32>,
    %c24_370 = arith.constant 24 : index
    %c0_371 = arith.constant 0 : index
    %234 = vector.load %arg12[%c24_370, %c0_371] : memref<36x192xf32, #tpu.memory_space<vmem>>, vector<1x192xf32>
    %c23_372 = arith.constant 23 : index
    %c0_373 = arith.constant 0 : index
    %235 = vector.load %arg13[%c23_372, %c0_373] : memref<50x1152xf32, #tpu.memory_space<vmem>>, vector<1x192xf32>
    tpu.vector_store %arg13[%c23_372, %c0_373], %234 {strides = array<i32>} : memref<50x1152xf32, #tpu.memory_space<vmem>>, vector<1x192xf32>,
    %c25_374 = arith.constant 25 : index
    %c0_375 = arith.constant 0 : index
    %236 = vector.load %arg12[%c25_374, %c0_375] : memref<36x192xf32, #tpu.memory_space<vmem>>, vector<1x192xf32>
    %c23_376 = arith.constant 23 : index
    %c192_377 = arith.constant 192 : index
    %237 = vector.load %arg13[%c23_376, %c192_377] : memref<50x1152xf32, #tpu.memory_space<vmem>>, vector<1x192xf32>
    tpu.vector_store %arg13[%c23_376, %c192_377], %236 {strides = array<i32>} : memref<50x1152xf32, #tpu.memory_space<vmem>>, vector<1x192xf32>,
    %c26_378 = arith.constant 26 : index
    %c0_379 = arith.constant 0 : index
    %238 = vector.load %arg12[%c26_378, %c0_379] : memref<36x192xf32, #tpu.memory_space<vmem>>, vector<1x192xf32>
    %c23_380 = arith.constant 23 : index
    %c384_381 = arith.constant 384 : index
    %239 = vector.load %arg13[%c23_380, %c384_381] : memref<50x1152xf32, #tpu.memory_space<vmem>>, vector<1x192xf32>
    tpu.vector_store %arg13[%c23_380, %c384_381], %238 {strides = array<i32>} : memref<50x1152xf32, #tpu.memory_space<vmem>>, vector<1x192xf32>,
    %c27_382 = arith.constant 27 : index
    %c0_383 = arith.constant 0 : index
    %240 = vector.load %arg12[%c27_382, %c0_383] : memref<36x192xf32, #tpu.memory_space<vmem>>, vector<1x192xf32>
    %c23_384 = arith.constant 23 : index
    %c576_385 = arith.constant 576 : index
    %241 = vector.load %arg13[%c23_384, %c576_385] : memref<50x1152xf32, #tpu.memory_space<vmem>>, vector<1x192xf32>
    tpu.vector_store %arg13[%c23_384, %c576_385], %240 {strides = array<i32>} : memref<50x1152xf32, #tpu.memory_space<vmem>>, vector<1x192xf32>,
    %c28_386 = arith.constant 28 : index
    %c0_387 = arith.constant 0 : index
    %242 = vector.load %arg12[%c28_386, %c0_387] : memref<36x192xf32, #tpu.memory_space<vmem>>, vector<1x192xf32>
    %c23_388 = arith.constant 23 : index
    %c768_389 = arith.constant 768 : index
    %243 = vector.load %arg13[%c23_388, %c768_389] : memref<50x1152xf32, #tpu.memory_space<vmem>>, vector<1x192xf32>
    tpu.vector_store %arg13[%c23_388, %c768_389], %242 {strides = array<i32>} : memref<50x1152xf32, #tpu.memory_space<vmem>>, vector<1x192xf32>,
    %c29_390 = arith.constant 29 : index
    %c0_391 = arith.constant 0 : index
    %244 = vector.load %arg12[%c29_390, %c0_391] : memref<36x192xf32, #tpu.memory_space<vmem>>, vector<1x192xf32>
    %c23_392 = arith.constant 23 : index
    %c960_393 = arith.constant 960 : index
    %245 = vector.load %arg13[%c23_392, %c960_393] : memref<50x1152xf32, #tpu.memory_space<vmem>>, vector<1x192xf32>
    tpu.vector_store %arg13[%c23_392, %c960_393], %244 {strides = array<i32>} : memref<50x1152xf32, #tpu.memory_space<vmem>>, vector<1x192xf32>,
    %c9_394 = arith.constant 9 : index
    %c0_395 = arith.constant 0 : index
    %246 = vector.load %arg12[%c9_394, %c0_395] : memref<36x192xf32, #tpu.memory_space<vmem>>, vector<1x192xf32>
    %c32_396 = arith.constant 32 : index
    %c0_397 = arith.constant 0 : index
    %247 = vector.load %arg13[%c32_396, %c0_397] : memref<50x1152xf32, #tpu.memory_space<vmem>>, vector<1x192xf32>
    tpu.vector_store %arg13[%c32_396, %c0_397], %246 {strides = array<i32>} : memref<50x1152xf32, #tpu.memory_space<vmem>>, vector<1x192xf32>,
    %c10_398 = arith.constant 10 : index
    %c0_399 = arith.constant 0 : index
    %248 = vector.load %arg12[%c10_398, %c0_399] : memref<36x192xf32, #tpu.memory_space<vmem>>, vector<1x192xf32>
    %c32_400 = arith.constant 32 : index
    %c192_401 = arith.constant 192 : index
    %249 = vector.load %arg13[%c32_400, %c192_401] : memref<50x1152xf32, #tpu.memory_space<vmem>>, vector<1x192xf32>
    tpu.vector_store %arg13[%c32_400, %c192_401], %248 {strides = array<i32>} : memref<50x1152xf32, #tpu.memory_space<vmem>>, vector<1x192xf32>,
    %c11_402 = arith.constant 11 : index
    %c0_403 = arith.constant 0 : index
    %250 = vector.load %arg12[%c11_402, %c0_403] : memref<36x192xf32, #tpu.memory_space<vmem>>, vector<1x192xf32>
    %c32_404 = arith.constant 32 : index
    %c384_405 = arith.constant 384 : index
    %251 = vector.load %arg13[%c32_404, %c384_405] : memref<50x1152xf32, #tpu.memory_space<vmem>>, vector<1x192xf32>
    tpu.vector_store %arg13[%c32_404, %c384_405], %250 {strides = array<i32>} : memref<50x1152xf32, #tpu.memory_space<vmem>>, vector<1x192xf32>,
    %c12_406 = arith.constant 12 : index
    %c0_407 = arith.constant 0 : index
    %252 = vector.load %arg12[%c12_406, %c0_407] : memref<36x192xf32, #tpu.memory_space<vmem>>, vector<1x192xf32>
    %c32_408 = arith.constant 32 : index
    %c576_409 = arith.constant 576 : index
    %253 = vector.load %arg13[%c32_408, %c576_409] : memref<50x1152xf32, #tpu.memory_space<vmem>>, vector<1x192xf32>
    tpu.vector_store %arg13[%c32_408, %c576_409], %252 {strides = array<i32>} : memref<50x1152xf32, #tpu.memory_space<vmem>>, vector<1x192xf32>,
    %c13_410 = arith.constant 13 : index
    %c0_411 = arith.constant 0 : index
    %254 = vector.load %arg12[%c13_410, %c0_411] : memref<36x192xf32, #tpu.memory_space<vmem>>, vector<1x192xf32>
    %c32_412 = arith.constant 32 : index
    %c768_413 = arith.constant 768 : index
    %255 = vector.load %arg13[%c32_412, %c768_413] : memref<50x1152xf32, #tpu.memory_space<vmem>>, vector<1x192xf32>
    tpu.vector_store %arg13[%c32_412, %c768_413], %254 {strides = array<i32>} : memref<50x1152xf32, #tpu.memory_space<vmem>>, vector<1x192xf32>,
    %c14_414 = arith.constant 14 : index
    %c0_415 = arith.constant 0 : index
    %256 = vector.load %arg12[%c14_414, %c0_415] : memref<36x192xf32, #tpu.memory_space<vmem>>, vector<1x192xf32>
    %c32_416 = arith.constant 32 : index
    %c960_417 = arith.constant 960 : index
    %257 = vector.load %arg13[%c32_416, %c960_417] : memref<50x1152xf32, #tpu.memory_space<vmem>>, vector<1x192xf32>
    tpu.vector_store %arg13[%c32_416, %c960_417], %256 {strides = array<i32>} : memref<50x1152xf32, #tpu.memory_space<vmem>>, vector<1x192xf32>,
    %c27_418 = arith.constant 27 : index
    %c0_419 = arith.constant 0 : index
    %258 = vector.load %arg12[%c27_418, %c0_419] : memref<36x192xf32, #tpu.memory_space<vmem>>, vector<1x192xf32>
    %c33_420 = arith.constant 33 : index
    %c0_421 = arith.constant 0 : index
    %259 = vector.load %arg13[%c33_420, %c0_421] : memref<50x1152xf32, #tpu.memory_space<vmem>>, vector<1x192xf32>
    tpu.vector_store %arg13[%c33_420, %c0_421], %258 {strides = array<i32>} : memref<50x1152xf32, #tpu.memory_space<vmem>>, vector<1x192xf32>,
    %c28_422 = arith.constant 28 : index
    %c0_423 = arith.constant 0 : index
    %260 = vector.load %arg12[%c28_422, %c0_423] : memref<36x192xf32, #tpu.memory_space<vmem>>, vector<1x192xf32>
    %c33_424 = arith.constant 33 : index
    %c192_425 = arith.constant 192 : index
    %261 = vector.load %arg13[%c33_424, %c192_425] : memref<50x1152xf32, #tpu.memory_space<vmem>>, vector<1x192xf32>
    tpu.vector_store %arg13[%c33_424, %c192_425], %260 {strides = array<i32>} : memref<50x1152xf32, #tpu.memory_space<vmem>>, vector<1x192xf32>,
    %c29_426 = arith.constant 29 : index
    %c0_427 = arith.constant 0 : index
    %262 = vector.load %arg12[%c29_426, %c0_427] : memref<36x192xf32, #tpu.memory_space<vmem>>, vector<1x192xf32>
    %c33_428 = arith.constant 33 : index
    %c384_429 = arith.constant 384 : index
    %263 = vector.load %arg13[%c33_428, %c384_429] : memref<50x1152xf32, #tpu.memory_space<vmem>>, vector<1x192xf32>
    tpu.vector_store %arg13[%c33_428, %c384_429], %262 {strides = array<i32>} : memref<50x1152xf32, #tpu.memory_space<vmem>>, vector<1x192xf32>,
    %c30_430 = arith.constant 30 : index
    %c0_431 = arith.constant 0 : index
    %264 = vector.load %arg12[%c30_430, %c0_431] : memref<36x192xf32, #tpu.memory_space<vmem>>, vector<1x192xf32>
    %c33_432 = arith.constant 33 : index
    %c576_433 = arith.constant 576 : index
    %265 = vector.load %arg13[%c33_432, %c576_433] : memref<50x1152xf32, #tpu.memory_space<vmem>>, vector<1x192xf32>
    tpu.vector_store %arg13[%c33_432, %c576_433], %264 {strides = array<i32>} : memref<50x1152xf32, #tpu.memory_space<vmem>>, vector<1x192xf32>,
    %c31_434 = arith.constant 31 : index
    %c0_435 = arith.constant 0 : index
    %266 = vector.load %arg12[%c31_434, %c0_435] : memref<36x192xf32, #tpu.memory_space<vmem>>, vector<1x192xf32>
    %c33_436 = arith.constant 33 : index
    %c768_437 = arith.constant 768 : index
    %267 = vector.load %arg13[%c33_436, %c768_437] : memref<50x1152xf32, #tpu.memory_space<vmem>>, vector<1x192xf32>
    tpu.vector_store %arg13[%c33_436, %c768_437], %266 {strides = array<i32>} : memref<50x1152xf32, #tpu.memory_space<vmem>>, vector<1x192xf32>,
    %c32_438 = arith.constant 32 : index
    %c0_439 = arith.constant 0 : index
    %268 = vector.load %arg12[%c32_438, %c0_439] : memref<36x192xf32, #tpu.memory_space<vmem>>, vector<1x192xf32>
    %c33_440 = arith.constant 33 : index
    %c960_441 = arith.constant 960 : index
    %269 = vector.load %arg13[%c33_440, %c960_441] : memref<50x1152xf32, #tpu.memory_space<vmem>>, vector<1x192xf32>
    tpu.vector_store %arg13[%c33_440, %c960_441], %268 {strides = array<i32>} : memref<50x1152xf32, #tpu.memory_space<vmem>>, vector<1x192xf32>,
    %c12_442 = arith.constant 12 : index
    %c0_443 = arith.constant 0 : index
    %270 = vector.load %arg12[%c12_442, %c0_443] : memref<36x192xf32, #tpu.memory_space<vmem>>, vector<1x192xf32>
    %c42 = arith.constant 42 : index
    %c0_444 = arith.constant 0 : index
    %271 = vector.load %arg13[%c42, %c0_444] : memref<50x1152xf32, #tpu.memory_space<vmem>>, vector<1x192xf32>
    tpu.vector_store %arg13[%c42, %c0_444], %270 {strides = array<i32>} : memref<50x1152xf32, #tpu.memory_space<vmem>>, vector<1x192xf32>,
    %c13_445 = arith.constant 13 : index
    %c0_446 = arith.constant 0 : index
    %272 = vector.load %arg12[%c13_445, %c0_446] : memref<36x192xf32, #tpu.memory_space<vmem>>, vector<1x192xf32>
    %c42_447 = arith.constant 42 : index
    %c192_448 = arith.constant 192 : index
    %273 = vector.load %arg13[%c42_447, %c192_448] : memref<50x1152xf32, #tpu.memory_space<vmem>>, vector<1x192xf32>
    tpu.vector_store %arg13[%c42_447, %c192_448], %272 {strides = array<i32>} : memref<50x1152xf32, #tpu.memory_space<vmem>>, vector<1x192xf32>,
    %c14_449 = arith.constant 14 : index
    %c0_450 = arith.constant 0 : index
    %274 = vector.load %arg12[%c14_449, %c0_450] : memref<36x192xf32, #tpu.memory_space<vmem>>, vector<1x192xf32>
    %c42_451 = arith.constant 42 : index
    %c384_452 = arith.constant 384 : index
    %275 = vector.load %arg13[%c42_451, %c384_452] : memref<50x1152xf32, #tpu.memory_space<vmem>>, vector<1x192xf32>
    tpu.vector_store %arg13[%c42_451, %c384_452], %274 {strides = array<i32>} : memref<50x1152xf32, #tpu.memory_space<vmem>>, vector<1x192xf32>,
    %c15_453 = arith.constant 15 : index
    %c0_454 = arith.constant 0 : index
    %276 = vector.load %arg12[%c15_453, %c0_454] : memref<36x192xf32, #tpu.memory_space<vmem>>, vector<1x192xf32>
    %c42_455 = arith.constant 42 : index
    %c576_456 = arith.constant 576 : index
    %277 = vector.load %arg13[%c42_455, %c576_456] : memref<50x1152xf32, #tpu.memory_space<vmem>>, vector<1x192xf32>
    tpu.vector_store %arg13[%c42_455, %c576_456], %276 {strides = array<i32>} : memref<50x1152xf32, #tpu.memory_space<vmem>>, vector<1x192xf32>,
    %c16_457 = arith.constant 16 : index
    %c0_458 = arith.constant 0 : index
    %278 = vector.load %arg12[%c16_457, %c0_458] : memref<36x192xf32, #tpu.memory_space<vmem>>, vector<1x192xf32>
    %c42_459 = arith.constant 42 : index
    %c768_460 = arith.constant 768 : index
    %279 = vector.load %arg13[%c42_459, %c768_460] : memref<50x1152xf32, #tpu.memory_space<vmem>>, vector<1x192xf32>
    tpu.vector_store %arg13[%c42_459, %c768_460], %278 {strides = array<i32>} : memref<50x1152xf32, #tpu.memory_space<vmem>>, vector<1x192xf32>,
    %c17_461 = arith.constant 17 : index
    %c0_462 = arith.constant 0 : index
    %280 = vector.load %arg12[%c17_461, %c0_462] : memref<36x192xf32, #tpu.memory_space<vmem>>, vector<1x192xf32>
    %c42_463 = arith.constant 42 : index
    %c960_464 = arith.constant 960 : index
    %281 = vector.load %arg13[%c42_463, %c960_464] : memref<50x1152xf32, #tpu.memory_space<vmem>>, vector<1x192xf32>
    tpu.vector_store %arg13[%c42_463, %c960_464], %280 {strides = array<i32>} : memref<50x1152xf32, #tpu.memory_space<vmem>>, vector<1x192xf32>,
    %c30_465 = arith.constant 30 : index
    %c0_466 = arith.constant 0 : index
    %282 = vector.load %arg12[%c30_465, %c0_466] : memref<36x192xf32, #tpu.memory_space<vmem>>, vector<1x192xf32>
    %c43 = arith.constant 43 : index
    %c0_467 = arith.constant 0 : index
    %283 = vector.load %arg13[%c43, %c0_467] : memref<50x1152xf32, #tpu.memory_space<vmem>>, vector<1x192xf32>
    tpu.vector_store %arg13[%c43, %c0_467], %282 {strides = array<i32>} : memref<50x1152xf32, #tpu.memory_space<vmem>>, vector<1x192xf32>,
    %c31_468 = arith.constant 31 : index
    %c0_469 = arith.constant 0 : index
    %284 = vector.load %arg12[%c31_468, %c0_469] : memref<36x192xf32, #tpu.memory_space<vmem>>, vector<1x192xf32>
    %c43_470 = arith.constant 43 : index
    %c192_471 = arith.constant 192 : index
    %285 = vector.load %arg13[%c43_470, %c192_471] : memref<50x1152xf32, #tpu.memory_space<vmem>>, vector<1x192xf32>
    tpu.vector_store %arg13[%c43_470, %c192_471], %284 {strides = array<i32>} : memref<50x1152xf32, #tpu.memory_space<vmem>>, vector<1x192xf32>,
    %c32_472 = arith.constant 32 : index
    %c0_473 = arith.constant 0 : index
    %286 = vector.load %arg12[%c32_472, %c0_473] : memref<36x192xf32, #tpu.memory_space<vmem>>, vector<1x192xf32>
    %c43_474 = arith.constant 43 : index
    %c384_475 = arith.constant 384 : index
    %287 = vector.load %arg13[%c43_474, %c384_475] : memref<50x1152xf32, #tpu.memory_space<vmem>>, vector<1x192xf32>
    tpu.vector_store %arg13[%c43_474, %c384_475], %286 {strides = array<i32>} : memref<50x1152xf32, #tpu.memory_space<vmem>>, vector<1x192xf32>,
    %c33_476 = arith.constant 33 : index
    %c0_477 = arith.constant 0 : index
    %288 = vector.load %arg12[%c33_476, %c0_477] : memref<36x192xf32, #tpu.memory_space<vmem>>, vector<1x192xf32>
    %c43_478 = arith.constant 43 : index
    %c576_479 = arith.constant 576 : index
    %289 = vector.load %arg13[%c43_478, %c576_479] : memref<50x1152xf32, #tpu.memory_space<vmem>>, vector<1x192xf32>
    tpu.vector_store %arg13[%c43_478, %c576_479], %288 {strides = array<i32>} : memref<50x1152xf32, #tpu.memory_space<vmem>>, vector<1x192xf32>,
    %c34_480 = arith.constant 34 : index
    %c0_481 = arith.constant 0 : index
    %290 = vector.load %arg12[%c34_480, %c0_481] : memref<36x192xf32, #tpu.memory_space<vmem>>, vector<1x192xf32>
    %c43_482 = arith.constant 43 : index
    %c768_483 = arith.constant 768 : index
    %291 = vector.load %arg13[%c43_482, %c768_483] : memref<50x1152xf32, #tpu.memory_space<vmem>>, vector<1x192xf32>
    tpu.vector_store %arg13[%c43_482, %c768_483], %290 {strides = array<i32>} : memref<50x1152xf32, #tpu.memory_space<vmem>>, vector<1x192xf32>,
    %c35_484 = arith.constant 35 : index
    %c0_485 = arith.constant 0 : index
    %292 = vector.load %arg12[%c35_484, %c0_485] : memref<36x192xf32, #tpu.memory_space<vmem>>, vector<1x192xf32>
    %c43_486 = arith.constant 43 : index
    %c960_487 = arith.constant 960 : index
    %293 = vector.load %arg13[%c43_486, %c960_487] : memref<50x1152xf32, #tpu.memory_space<vmem>>, vector<1x192xf32>
    tpu.vector_store %arg13[%c43_486, %c960_487], %292 {strides = array<i32>} : memref<50x1152xf32, #tpu.memory_space<vmem>>, vector<1x192xf32>,
    %c216_488 = arith.constant 216 : index
    %c0_489 = arith.constant 0 : index
    %294 = vector.load %arg11[%c216_488, %c0_489] : memref<648x32xf32, #tpu.memory_space<vmem>>, vector<36x32xf32>
    %c0_490 = arith.constant 0 : index
    %c0_491 = arith.constant 0 : index
    %295 = vector.load %arg12[%c0_490, %c0_491] : memref<36x192xf32, #tpu.memory_space<vmem>>, vector<36x32xf32>
    tpu.vector_store %arg12[%c0_490, %c0_491], %294 {strides = array<i32>} : memref<36x192xf32, #tpu.memory_space<vmem>>, vector<36x32xf32>,
    %c252_492 = arith.constant 252 : index
    %c0_493 = arith.constant 0 : index
    %296 = vector.load %arg11[%c252_492, %c0_493] : memref<648x32xf32, #tpu.memory_space<vmem>>, vector<36x32xf32>
    %c0_494 = arith.constant 0 : index
    %c32_495 = arith.constant 32 : index
    %297 = vector.load %arg12[%c0_494, %c32_495] : memref<36x192xf32, #tpu.memory_space<vmem>>, vector<36x32xf32>
    tpu.vector_store %arg12[%c0_494, %c32_495], %296 {strides = array<i32>} : memref<36x192xf32, #tpu.memory_space<vmem>>, vector<36x32xf32>,
    %c288_496 = arith.constant 288 : index
    %c0_497 = arith.constant 0 : index
    %298 = vector.load %arg11[%c288_496, %c0_497] : memref<648x32xf32, #tpu.memory_space<vmem>>, vector<36x32xf32>
    %c0_498 = arith.constant 0 : index
    %c64_499 = arith.constant 64 : index
    %299 = vector.load %arg12[%c0_498, %c64_499] : memref<36x192xf32, #tpu.memory_space<vmem>>, vector<36x32xf32>
    tpu.vector_store %arg12[%c0_498, %c64_499], %298 {strides = array<i32>} : memref<36x192xf32, #tpu.memory_space<vmem>>, vector<36x32xf32>,
    %c324 = arith.constant 324 : index
    %c0_500 = arith.constant 0 : index
    %300 = vector.load %arg11[%c324, %c0_500] : memref<648x32xf32, #tpu.memory_space<vmem>>, vector<36x32xf32>
    %c0_501 = arith.constant 0 : index
    %c96_502 = arith.constant 96 : index
    %301 = vector.load %arg12[%c0_501, %c96_502] : memref<36x192xf32, #tpu.memory_space<vmem>>, vector<36x32xf32>
    tpu.vector_store %arg12[%c0_501, %c96_502], %300 {strides = array<i32>} : memref<36x192xf32, #tpu.memory_space<vmem>>, vector<36x32xf32>,
    %c360 = arith.constant 360 : index
    %c0_503 = arith.constant 0 : index
    %302 = vector.load %arg11[%c360, %c0_503] : memref<648x32xf32, #tpu.memory_space<vmem>>, vector<36x32xf32>
    %c0_504 = arith.constant 0 : index
    %c128_505 = arith.constant 128 : index
    %303 = vector.load %arg12[%c0_504, %c128_505] : memref<36x192xf32, #tpu.memory_space<vmem>>, vector<36x32xf32>
    tpu.vector_store %arg12[%c0_504, %c128_505], %302 {strides = array<i32>} : memref<36x192xf32, #tpu.memory_space<vmem>>, vector<36x32xf32>,
    %c396 = arith.constant 396 : index
    %c0_506 = arith.constant 0 : index
    %304 = vector.load %arg11[%c396, %c0_506] : memref<648x32xf32, #tpu.memory_space<vmem>>, vector<36x32xf32>
    %c0_507 = arith.constant 0 : index
    %c160_508 = arith.constant 160 : index
    %305 = vector.load %arg12[%c0_507, %c160_508] : memref<36x192xf32, #tpu.memory_space<vmem>>, vector<36x32xf32>
    tpu.vector_store %arg12[%c0_507, %c160_508], %304 {strides = array<i32>} : memref<36x192xf32, #tpu.memory_space<vmem>>, vector<36x32xf32>,
    %c0_509 = arith.constant 0 : index
    %c0_510 = arith.constant 0 : index
    %306 = vector.load %arg12[%c0_509, %c0_510] : memref<36x192xf32, #tpu.memory_space<vmem>>, vector<1x192xf32>
    %c4_511 = arith.constant 4 : index
    %c0_512 = arith.constant 0 : index
    %307 = vector.load %arg13[%c4_511, %c0_512] : memref<50x1152xf32, #tpu.memory_space<vmem>>, vector<1x192xf32>
    tpu.vector_store %arg13[%c4_511, %c0_512], %306 {strides = array<i32>} : memref<50x1152xf32, #tpu.memory_space<vmem>>, vector<1x192xf32>,
    %c1_513 = arith.constant 1 : index
    %c0_514 = arith.constant 0 : index
    %308 = vector.load %arg12[%c1_513, %c0_514] : memref<36x192xf32, #tpu.memory_space<vmem>>, vector<1x192xf32>
    %c4_515 = arith.constant 4 : index
    %c192_516 = arith.constant 192 : index
    %309 = vector.load %arg13[%c4_515, %c192_516] : memref<50x1152xf32, #tpu.memory_space<vmem>>, vector<1x192xf32>
    tpu.vector_store %arg13[%c4_515, %c192_516], %308 {strides = array<i32>} : memref<50x1152xf32, #tpu.memory_space<vmem>>, vector<1x192xf32>,
    %c2_517 = arith.constant 2 : index
    %c0_518 = arith.constant 0 : index
    %310 = vector.load %arg12[%c2_517, %c0_518] : memref<36x192xf32, #tpu.memory_space<vmem>>, vector<1x192xf32>
    %c4_519 = arith.constant 4 : index
    %c384_520 = arith.constant 384 : index
    %311 = vector.load %arg13[%c4_519, %c384_520] : memref<50x1152xf32, #tpu.memory_space<vmem>>, vector<1x192xf32>
    tpu.vector_store %arg13[%c4_519, %c384_520], %310 {strides = array<i32>} : memref<50x1152xf32, #tpu.memory_space<vmem>>, vector<1x192xf32>,
    %c3_521 = arith.constant 3 : index
    %c0_522 = arith.constant 0 : index
    %312 = vector.load %arg12[%c3_521, %c0_522] : memref<36x192xf32, #tpu.memory_space<vmem>>, vector<1x192xf32>
    %c4_523 = arith.constant 4 : index
    %c576_524 = arith.constant 576 : index
    %313 = vector.load %arg13[%c4_523, %c576_524] : memref<50x1152xf32, #tpu.memory_space<vmem>>, vector<1x192xf32>
    tpu.vector_store %arg13[%c4_523, %c576_524], %312 {strides = array<i32>} : memref<50x1152xf32, #tpu.memory_space<vmem>>, vector<1x192xf32>,
    %c4_525 = arith.constant 4 : index
    %c0_526 = arith.constant 0 : index
    %314 = vector.load %arg12[%c4_525, %c0_526] : memref<36x192xf32, #tpu.memory_space<vmem>>, vector<1x192xf32>
    %c4_527 = arith.constant 4 : index
    %c768_528 = arith.constant 768 : index
    %315 = vector.load %arg13[%c4_527, %c768_528] : memref<50x1152xf32, #tpu.memory_space<vmem>>, vector<1x192xf32>
    tpu.vector_store %arg13[%c4_527, %c768_528], %314 {strides = array<i32>} : memref<50x1152xf32, #tpu.memory_space<vmem>>, vector<1x192xf32>,
    %c5_529 = arith.constant 5 : index
    %c0_530 = arith.constant 0 : index
    %316 = vector.load %arg12[%c5_529, %c0_530] : memref<36x192xf32, #tpu.memory_space<vmem>>, vector<1x192xf32>
    %c4_531 = arith.constant 4 : index
    %c960_532 = arith.constant 960 : index
    %317 = vector.load %arg13[%c4_531, %c960_532] : memref<50x1152xf32, #tpu.memory_space<vmem>>, vector<1x192xf32>
    tpu.vector_store %arg13[%c4_531, %c960_532], %316 {strides = array<i32>} : memref<50x1152xf32, #tpu.memory_space<vmem>>, vector<1x192xf32>,
    %c18_533 = arith.constant 18 : index
    %c0_534 = arith.constant 0 : index
    %318 = vector.load %arg12[%c18_533, %c0_534] : memref<36x192xf32, #tpu.memory_space<vmem>>, vector<1x192xf32>
    %c5_535 = arith.constant 5 : index
    %c0_536 = arith.constant 0 : index
    %319 = vector.load %arg13[%c5_535, %c0_536] : memref<50x1152xf32, #tpu.memory_space<vmem>>, vector<1x192xf32>
    tpu.vector_store %arg13[%c5_535, %c0_536], %318 {strides = array<i32>} : memref<50x1152xf32, #tpu.memory_space<vmem>>, vector<1x192xf32>,
    %c19_537 = arith.constant 19 : index
    %c0_538 = arith.constant 0 : index
    %320 = vector.load %arg12[%c19_537, %c0_538] : memref<36x192xf32, #tpu.memory_space<vmem>>, vector<1x192xf32>
    %c5_539 = arith.constant 5 : index
    %c192_540 = arith.constant 192 : index
    %321 = vector.load %arg13[%c5_539, %c192_540] : memref<50x1152xf32, #tpu.memory_space<vmem>>, vector<1x192xf32>
    tpu.vector_store %arg13[%c5_539, %c192_540], %320 {strides = array<i32>} : memref<50x1152xf32, #tpu.memory_space<vmem>>, vector<1x192xf32>,
    %c20_541 = arith.constant 20 : index
    %c0_542 = arith.constant 0 : index
    %322 = vector.load %arg12[%c20_541, %c0_542] : memref<36x192xf32, #tpu.memory_space<vmem>>, vector<1x192xf32>
    %c5_543 = arith.constant 5 : index
    %c384_544 = arith.constant 384 : index
    %323 = vector.load %arg13[%c5_543, %c384_544] : memref<50x1152xf32, #tpu.memory_space<vmem>>, vector<1x192xf32>
    tpu.vector_store %arg13[%c5_543, %c384_544], %322 {strides = array<i32>} : memref<50x1152xf32, #tpu.memory_space<vmem>>, vector<1x192xf32>,
    %c21_545 = arith.constant 21 : index
    %c0_546 = arith.constant 0 : index
    %324 = vector.load %arg12[%c21_545, %c0_546] : memref<36x192xf32, #tpu.memory_space<vmem>>, vector<1x192xf32>
    %c5_547 = arith.constant 5 : index
    %c576_548 = arith.constant 576 : index
    %325 = vector.load %arg13[%c5_547, %c576_548] : memref<50x1152xf32, #tpu.memory_space<vmem>>, vector<1x192xf32>
    tpu.vector_store %arg13[%c5_547, %c576_548], %324 {strides = array<i32>} : memref<50x1152xf32, #tpu.memory_space<vmem>>, vector<1x192xf32>,
    %c22_549 = arith.constant 22 : index
    %c0_550 = arith.constant 0 : index
    %326 = vector.load %arg12[%c22_549, %c0_550] : memref<36x192xf32, #tpu.memory_space<vmem>>, vector<1x192xf32>
    %c5_551 = arith.constant 5 : index
    %c768_552 = arith.constant 768 : index
    %327 = vector.load %arg13[%c5_551, %c768_552] : memref<50x1152xf32, #tpu.memory_space<vmem>>, vector<1x192xf32>
    tpu.vector_store %arg13[%c5_551, %c768_552], %326 {strides = array<i32>} : memref<50x1152xf32, #tpu.memory_space<vmem>>, vector<1x192xf32>,
    %c23_553 = arith.constant 23 : index
    %c0_554 = arith.constant 0 : index
    %328 = vector.load %arg12[%c23_553, %c0_554] : memref<36x192xf32, #tpu.memory_space<vmem>>, vector<1x192xf32>
    %c5_555 = arith.constant 5 : index
    %c960_556 = arith.constant 960 : index
    %329 = vector.load %arg13[%c5_555, %c960_556] : memref<50x1152xf32, #tpu.memory_space<vmem>>, vector<1x192xf32>
    tpu.vector_store %arg13[%c5_555, %c960_556], %328 {strides = array<i32>} : memref<50x1152xf32, #tpu.memory_space<vmem>>, vector<1x192xf32>,
    %c3_557 = arith.constant 3 : index
    %c0_558 = arith.constant 0 : index
    %330 = vector.load %arg12[%c3_557, %c0_558] : memref<36x192xf32, #tpu.memory_space<vmem>>, vector<1x192xf32>
    %c14_559 = arith.constant 14 : index
    %c0_560 = arith.constant 0 : index
    %331 = vector.load %arg13[%c14_559, %c0_560] : memref<50x1152xf32, #tpu.memory_space<vmem>>, vector<1x192xf32>
    tpu.vector_store %arg13[%c14_559, %c0_560], %330 {strides = array<i32>} : memref<50x1152xf32, #tpu.memory_space<vmem>>, vector<1x192xf32>,
    %c4_561 = arith.constant 4 : index
    %c0_562 = arith.constant 0 : index
    %332 = vector.load %arg12[%c4_561, %c0_562] : memref<36x192xf32, #tpu.memory_space<vmem>>, vector<1x192xf32>
    %c14_563 = arith.constant 14 : index
    %c192_564 = arith.constant 192 : index
    %333 = vector.load %arg13[%c14_563, %c192_564] : memref<50x1152xf32, #tpu.memory_space<vmem>>, vector<1x192xf32>
    tpu.vector_store %arg13[%c14_563, %c192_564], %332 {strides = array<i32>} : memref<50x1152xf32, #tpu.memory_space<vmem>>, vector<1x192xf32>,
    %c5_565 = arith.constant 5 : index
    %c0_566 = arith.constant 0 : index
    %334 = vector.load %arg12[%c5_565, %c0_566] : memref<36x192xf32, #tpu.memory_space<vmem>>, vector<1x192xf32>
    %c14_567 = arith.constant 14 : index
    %c384_568 = arith.constant 384 : index
    %335 = vector.load %arg13[%c14_567, %c384_568] : memref<50x1152xf32, #tpu.memory_space<vmem>>, vector<1x192xf32>
    tpu.vector_store %arg13[%c14_567, %c384_568], %334 {strides = array<i32>} : memref<50x1152xf32, #tpu.memory_space<vmem>>, vector<1x192xf32>,
    %c6_569 = arith.constant 6 : index
    %c0_570 = arith.constant 0 : index
    %336 = vector.load %arg12[%c6_569, %c0_570] : memref<36x192xf32, #tpu.memory_space<vmem>>, vector<1x192xf32>
    %c14_571 = arith.constant 14 : index
    %c576_572 = arith.constant 576 : index
    %337 = vector.load %arg13[%c14_571, %c576_572] : memref<50x1152xf32, #tpu.memory_space<vmem>>, vector<1x192xf32>
    tpu.vector_store %arg13[%c14_571, %c576_572], %336 {strides = array<i32>} : memref<50x1152xf32, #tpu.memory_space<vmem>>, vector<1x192xf32>,
    %c7_573 = arith.constant 7 : index
    %c0_574 = arith.constant 0 : index
    %338 = vector.load %arg12[%c7_573, %c0_574] : memref<36x192xf32, #tpu.memory_space<vmem>>, vector<1x192xf32>
    %c14_575 = arith.constant 14 : index
    %c768_576 = arith.constant 768 : index
    %339 = vector.load %arg13[%c14_575, %c768_576] : memref<50x1152xf32, #tpu.memory_space<vmem>>, vector<1x192xf32>
    tpu.vector_store %arg13[%c14_575, %c768_576], %338 {strides = array<i32>} : memref<50x1152xf32, #tpu.memory_space<vmem>>, vector<1x192xf32>,
    %c8_577 = arith.constant 8 : index
    %c0_578 = arith.constant 0 : index
    %340 = vector.load %arg12[%c8_577, %c0_578] : memref<36x192xf32, #tpu.memory_space<vmem>>, vector<1x192xf32>
    %c14_579 = arith.constant 14 : index
    %c960_580 = arith.constant 960 : index
    %341 = vector.load %arg13[%c14_579, %c960_580] : memref<50x1152xf32, #tpu.memory_space<vmem>>, vector<1x192xf32>
    tpu.vector_store %arg13[%c14_579, %c960_580], %340 {strides = array<i32>} : memref<50x1152xf32, #tpu.memory_space<vmem>>, vector<1x192xf32>,
    %c21_581 = arith.constant 21 : index
    %c0_582 = arith.constant 0 : index
    %342 = vector.load %arg12[%c21_581, %c0_582] : memref<36x192xf32, #tpu.memory_space<vmem>>, vector<1x192xf32>
    %c15_583 = arith.constant 15 : index
    %c0_584 = arith.constant 0 : index
    %343 = vector.load %arg13[%c15_583, %c0_584] : memref<50x1152xf32, #tpu.memory_space<vmem>>, vector<1x192xf32>
    tpu.vector_store %arg13[%c15_583, %c0_584], %342 {strides = array<i32>} : memref<50x1152xf32, #tpu.memory_space<vmem>>, vector<1x192xf32>,
    %c22_585 = arith.constant 22 : index
    %c0_586 = arith.constant 0 : index
    %344 = vector.load %arg12[%c22_585, %c0_586] : memref<36x192xf32, #tpu.memory_space<vmem>>, vector<1x192xf32>
    %c15_587 = arith.constant 15 : index
    %c192_588 = arith.constant 192 : index
    %345 = vector.load %arg13[%c15_587, %c192_588] : memref<50x1152xf32, #tpu.memory_space<vmem>>, vector<1x192xf32>
    tpu.vector_store %arg13[%c15_587, %c192_588], %344 {strides = array<i32>} : memref<50x1152xf32, #tpu.memory_space<vmem>>, vector<1x192xf32>,
    %c23_589 = arith.constant 23 : index
    %c0_590 = arith.constant 0 : index
    %346 = vector.load %arg12[%c23_589, %c0_590] : memref<36x192xf32, #tpu.memory_space<vmem>>, vector<1x192xf32>
    %c15_591 = arith.constant 15 : index
    %c384_592 = arith.constant 384 : index
    %347 = vector.load %arg13[%c15_591, %c384_592] : memref<50x1152xf32, #tpu.memory_space<vmem>>, vector<1x192xf32>
    tpu.vector_store %arg13[%c15_591, %c384_592], %346 {strides = array<i32>} : memref<50x1152xf32, #tpu.memory_space<vmem>>, vector<1x192xf32>,
    %c24_593 = arith.constant 24 : index
    %c0_594 = arith.constant 0 : index
    %348 = vector.load %arg12[%c24_593, %c0_594] : memref<36x192xf32, #tpu.memory_space<vmem>>, vector<1x192xf32>
    %c15_595 = arith.constant 15 : index
    %c576_596 = arith.constant 576 : index
    %349 = vector.load %arg13[%c15_595, %c576_596] : memref<50x1152xf32, #tpu.memory_space<vmem>>, vector<1x192xf32>
    tpu.vector_store %arg13[%c15_595, %c576_596], %348 {strides = array<i32>} : memref<50x1152xf32, #tpu.memory_space<vmem>>, vector<1x192xf32>,
    %c25_597 = arith.constant 25 : index
    %c0_598 = arith.constant 0 : index
    %350 = vector.load %arg12[%c25_597, %c0_598] : memref<36x192xf32, #tpu.memory_space<vmem>>, vector<1x192xf32>
    %c15_599 = arith.constant 15 : index
    %c768_600 = arith.constant 768 : index
    %351 = vector.load %arg13[%c15_599, %c768_600] : memref<50x1152xf32, #tpu.memory_space<vmem>>, vector<1x192xf32>
    tpu.vector_store %arg13[%c15_599, %c768_600], %350 {strides = array<i32>} : memref<50x1152xf32, #tpu.memory_space<vmem>>, vector<1x192xf32>,
    %c26_601 = arith.constant 26 : index
    %c0_602 = arith.constant 0 : index
    %352 = vector.load %arg12[%c26_601, %c0_602] : memref<36x192xf32, #tpu.memory_space<vmem>>, vector<1x192xf32>
    %c15_603 = arith.constant 15 : index
    %c960_604 = arith.constant 960 : index
    %353 = vector.load %arg13[%c15_603, %c960_604] : memref<50x1152xf32, #tpu.memory_space<vmem>>, vector<1x192xf32>
    tpu.vector_store %arg13[%c15_603, %c960_604], %352 {strides = array<i32>} : memref<50x1152xf32, #tpu.memory_space<vmem>>, vector<1x192xf32>,
    %c6_605 = arith.constant 6 : index
    %c0_606 = arith.constant 0 : index
    %354 = vector.load %arg12[%c6_605, %c0_606] : memref<36x192xf32, #tpu.memory_space<vmem>>, vector<1x192xf32>
    %c24_607 = arith.constant 24 : index
    %c0_608 = arith.constant 0 : index
    %355 = vector.load %arg13[%c24_607, %c0_608] : memref<50x1152xf32, #tpu.memory_space<vmem>>, vector<1x192xf32>
    tpu.vector_store %arg13[%c24_607, %c0_608], %354 {strides = array<i32>} : memref<50x1152xf32, #tpu.memory_space<vmem>>, vector<1x192xf32>,
    %c7_609 = arith.constant 7 : index
    %c0_610 = arith.constant 0 : index
    %356 = vector.load %arg12[%c7_609, %c0_610] : memref<36x192xf32, #tpu.memory_space<vmem>>, vector<1x192xf32>
    %c24_611 = arith.constant 24 : index
    %c192_612 = arith.constant 192 : index
    %357 = vector.load %arg13[%c24_611, %c192_612] : memref<50x1152xf32, #tpu.memory_space<vmem>>, vector<1x192xf32>
    tpu.vector_store %arg13[%c24_611, %c192_612], %356 {strides = array<i32>} : memref<50x1152xf32, #tpu.memory_space<vmem>>, vector<1x192xf32>,
    %c8_613 = arith.constant 8 : index
    %c0_614 = arith.constant 0 : index
    %358 = vector.load %arg12[%c8_613, %c0_614] : memref<36x192xf32, #tpu.memory_space<vmem>>, vector<1x192xf32>
    %c24_615 = arith.constant 24 : index
    %c384_616 = arith.constant 384 : index
    %359 = vector.load %arg13[%c24_615, %c384_616] : memref<50x1152xf32, #tpu.memory_space<vmem>>, vector<1x192xf32>
    tpu.vector_store %arg13[%c24_615, %c384_616], %358 {strides = array<i32>} : memref<50x1152xf32, #tpu.memory_space<vmem>>, vector<1x192xf32>,
    %c9_617 = arith.constant 9 : index
    %c0_618 = arith.constant 0 : index
    %360 = vector.load %arg12[%c9_617, %c0_618] : memref<36x192xf32, #tpu.memory_space<vmem>>, vector<1x192xf32>
    %c24_619 = arith.constant 24 : index
    %c576_620 = arith.constant 576 : index
    %361 = vector.load %arg13[%c24_619, %c576_620] : memref<50x1152xf32, #tpu.memory_space<vmem>>, vector<1x192xf32>
    tpu.vector_store %arg13[%c24_619, %c576_620], %360 {strides = array<i32>} : memref<50x1152xf32, #tpu.memory_space<vmem>>, vector<1x192xf32>,
    %c10_621 = arith.constant 10 : index
    %c0_622 = arith.constant 0 : index
    %362 = vector.load %arg12[%c10_621, %c0_622] : memref<36x192xf32, #tpu.memory_space<vmem>>, vector<1x192xf32>
    %c24_623 = arith.constant 24 : index
    %c768_624 = arith.constant 768 : index
    %363 = vector.load %arg13[%c24_623, %c768_624] : memref<50x1152xf32, #tpu.memory_space<vmem>>, vector<1x192xf32>
    tpu.vector_store %arg13[%c24_623, %c768_624], %362 {strides = array<i32>} : memref<50x1152xf32, #tpu.memory_space<vmem>>, vector<1x192xf32>,
    %c11_625 = arith.constant 11 : index
    %c0_626 = arith.constant 0 : index
    %364 = vector.load %arg12[%c11_625, %c0_626] : memref<36x192xf32, #tpu.memory_space<vmem>>, vector<1x192xf32>
    %c24_627 = arith.constant 24 : index
    %c960_628 = arith.constant 960 : index
    %365 = vector.load %arg13[%c24_627, %c960_628] : memref<50x1152xf32, #tpu.memory_space<vmem>>, vector<1x192xf32>
    tpu.vector_store %arg13[%c24_627, %c960_628], %364 {strides = array<i32>} : memref<50x1152xf32, #tpu.memory_space<vmem>>, vector<1x192xf32>,
    %c24_629 = arith.constant 24 : index
    %c0_630 = arith.constant 0 : index
    %366 = vector.load %arg12[%c24_629, %c0_630] : memref<36x192xf32, #tpu.memory_space<vmem>>, vector<1x192xf32>
    %c25_631 = arith.constant 25 : index
    %c0_632 = arith.constant 0 : index
    %367 = vector.load %arg13[%c25_631, %c0_632] : memref<50x1152xf32, #tpu.memory_space<vmem>>, vector<1x192xf32>
    tpu.vector_store %arg13[%c25_631, %c0_632], %366 {strides = array<i32>} : memref<50x1152xf32, #tpu.memory_space<vmem>>, vector<1x192xf32>,
    %c25_633 = arith.constant 25 : index
    %c0_634 = arith.constant 0 : index
    %368 = vector.load %arg12[%c25_633, %c0_634] : memref<36x192xf32, #tpu.memory_space<vmem>>, vector<1x192xf32>
    %c25_635 = arith.constant 25 : index
    %c192_636 = arith.constant 192 : index
    %369 = vector.load %arg13[%c25_635, %c192_636] : memref<50x1152xf32, #tpu.memory_space<vmem>>, vector<1x192xf32>
    tpu.vector_store %arg13[%c25_635, %c192_636], %368 {strides = array<i32>} : memref<50x1152xf32, #tpu.memory_space<vmem>>, vector<1x192xf32>,
    %c26_637 = arith.constant 26 : index
    %c0_638 = arith.constant 0 : index
    %370 = vector.load %arg12[%c26_637, %c0_638] : memref<36x192xf32, #tpu.memory_space<vmem>>, vector<1x192xf32>
    %c25_639 = arith.constant 25 : index
    %c384_640 = arith.constant 384 : index
    %371 = vector.load %arg13[%c25_639, %c384_640] : memref<50x1152xf32, #tpu.memory_space<vmem>>, vector<1x192xf32>
    tpu.vector_store %arg13[%c25_639, %c384_640], %370 {strides = array<i32>} : memref<50x1152xf32, #tpu.memory_space<vmem>>, vector<1x192xf32>,
    %c27_641 = arith.constant 27 : index
    %c0_642 = arith.constant 0 : index
    %372 = vector.load %arg12[%c27_641, %c0_642] : memref<36x192xf32, #tpu.memory_space<vmem>>, vector<1x192xf32>
    %c25_643 = arith.constant 25 : index
    %c576_644 = arith.constant 576 : index
    %373 = vector.load %arg13[%c25_643, %c576_644] : memref<50x1152xf32, #tpu.memory_space<vmem>>, vector<1x192xf32>
    tpu.vector_store %arg13[%c25_643, %c576_644], %372 {strides = array<i32>} : memref<50x1152xf32, #tpu.memory_space<vmem>>, vector<1x192xf32>,
    %c28_645 = arith.constant 28 : index
    %c0_646 = arith.constant 0 : index
    %374 = vector.load %arg12[%c28_645, %c0_646] : memref<36x192xf32, #tpu.memory_space<vmem>>, vector<1x192xf32>
    %c25_647 = arith.constant 25 : index
    %c768_648 = arith.constant 768 : index
    %375 = vector.load %arg13[%c25_647, %c768_648] : memref<50x1152xf32, #tpu.memory_space<vmem>>, vector<1x192xf32>
    tpu.vector_store %arg13[%c25_647, %c768_648], %374 {strides = array<i32>} : memref<50x1152xf32, #tpu.memory_space<vmem>>, vector<1x192xf32>,
    %c29_649 = arith.constant 29 : index
    %c0_650 = arith.constant 0 : index
    %376 = vector.load %arg12[%c29_649, %c0_650] : memref<36x192xf32, #tpu.memory_space<vmem>>, vector<1x192xf32>
    %c25_651 = arith.constant 25 : index
    %c960_652 = arith.constant 960 : index
    %377 = vector.load %arg13[%c25_651, %c960_652] : memref<50x1152xf32, #tpu.memory_space<vmem>>, vector<1x192xf32>
    tpu.vector_store %arg13[%c25_651, %c960_652], %376 {strides = array<i32>} : memref<50x1152xf32, #tpu.memory_space<vmem>>, vector<1x192xf32>,
    %c9_653 = arith.constant 9 : index
    %c0_654 = arith.constant 0 : index
    %378 = vector.load %arg12[%c9_653, %c0_654] : memref<36x192xf32, #tpu.memory_space<vmem>>, vector<1x192xf32>
    %c34_655 = arith.constant 34 : index
    %c0_656 = arith.constant 0 : index
    %379 = vector.load %arg13[%c34_655, %c0_656] : memref<50x1152xf32, #tpu.memory_space<vmem>>, vector<1x192xf32>
    tpu.vector_store %arg13[%c34_655, %c0_656], %378 {strides = array<i32>} : memref<50x1152xf32, #tpu.memory_space<vmem>>, vector<1x192xf32>,
    %c10_657 = arith.constant 10 : index
    %c0_658 = arith.constant 0 : index
    %380 = vector.load %arg12[%c10_657, %c0_658] : memref<36x192xf32, #tpu.memory_space<vmem>>, vector<1x192xf32>
    %c34_659 = arith.constant 34 : index
    %c192_660 = arith.constant 192 : index
    %381 = vector.load %arg13[%c34_659, %c192_660] : memref<50x1152xf32, #tpu.memory_space<vmem>>, vector<1x192xf32>
    tpu.vector_store %arg13[%c34_659, %c192_660], %380 {strides = array<i32>} : memref<50x1152xf32, #tpu.memory_space<vmem>>, vector<1x192xf32>,
    %c11_661 = arith.constant 11 : index
    %c0_662 = arith.constant 0 : index
    %382 = vector.load %arg12[%c11_661, %c0_662] : memref<36x192xf32, #tpu.memory_space<vmem>>, vector<1x192xf32>
    %c34_663 = arith.constant 34 : index
    %c384_664 = arith.constant 384 : index
    %383 = vector.load %arg13[%c34_663, %c384_664] : memref<50x1152xf32, #tpu.memory_space<vmem>>, vector<1x192xf32>
    tpu.vector_store %arg13[%c34_663, %c384_664], %382 {strides = array<i32>} : memref<50x1152xf32, #tpu.memory_space<vmem>>, vector<1x192xf32>,
    %c12_665 = arith.constant 12 : index
    %c0_666 = arith.constant 0 : index
    %384 = vector.load %arg12[%c12_665, %c0_666] : memref<36x192xf32, #tpu.memory_space<vmem>>, vector<1x192xf32>
    %c34_667 = arith.constant 34 : index
    %c576_668 = arith.constant 576 : index
    %385 = vector.load %arg13[%c34_667, %c576_668] : memref<50x1152xf32, #tpu.memory_space<vmem>>, vector<1x192xf32>
    tpu.vector_store %arg13[%c34_667, %c576_668], %384 {strides = array<i32>} : memref<50x1152xf32, #tpu.memory_space<vmem>>, vector<1x192xf32>,
    %c13_669 = arith.constant 13 : index
    %c0_670 = arith.constant 0 : index
    %386 = vector.load %arg12[%c13_669, %c0_670] : memref<36x192xf32, #tpu.memory_space<vmem>>, vector<1x192xf32>
    %c34_671 = arith.constant 34 : index
    %c768_672 = arith.constant 768 : index
    %387 = vector.load %arg13[%c34_671, %c768_672] : memref<50x1152xf32, #tpu.memory_space<vmem>>, vector<1x192xf32>
    tpu.vector_store %arg13[%c34_671, %c768_672], %386 {strides = array<i32>} : memref<50x1152xf32, #tpu.memory_space<vmem>>, vector<1x192xf32>,
    %c14_673 = arith.constant 14 : index
    %c0_674 = arith.constant 0 : index
    %388 = vector.load %arg12[%c14_673, %c0_674] : memref<36x192xf32, #tpu.memory_space<vmem>>, vector<1x192xf32>
    %c34_675 = arith.constant 34 : index
    %c960_676 = arith.constant 960 : index
    %389 = vector.load %arg13[%c34_675, %c960_676] : memref<50x1152xf32, #tpu.memory_space<vmem>>, vector<1x192xf32>
    tpu.vector_store %arg13[%c34_675, %c960_676], %388 {strides = array<i32>} : memref<50x1152xf32, #tpu.memory_space<vmem>>, vector<1x192xf32>,
    %c27_677 = arith.constant 27 : index
    %c0_678 = arith.constant 0 : index
    %390 = vector.load %arg12[%c27_677, %c0_678] : memref<36x192xf32, #tpu.memory_space<vmem>>, vector<1x192xf32>
    %c35_679 = arith.constant 35 : index
    %c0_680 = arith.constant 0 : index
    %391 = vector.load %arg13[%c35_679, %c0_680] : memref<50x1152xf32, #tpu.memory_space<vmem>>, vector<1x192xf32>
    tpu.vector_store %arg13[%c35_679, %c0_680], %390 {strides = array<i32>} : memref<50x1152xf32, #tpu.memory_space<vmem>>, vector<1x192xf32>,
    %c28_681 = arith.constant 28 : index
    %c0_682 = arith.constant 0 : index
    %392 = vector.load %arg12[%c28_681, %c0_682] : memref<36x192xf32, #tpu.memory_space<vmem>>, vector<1x192xf32>
    %c35_683 = arith.constant 35 : index
    %c192_684 = arith.constant 192 : index
    %393 = vector.load %arg13[%c35_683, %c192_684] : memref<50x1152xf32, #tpu.memory_space<vmem>>, vector<1x192xf32>
    tpu.vector_store %arg13[%c35_683, %c192_684], %392 {strides = array<i32>} : memref<50x1152xf32, #tpu.memory_space<vmem>>, vector<1x192xf32>,
    %c29_685 = arith.constant 29 : index
    %c0_686 = arith.constant 0 : index
    %394 = vector.load %arg12[%c29_685, %c0_686] : memref<36x192xf32, #tpu.memory_space<vmem>>, vector<1x192xf32>
    %c35_687 = arith.constant 35 : index
    %c384_688 = arith.constant 384 : index
    %395 = vector.load %arg13[%c35_687, %c384_688] : memref<50x1152xf32, #tpu.memory_space<vmem>>, vector<1x192xf32>
    tpu.vector_store %arg13[%c35_687, %c384_688], %394 {strides = array<i32>} : memref<50x1152xf32, #tpu.memory_space<vmem>>, vector<1x192xf32>,
    %c30_689 = arith.constant 30 : index
    %c0_690 = arith.constant 0 : index
    %396 = vector.load %arg12[%c30_689, %c0_690] : memref<36x192xf32, #tpu.memory_space<vmem>>, vector<1x192xf32>
    %c35_691 = arith.constant 35 : index
    %c576_692 = arith.constant 576 : index
    %397 = vector.load %arg13[%c35_691, %c576_692] : memref<50x1152xf32, #tpu.memory_space<vmem>>, vector<1x192xf32>
    tpu.vector_store %arg13[%c35_691, %c576_692], %396 {strides = array<i32>} : memref<50x1152xf32, #tpu.memory_space<vmem>>, vector<1x192xf32>,
    %c31_693 = arith.constant 31 : index
    %c0_694 = arith.constant 0 : index
    %398 = vector.load %arg12[%c31_693, %c0_694] : memref<36x192xf32, #tpu.memory_space<vmem>>, vector<1x192xf32>
    %c35_695 = arith.constant 35 : index
    %c768_696 = arith.constant 768 : index
    %399 = vector.load %arg13[%c35_695, %c768_696] : memref<50x1152xf32, #tpu.memory_space<vmem>>, vector<1x192xf32>
    tpu.vector_store %arg13[%c35_695, %c768_696], %398 {strides = array<i32>} : memref<50x1152xf32, #tpu.memory_space<vmem>>, vector<1x192xf32>,
    %c32_697 = arith.constant 32 : index
    %c0_698 = arith.constant 0 : index
    %400 = vector.load %arg12[%c32_697, %c0_698] : memref<36x192xf32, #tpu.memory_space<vmem>>, vector<1x192xf32>
    %c35_699 = arith.constant 35 : index
    %c960_700 = arith.constant 960 : index
    %401 = vector.load %arg13[%c35_699, %c960_700] : memref<50x1152xf32, #tpu.memory_space<vmem>>, vector<1x192xf32>
    tpu.vector_store %arg13[%c35_699, %c960_700], %400 {strides = array<i32>} : memref<50x1152xf32, #tpu.memory_space<vmem>>, vector<1x192xf32>,
    %c12_701 = arith.constant 12 : index
    %c0_702 = arith.constant 0 : index
    %402 = vector.load %arg12[%c12_701, %c0_702] : memref<36x192xf32, #tpu.memory_space<vmem>>, vector<1x192xf32>
    %c44 = arith.constant 44 : index
    %c0_703 = arith.constant 0 : index
    %403 = vector.load %arg13[%c44, %c0_703] : memref<50x1152xf32, #tpu.memory_space<vmem>>, vector<1x192xf32>
    tpu.vector_store %arg13[%c44, %c0_703], %402 {strides = array<i32>} : memref<50x1152xf32, #tpu.memory_space<vmem>>, vector<1x192xf32>,
    %c13_704 = arith.constant 13 : index
    %c0_705 = arith.constant 0 : index
    %404 = vector.load %arg12[%c13_704, %c0_705] : memref<36x192xf32, #tpu.memory_space<vmem>>, vector<1x192xf32>
    %c44_706 = arith.constant 44 : index
    %c192_707 = arith.constant 192 : index
    %405 = vector.load %arg13[%c44_706, %c192_707] : memref<50x1152xf32, #tpu.memory_space<vmem>>, vector<1x192xf32>
    tpu.vector_store %arg13[%c44_706, %c192_707], %404 {strides = array<i32>} : memref<50x1152xf32, #tpu.memory_space<vmem>>, vector<1x192xf32>,
    %c14_708 = arith.constant 14 : index
    %c0_709 = arith.constant 0 : index
    %406 = vector.load %arg12[%c14_708, %c0_709] : memref<36x192xf32, #tpu.memory_space<vmem>>, vector<1x192xf32>
    %c44_710 = arith.constant 44 : index
    %c384_711 = arith.constant 384 : index
    %407 = vector.load %arg13[%c44_710, %c384_711] : memref<50x1152xf32, #tpu.memory_space<vmem>>, vector<1x192xf32>
    tpu.vector_store %arg13[%c44_710, %c384_711], %406 {strides = array<i32>} : memref<50x1152xf32, #tpu.memory_space<vmem>>, vector<1x192xf32>,
    %c15_712 = arith.constant 15 : index
    %c0_713 = arith.constant 0 : index
    %408 = vector.load %arg12[%c15_712, %c0_713] : memref<36x192xf32, #tpu.memory_space<vmem>>, vector<1x192xf32>
    %c44_714 = arith.constant 44 : index
    %c576_715 = arith.constant 576 : index
    %409 = vector.load %arg13[%c44_714, %c576_715] : memref<50x1152xf32, #tpu.memory_space<vmem>>, vector<1x192xf32>
    tpu.vector_store %arg13[%c44_714, %c576_715], %408 {strides = array<i32>} : memref<50x1152xf32, #tpu.memory_space<vmem>>, vector<1x192xf32>,
    %c16_716 = arith.constant 16 : index
    %c0_717 = arith.constant 0 : index
    %410 = vector.load %arg12[%c16_716, %c0_717] : memref<36x192xf32, #tpu.memory_space<vmem>>, vector<1x192xf32>
    %c44_718 = arith.constant 44 : index
    %c768_719 = arith.constant 768 : index
    %411 = vector.load %arg13[%c44_718, %c768_719] : memref<50x1152xf32, #tpu.memory_space<vmem>>, vector<1x192xf32>
    tpu.vector_store %arg13[%c44_718, %c768_719], %410 {strides = array<i32>} : memref<50x1152xf32, #tpu.memory_space<vmem>>, vector<1x192xf32>,
    %c17_720 = arith.constant 17 : index
    %c0_721 = arith.constant 0 : index
    %412 = vector.load %arg12[%c17_720, %c0_721] : memref<36x192xf32, #tpu.memory_space<vmem>>, vector<1x192xf32>
    %c44_722 = arith.constant 44 : index
    %c960_723 = arith.constant 960 : index
    %413 = vector.load %arg13[%c44_722, %c960_723] : memref<50x1152xf32, #tpu.memory_space<vmem>>, vector<1x192xf32>
    tpu.vector_store %arg13[%c44_722, %c960_723], %412 {strides = array<i32>} : memref<50x1152xf32, #tpu.memory_space<vmem>>, vector<1x192xf32>,
    %c30_724 = arith.constant 30 : index
    %c0_725 = arith.constant 0 : index
    %414 = vector.load %arg12[%c30_724, %c0_725] : memref<36x192xf32, #tpu.memory_space<vmem>>, vector<1x192xf32>
    %c45 = arith.constant 45 : index
    %c0_726 = arith.constant 0 : index
    %415 = vector.load %arg13[%c45, %c0_726] : memref<50x1152xf32, #tpu.memory_space<vmem>>, vector<1x192xf32>
    tpu.vector_store %arg13[%c45, %c0_726], %414 {strides = array<i32>} : memref<50x1152xf32, #tpu.memory_space<vmem>>, vector<1x192xf32>,
    %c31_727 = arith.constant 31 : index
    %c0_728 = arith.constant 0 : index
    %416 = vector.load %arg12[%c31_727, %c0_728] : memref<36x192xf32, #tpu.memory_space<vmem>>, vector<1x192xf32>
    %c45_729 = arith.constant 45 : index
    %c192_730 = arith.constant 192 : index
    %417 = vector.load %arg13[%c45_729, %c192_730] : memref<50x1152xf32, #tpu.memory_space<vmem>>, vector<1x192xf32>
    tpu.vector_store %arg13[%c45_729, %c192_730], %416 {strides = array<i32>} : memref<50x1152xf32, #tpu.memory_space<vmem>>, vector<1x192xf32>,
    %c32_731 = arith.constant 32 : index
    %c0_732 = arith.constant 0 : index
    %418 = vector.load %arg12[%c32_731, %c0_732] : memref<36x192xf32, #tpu.memory_space<vmem>>, vector<1x192xf32>
    %c45_733 = arith.constant 45 : index
    %c384_734 = arith.constant 384 : index
    %419 = vector.load %arg13[%c45_733, %c384_734] : memref<50x1152xf32, #tpu.memory_space<vmem>>, vector<1x192xf32>
    tpu.vector_store %arg13[%c45_733, %c384_734], %418 {strides = array<i32>} : memref<50x1152xf32, #tpu.memory_space<vmem>>, vector<1x192xf32>,
    %c33_735 = arith.constant 33 : index
    %c0_736 = arith.constant 0 : index
    %420 = vector.load %arg12[%c33_735, %c0_736] : memref<36x192xf32, #tpu.memory_space<vmem>>, vector<1x192xf32>
    %c45_737 = arith.constant 45 : index
    %c576_738 = arith.constant 576 : index
    %421 = vector.load %arg13[%c45_737, %c576_738] : memref<50x1152xf32, #tpu.memory_space<vmem>>, vector<1x192xf32>
    tpu.vector_store %arg13[%c45_737, %c576_738], %420 {strides = array<i32>} : memref<50x1152xf32, #tpu.memory_space<vmem>>, vector<1x192xf32>,
    %c34_739 = arith.constant 34 : index
    %c0_740 = arith.constant 0 : index
    %422 = vector.load %arg12[%c34_739, %c0_740] : memref<36x192xf32, #tpu.memory_space<vmem>>, vector<1x192xf32>
    %c45_741 = arith.constant 45 : index
    %c768_742 = arith.constant 768 : index
    %423 = vector.load %arg13[%c45_741, %c768_742] : memref<50x1152xf32, #tpu.memory_space<vmem>>, vector<1x192xf32>
    tpu.vector_store %arg13[%c45_741, %c768_742], %422 {strides = array<i32>} : memref<50x1152xf32, #tpu.memory_space<vmem>>, vector<1x192xf32>,
    %c35_743 = arith.constant 35 : index
    %c0_744 = arith.constant 0 : index
    %424 = vector.load %arg12[%c35_743, %c0_744] : memref<36x192xf32, #tpu.memory_space<vmem>>, vector<1x192xf32>
    %c45_745 = arith.constant 45 : index
    %c960_746 = arith.constant 960 : index
    %425 = vector.load %arg13[%c45_745, %c960_746] : memref<50x1152xf32, #tpu.memory_space<vmem>>, vector<1x192xf32>
    tpu.vector_store %arg13[%c45_745, %c960_746], %424 {strides = array<i32>} : memref<50x1152xf32, #tpu.memory_space<vmem>>, vector<1x192xf32>,
    %c324_747 = arith.constant 324 : index
    %c0_748 = arith.constant 0 : index
    %426 = vector.load %arg11[%c324_747, %c0_748] : memref<648x32xf32, #tpu.memory_space<vmem>>, vector<36x32xf32>
    %c0_749 = arith.constant 0 : index
    %c0_750 = arith.constant 0 : index
    %427 = vector.load %arg12[%c0_749, %c0_750] : memref<36x192xf32, #tpu.memory_space<vmem>>, vector<36x32xf32>
    tpu.vector_store %arg12[%c0_749, %c0_750], %426 {strides = array<i32>} : memref<36x192xf32, #tpu.memory_space<vmem>>, vector<36x32xf32>,
    %c360_751 = arith.constant 360 : index
    %c0_752 = arith.constant 0 : index
    %428 = vector.load %arg11[%c360_751, %c0_752] : memref<648x32xf32, #tpu.memory_space<vmem>>, vector<36x32xf32>
    %c0_753 = arith.constant 0 : index
    %c32_754 = arith.constant 32 : index
    %429 = vector.load %arg12[%c0_753, %c32_754] : memref<36x192xf32, #tpu.memory_space<vmem>>, vector<36x32xf32>
    tpu.vector_store %arg12[%c0_753, %c32_754], %428 {strides = array<i32>} : memref<36x192xf32, #tpu.memory_space<vmem>>, vector<36x32xf32>,
    %c396_755 = arith.constant 396 : index
    %c0_756 = arith.constant 0 : index
    %430 = vector.load %arg11[%c396_755, %c0_756] : memref<648x32xf32, #tpu.memory_space<vmem>>, vector<36x32xf32>
    %c0_757 = arith.constant 0 : index
    %c64_758 = arith.constant 64 : index
    %431 = vector.load %arg12[%c0_757, %c64_758] : memref<36x192xf32, #tpu.memory_space<vmem>>, vector<36x32xf32>
    tpu.vector_store %arg12[%c0_757, %c64_758], %430 {strides = array<i32>} : memref<36x192xf32, #tpu.memory_space<vmem>>, vector<36x32xf32>,
    %c432 = arith.constant 432 : index
    %c0_759 = arith.constant 0 : index
    %432 = vector.load %arg11[%c432, %c0_759] : memref<648x32xf32, #tpu.memory_space<vmem>>, vector<36x32xf32>
    %c0_760 = arith.constant 0 : index
    %c96_761 = arith.constant 96 : index
    %433 = vector.load %arg12[%c0_760, %c96_761] : memref<36x192xf32, #tpu.memory_space<vmem>>, vector<36x32xf32>
    tpu.vector_store %arg12[%c0_760, %c96_761], %432 {strides = array<i32>} : memref<36x192xf32, #tpu.memory_space<vmem>>, vector<36x32xf32>,
    %c468 = arith.constant 468 : index
    %c0_762 = arith.constant 0 : index
    %434 = vector.load %arg11[%c468, %c0_762] : memref<648x32xf32, #tpu.memory_space<vmem>>, vector<36x32xf32>
    %c0_763 = arith.constant 0 : index
    %c128_764 = arith.constant 128 : index
    %435 = vector.load %arg12[%c0_763, %c128_764] : memref<36x192xf32, #tpu.memory_space<vmem>>, vector<36x32xf32>
    tpu.vector_store %arg12[%c0_763, %c128_764], %434 {strides = array<i32>} : memref<36x192xf32, #tpu.memory_space<vmem>>, vector<36x32xf32>,
    %c504 = arith.constant 504 : index
    %c0_765 = arith.constant 0 : index
    %436 = vector.load %arg11[%c504, %c0_765] : memref<648x32xf32, #tpu.memory_space<vmem>>, vector<36x32xf32>
    %c0_766 = arith.constant 0 : index
    %c160_767 = arith.constant 160 : index
    %437 = vector.load %arg12[%c0_766, %c160_767] : memref<36x192xf32, #tpu.memory_space<vmem>>, vector<36x32xf32>
    tpu.vector_store %arg12[%c0_766, %c160_767], %436 {strides = array<i32>} : memref<36x192xf32, #tpu.memory_space<vmem>>, vector<36x32xf32>,
    %c0_768 = arith.constant 0 : index
    %c0_769 = arith.constant 0 : index
    %438 = vector.load %arg12[%c0_768, %c0_769] : memref<36x192xf32, #tpu.memory_space<vmem>>, vector<1x192xf32>
    %c6_770 = arith.constant 6 : index
    %c0_771 = arith.constant 0 : index
    %439 = vector.load %arg13[%c6_770, %c0_771] : memref<50x1152xf32, #tpu.memory_space<vmem>>, vector<1x192xf32>
    tpu.vector_store %arg13[%c6_770, %c0_771], %438 {strides = array<i32>} : memref<50x1152xf32, #tpu.memory_space<vmem>>, vector<1x192xf32>,
    %c1_772 = arith.constant 1 : index
    %c0_773 = arith.constant 0 : index
    %440 = vector.load %arg12[%c1_772, %c0_773] : memref<36x192xf32, #tpu.memory_space<vmem>>, vector<1x192xf32>
    %c6_774 = arith.constant 6 : index
    %c192_775 = arith.constant 192 : index
    %441 = vector.load %arg13[%c6_774, %c192_775] : memref<50x1152xf32, #tpu.memory_space<vmem>>, vector<1x192xf32>
    tpu.vector_store %arg13[%c6_774, %c192_775], %440 {strides = array<i32>} : memref<50x1152xf32, #tpu.memory_space<vmem>>, vector<1x192xf32>,
    %c2_776 = arith.constant 2 : index
    %c0_777 = arith.constant 0 : index
    %442 = vector.load %arg12[%c2_776, %c0_777] : memref<36x192xf32, #tpu.memory_space<vmem>>, vector<1x192xf32>
    %c6_778 = arith.constant 6 : index
    %c384_779 = arith.constant 384 : index
    %443 = vector.load %arg13[%c6_778, %c384_779] : memref<50x1152xf32, #tpu.memory_space<vmem>>, vector<1x192xf32>
    tpu.vector_store %arg13[%c6_778, %c384_779], %442 {strides = array<i32>} : memref<50x1152xf32, #tpu.memory_space<vmem>>, vector<1x192xf32>,
    %c3_780 = arith.constant 3 : index
    %c0_781 = arith.constant 0 : index
    %444 = vector.load %arg12[%c3_780, %c0_781] : memref<36x192xf32, #tpu.memory_space<vmem>>, vector<1x192xf32>
    %c6_782 = arith.constant 6 : index
    %c576_783 = arith.constant 576 : index
    %445 = vector.load %arg13[%c6_782, %c576_783] : memref<50x1152xf32, #tpu.memory_space<vmem>>, vector<1x192xf32>
    tpu.vector_store %arg13[%c6_782, %c576_783], %444 {strides = array<i32>} : memref<50x1152xf32, #tpu.memory_space<vmem>>, vector<1x192xf32>,
    %c4_784 = arith.constant 4 : index
    %c0_785 = arith.constant 0 : index
    %446 = vector.load %arg12[%c4_784, %c0_785] : memref<36x192xf32, #tpu.memory_space<vmem>>, vector<1x192xf32>
    %c6_786 = arith.constant 6 : index
    %c768_787 = arith.constant 768 : index
    %447 = vector.load %arg13[%c6_786, %c768_787] : memref<50x1152xf32, #tpu.memory_space<vmem>>, vector<1x192xf32>
    tpu.vector_store %arg13[%c6_786, %c768_787], %446 {strides = array<i32>} : memref<50x1152xf32, #tpu.memory_space<vmem>>, vector<1x192xf32>,
    %c5_788 = arith.constant 5 : index
    %c0_789 = arith.constant 0 : index
    %448 = vector.load %arg12[%c5_788, %c0_789] : memref<36x192xf32, #tpu.memory_space<vmem>>, vector<1x192xf32>
    %c6_790 = arith.constant 6 : index
    %c960_791 = arith.constant 960 : index
    %449 = vector.load %arg13[%c6_790, %c960_791] : memref<50x1152xf32, #tpu.memory_space<vmem>>, vector<1x192xf32>
    tpu.vector_store %arg13[%c6_790, %c960_791], %448 {strides = array<i32>} : memref<50x1152xf32, #tpu.memory_space<vmem>>, vector<1x192xf32>,
    %c18_792 = arith.constant 18 : index
    %c0_793 = arith.constant 0 : index
    %450 = vector.load %arg12[%c18_792, %c0_793] : memref<36x192xf32, #tpu.memory_space<vmem>>, vector<1x192xf32>
    %c7_794 = arith.constant 7 : index
    %c0_795 = arith.constant 0 : index
    %451 = vector.load %arg13[%c7_794, %c0_795] : memref<50x1152xf32, #tpu.memory_space<vmem>>, vector<1x192xf32>
    tpu.vector_store %arg13[%c7_794, %c0_795], %450 {strides = array<i32>} : memref<50x1152xf32, #tpu.memory_space<vmem>>, vector<1x192xf32>,
    %c19_796 = arith.constant 19 : index
    %c0_797 = arith.constant 0 : index
    %452 = vector.load %arg12[%c19_796, %c0_797] : memref<36x192xf32, #tpu.memory_space<vmem>>, vector<1x192xf32>
    %c7_798 = arith.constant 7 : index
    %c192_799 = arith.constant 192 : index
    %453 = vector.load %arg13[%c7_798, %c192_799] : memref<50x1152xf32, #tpu.memory_space<vmem>>, vector<1x192xf32>
    tpu.vector_store %arg13[%c7_798, %c192_799], %452 {strides = array<i32>} : memref<50x1152xf32, #tpu.memory_space<vmem>>, vector<1x192xf32>,
    %c20_800 = arith.constant 20 : index
    %c0_801 = arith.constant 0 : index
    %454 = vector.load %arg12[%c20_800, %c0_801] : memref<36x192xf32, #tpu.memory_space<vmem>>, vector<1x192xf32>
    %c7_802 = arith.constant 7 : index
    %c384_803 = arith.constant 384 : index
    %455 = vector.load %arg13[%c7_802, %c384_803] : memref<50x1152xf32, #tpu.memory_space<vmem>>, vector<1x192xf32>
    tpu.vector_store %arg13[%c7_802, %c384_803], %454 {strides = array<i32>} : memref<50x1152xf32, #tpu.memory_space<vmem>>, vector<1x192xf32>,
    %c21_804 = arith.constant 21 : index
    %c0_805 = arith.constant 0 : index
    %456 = vector.load %arg12[%c21_804, %c0_805] : memref<36x192xf32, #tpu.memory_space<vmem>>, vector<1x192xf32>
    %c7_806 = arith.constant 7 : index
    %c576_807 = arith.constant 576 : index
    %457 = vector.load %arg13[%c7_806, %c576_807] : memref<50x1152xf32, #tpu.memory_space<vmem>>, vector<1x192xf32>
    tpu.vector_store %arg13[%c7_806, %c576_807], %456 {strides = array<i32>} : memref<50x1152xf32, #tpu.memory_space<vmem>>, vector<1x192xf32>,
    %c22_808 = arith.constant 22 : index
    %c0_809 = arith.constant 0 : index
    %458 = vector.load %arg12[%c22_808, %c0_809] : memref<36x192xf32, #tpu.memory_space<vmem>>, vector<1x192xf32>
    %c7_810 = arith.constant 7 : index
    %c768_811 = arith.constant 768 : index
    %459 = vector.load %arg13[%c7_810, %c768_811] : memref<50x1152xf32, #tpu.memory_space<vmem>>, vector<1x192xf32>
    tpu.vector_store %arg13[%c7_810, %c768_811], %458 {strides = array<i32>} : memref<50x1152xf32, #tpu.memory_space<vmem>>, vector<1x192xf32>,
    %c23_812 = arith.constant 23 : index
    %c0_813 = arith.constant 0 : index
    %460 = vector.load %arg12[%c23_812, %c0_813] : memref<36x192xf32, #tpu.memory_space<vmem>>, vector<1x192xf32>
    %c7_814 = arith.constant 7 : index
    %c960_815 = arith.constant 960 : index
    %461 = vector.load %arg13[%c7_814, %c960_815] : memref<50x1152xf32, #tpu.memory_space<vmem>>, vector<1x192xf32>
    tpu.vector_store %arg13[%c7_814, %c960_815], %460 {strides = array<i32>} : memref<50x1152xf32, #tpu.memory_space<vmem>>, vector<1x192xf32>,
    %c3_816 = arith.constant 3 : index
    %c0_817 = arith.constant 0 : index
    %462 = vector.load %arg12[%c3_816, %c0_817] : memref<36x192xf32, #tpu.memory_space<vmem>>, vector<1x192xf32>
    %c16_818 = arith.constant 16 : index
    %c0_819 = arith.constant 0 : index
    %463 = vector.load %arg13[%c16_818, %c0_819] : memref<50x1152xf32, #tpu.memory_space<vmem>>, vector<1x192xf32>
    tpu.vector_store %arg13[%c16_818, %c0_819], %462 {strides = array<i32>} : memref<50x1152xf32, #tpu.memory_space<vmem>>, vector<1x192xf32>,
    %c4_820 = arith.constant 4 : index
    %c0_821 = arith.constant 0 : index
    %464 = vector.load %arg12[%c4_820, %c0_821] : memref<36x192xf32, #tpu.memory_space<vmem>>, vector<1x192xf32>
    %c16_822 = arith.constant 16 : index
    %c192_823 = arith.constant 192 : index
    %465 = vector.load %arg13[%c16_822, %c192_823] : memref<50x1152xf32, #tpu.memory_space<vmem>>, vector<1x192xf32>
    tpu.vector_store %arg13[%c16_822, %c192_823], %464 {strides = array<i32>} : memref<50x1152xf32, #tpu.memory_space<vmem>>, vector<1x192xf32>,
    %c5_824 = arith.constant 5 : index
    %c0_825 = arith.constant 0 : index
    %466 = vector.load %arg12[%c5_824, %c0_825] : memref<36x192xf32, #tpu.memory_space<vmem>>, vector<1x192xf32>
    %c16_826 = arith.constant 16 : index
    %c384_827 = arith.constant 384 : index
    %467 = vector.load %arg13[%c16_826, %c384_827] : memref<50x1152xf32, #tpu.memory_space<vmem>>, vector<1x192xf32>
    tpu.vector_store %arg13[%c16_826, %c384_827], %466 {strides = array<i32>} : memref<50x1152xf32, #tpu.memory_space<vmem>>, vector<1x192xf32>,
    %c6_828 = arith.constant 6 : index
    %c0_829 = arith.constant 0 : index
    %468 = vector.load %arg12[%c6_828, %c0_829] : memref<36x192xf32, #tpu.memory_space<vmem>>, vector<1x192xf32>
    %c16_830 = arith.constant 16 : index
    %c576_831 = arith.constant 576 : index
    %469 = vector.load %arg13[%c16_830, %c576_831] : memref<50x1152xf32, #tpu.memory_space<vmem>>, vector<1x192xf32>
    tpu.vector_store %arg13[%c16_830, %c576_831], %468 {strides = array<i32>} : memref<50x1152xf32, #tpu.memory_space<vmem>>, vector<1x192xf32>,
    %c7_832 = arith.constant 7 : index
    %c0_833 = arith.constant 0 : index
    %470 = vector.load %arg12[%c7_832, %c0_833] : memref<36x192xf32, #tpu.memory_space<vmem>>, vector<1x192xf32>
    %c16_834 = arith.constant 16 : index
    %c768_835 = arith.constant 768 : index
    %471 = vector.load %arg13[%c16_834, %c768_835] : memref<50x1152xf32, #tpu.memory_space<vmem>>, vector<1x192xf32>
    tpu.vector_store %arg13[%c16_834, %c768_835], %470 {strides = array<i32>} : memref<50x1152xf32, #tpu.memory_space<vmem>>, vector<1x192xf32>,
    %c8_836 = arith.constant 8 : index
    %c0_837 = arith.constant 0 : index
    %472 = vector.load %arg12[%c8_836, %c0_837] : memref<36x192xf32, #tpu.memory_space<vmem>>, vector<1x192xf32>
    %c16_838 = arith.constant 16 : index
    %c960_839 = arith.constant 960 : index
    %473 = vector.load %arg13[%c16_838, %c960_839] : memref<50x1152xf32, #tpu.memory_space<vmem>>, vector<1x192xf32>
    tpu.vector_store %arg13[%c16_838, %c960_839], %472 {strides = array<i32>} : memref<50x1152xf32, #tpu.memory_space<vmem>>, vector<1x192xf32>,
    %c21_840 = arith.constant 21 : index
    %c0_841 = arith.constant 0 : index
    %474 = vector.load %arg12[%c21_840, %c0_841] : memref<36x192xf32, #tpu.memory_space<vmem>>, vector<1x192xf32>
    %c17_842 = arith.constant 17 : index
    %c0_843 = arith.constant 0 : index
    %475 = vector.load %arg13[%c17_842, %c0_843] : memref<50x1152xf32, #tpu.memory_space<vmem>>, vector<1x192xf32>
    tpu.vector_store %arg13[%c17_842, %c0_843], %474 {strides = array<i32>} : memref<50x1152xf32, #tpu.memory_space<vmem>>, vector<1x192xf32>,
    %c22_844 = arith.constant 22 : index
    %c0_845 = arith.constant 0 : index
    %476 = vector.load %arg12[%c22_844, %c0_845] : memref<36x192xf32, #tpu.memory_space<vmem>>, vector<1x192xf32>
    %c17_846 = arith.constant 17 : index
    %c192_847 = arith.constant 192 : index
    %477 = vector.load %arg13[%c17_846, %c192_847] : memref<50x1152xf32, #tpu.memory_space<vmem>>, vector<1x192xf32>
    tpu.vector_store %arg13[%c17_846, %c192_847], %476 {strides = array<i32>} : memref<50x1152xf32, #tpu.memory_space<vmem>>, vector<1x192xf32>,
    %c23_848 = arith.constant 23 : index
    %c0_849 = arith.constant 0 : index
    %478 = vector.load %arg12[%c23_848, %c0_849] : memref<36x192xf32, #tpu.memory_space<vmem>>, vector<1x192xf32>
    %c17_850 = arith.constant 17 : index
    %c384_851 = arith.constant 384 : index
    %479 = vector.load %arg13[%c17_850, %c384_851] : memref<50x1152xf32, #tpu.memory_space<vmem>>, vector<1x192xf32>
    tpu.vector_store %arg13[%c17_850, %c384_851], %478 {strides = array<i32>} : memref<50x1152xf32, #tpu.memory_space<vmem>>, vector<1x192xf32>,
    %c24_852 = arith.constant 24 : index
    %c0_853 = arith.constant 0 : index
    %480 = vector.load %arg12[%c24_852, %c0_853] : memref<36x192xf32, #tpu.memory_space<vmem>>, vector<1x192xf32>
    %c17_854 = arith.constant 17 : index
    %c576_855 = arith.constant 576 : index
    %481 = vector.load %arg13[%c17_854, %c576_855] : memref<50x1152xf32, #tpu.memory_space<vmem>>, vector<1x192xf32>
    tpu.vector_store %arg13[%c17_854, %c576_855], %480 {strides = array<i32>} : memref<50x1152xf32, #tpu.memory_space<vmem>>, vector<1x192xf32>,
    %c25_856 = arith.constant 25 : index
    %c0_857 = arith.constant 0 : index
    %482 = vector.load %arg12[%c25_856, %c0_857] : memref<36x192xf32, #tpu.memory_space<vmem>>, vector<1x192xf32>
    %c17_858 = arith.constant 17 : index
    %c768_859 = arith.constant 768 : index
    %483 = vector.load %arg13[%c17_858, %c768_859] : memref<50x1152xf32, #tpu.memory_space<vmem>>, vector<1x192xf32>
    tpu.vector_store %arg13[%c17_858, %c768_859], %482 {strides = array<i32>} : memref<50x1152xf32, #tpu.memory_space<vmem>>, vector<1x192xf32>,
    %c26_860 = arith.constant 26 : index
    %c0_861 = arith.constant 0 : index
    %484 = vector.load %arg12[%c26_860, %c0_861] : memref<36x192xf32, #tpu.memory_space<vmem>>, vector<1x192xf32>
    %c17_862 = arith.constant 17 : index
    %c960_863 = arith.constant 960 : index
    %485 = vector.load %arg13[%c17_862, %c960_863] : memref<50x1152xf32, #tpu.memory_space<vmem>>, vector<1x192xf32>
    tpu.vector_store %arg13[%c17_862, %c960_863], %484 {strides = array<i32>} : memref<50x1152xf32, #tpu.memory_space<vmem>>, vector<1x192xf32>,
    %c6_864 = arith.constant 6 : index
    %c0_865 = arith.constant 0 : index
    %486 = vector.load %arg12[%c6_864, %c0_865] : memref<36x192xf32, #tpu.memory_space<vmem>>, vector<1x192xf32>
    %c26_866 = arith.constant 26 : index
    %c0_867 = arith.constant 0 : index
    %487 = vector.load %arg13[%c26_866, %c0_867] : memref<50x1152xf32, #tpu.memory_space<vmem>>, vector<1x192xf32>
    tpu.vector_store %arg13[%c26_866, %c0_867], %486 {strides = array<i32>} : memref<50x1152xf32, #tpu.memory_space<vmem>>, vector<1x192xf32>,
    %c7_868 = arith.constant 7 : index
    %c0_869 = arith.constant 0 : index
    %488 = vector.load %arg12[%c7_868, %c0_869] : memref<36x192xf32, #tpu.memory_space<vmem>>, vector<1x192xf32>
    %c26_870 = arith.constant 26 : index
    %c192_871 = arith.constant 192 : index
    %489 = vector.load %arg13[%c26_870, %c192_871] : memref<50x1152xf32, #tpu.memory_space<vmem>>, vector<1x192xf32>
    tpu.vector_store %arg13[%c26_870, %c192_871], %488 {strides = array<i32>} : memref<50x1152xf32, #tpu.memory_space<vmem>>, vector<1x192xf32>,
    %c8_872 = arith.constant 8 : index
    %c0_873 = arith.constant 0 : index
    %490 = vector.load %arg12[%c8_872, %c0_873] : memref<36x192xf32, #tpu.memory_space<vmem>>, vector<1x192xf32>
    %c26_874 = arith.constant 26 : index
    %c384_875 = arith.constant 384 : index
    %491 = vector.load %arg13[%c26_874, %c384_875] : memref<50x1152xf32, #tpu.memory_space<vmem>>, vector<1x192xf32>
    tpu.vector_store %arg13[%c26_874, %c384_875], %490 {strides = array<i32>} : memref<50x1152xf32, #tpu.memory_space<vmem>>, vector<1x192xf32>,
    %c9_876 = arith.constant 9 : index
    %c0_877 = arith.constant 0 : index
    %492 = vector.load %arg12[%c9_876, %c0_877] : memref<36x192xf32, #tpu.memory_space<vmem>>, vector<1x192xf32>
    %c26_878 = arith.constant 26 : index
    %c576_879 = arith.constant 576 : index
    %493 = vector.load %arg13[%c26_878, %c576_879] : memref<50x1152xf32, #tpu.memory_space<vmem>>, vector<1x192xf32>
    tpu.vector_store %arg13[%c26_878, %c576_879], %492 {strides = array<i32>} : memref<50x1152xf32, #tpu.memory_space<vmem>>, vector<1x192xf32>,
    %c10_880 = arith.constant 10 : index
    %c0_881 = arith.constant 0 : index
    %494 = vector.load %arg12[%c10_880, %c0_881] : memref<36x192xf32, #tpu.memory_space<vmem>>, vector<1x192xf32>
    %c26_882 = arith.constant 26 : index
    %c768_883 = arith.constant 768 : index
    %495 = vector.load %arg13[%c26_882, %c768_883] : memref<50x1152xf32, #tpu.memory_space<vmem>>, vector<1x192xf32>
    tpu.vector_store %arg13[%c26_882, %c768_883], %494 {strides = array<i32>} : memref<50x1152xf32, #tpu.memory_space<vmem>>, vector<1x192xf32>,
    %c11_884 = arith.constant 11 : index
    %c0_885 = arith.constant 0 : index
    %496 = vector.load %arg12[%c11_884, %c0_885] : memref<36x192xf32, #tpu.memory_space<vmem>>, vector<1x192xf32>
    %c26_886 = arith.constant 26 : index
    %c960_887 = arith.constant 960 : index
    %497 = vector.load %arg13[%c26_886, %c960_887] : memref<50x1152xf32, #tpu.memory_space<vmem>>, vector<1x192xf32>
    tpu.vector_store %arg13[%c26_886, %c960_887], %496 {strides = array<i32>} : memref<50x1152xf32, #tpu.memory_space<vmem>>, vector<1x192xf32>,
    %c24_888 = arith.constant 24 : index
    %c0_889 = arith.constant 0 : index
    %498 = vector.load %arg12[%c24_888, %c0_889] : memref<36x192xf32, #tpu.memory_space<vmem>>, vector<1x192xf32>
    %c27_890 = arith.constant 27 : index
    %c0_891 = arith.constant 0 : index
    %499 = vector.load %arg13[%c27_890, %c0_891] : memref<50x1152xf32, #tpu.memory_space<vmem>>, vector<1x192xf32>
    tpu.vector_store %arg13[%c27_890, %c0_891], %498 {strides = array<i32>} : memref<50x1152xf32, #tpu.memory_space<vmem>>, vector<1x192xf32>,
    %c25_892 = arith.constant 25 : index
    %c0_893 = arith.constant 0 : index
    %500 = vector.load %arg12[%c25_892, %c0_893] : memref<36x192xf32, #tpu.memory_space<vmem>>, vector<1x192xf32>
    %c27_894 = arith.constant 27 : index
    %c192_895 = arith.constant 192 : index
    %501 = vector.load %arg13[%c27_894, %c192_895] : memref<50x1152xf32, #tpu.memory_space<vmem>>, vector<1x192xf32>
    tpu.vector_store %arg13[%c27_894, %c192_895], %500 {strides = array<i32>} : memref<50x1152xf32, #tpu.memory_space<vmem>>, vector<1x192xf32>,
    %c26_896 = arith.constant 26 : index
    %c0_897 = arith.constant 0 : index
    %502 = vector.load %arg12[%c26_896, %c0_897] : memref<36x192xf32, #tpu.memory_space<vmem>>, vector<1x192xf32>
    %c27_898 = arith.constant 27 : index
    %c384_899 = arith.constant 384 : index
    %503 = vector.load %arg13[%c27_898, %c384_899] : memref<50x1152xf32, #tpu.memory_space<vmem>>, vector<1x192xf32>
    tpu.vector_store %arg13[%c27_898, %c384_899], %502 {strides = array<i32>} : memref<50x1152xf32, #tpu.memory_space<vmem>>, vector<1x192xf32>,
    %c27_900 = arith.constant 27 : index
    %c0_901 = arith.constant 0 : index
    %504 = vector.load %arg12[%c27_900, %c0_901] : memref<36x192xf32, #tpu.memory_space<vmem>>, vector<1x192xf32>
    %c27_902 = arith.constant 27 : index
    %c576_903 = arith.constant 576 : index
    %505 = vector.load %arg13[%c27_902, %c576_903] : memref<50x1152xf32, #tpu.memory_space<vmem>>, vector<1x192xf32>
    tpu.vector_store %arg13[%c27_902, %c576_903], %504 {strides = array<i32>} : memref<50x1152xf32, #tpu.memory_space<vmem>>, vector<1x192xf32>,
    %c28_904 = arith.constant 28 : index
    %c0_905 = arith.constant 0 : index
    %506 = vector.load %arg12[%c28_904, %c0_905] : memref<36x192xf32, #tpu.memory_space<vmem>>, vector<1x192xf32>
    %c27_906 = arith.constant 27 : index
    %c768_907 = arith.constant 768 : index
    %507 = vector.load %arg13[%c27_906, %c768_907] : memref<50x1152xf32, #tpu.memory_space<vmem>>, vector<1x192xf32>
    tpu.vector_store %arg13[%c27_906, %c768_907], %506 {strides = array<i32>} : memref<50x1152xf32, #tpu.memory_space<vmem>>, vector<1x192xf32>,
    %c29_908 = arith.constant 29 : index
    %c0_909 = arith.constant 0 : index
    %508 = vector.load %arg12[%c29_908, %c0_909] : memref<36x192xf32, #tpu.memory_space<vmem>>, vector<1x192xf32>
    %c27_910 = arith.constant 27 : index
    %c960_911 = arith.constant 960 : index
    %509 = vector.load %arg13[%c27_910, %c960_911] : memref<50x1152xf32, #tpu.memory_space<vmem>>, vector<1x192xf32>
    tpu.vector_store %arg13[%c27_910, %c960_911], %508 {strides = array<i32>} : memref<50x1152xf32, #tpu.memory_space<vmem>>, vector<1x192xf32>,
    %c9_912 = arith.constant 9 : index
    %c0_913 = arith.constant 0 : index
    %510 = vector.load %arg12[%c9_912, %c0_913] : memref<36x192xf32, #tpu.memory_space<vmem>>, vector<1x192xf32>
    %c36_914 = arith.constant 36 : index
    %c0_915 = arith.constant 0 : index
    %511 = vector.load %arg13[%c36_914, %c0_915] : memref<50x1152xf32, #tpu.memory_space<vmem>>, vector<1x192xf32>
    tpu.vector_store %arg13[%c36_914, %c0_915], %510 {strides = array<i32>} : memref<50x1152xf32, #tpu.memory_space<vmem>>, vector<1x192xf32>,
    %c10_916 = arith.constant 10 : index
    %c0_917 = arith.constant 0 : index
    %512 = vector.load %arg12[%c10_916, %c0_917] : memref<36x192xf32, #tpu.memory_space<vmem>>, vector<1x192xf32>
    %c36_918 = arith.constant 36 : index
    %c192_919 = arith.constant 192 : index
    %513 = vector.load %arg13[%c36_918, %c192_919] : memref<50x1152xf32, #tpu.memory_space<vmem>>, vector<1x192xf32>
    tpu.vector_store %arg13[%c36_918, %c192_919], %512 {strides = array<i32>} : memref<50x1152xf32, #tpu.memory_space<vmem>>, vector<1x192xf32>,
    %c11_920 = arith.constant 11 : index
    %c0_921 = arith.constant 0 : index
    %514 = vector.load %arg12[%c11_920, %c0_921] : memref<36x192xf32, #tpu.memory_space<vmem>>, vector<1x192xf32>
    %c36_922 = arith.constant 36 : index
    %c384_923 = arith.constant 384 : index
    %515 = vector.load %arg13[%c36_922, %c384_923] : memref<50x1152xf32, #tpu.memory_space<vmem>>, vector<1x192xf32>
    tpu.vector_store %arg13[%c36_922, %c384_923], %514 {strides = array<i32>} : memref<50x1152xf32, #tpu.memory_space<vmem>>, vector<1x192xf32>,
    %c12_924 = arith.constant 12 : index
    %c0_925 = arith.constant 0 : index
    %516 = vector.load %arg12[%c12_924, %c0_925] : memref<36x192xf32, #tpu.memory_space<vmem>>, vector<1x192xf32>
    %c36_926 = arith.constant 36 : index
    %c576_927 = arith.constant 576 : index
    %517 = vector.load %arg13[%c36_926, %c576_927] : memref<50x1152xf32, #tpu.memory_space<vmem>>, vector<1x192xf32>
    tpu.vector_store %arg13[%c36_926, %c576_927], %516 {strides = array<i32>} : memref<50x1152xf32, #tpu.memory_space<vmem>>, vector<1x192xf32>,
    %c13_928 = arith.constant 13 : index
    %c0_929 = arith.constant 0 : index
    %518 = vector.load %arg12[%c13_928, %c0_929] : memref<36x192xf32, #tpu.memory_space<vmem>>, vector<1x192xf32>
    %c36_930 = arith.constant 36 : index
    %c768_931 = arith.constant 768 : index
    %519 = vector.load %arg13[%c36_930, %c768_931] : memref<50x1152xf32, #tpu.memory_space<vmem>>, vector<1x192xf32>
    tpu.vector_store %arg13[%c36_930, %c768_931], %518 {strides = array<i32>} : memref<50x1152xf32, #tpu.memory_space<vmem>>, vector<1x192xf32>,
    %c14_932 = arith.constant 14 : index
    %c0_933 = arith.constant 0 : index
    %520 = vector.load %arg12[%c14_932, %c0_933] : memref<36x192xf32, #tpu.memory_space<vmem>>, vector<1x192xf32>
    %c36_934 = arith.constant 36 : index
    %c960_935 = arith.constant 960 : index
    %521 = vector.load %arg13[%c36_934, %c960_935] : memref<50x1152xf32, #tpu.memory_space<vmem>>, vector<1x192xf32>
    tpu.vector_store %arg13[%c36_934, %c960_935], %520 {strides = array<i32>} : memref<50x1152xf32, #tpu.memory_space<vmem>>, vector<1x192xf32>,
    %c27_936 = arith.constant 27 : index
    %c0_937 = arith.constant 0 : index
    %522 = vector.load %arg12[%c27_936, %c0_937] : memref<36x192xf32, #tpu.memory_space<vmem>>, vector<1x192xf32>
    %c37 = arith.constant 37 : index
    %c0_938 = arith.constant 0 : index
    %523 = vector.load %arg13[%c37, %c0_938] : memref<50x1152xf32, #tpu.memory_space<vmem>>, vector<1x192xf32>
    tpu.vector_store %arg13[%c37, %c0_938], %522 {strides = array<i32>} : memref<50x1152xf32, #tpu.memory_space<vmem>>, vector<1x192xf32>,
    %c28_939 = arith.constant 28 : index
    %c0_940 = arith.constant 0 : index
    %524 = vector.load %arg12[%c28_939, %c0_940] : memref<36x192xf32, #tpu.memory_space<vmem>>, vector<1x192xf32>
    %c37_941 = arith.constant 37 : index
    %c192_942 = arith.constant 192 : index
    %525 = vector.load %arg13[%c37_941, %c192_942] : memref<50x1152xf32, #tpu.memory_space<vmem>>, vector<1x192xf32>
    tpu.vector_store %arg13[%c37_941, %c192_942], %524 {strides = array<i32>} : memref<50x1152xf32, #tpu.memory_space<vmem>>, vector<1x192xf32>,
    %c29_943 = arith.constant 29 : index
    %c0_944 = arith.constant 0 : index
    %526 = vector.load %arg12[%c29_943, %c0_944] : memref<36x192xf32, #tpu.memory_space<vmem>>, vector<1x192xf32>
    %c37_945 = arith.constant 37 : index
    %c384_946 = arith.constant 384 : index
    %527 = vector.load %arg13[%c37_945, %c384_946] : memref<50x1152xf32, #tpu.memory_space<vmem>>, vector<1x192xf32>
    tpu.vector_store %arg13[%c37_945, %c384_946], %526 {strides = array<i32>} : memref<50x1152xf32, #tpu.memory_space<vmem>>, vector<1x192xf32>,
    %c30_947 = arith.constant 30 : index
    %c0_948 = arith.constant 0 : index
    %528 = vector.load %arg12[%c30_947, %c0_948] : memref<36x192xf32, #tpu.memory_space<vmem>>, vector<1x192xf32>
    %c37_949 = arith.constant 37 : index
    %c576_950 = arith.constant 576 : index
    %529 = vector.load %arg13[%c37_949, %c576_950] : memref<50x1152xf32, #tpu.memory_space<vmem>>, vector<1x192xf32>
    tpu.vector_store %arg13[%c37_949, %c576_950], %528 {strides = array<i32>} : memref<50x1152xf32, #tpu.memory_space<vmem>>, vector<1x192xf32>,
    %c31_951 = arith.constant 31 : index
    %c0_952 = arith.constant 0 : index
    %530 = vector.load %arg12[%c31_951, %c0_952] : memref<36x192xf32, #tpu.memory_space<vmem>>, vector<1x192xf32>
    %c37_953 = arith.constant 37 : index
    %c768_954 = arith.constant 768 : index
    %531 = vector.load %arg13[%c37_953, %c768_954] : memref<50x1152xf32, #tpu.memory_space<vmem>>, vector<1x192xf32>
    tpu.vector_store %arg13[%c37_953, %c768_954], %530 {strides = array<i32>} : memref<50x1152xf32, #tpu.memory_space<vmem>>, vector<1x192xf32>,
    %c32_955 = arith.constant 32 : index
    %c0_956 = arith.constant 0 : index
    %532 = vector.load %arg12[%c32_955, %c0_956] : memref<36x192xf32, #tpu.memory_space<vmem>>, vector<1x192xf32>
    %c37_957 = arith.constant 37 : index
    %c960_958 = arith.constant 960 : index
    %533 = vector.load %arg13[%c37_957, %c960_958] : memref<50x1152xf32, #tpu.memory_space<vmem>>, vector<1x192xf32>
    tpu.vector_store %arg13[%c37_957, %c960_958], %532 {strides = array<i32>} : memref<50x1152xf32, #tpu.memory_space<vmem>>, vector<1x192xf32>,
    %c12_959 = arith.constant 12 : index
    %c0_960 = arith.constant 0 : index
    %534 = vector.load %arg12[%c12_959, %c0_960] : memref<36x192xf32, #tpu.memory_space<vmem>>, vector<1x192xf32>
    %c46 = arith.constant 46 : index
    %c0_961 = arith.constant 0 : index
    %535 = vector.load %arg13[%c46, %c0_961] : memref<50x1152xf32, #tpu.memory_space<vmem>>, vector<1x192xf32>
    tpu.vector_store %arg13[%c46, %c0_961], %534 {strides = array<i32>} : memref<50x1152xf32, #tpu.memory_space<vmem>>, vector<1x192xf32>,
    %c13_962 = arith.constant 13 : index
    %c0_963 = arith.constant 0 : index
    %536 = vector.load %arg12[%c13_962, %c0_963] : memref<36x192xf32, #tpu.memory_space<vmem>>, vector<1x192xf32>
    %c46_964 = arith.constant 46 : index
    %c192_965 = arith.constant 192 : index
    %537 = vector.load %arg13[%c46_964, %c192_965] : memref<50x1152xf32, #tpu.memory_space<vmem>>, vector<1x192xf32>
    tpu.vector_store %arg13[%c46_964, %c192_965], %536 {strides = array<i32>} : memref<50x1152xf32, #tpu.memory_space<vmem>>, vector<1x192xf32>,
    %c14_966 = arith.constant 14 : index
    %c0_967 = arith.constant 0 : index
    %538 = vector.load %arg12[%c14_966, %c0_967] : memref<36x192xf32, #tpu.memory_space<vmem>>, vector<1x192xf32>
    %c46_968 = arith.constant 46 : index
    %c384_969 = arith.constant 384 : index
    %539 = vector.load %arg13[%c46_968, %c384_969] : memref<50x1152xf32, #tpu.memory_space<vmem>>, vector<1x192xf32>
    tpu.vector_store %arg13[%c46_968, %c384_969], %538 {strides = array<i32>} : memref<50x1152xf32, #tpu.memory_space<vmem>>, vector<1x192xf32>,
    %c15_970 = arith.constant 15 : index
    %c0_971 = arith.constant 0 : index
    %540 = vector.load %arg12[%c15_970, %c0_971] : memref<36x192xf32, #tpu.memory_space<vmem>>, vector<1x192xf32>
    %c46_972 = arith.constant 46 : index
    %c576_973 = arith.constant 576 : index
    %541 = vector.load %arg13[%c46_972, %c576_973] : memref<50x1152xf32, #tpu.memory_space<vmem>>, vector<1x192xf32>
    tpu.vector_store %arg13[%c46_972, %c576_973], %540 {strides = array<i32>} : memref<50x1152xf32, #tpu.memory_space<vmem>>, vector<1x192xf32>,
    %c16_974 = arith.constant 16 : index
    %c0_975 = arith.constant 0 : index
    %542 = vector.load %arg12[%c16_974, %c0_975] : memref<36x192xf32, #tpu.memory_space<vmem>>, vector<1x192xf32>
    %c46_976 = arith.constant 46 : index
    %c768_977 = arith.constant 768 : index
    %543 = vector.load %arg13[%c46_976, %c768_977] : memref<50x1152xf32, #tpu.memory_space<vmem>>, vector<1x192xf32>
    tpu.vector_store %arg13[%c46_976, %c768_977], %542 {strides = array<i32>} : memref<50x1152xf32, #tpu.memory_space<vmem>>, vector<1x192xf32>,
    %c17_978 = arith.constant 17 : index
    %c0_979 = arith.constant 0 : index
    %544 = vector.load %arg12[%c17_978, %c0_979] : memref<36x192xf32, #tpu.memory_space<vmem>>, vector<1x192xf32>
    %c46_980 = arith.constant 46 : index
    %c960_981 = arith.constant 960 : index
    %545 = vector.load %arg13[%c46_980, %c960_981] : memref<50x1152xf32, #tpu.memory_space<vmem>>, vector<1x192xf32>
    tpu.vector_store %arg13[%c46_980, %c960_981], %544 {strides = array<i32>} : memref<50x1152xf32, #tpu.memory_space<vmem>>, vector<1x192xf32>,
    %c30_982 = arith.constant 30 : index
    %c0_983 = arith.constant 0 : index
    %546 = vector.load %arg12[%c30_982, %c0_983] : memref<36x192xf32, #tpu.memory_space<vmem>>, vector<1x192xf32>
    %c47 = arith.constant 47 : index
    %c0_984 = arith.constant 0 : index
    %547 = vector.load %arg13[%c47, %c0_984] : memref<50x1152xf32, #tpu.memory_space<vmem>>, vector<1x192xf32>
    tpu.vector_store %arg13[%c47, %c0_984], %546 {strides = array<i32>} : memref<50x1152xf32, #tpu.memory_space<vmem>>, vector<1x192xf32>,
    %c31_985 = arith.constant 31 : index
    %c0_986 = arith.constant 0 : index
    %548 = vector.load %arg12[%c31_985, %c0_986] : memref<36x192xf32, #tpu.memory_space<vmem>>, vector<1x192xf32>
    %c47_987 = arith.constant 47 : index
    %c192_988 = arith.constant 192 : index
    %549 = vector.load %arg13[%c47_987, %c192_988] : memref<50x1152xf32, #tpu.memory_space<vmem>>, vector<1x192xf32>
    tpu.vector_store %arg13[%c47_987, %c192_988], %548 {strides = array<i32>} : memref<50x1152xf32, #tpu.memory_space<vmem>>, vector<1x192xf32>,
    %c32_989 = arith.constant 32 : index
    %c0_990 = arith.constant 0 : index
    %550 = vector.load %arg12[%c32_989, %c0_990] : memref<36x192xf32, #tpu.memory_space<vmem>>, vector<1x192xf32>
    %c47_991 = arith.constant 47 : index
    %c384_992 = arith.constant 384 : index
    %551 = vector.load %arg13[%c47_991, %c384_992] : memref<50x1152xf32, #tpu.memory_space<vmem>>, vector<1x192xf32>
    tpu.vector_store %arg13[%c47_991, %c384_992], %550 {strides = array<i32>} : memref<50x1152xf32, #tpu.memory_space<vmem>>, vector<1x192xf32>,
    %c33_993 = arith.constant 33 : index
    %c0_994 = arith.constant 0 : index
    %552 = vector.load %arg12[%c33_993, %c0_994] : memref<36x192xf32, #tpu.memory_space<vmem>>, vector<1x192xf32>
    %c47_995 = arith.constant 47 : index
    %c576_996 = arith.constant 576 : index
    %553 = vector.load %arg13[%c47_995, %c576_996] : memref<50x1152xf32, #tpu.memory_space<vmem>>, vector<1x192xf32>
    tpu.vector_store %arg13[%c47_995, %c576_996], %552 {strides = array<i32>} : memref<50x1152xf32, #tpu.memory_space<vmem>>, vector<1x192xf32>,
    %c34_997 = arith.constant 34 : index
    %c0_998 = arith.constant 0 : index
    %554 = vector.load %arg12[%c34_997, %c0_998] : memref<36x192xf32, #tpu.memory_space<vmem>>, vector<1x192xf32>
    %c47_999 = arith.constant 47 : index
    %c768_1000 = arith.constant 768 : index
    %555 = vector.load %arg13[%c47_999, %c768_1000] : memref<50x1152xf32, #tpu.memory_space<vmem>>, vector<1x192xf32>
    tpu.vector_store %arg13[%c47_999, %c768_1000], %554 {strides = array<i32>} : memref<50x1152xf32, #tpu.memory_space<vmem>>, vector<1x192xf32>,
    %c35_1001 = arith.constant 35 : index
    %c0_1002 = arith.constant 0 : index
    %556 = vector.load %arg12[%c35_1001, %c0_1002] : memref<36x192xf32, #tpu.memory_space<vmem>>, vector<1x192xf32>
    %c47_1003 = arith.constant 47 : index
    %c960_1004 = arith.constant 960 : index
    %557 = vector.load %arg13[%c47_1003, %c960_1004] : memref<50x1152xf32, #tpu.memory_space<vmem>>, vector<1x192xf32>
    tpu.vector_store %arg13[%c47_1003, %c960_1004], %556 {strides = array<i32>} : memref<50x1152xf32, #tpu.memory_space<vmem>>, vector<1x192xf32>,
    %c432_1005 = arith.constant 432 : index
    %c0_1006 = arith.constant 0 : index
    %558 = vector.load %arg11[%c432_1005, %c0_1006] : memref<648x32xf32, #tpu.memory_space<vmem>>, vector<36x32xf32>
    %c0_1007 = arith.constant 0 : index
    %c0_1008 = arith.constant 0 : index
    %559 = vector.load %arg12[%c0_1007, %c0_1008] : memref<36x192xf32, #tpu.memory_space<vmem>>, vector<36x32xf32>
    tpu.vector_store %arg12[%c0_1007, %c0_1008], %558 {strides = array<i32>} : memref<36x192xf32, #tpu.memory_space<vmem>>, vector<36x32xf32>,
    %c468_1009 = arith.constant 468 : index
    %c0_1010 = arith.constant 0 : index
    %560 = vector.load %arg11[%c468_1009, %c0_1010] : memref<648x32xf32, #tpu.memory_space<vmem>>, vector<36x32xf32>
    %c0_1011 = arith.constant 0 : index
    %c32_1012 = arith.constant 32 : index
    %561 = vector.load %arg12[%c0_1011, %c32_1012] : memref<36x192xf32, #tpu.memory_space<vmem>>, vector<36x32xf32>
    tpu.vector_store %arg12[%c0_1011, %c32_1012], %560 {strides = array<i32>} : memref<36x192xf32, #tpu.memory_space<vmem>>, vector<36x32xf32>,
    %c504_1013 = arith.constant 504 : index
    %c0_1014 = arith.constant 0 : index
    %562 = vector.load %arg11[%c504_1013, %c0_1014] : memref<648x32xf32, #tpu.memory_space<vmem>>, vector<36x32xf32>
    %c0_1015 = arith.constant 0 : index
    %c64_1016 = arith.constant 64 : index
    %563 = vector.load %arg12[%c0_1015, %c64_1016] : memref<36x192xf32, #tpu.memory_space<vmem>>, vector<36x32xf32>
    tpu.vector_store %arg12[%c0_1015, %c64_1016], %562 {strides = array<i32>} : memref<36x192xf32, #tpu.memory_space<vmem>>, vector<36x32xf32>,
    %c540 = arith.constant 540 : index
    %c0_1017 = arith.constant 0 : index
    %564 = vector.load %arg11[%c540, %c0_1017] : memref<648x32xf32, #tpu.memory_space<vmem>>, vector<36x32xf32>
    %c0_1018 = arith.constant 0 : index
    %c96_1019 = arith.constant 96 : index
    %565 = vector.load %arg12[%c0_1018, %c96_1019] : memref<36x192xf32, #tpu.memory_space<vmem>>, vector<36x32xf32>
    tpu.vector_store %arg12[%c0_1018, %c96_1019], %564 {strides = array<i32>} : memref<36x192xf32, #tpu.memory_space<vmem>>, vector<36x32xf32>,
    %c576_1020 = arith.constant 576 : index
    %c0_1021 = arith.constant 0 : index
    %566 = vector.load %arg11[%c576_1020, %c0_1021] : memref<648x32xf32, #tpu.memory_space<vmem>>, vector<36x32xf32>
    %c0_1022 = arith.constant 0 : index
    %c128_1023 = arith.constant 128 : index
    %567 = vector.load %arg12[%c0_1022, %c128_1023] : memref<36x192xf32, #tpu.memory_space<vmem>>, vector<36x32xf32>
    tpu.vector_store %arg12[%c0_1022, %c128_1023], %566 {strides = array<i32>} : memref<36x192xf32, #tpu.memory_space<vmem>>, vector<36x32xf32>,
    %c612 = arith.constant 612 : index
    %c0_1024 = arith.constant 0 : index
    %568 = vector.load %arg11[%c612, %c0_1024] : memref<648x32xf32, #tpu.memory_space<vmem>>, vector<36x32xf32>
    %c0_1025 = arith.constant 0 : index
    %c160_1026 = arith.constant 160 : index
    %569 = vector.load %arg12[%c0_1025, %c160_1026] : memref<36x192xf32, #tpu.memory_space<vmem>>, vector<36x32xf32>
    tpu.vector_store %arg12[%c0_1025, %c160_1026], %568 {strides = array<i32>} : memref<36x192xf32, #tpu.memory_space<vmem>>, vector<36x32xf32>,
    %c0_1027 = arith.constant 0 : index
    %c0_1028 = arith.constant 0 : index
    %570 = vector.load %arg12[%c0_1027, %c0_1028] : memref<36x192xf32, #tpu.memory_space<vmem>>, vector<1x192xf32>
    %c8_1029 = arith.constant 8 : index
    %c0_1030 = arith.constant 0 : index
    %571 = vector.load %arg13[%c8_1029, %c0_1030] : memref<50x1152xf32, #tpu.memory_space<vmem>>, vector<1x192xf32>
    tpu.vector_store %arg13[%c8_1029, %c0_1030], %570 {strides = array<i32>} : memref<50x1152xf32, #tpu.memory_space<vmem>>, vector<1x192xf32>,
    %c1_1031 = arith.constant 1 : index
    %c0_1032 = arith.constant 0 : index
    %572 = vector.load %arg12[%c1_1031, %c0_1032] : memref<36x192xf32, #tpu.memory_space<vmem>>, vector<1x192xf32>
    %c8_1033 = arith.constant 8 : index
    %c192_1034 = arith.constant 192 : index
    %573 = vector.load %arg13[%c8_1033, %c192_1034] : memref<50x1152xf32, #tpu.memory_space<vmem>>, vector<1x192xf32>
    tpu.vector_store %arg13[%c8_1033, %c192_1034], %572 {strides = array<i32>} : memref<50x1152xf32, #tpu.memory_space<vmem>>, vector<1x192xf32>,
    %c2_1035 = arith.constant 2 : index
    %c0_1036 = arith.constant 0 : index
    %574 = vector.load %arg12[%c2_1035, %c0_1036] : memref<36x192xf32, #tpu.memory_space<vmem>>, vector<1x192xf32>
    %c8_1037 = arith.constant 8 : index
    %c384_1038 = arith.constant 384 : index
    %575 = vector.load %arg13[%c8_1037, %c384_1038] : memref<50x1152xf32, #tpu.memory_space<vmem>>, vector<1x192xf32>
    tpu.vector_store %arg13[%c8_1037, %c384_1038], %574 {strides = array<i32>} : memref<50x1152xf32, #tpu.memory_space<vmem>>, vector<1x192xf32>,
    %c3_1039 = arith.constant 3 : index
    %c0_1040 = arith.constant 0 : index
    %576 = vector.load %arg12[%c3_1039, %c0_1040] : memref<36x192xf32, #tpu.memory_space<vmem>>, vector<1x192xf32>
    %c8_1041 = arith.constant 8 : index
    %c576_1042 = arith.constant 576 : index
    %577 = vector.load %arg13[%c8_1041, %c576_1042] : memref<50x1152xf32, #tpu.memory_space<vmem>>, vector<1x192xf32>
    tpu.vector_store %arg13[%c8_1041, %c576_1042], %576 {strides = array<i32>} : memref<50x1152xf32, #tpu.memory_space<vmem>>, vector<1x192xf32>,
    %c4_1043 = arith.constant 4 : index
    %c0_1044 = arith.constant 0 : index
    %578 = vector.load %arg12[%c4_1043, %c0_1044] : memref<36x192xf32, #tpu.memory_space<vmem>>, vector<1x192xf32>
    %c8_1045 = arith.constant 8 : index
    %c768_1046 = arith.constant 768 : index
    %579 = vector.load %arg13[%c8_1045, %c768_1046] : memref<50x1152xf32, #tpu.memory_space<vmem>>, vector<1x192xf32>
    tpu.vector_store %arg13[%c8_1045, %c768_1046], %578 {strides = array<i32>} : memref<50x1152xf32, #tpu.memory_space<vmem>>, vector<1x192xf32>,
    %c5_1047 = arith.constant 5 : index
    %c0_1048 = arith.constant 0 : index
    %580 = vector.load %arg12[%c5_1047, %c0_1048] : memref<36x192xf32, #tpu.memory_space<vmem>>, vector<1x192xf32>
    %c8_1049 = arith.constant 8 : index
    %c960_1050 = arith.constant 960 : index
    %581 = vector.load %arg13[%c8_1049, %c960_1050] : memref<50x1152xf32, #tpu.memory_space<vmem>>, vector<1x192xf32>
    tpu.vector_store %arg13[%c8_1049, %c960_1050], %580 {strides = array<i32>} : memref<50x1152xf32, #tpu.memory_space<vmem>>, vector<1x192xf32>,
    %c18_1051 = arith.constant 18 : index
    %c0_1052 = arith.constant 0 : index
    %582 = vector.load %arg12[%c18_1051, %c0_1052] : memref<36x192xf32, #tpu.memory_space<vmem>>, vector<1x192xf32>
    %c9_1053 = arith.constant 9 : index
    %c0_1054 = arith.constant 0 : index
    %583 = vector.load %arg13[%c9_1053, %c0_1054] : memref<50x1152xf32, #tpu.memory_space<vmem>>, vector<1x192xf32>
    tpu.vector_store %arg13[%c9_1053, %c0_1054], %582 {strides = array<i32>} : memref<50x1152xf32, #tpu.memory_space<vmem>>, vector<1x192xf32>,
    %c19_1055 = arith.constant 19 : index
    %c0_1056 = arith.constant 0 : index
    %584 = vector.load %arg12[%c19_1055, %c0_1056] : memref<36x192xf32, #tpu.memory_space<vmem>>, vector<1x192xf32>
    %c9_1057 = arith.constant 9 : index
    %c192_1058 = arith.constant 192 : index
    %585 = vector.load %arg13[%c9_1057, %c192_1058] : memref<50x1152xf32, #tpu.memory_space<vmem>>, vector<1x192xf32>
    tpu.vector_store %arg13[%c9_1057, %c192_1058], %584 {strides = array<i32>} : memref<50x1152xf32, #tpu.memory_space<vmem>>, vector<1x192xf32>,
    %c20_1059 = arith.constant 20 : index
    %c0_1060 = arith.constant 0 : index
    %586 = vector.load %arg12[%c20_1059, %c0_1060] : memref<36x192xf32, #tpu.memory_space<vmem>>, vector<1x192xf32>
    %c9_1061 = arith.constant 9 : index
    %c384_1062 = arith.constant 384 : index
    %587 = vector.load %arg13[%c9_1061, %c384_1062] : memref<50x1152xf32, #tpu.memory_space<vmem>>, vector<1x192xf32>
    tpu.vector_store %arg13[%c9_1061, %c384_1062], %586 {strides = array<i32>} : memref<50x1152xf32, #tpu.memory_space<vmem>>, vector<1x192xf32>,
    %c21_1063 = arith.constant 21 : index
    %c0_1064 = arith.constant 0 : index
    %588 = vector.load %arg12[%c21_1063, %c0_1064] : memref<36x192xf32, #tpu.memory_space<vmem>>, vector<1x192xf32>
    %c9_1065 = arith.constant 9 : index
    %c576_1066 = arith.constant 576 : index
    %589 = vector.load %arg13[%c9_1065, %c576_1066] : memref<50x1152xf32, #tpu.memory_space<vmem>>, vector<1x192xf32>
    tpu.vector_store %arg13[%c9_1065, %c576_1066], %588 {strides = array<i32>} : memref<50x1152xf32, #tpu.memory_space<vmem>>, vector<1x192xf32>,
    %c22_1067 = arith.constant 22 : index
    %c0_1068 = arith.constant 0 : index
    %590 = vector.load %arg12[%c22_1067, %c0_1068] : memref<36x192xf32, #tpu.memory_space<vmem>>, vector<1x192xf32>
    %c9_1069 = arith.constant 9 : index
    %c768_1070 = arith.constant 768 : index
    %591 = vector.load %arg13[%c9_1069, %c768_1070] : memref<50x1152xf32, #tpu.memory_space<vmem>>, vector<1x192xf32>
    tpu.vector_store %arg13[%c9_1069, %c768_1070], %590 {strides = array<i32>} : memref<50x1152xf32, #tpu.memory_space<vmem>>, vector<1x192xf32>,
    %c23_1071 = arith.constant 23 : index
    %c0_1072 = arith.constant 0 : index
    %592 = vector.load %arg12[%c23_1071, %c0_1072] : memref<36x192xf32, #tpu.memory_space<vmem>>, vector<1x192xf32>
    %c9_1073 = arith.constant 9 : index
    %c960_1074 = arith.constant 960 : index
    %593 = vector.load %arg13[%c9_1073, %c960_1074] : memref<50x1152xf32, #tpu.memory_space<vmem>>, vector<1x192xf32>
    tpu.vector_store %arg13[%c9_1073, %c960_1074], %592 {strides = array<i32>} : memref<50x1152xf32, #tpu.memory_space<vmem>>, vector<1x192xf32>,
    %c3_1075 = arith.constant 3 : index
    %c0_1076 = arith.constant 0 : index
    %594 = vector.load %arg12[%c3_1075, %c0_1076] : memref<36x192xf32, #tpu.memory_space<vmem>>, vector<1x192xf32>
    %c18_1077 = arith.constant 18 : index
    %c0_1078 = arith.constant 0 : index
    %595 = vector.load %arg13[%c18_1077, %c0_1078] : memref<50x1152xf32, #tpu.memory_space<vmem>>, vector<1x192xf32>
    tpu.vector_store %arg13[%c18_1077, %c0_1078], %594 {strides = array<i32>} : memref<50x1152xf32, #tpu.memory_space<vmem>>, vector<1x192xf32>,
    %c4_1079 = arith.constant 4 : index
    %c0_1080 = arith.constant 0 : index
    %596 = vector.load %arg12[%c4_1079, %c0_1080] : memref<36x192xf32, #tpu.memory_space<vmem>>, vector<1x192xf32>
    %c18_1081 = arith.constant 18 : index
    %c192_1082 = arith.constant 192 : index
    %597 = vector.load %arg13[%c18_1081, %c192_1082] : memref<50x1152xf32, #tpu.memory_space<vmem>>, vector<1x192xf32>
    tpu.vector_store %arg13[%c18_1081, %c192_1082], %596 {strides = array<i32>} : memref<50x1152xf32, #tpu.memory_space<vmem>>, vector<1x192xf32>,
    %c5_1083 = arith.constant 5 : index
    %c0_1084 = arith.constant 0 : index
    %598 = vector.load %arg12[%c5_1083, %c0_1084] : memref<36x192xf32, #tpu.memory_space<vmem>>, vector<1x192xf32>
    %c18_1085 = arith.constant 18 : index
    %c384_1086 = arith.constant 384 : index
    %599 = vector.load %arg13[%c18_1085, %c384_1086] : memref<50x1152xf32, #tpu.memory_space<vmem>>, vector<1x192xf32>
    tpu.vector_store %arg13[%c18_1085, %c384_1086], %598 {strides = array<i32>} : memref<50x1152xf32, #tpu.memory_space<vmem>>, vector<1x192xf32>,
    %c6_1087 = arith.constant 6 : index
    %c0_1088 = arith.constant 0 : index
    %600 = vector.load %arg12[%c6_1087, %c0_1088] : memref<36x192xf32, #tpu.memory_space<vmem>>, vector<1x192xf32>
    %c18_1089 = arith.constant 18 : index
    %c576_1090 = arith.constant 576 : index
    %601 = vector.load %arg13[%c18_1089, %c576_1090] : memref<50x1152xf32, #tpu.memory_space<vmem>>, vector<1x192xf32>
    tpu.vector_store %arg13[%c18_1089, %c576_1090], %600 {strides = array<i32>} : memref<50x1152xf32, #tpu.memory_space<vmem>>, vector<1x192xf32>,
    %c7_1091 = arith.constant 7 : index
    %c0_1092 = arith.constant 0 : index
    %602 = vector.load %arg12[%c7_1091, %c0_1092] : memref<36x192xf32, #tpu.memory_space<vmem>>, vector<1x192xf32>
    %c18_1093 = arith.constant 18 : index
    %c768_1094 = arith.constant 768 : index
    %603 = vector.load %arg13[%c18_1093, %c768_1094] : memref<50x1152xf32, #tpu.memory_space<vmem>>, vector<1x192xf32>
    tpu.vector_store %arg13[%c18_1093, %c768_1094], %602 {strides = array<i32>} : memref<50x1152xf32, #tpu.memory_space<vmem>>, vector<1x192xf32>,
    %c8_1095 = arith.constant 8 : index
    %c0_1096 = arith.constant 0 : index
    %604 = vector.load %arg12[%c8_1095, %c0_1096] : memref<36x192xf32, #tpu.memory_space<vmem>>, vector<1x192xf32>
    %c18_1097 = arith.constant 18 : index
    %c960_1098 = arith.constant 960 : index
    %605 = vector.load %arg13[%c18_1097, %c960_1098] : memref<50x1152xf32, #tpu.memory_space<vmem>>, vector<1x192xf32>
    tpu.vector_store %arg13[%c18_1097, %c960_1098], %604 {strides = array<i32>} : memref<50x1152xf32, #tpu.memory_space<vmem>>, vector<1x192xf32>,
    %c21_1099 = arith.constant 21 : index
    %c0_1100 = arith.constant 0 : index
    %606 = vector.load %arg12[%c21_1099, %c0_1100] : memref<36x192xf32, #tpu.memory_space<vmem>>, vector<1x192xf32>
    %c19_1101 = arith.constant 19 : index
    %c0_1102 = arith.constant 0 : index
    %607 = vector.load %arg13[%c19_1101, %c0_1102] : memref<50x1152xf32, #tpu.memory_space<vmem>>, vector<1x192xf32>
    tpu.vector_store %arg13[%c19_1101, %c0_1102], %606 {strides = array<i32>} : memref<50x1152xf32, #tpu.memory_space<vmem>>, vector<1x192xf32>,
    %c22_1103 = arith.constant 22 : index
    %c0_1104 = arith.constant 0 : index
    %608 = vector.load %arg12[%c22_1103, %c0_1104] : memref<36x192xf32, #tpu.memory_space<vmem>>, vector<1x192xf32>
    %c19_1105 = arith.constant 19 : index
    %c192_1106 = arith.constant 192 : index
    %609 = vector.load %arg13[%c19_1105, %c192_1106] : memref<50x1152xf32, #tpu.memory_space<vmem>>, vector<1x192xf32>
    tpu.vector_store %arg13[%c19_1105, %c192_1106], %608 {strides = array<i32>} : memref<50x1152xf32, #tpu.memory_space<vmem>>, vector<1x192xf32>,
    %c23_1107 = arith.constant 23 : index
    %c0_1108 = arith.constant 0 : index
    %610 = vector.load %arg12[%c23_1107, %c0_1108] : memref<36x192xf32, #tpu.memory_space<vmem>>, vector<1x192xf32>
    %c19_1109 = arith.constant 19 : index
    %c384_1110 = arith.constant 384 : index
    %611 = vector.load %arg13[%c19_1109, %c384_1110] : memref<50x1152xf32, #tpu.memory_space<vmem>>, vector<1x192xf32>
    tpu.vector_store %arg13[%c19_1109, %c384_1110], %610 {strides = array<i32>} : memref<50x1152xf32, #tpu.memory_space<vmem>>, vector<1x192xf32>,
    %c24_1111 = arith.constant 24 : index
    %c0_1112 = arith.constant 0 : index
    %612 = vector.load %arg12[%c24_1111, %c0_1112] : memref<36x192xf32, #tpu.memory_space<vmem>>, vector<1x192xf32>
    %c19_1113 = arith.constant 19 : index
    %c576_1114 = arith.constant 576 : index
    %613 = vector.load %arg13[%c19_1113, %c576_1114] : memref<50x1152xf32, #tpu.memory_space<vmem>>, vector<1x192xf32>
    tpu.vector_store %arg13[%c19_1113, %c576_1114], %612 {strides = array<i32>} : memref<50x1152xf32, #tpu.memory_space<vmem>>, vector<1x192xf32>,
    %c25_1115 = arith.constant 25 : index
    %c0_1116 = arith.constant 0 : index
    %614 = vector.load %arg12[%c25_1115, %c0_1116] : memref<36x192xf32, #tpu.memory_space<vmem>>, vector<1x192xf32>
    %c19_1117 = arith.constant 19 : index
    %c768_1118 = arith.constant 768 : index
    %615 = vector.load %arg13[%c19_1117, %c768_1118] : memref<50x1152xf32, #tpu.memory_space<vmem>>, vector<1x192xf32>
    tpu.vector_store %arg13[%c19_1117, %c768_1118], %614 {strides = array<i32>} : memref<50x1152xf32, #tpu.memory_space<vmem>>, vector<1x192xf32>,
    %c26_1119 = arith.constant 26 : index
    %c0_1120 = arith.constant 0 : index
    %616 = vector.load %arg12[%c26_1119, %c0_1120] : memref<36x192xf32, #tpu.memory_space<vmem>>, vector<1x192xf32>
    %c19_1121 = arith.constant 19 : index
    %c960_1122 = arith.constant 960 : index
    %617 = vector.load %arg13[%c19_1121, %c960_1122] : memref<50x1152xf32, #tpu.memory_space<vmem>>, vector<1x192xf32>
    tpu.vector_store %arg13[%c19_1121, %c960_1122], %616 {strides = array<i32>} : memref<50x1152xf32, #tpu.memory_space<vmem>>, vector<1x192xf32>,
    %c6_1123 = arith.constant 6 : index
    %c0_1124 = arith.constant 0 : index
    %618 = vector.load %arg12[%c6_1123, %c0_1124] : memref<36x192xf32, #tpu.memory_space<vmem>>, vector<1x192xf32>
    %c28_1125 = arith.constant 28 : index
    %c0_1126 = arith.constant 0 : index
    %619 = vector.load %arg13[%c28_1125, %c0_1126] : memref<50x1152xf32, #tpu.memory_space<vmem>>, vector<1x192xf32>
    tpu.vector_store %arg13[%c28_1125, %c0_1126], %618 {strides = array<i32>} : memref<50x1152xf32, #tpu.memory_space<vmem>>, vector<1x192xf32>,
    %c7_1127 = arith.constant 7 : index
    %c0_1128 = arith.constant 0 : index
    %620 = vector.load %arg12[%c7_1127, %c0_1128] : memref<36x192xf32, #tpu.memory_space<vmem>>, vector<1x192xf32>
    %c28_1129 = arith.constant 28 : index
    %c192_1130 = arith.constant 192 : index
    %621 = vector.load %arg13[%c28_1129, %c192_1130] : memref<50x1152xf32, #tpu.memory_space<vmem>>, vector<1x192xf32>
    tpu.vector_store %arg13[%c28_1129, %c192_1130], %620 {strides = array<i32>} : memref<50x1152xf32, #tpu.memory_space<vmem>>, vector<1x192xf32>,
    %c8_1131 = arith.constant 8 : index
    %c0_1132 = arith.constant 0 : index
    %622 = vector.load %arg12[%c8_1131, %c0_1132] : memref<36x192xf32, #tpu.memory_space<vmem>>, vector<1x192xf32>
    %c28_1133 = arith.constant 28 : index
    %c384_1134 = arith.constant 384 : index
    %623 = vector.load %arg13[%c28_1133, %c384_1134] : memref<50x1152xf32, #tpu.memory_space<vmem>>, vector<1x192xf32>
    tpu.vector_store %arg13[%c28_1133, %c384_1134], %622 {strides = array<i32>} : memref<50x1152xf32, #tpu.memory_space<vmem>>, vector<1x192xf32>,
    %c9_1135 = arith.constant 9 : index
    %c0_1136 = arith.constant 0 : index
    %624 = vector.load %arg12[%c9_1135, %c0_1136] : memref<36x192xf32, #tpu.memory_space<vmem>>, vector<1x192xf32>
    %c28_1137 = arith.constant 28 : index
    %c576_1138 = arith.constant 576 : index
    %625 = vector.load %arg13[%c28_1137, %c576_1138] : memref<50x1152xf32, #tpu.memory_space<vmem>>, vector<1x192xf32>
    tpu.vector_store %arg13[%c28_1137, %c576_1138], %624 {strides = array<i32>} : memref<50x1152xf32, #tpu.memory_space<vmem>>, vector<1x192xf32>,
    %c10_1139 = arith.constant 10 : index
    %c0_1140 = arith.constant 0 : index
    %626 = vector.load %arg12[%c10_1139, %c0_1140] : memref<36x192xf32, #tpu.memory_space<vmem>>, vector<1x192xf32>
    %c28_1141 = arith.constant 28 : index
    %c768_1142 = arith.constant 768 : index
    %627 = vector.load %arg13[%c28_1141, %c768_1142] : memref<50x1152xf32, #tpu.memory_space<vmem>>, vector<1x192xf32>
    tpu.vector_store %arg13[%c28_1141, %c768_1142], %626 {strides = array<i32>} : memref<50x1152xf32, #tpu.memory_space<vmem>>, vector<1x192xf32>,
    %c11_1143 = arith.constant 11 : index
    %c0_1144 = arith.constant 0 : index
    %628 = vector.load %arg12[%c11_1143, %c0_1144] : memref<36x192xf32, #tpu.memory_space<vmem>>, vector<1x192xf32>
    %c28_1145 = arith.constant 28 : index
    %c960_1146 = arith.constant 960 : index
    %629 = vector.load %arg13[%c28_1145, %c960_1146] : memref<50x1152xf32, #tpu.memory_space<vmem>>, vector<1x192xf32>
    tpu.vector_store %arg13[%c28_1145, %c960_1146], %628 {strides = array<i32>} : memref<50x1152xf32, #tpu.memory_space<vmem>>, vector<1x192xf32>,
    %c24_1147 = arith.constant 24 : index
    %c0_1148 = arith.constant 0 : index
    %630 = vector.load %arg12[%c24_1147, %c0_1148] : memref<36x192xf32, #tpu.memory_space<vmem>>, vector<1x192xf32>
    %c29_1149 = arith.constant 29 : index
    %c0_1150 = arith.constant 0 : index
    %631 = vector.load %arg13[%c29_1149, %c0_1150] : memref<50x1152xf32, #tpu.memory_space<vmem>>, vector<1x192xf32>
    tpu.vector_store %arg13[%c29_1149, %c0_1150], %630 {strides = array<i32>} : memref<50x1152xf32, #tpu.memory_space<vmem>>, vector<1x192xf32>,
    %c25_1151 = arith.constant 25 : index
    %c0_1152 = arith.constant 0 : index
    %632 = vector.load %arg12[%c25_1151, %c0_1152] : memref<36x192xf32, #tpu.memory_space<vmem>>, vector<1x192xf32>
    %c29_1153 = arith.constant 29 : index
    %c192_1154 = arith.constant 192 : index
    %633 = vector.load %arg13[%c29_1153, %c192_1154] : memref<50x1152xf32, #tpu.memory_space<vmem>>, vector<1x192xf32>
    tpu.vector_store %arg13[%c29_1153, %c192_1154], %632 {strides = array<i32>} : memref<50x1152xf32, #tpu.memory_space<vmem>>, vector<1x192xf32>,
    %c26_1155 = arith.constant 26 : index
    %c0_1156 = arith.constant 0 : index
    %634 = vector.load %arg12[%c26_1155, %c0_1156] : memref<36x192xf32, #tpu.memory_space<vmem>>, vector<1x192xf32>
    %c29_1157 = arith.constant 29 : index
    %c384_1158 = arith.constant 384 : index
    %635 = vector.load %arg13[%c29_1157, %c384_1158] : memref<50x1152xf32, #tpu.memory_space<vmem>>, vector<1x192xf32>
    tpu.vector_store %arg13[%c29_1157, %c384_1158], %634 {strides = array<i32>} : memref<50x1152xf32, #tpu.memory_space<vmem>>, vector<1x192xf32>,
    %c27_1159 = arith.constant 27 : index
    %c0_1160 = arith.constant 0 : index
    %636 = vector.load %arg12[%c27_1159, %c0_1160] : memref<36x192xf32, #tpu.memory_space<vmem>>, vector<1x192xf32>
    %c29_1161 = arith.constant 29 : index
    %c576_1162 = arith.constant 576 : index
    %637 = vector.load %arg13[%c29_1161, %c576_1162] : memref<50x1152xf32, #tpu.memory_space<vmem>>, vector<1x192xf32>
    tpu.vector_store %arg13[%c29_1161, %c576_1162], %636 {strides = array<i32>} : memref<50x1152xf32, #tpu.memory_space<vmem>>, vector<1x192xf32>,
    %c28_1163 = arith.constant 28 : index
    %c0_1164 = arith.constant 0 : index
    %638 = vector.load %arg12[%c28_1163, %c0_1164] : memref<36x192xf32, #tpu.memory_space<vmem>>, vector<1x192xf32>
    %c29_1165 = arith.constant 29 : index
    %c768_1166 = arith.constant 768 : index
    %639 = vector.load %arg13[%c29_1165, %c768_1166] : memref<50x1152xf32, #tpu.memory_space<vmem>>, vector<1x192xf32>
    tpu.vector_store %arg13[%c29_1165, %c768_1166], %638 {strides = array<i32>} : memref<50x1152xf32, #tpu.memory_space<vmem>>, vector<1x192xf32>,
    %c29_1167 = arith.constant 29 : index
    %c0_1168 = arith.constant 0 : index
    %640 = vector.load %arg12[%c29_1167, %c0_1168] : memref<36x192xf32, #tpu.memory_space<vmem>>, vector<1x192xf32>
    %c29_1169 = arith.constant 29 : index
    %c960_1170 = arith.constant 960 : index
    %641 = vector.load %arg13[%c29_1169, %c960_1170] : memref<50x1152xf32, #tpu.memory_space<vmem>>, vector<1x192xf32>
    tpu.vector_store %arg13[%c29_1169, %c960_1170], %640 {strides = array<i32>} : memref<50x1152xf32, #tpu.memory_space<vmem>>, vector<1x192xf32>,
    %c9_1171 = arith.constant 9 : index
    %c0_1172 = arith.constant 0 : index
    %642 = vector.load %arg12[%c9_1171, %c0_1172] : memref<36x192xf32, #tpu.memory_space<vmem>>, vector<1x192xf32>
    %c38 = arith.constant 38 : index
    %c0_1173 = arith.constant 0 : index
    %643 = vector.load %arg13[%c38, %c0_1173] : memref<50x1152xf32, #tpu.memory_space<vmem>>, vector<1x192xf32>
    tpu.vector_store %arg13[%c38, %c0_1173], %642 {strides = array<i32>} : memref<50x1152xf32, #tpu.memory_space<vmem>>, vector<1x192xf32>,
    %c10_1174 = arith.constant 10 : index
    %c0_1175 = arith.constant 0 : index
    %644 = vector.load %arg12[%c10_1174, %c0_1175] : memref<36x192xf32, #tpu.memory_space<vmem>>, vector<1x192xf32>
    %c38_1176 = arith.constant 38 : index
    %c192_1177 = arith.constant 192 : index
    %645 = vector.load %arg13[%c38_1176, %c192_1177] : memref<50x1152xf32, #tpu.memory_space<vmem>>, vector<1x192xf32>
    tpu.vector_store %arg13[%c38_1176, %c192_1177], %644 {strides = array<i32>} : memref<50x1152xf32, #tpu.memory_space<vmem>>, vector<1x192xf32>,
    %c11_1178 = arith.constant 11 : index
    %c0_1179 = arith.constant 0 : index
    %646 = vector.load %arg12[%c11_1178, %c0_1179] : memref<36x192xf32, #tpu.memory_space<vmem>>, vector<1x192xf32>
    %c38_1180 = arith.constant 38 : index
    %c384_1181 = arith.constant 384 : index
    %647 = vector.load %arg13[%c38_1180, %c384_1181] : memref<50x1152xf32, #tpu.memory_space<vmem>>, vector<1x192xf32>
    tpu.vector_store %arg13[%c38_1180, %c384_1181], %646 {strides = array<i32>} : memref<50x1152xf32, #tpu.memory_space<vmem>>, vector<1x192xf32>,
    %c12_1182 = arith.constant 12 : index
    %c0_1183 = arith.constant 0 : index
    %648 = vector.load %arg12[%c12_1182, %c0_1183] : memref<36x192xf32, #tpu.memory_space<vmem>>, vector<1x192xf32>
    %c38_1184 = arith.constant 38 : index
    %c576_1185 = arith.constant 576 : index
    %649 = vector.load %arg13[%c38_1184, %c576_1185] : memref<50x1152xf32, #tpu.memory_space<vmem>>, vector<1x192xf32>
    tpu.vector_store %arg13[%c38_1184, %c576_1185], %648 {strides = array<i32>} : memref<50x1152xf32, #tpu.memory_space<vmem>>, vector<1x192xf32>,
    %c13_1186 = arith.constant 13 : index
    %c0_1187 = arith.constant 0 : index
    %650 = vector.load %arg12[%c13_1186, %c0_1187] : memref<36x192xf32, #tpu.memory_space<vmem>>, vector<1x192xf32>
    %c38_1188 = arith.constant 38 : index
    %c768_1189 = arith.constant 768 : index
    %651 = vector.load %arg13[%c38_1188, %c768_1189] : memref<50x1152xf32, #tpu.memory_space<vmem>>, vector<1x192xf32>
    tpu.vector_store %arg13[%c38_1188, %c768_1189], %650 {strides = array<i32>} : memref<50x1152xf32, #tpu.memory_space<vmem>>, vector<1x192xf32>,
    %c14_1190 = arith.constant 14 : index
    %c0_1191 = arith.constant 0 : index
    %652 = vector.load %arg12[%c14_1190, %c0_1191] : memref<36x192xf32, #tpu.memory_space<vmem>>, vector<1x192xf32>
    %c38_1192 = arith.constant 38 : index
    %c960_1193 = arith.constant 960 : index
    %653 = vector.load %arg13[%c38_1192, %c960_1193] : memref<50x1152xf32, #tpu.memory_space<vmem>>, vector<1x192xf32>
    tpu.vector_store %arg13[%c38_1192, %c960_1193], %652 {strides = array<i32>} : memref<50x1152xf32, #tpu.memory_space<vmem>>, vector<1x192xf32>,
    %c27_1194 = arith.constant 27 : index
    %c0_1195 = arith.constant 0 : index
    %654 = vector.load %arg12[%c27_1194, %c0_1195] : memref<36x192xf32, #tpu.memory_space<vmem>>, vector<1x192xf32>
    %c39 = arith.constant 39 : index
    %c0_1196 = arith.constant 0 : index
    %655 = vector.load %arg13[%c39, %c0_1196] : memref<50x1152xf32, #tpu.memory_space<vmem>>, vector<1x192xf32>
    tpu.vector_store %arg13[%c39, %c0_1196], %654 {strides = array<i32>} : memref<50x1152xf32, #tpu.memory_space<vmem>>, vector<1x192xf32>,
    %c28_1197 = arith.constant 28 : index
    %c0_1198 = arith.constant 0 : index
    %656 = vector.load %arg12[%c28_1197, %c0_1198] : memref<36x192xf32, #tpu.memory_space<vmem>>, vector<1x192xf32>
    %c39_1199 = arith.constant 39 : index
    %c192_1200 = arith.constant 192 : index
    %657 = vector.load %arg13[%c39_1199, %c192_1200] : memref<50x1152xf32, #tpu.memory_space<vmem>>, vector<1x192xf32>
    tpu.vector_store %arg13[%c39_1199, %c192_1200], %656 {strides = array<i32>} : memref<50x1152xf32, #tpu.memory_space<vmem>>, vector<1x192xf32>,
    %c29_1201 = arith.constant 29 : index
    %c0_1202 = arith.constant 0 : index
    %658 = vector.load %arg12[%c29_1201, %c0_1202] : memref<36x192xf32, #tpu.memory_space<vmem>>, vector<1x192xf32>
    %c39_1203 = arith.constant 39 : index
    %c384_1204 = arith.constant 384 : index
    %659 = vector.load %arg13[%c39_1203, %c384_1204] : memref<50x1152xf32, #tpu.memory_space<vmem>>, vector<1x192xf32>
    tpu.vector_store %arg13[%c39_1203, %c384_1204], %658 {strides = array<i32>} : memref<50x1152xf32, #tpu.memory_space<vmem>>, vector<1x192xf32>,
    %c30_1205 = arith.constant 30 : index
    %c0_1206 = arith.constant 0 : index
    %660 = vector.load %arg12[%c30_1205, %c0_1206] : memref<36x192xf32, #tpu.memory_space<vmem>>, vector<1x192xf32>
    %c39_1207 = arith.constant 39 : index
    %c576_1208 = arith.constant 576 : index
    %661 = vector.load %arg13[%c39_1207, %c576_1208] : memref<50x1152xf32, #tpu.memory_space<vmem>>, vector<1x192xf32>
    tpu.vector_store %arg13[%c39_1207, %c576_1208], %660 {strides = array<i32>} : memref<50x1152xf32, #tpu.memory_space<vmem>>, vector<1x192xf32>,
    %c31_1209 = arith.constant 31 : index
    %c0_1210 = arith.constant 0 : index
    %662 = vector.load %arg12[%c31_1209, %c0_1210] : memref<36x192xf32, #tpu.memory_space<vmem>>, vector<1x192xf32>
    %c39_1211 = arith.constant 39 : index
    %c768_1212 = arith.constant 768 : index
    %663 = vector.load %arg13[%c39_1211, %c768_1212] : memref<50x1152xf32, #tpu.memory_space<vmem>>, vector<1x192xf32>
    tpu.vector_store %arg13[%c39_1211, %c768_1212], %662 {strides = array<i32>} : memref<50x1152xf32, #tpu.memory_space<vmem>>, vector<1x192xf32>,
    %c32_1213 = arith.constant 32 : index
    %c0_1214 = arith.constant 0 : index
    %664 = vector.load %arg12[%c32_1213, %c0_1214] : memref<36x192xf32, #tpu.memory_space<vmem>>, vector<1x192xf32>
    %c39_1215 = arith.constant 39 : index
    %c960_1216 = arith.constant 960 : index
    %665 = vector.load %arg13[%c39_1215, %c960_1216] : memref<50x1152xf32, #tpu.memory_space<vmem>>, vector<1x192xf32>
    tpu.vector_store %arg13[%c39_1215, %c960_1216], %664 {strides = array<i32>} : memref<50x1152xf32, #tpu.memory_space<vmem>>, vector<1x192xf32>,
    %c12_1217 = arith.constant 12 : index
    %c0_1218 = arith.constant 0 : index
    %666 = vector.load %arg12[%c12_1217, %c0_1218] : memref<36x192xf32, #tpu.memory_space<vmem>>, vector<1x192xf32>
    %c48 = arith.constant 48 : index
    %c0_1219 = arith.constant 0 : index
    %667 = vector.load %arg13[%c48, %c0_1219] : memref<50x1152xf32, #tpu.memory_space<vmem>>, vector<1x192xf32>
    tpu.vector_store %arg13[%c48, %c0_1219], %666 {strides = array<i32>} : memref<50x1152xf32, #tpu.memory_space<vmem>>, vector<1x192xf32>,
    %c13_1220 = arith.constant 13 : index
    %c0_1221 = arith.constant 0 : index
    %668 = vector.load %arg12[%c13_1220, %c0_1221] : memref<36x192xf32, #tpu.memory_space<vmem>>, vector<1x192xf32>
    %c48_1222 = arith.constant 48 : index
    %c192_1223 = arith.constant 192 : index
    %669 = vector.load %arg13[%c48_1222, %c192_1223] : memref<50x1152xf32, #tpu.memory_space<vmem>>, vector<1x192xf32>
    tpu.vector_store %arg13[%c48_1222, %c192_1223], %668 {strides = array<i32>} : memref<50x1152xf32, #tpu.memory_space<vmem>>, vector<1x192xf32>,
    %c14_1224 = arith.constant 14 : index
    %c0_1225 = arith.constant 0 : index
    %670 = vector.load %arg12[%c14_1224, %c0_1225] : memref<36x192xf32, #tpu.memory_space<vmem>>, vector<1x192xf32>
    %c48_1226 = arith.constant 48 : index
    %c384_1227 = arith.constant 384 : index
    %671 = vector.load %arg13[%c48_1226, %c384_1227] : memref<50x1152xf32, #tpu.memory_space<vmem>>, vector<1x192xf32>
    tpu.vector_store %arg13[%c48_1226, %c384_1227], %670 {strides = array<i32>} : memref<50x1152xf32, #tpu.memory_space<vmem>>, vector<1x192xf32>,
    %c15_1228 = arith.constant 15 : index
    %c0_1229 = arith.constant 0 : index
    %672 = vector.load %arg12[%c15_1228, %c0_1229] : memref<36x192xf32, #tpu.memory_space<vmem>>, vector<1x192xf32>
    %c48_1230 = arith.constant 48 : index
    %c576_1231 = arith.constant 576 : index
    %673 = vector.load %arg13[%c48_1230, %c576_1231] : memref<50x1152xf32, #tpu.memory_space<vmem>>, vector<1x192xf32>
    tpu.vector_store %arg13[%c48_1230, %c576_1231], %672 {strides = array<i32>} : memref<50x1152xf32, #tpu.memory_space<vmem>>, vector<1x192xf32>,
    %c16_1232 = arith.constant 16 : index
    %c0_1233 = arith.constant 0 : index
    %674 = vector.load %arg12[%c16_1232, %c0_1233] : memref<36x192xf32, #tpu.memory_space<vmem>>, vector<1x192xf32>
    %c48_1234 = arith.constant 48 : index
    %c768_1235 = arith.constant 768 : index
    %675 = vector.load %arg13[%c48_1234, %c768_1235] : memref<50x1152xf32, #tpu.memory_space<vmem>>, vector<1x192xf32>
    tpu.vector_store %arg13[%c48_1234, %c768_1235], %674 {strides = array<i32>} : memref<50x1152xf32, #tpu.memory_space<vmem>>, vector<1x192xf32>,
    %c17_1236 = arith.constant 17 : index
    %c0_1237 = arith.constant 0 : index
    %676 = vector.load %arg12[%c17_1236, %c0_1237] : memref<36x192xf32, #tpu.memory_space<vmem>>, vector<1x192xf32>
    %c48_1238 = arith.constant 48 : index
    %c960_1239 = arith.constant 960 : index
    %677 = vector.load %arg13[%c48_1238, %c960_1239] : memref<50x1152xf32, #tpu.memory_space<vmem>>, vector<1x192xf32>
    tpu.vector_store %arg13[%c48_1238, %c960_1239], %676 {strides = array<i32>} : memref<50x1152xf32, #tpu.memory_space<vmem>>, vector<1x192xf32>,
    %c30_1240 = arith.constant 30 : index
    %c0_1241 = arith.constant 0 : index
    %678 = vector.load %arg12[%c30_1240, %c0_1241] : memref<36x192xf32, #tpu.memory_space<vmem>>, vector<1x192xf32>
    %c49 = arith.constant 49 : index
    %c0_1242 = arith.constant 0 : index
    %679 = vector.load %arg13[%c49, %c0_1242] : memref<50x1152xf32, #tpu.memory_space<vmem>>, vector<1x192xf32>
    tpu.vector_store %arg13[%c49, %c0_1242], %678 {strides = array<i32>} : memref<50x1152xf32, #tpu.memory_space<vmem>>, vector<1x192xf32>,
    %c31_1243 = arith.constant 31 : index
    %c0_1244 = arith.constant 0 : index
    %680 = vector.load %arg12[%c31_1243, %c0_1244] : memref<36x192xf32, #tpu.memory_space<vmem>>, vector<1x192xf32>
    %c49_1245 = arith.constant 49 : index
    %c192_1246 = arith.constant 192 : index
    %681 = vector.load %arg13[%c49_1245, %c192_1246] : memref<50x1152xf32, #tpu.memory_space<vmem>>, vector<1x192xf32>
    tpu.vector_store %arg13[%c49_1245, %c192_1246], %680 {strides = array<i32>} : memref<50x1152xf32, #tpu.memory_space<vmem>>, vector<1x192xf32>,
    %c32_1247 = arith.constant 32 : index
    %c0_1248 = arith.constant 0 : index
    %682 = vector.load %arg12[%c32_1247, %c0_1248] : memref<36x192xf32, #tpu.memory_space<vmem>>, vector<1x192xf32>
    %c49_1249 = arith.constant 49 : index
    %c384_1250 = arith.constant 384 : index
    %683 = vector.load %arg13[%c49_1249, %c384_1250] : memref<50x1152xf32, #tpu.memory_space<vmem>>, vector<1x192xf32>
    tpu.vector_store %arg13[%c49_1249, %c384_1250], %682 {strides = array<i32>} : memref<50x1152xf32, #tpu.memory_space<vmem>>, vector<1x192xf32>,
    %c33_1251 = arith.constant 33 : index
    %c0_1252 = arith.constant 0 : index
    %684 = vector.load %arg12[%c33_1251, %c0_1252] : memref<36x192xf32, #tpu.memory_space<vmem>>, vector<1x192xf32>
    %c49_1253 = arith.constant 49 : index
    %c576_1254 = arith.constant 576 : index
    %685 = vector.load %arg13[%c49_1253, %c576_1254] : memref<50x1152xf32, #tpu.memory_space<vmem>>, vector<1x192xf32>
    tpu.vector_store %arg13[%c49_1253, %c576_1254], %684 {strides = array<i32>} : memref<50x1152xf32, #tpu.memory_space<vmem>>, vector<1x192xf32>,
    %c34_1255 = arith.constant 34 : index
    %c0_1256 = arith.constant 0 : index
    %686 = vector.load %arg12[%c34_1255, %c0_1256] : memref<36x192xf32, #tpu.memory_space<vmem>>, vector<1x192xf32>
    %c49_1257 = arith.constant 49 : index
    %c768_1258 = arith.constant 768 : index
    %687 = vector.load %arg13[%c49_1257, %c768_1258] : memref<50x1152xf32, #tpu.memory_space<vmem>>, vector<1x192xf32>
    tpu.vector_store %arg13[%c49_1257, %c768_1258], %686 {strides = array<i32>} : memref<50x1152xf32, #tpu.memory_space<vmem>>, vector<1x192xf32>,
    %c35_1259 = arith.constant 35 : index
    %c0_1260 = arith.constant 0 : index
    %688 = vector.load %arg12[%c35_1259, %c0_1260] : memref<36x192xf32, #tpu.memory_space<vmem>>, vector<1x192xf32>
    %c49_1261 = arith.constant 49 : index
    %c960_1262 = arith.constant 960 : index
    %689 = vector.load %arg13[%c49_1261, %c960_1262] : memref<50x1152xf32, #tpu.memory_space<vmem>>, vector<1x192xf32>
    tpu.vector_store %arg13[%c49_1261, %c960_1262], %688 {strides = array<i32>} : memref<50x1152xf32, #tpu.memory_space<vmem>>, vector<1x192xf32>,
    %c0_1263 = arith.constant 0 : index
    %c0_1264 = arith.constant 0 : index
    %690 = vector.load %arg13[%c0_1263, %c0_1264] : memref<50x1152xf32, #tpu.memory_space<vmem>>, vector<50x1152xf32>
    %c0_1265 = arith.constant 0 : index
    %c0_1266 = arith.constant 0 : index
    %691 = vector.load %arg3[%c0_1265, %c0_1266] : memref<1152x64xf32, #tpu.memory_space<vmem>>, vector<1152x64xf32>
    %cst_1267 = arith.constant dense<0.000000e+00> : vector<50x64xf32>
    %692 = tpu.matmul %690, %691, %cst_1267 {dimension_numbers = #tpu.dot_dimension_numbers<[1], [0], [0], [1], [0, 0, 1, 1], [], []>} : vector<50x1152xf32>, vector<1152x64xf32>, vector<50x64xf32> -> vector<50x64xf32>
    %cst_1268 = arith.constant dense<0.000000e+00> : vector<64xf32>
    %693 = vector.multi_reduction <add>, %692, %cst_1268 [0] : vector<50x64xf32> to vector<64xf32>
    %694 = vector.shape_cast %693 : vector<64xf32> to vector<1x64xf32>
    %cst_1269 = arith.constant 5.000000e+01 : f32
    %695 = vector.broadcast %cst_1269 : f32 to vector<1x64xf32>
    %696 = arith.divf %694, %695 : vector<1x64xf32>
    %697 = arith.mulf %692, %692 : vector<50x64xf32>
    %cst_1270 = arith.constant dense<0.000000e+00> : vector<64xf32>
    %698 = vector.multi_reduction <add>, %697, %cst_1270 [0] : vector<50x64xf32> to vector<64xf32>
    %699 = vector.shape_cast %698 : vector<64xf32> to vector<1x64xf32>
    %cst_1271 = arith.constant 5.000000e+01 : f32
    %700 = vector.broadcast %cst_1271 : f32 to vector<1x64xf32>
    %701 = arith.divf %699, %700 : vector<1x64xf32>
    %702 = arith.mulf %696, %696 : vector<1x64xf32>
    %703 = arith.subf %701, %702 : vector<1x64xf32>
    %c0_1272 = arith.constant 0 : index
    %c0_1273 = arith.constant 0 : index
    %704 = vector.load %arg7[%c0_1272, %c0_1273] : memref<1x64xf32, #tpu.memory_space<vmem>>, vector<1x64xf32>
    %cst_1274 = arith.constant 9.99999974E-6 : f32
    %705 = vector.broadcast %cst_1274 : f32 to vector<1x64xf32>
    %706 = arith.addf %703, %705 : vector<1x64xf32>
    %707 = math.rsqrt %706 : vector<1x64xf32>
    %708 = arith.mulf %704, %707 : vector<1x64xf32>
    %c0_1275 = arith.constant 0 : index
    %c0_1276 = arith.constant 0 : index
    %709 = vector.load %arg8[%c0_1275, %c0_1276] : memref<1x64xf32, #tpu.memory_space<vmem>>, vector<1x64xf32>
    %710 = arith.mulf %696, %708 : vector<1x64xf32>
    %711 = arith.subf %709, %710 : vector<1x64xf32>
    %712 = vector.broadcast %708 : vector<1x64xf32> to vector<50x64xf32>
    %713 = arith.mulf %692, %712 : vector<50x64xf32>
    %714 = vector.broadcast %711 : vector<1x64xf32> to vector<50x64xf32>
    %715 = arith.addf %713, %714 : vector<50x64xf32>
    %cst_1277 = arith.constant 0.000000e+00 : f32
    %716 = vector.broadcast %cst_1277 : f32 to vector<50x64xf32>
    %717 = arith.maximumf %715, %716 : vector<50x64xf32>
    %c0_1278 = arith.constant 0 : index
    %c0_1279 = arith.constant 0 : index
    %718 = vector.load %arg14[%c0_1278, %c0_1279] : memref<50x64xf32, #tpu.memory_space<vmem>>, vector<50x64xf32>
    tpu.vector_store %arg14[%c0_1278, %c0_1279], %717 {strides = array<i32>} : memref<50x64xf32, #tpu.memory_space<vmem>>, vector<50x64xf32>,
    %c0_1280 = arith.constant 0 : index
    %c0_1281 = arith.constant 0 : index
    %719 = vector.load %arg14[%c0_1280, %c0_1281] : memref<50x64xf32, #tpu.memory_space<vmem>>, vector<2x64xf32>
    %c0_1282 = arith.constant 0 : index
    %c0_1283 = arith.constant 0 : index
    %720 = vector.load %arg15[%c0_1282, %c0_1283] : memref<2x1600xf32, #tpu.memory_space<vmem>>, vector<2x64xf32>
    tpu.vector_store %arg15[%c0_1282, %c0_1283], %719 {strides = array<i32>} : memref<2x1600xf32, #tpu.memory_space<vmem>>, vector<2x64xf32>,
    %c2_1284 = arith.constant 2 : index
    %c0_1285 = arith.constant 0 : index
    %721 = vector.load %arg14[%c2_1284, %c0_1285] : memref<50x64xf32, #tpu.memory_space<vmem>>, vector<2x64xf32>
    %c0_1286 = arith.constant 0 : index
    %c64_1287 = arith.constant 64 : index
    %722 = vector.load %arg15[%c0_1286, %c64_1287] : memref<2x1600xf32, #tpu.memory_space<vmem>>, vector<2x64xf32>
    tpu.vector_store %arg15[%c0_1286, %c64_1287], %721 {strides = array<i32>} : memref<2x1600xf32, #tpu.memory_space<vmem>>, vector<2x64xf32>,
    %c4_1288 = arith.constant 4 : index
    %c0_1289 = arith.constant 0 : index
    %723 = vector.load %arg14[%c4_1288, %c0_1289] : memref<50x64xf32, #tpu.memory_space<vmem>>, vector<2x64xf32>
    %c0_1290 = arith.constant 0 : index
    %c128_1291 = arith.constant 128 : index
    %724 = vector.load %arg15[%c0_1290, %c128_1291] : memref<2x1600xf32, #tpu.memory_space<vmem>>, vector<2x64xf32>
    tpu.vector_store %arg15[%c0_1290, %c128_1291], %723 {strides = array<i32>} : memref<2x1600xf32, #tpu.memory_space<vmem>>, vector<2x64xf32>,
    %c6_1292 = arith.constant 6 : index
    %c0_1293 = arith.constant 0 : index
    %725 = vector.load %arg14[%c6_1292, %c0_1293] : memref<50x64xf32, #tpu.memory_space<vmem>>, vector<2x64xf32>
    %c0_1294 = arith.constant 0 : index
    %c192_1295 = arith.constant 192 : index
    %726 = vector.load %arg15[%c0_1294, %c192_1295] : memref<2x1600xf32, #tpu.memory_space<vmem>>, vector<2x64xf32>
    tpu.vector_store %arg15[%c0_1294, %c192_1295], %725 {strides = array<i32>} : memref<2x1600xf32, #tpu.memory_space<vmem>>, vector<2x64xf32>,
    %c8_1296 = arith.constant 8 : index
    %c0_1297 = arith.constant 0 : index
    %727 = vector.load %arg14[%c8_1296, %c0_1297] : memref<50x64xf32, #tpu.memory_space<vmem>>, vector<2x64xf32>
    %c0_1298 = arith.constant 0 : index
    %c256 = arith.constant 256 : index
    %728 = vector.load %arg15[%c0_1298, %c256] : memref<2x1600xf32, #tpu.memory_space<vmem>>, vector<2x64xf32>
    tpu.vector_store %arg15[%c0_1298, %c256], %727 {strides = array<i32>} : memref<2x1600xf32, #tpu.memory_space<vmem>>, vector<2x64xf32>,
    %c10_1299 = arith.constant 10 : index
    %c0_1300 = arith.constant 0 : index
    %729 = vector.load %arg14[%c10_1299, %c0_1300] : memref<50x64xf32, #tpu.memory_space<vmem>>, vector<2x64xf32>
    %c0_1301 = arith.constant 0 : index
    %c320 = arith.constant 320 : index
    %730 = vector.load %arg15[%c0_1301, %c320] : memref<2x1600xf32, #tpu.memory_space<vmem>>, vector<2x64xf32>
    tpu.vector_store %arg15[%c0_1301, %c320], %729 {strides = array<i32>} : memref<2x1600xf32, #tpu.memory_space<vmem>>, vector<2x64xf32>,
    %c12_1302 = arith.constant 12 : index
    %c0_1303 = arith.constant 0 : index
    %731 = vector.load %arg14[%c12_1302, %c0_1303] : memref<50x64xf32, #tpu.memory_space<vmem>>, vector<2x64xf32>
    %c0_1304 = arith.constant 0 : index
    %c384_1305 = arith.constant 384 : index
    %732 = vector.load %arg15[%c0_1304, %c384_1305] : memref<2x1600xf32, #tpu.memory_space<vmem>>, vector<2x64xf32>
    tpu.vector_store %arg15[%c0_1304, %c384_1305], %731 {strides = array<i32>} : memref<2x1600xf32, #tpu.memory_space<vmem>>, vector<2x64xf32>,
    %c14_1306 = arith.constant 14 : index
    %c0_1307 = arith.constant 0 : index
    %733 = vector.load %arg14[%c14_1306, %c0_1307] : memref<50x64xf32, #tpu.memory_space<vmem>>, vector<2x64xf32>
    %c0_1308 = arith.constant 0 : index
    %c448 = arith.constant 448 : index
    %734 = vector.load %arg15[%c0_1308, %c448] : memref<2x1600xf32, #tpu.memory_space<vmem>>, vector<2x64xf32>
    tpu.vector_store %arg15[%c0_1308, %c448], %733 {strides = array<i32>} : memref<2x1600xf32, #tpu.memory_space<vmem>>, vector<2x64xf32>,
    %c16_1309 = arith.constant 16 : index
    %c0_1310 = arith.constant 0 : index
    %735 = vector.load %arg14[%c16_1309, %c0_1310] : memref<50x64xf32, #tpu.memory_space<vmem>>, vector<2x64xf32>
    %c0_1311 = arith.constant 0 : index
    %c512 = arith.constant 512 : index
    %736 = vector.load %arg15[%c0_1311, %c512] : memref<2x1600xf32, #tpu.memory_space<vmem>>, vector<2x64xf32>
    tpu.vector_store %arg15[%c0_1311, %c512], %735 {strides = array<i32>} : memref<2x1600xf32, #tpu.memory_space<vmem>>, vector<2x64xf32>,
    %c18_1312 = arith.constant 18 : index
    %c0_1313 = arith.constant 0 : index
    %737 = vector.load %arg14[%c18_1312, %c0_1313] : memref<50x64xf32, #tpu.memory_space<vmem>>, vector<2x64xf32>
    %c0_1314 = arith.constant 0 : index
    %c576_1315 = arith.constant 576 : index
    %738 = vector.load %arg15[%c0_1314, %c576_1315] : memref<2x1600xf32, #tpu.memory_space<vmem>>, vector<2x64xf32>
    tpu.vector_store %arg15[%c0_1314, %c576_1315], %737 {strides = array<i32>} : memref<2x1600xf32, #tpu.memory_space<vmem>>, vector<2x64xf32>,
    %c20_1316 = arith.constant 20 : index
    %c0_1317 = arith.constant 0 : index
    %739 = vector.load %arg14[%c20_1316, %c0_1317] : memref<50x64xf32, #tpu.memory_space<vmem>>, vector<2x64xf32>
    %c0_1318 = arith.constant 0 : index
    %c640 = arith.constant 640 : index
    %740 = vector.load %arg15[%c0_1318, %c640] : memref<2x1600xf32, #tpu.memory_space<vmem>>, vector<2x64xf32>
    tpu.vector_store %arg15[%c0_1318, %c640], %739 {strides = array<i32>} : memref<2x1600xf32, #tpu.memory_space<vmem>>, vector<2x64xf32>,
    %c22_1319 = arith.constant 22 : index
    %c0_1320 = arith.constant 0 : index
    %741 = vector.load %arg14[%c22_1319, %c0_1320] : memref<50x64xf32, #tpu.memory_space<vmem>>, vector<2x64xf32>
    %c0_1321 = arith.constant 0 : index
    %c704 = arith.constant 704 : index
    %742 = vector.load %arg15[%c0_1321, %c704] : memref<2x1600xf32, #tpu.memory_space<vmem>>, vector<2x64xf32>
    tpu.vector_store %arg15[%c0_1321, %c704], %741 {strides = array<i32>} : memref<2x1600xf32, #tpu.memory_space<vmem>>, vector<2x64xf32>,
    %c24_1322 = arith.constant 24 : index
    %c0_1323 = arith.constant 0 : index
    %743 = vector.load %arg14[%c24_1322, %c0_1323] : memref<50x64xf32, #tpu.memory_space<vmem>>, vector<2x64xf32>
    %c0_1324 = arith.constant 0 : index
    %c768_1325 = arith.constant 768 : index
    %744 = vector.load %arg15[%c0_1324, %c768_1325] : memref<2x1600xf32, #tpu.memory_space<vmem>>, vector<2x64xf32>
    tpu.vector_store %arg15[%c0_1324, %c768_1325], %743 {strides = array<i32>} : memref<2x1600xf32, #tpu.memory_space<vmem>>, vector<2x64xf32>,
    %c26_1326 = arith.constant 26 : index
    %c0_1327 = arith.constant 0 : index
    %745 = vector.load %arg14[%c26_1326, %c0_1327] : memref<50x64xf32, #tpu.memory_space<vmem>>, vector<2x64xf32>
    %c0_1328 = arith.constant 0 : index
    %c832 = arith.constant 832 : index
    %746 = vector.load %arg15[%c0_1328, %c832] : memref<2x1600xf32, #tpu.memory_space<vmem>>, vector<2x64xf32>
    tpu.vector_store %arg15[%c0_1328, %c832], %745 {strides = array<i32>} : memref<2x1600xf32, #tpu.memory_space<vmem>>, vector<2x64xf32>,
    %c28_1329 = arith.constant 28 : index
    %c0_1330 = arith.constant 0 : index
    %747 = vector.load %arg14[%c28_1329, %c0_1330] : memref<50x64xf32, #tpu.memory_space<vmem>>, vector<2x64xf32>
    %c0_1331 = arith.constant 0 : index
    %c896 = arith.constant 896 : index
    %748 = vector.load %arg15[%c0_1331, %c896] : memref<2x1600xf32, #tpu.memory_space<vmem>>, vector<2x64xf32>
    tpu.vector_store %arg15[%c0_1331, %c896], %747 {strides = array<i32>} : memref<2x1600xf32, #tpu.memory_space<vmem>>, vector<2x64xf32>,
    %c30_1332 = arith.constant 30 : index
    %c0_1333 = arith.constant 0 : index
    %749 = vector.load %arg14[%c30_1332, %c0_1333] : memref<50x64xf32, #tpu.memory_space<vmem>>, vector<2x64xf32>
    %c0_1334 = arith.constant 0 : index
    %c960_1335 = arith.constant 960 : index
    %750 = vector.load %arg15[%c0_1334, %c960_1335] : memref<2x1600xf32, #tpu.memory_space<vmem>>, vector<2x64xf32>
    tpu.vector_store %arg15[%c0_1334, %c960_1335], %749 {strides = array<i32>} : memref<2x1600xf32, #tpu.memory_space<vmem>>, vector<2x64xf32>,
    %c32_1336 = arith.constant 32 : index
    %c0_1337 = arith.constant 0 : index
    %751 = vector.load %arg14[%c32_1336, %c0_1337] : memref<50x64xf32, #tpu.memory_space<vmem>>, vector<2x64xf32>
    %c0_1338 = arith.constant 0 : index
    %c1024 = arith.constant 1024 : index
    %752 = vector.load %arg15[%c0_1338, %c1024] : memref<2x1600xf32, #tpu.memory_space<vmem>>, vector<2x64xf32>
    tpu.vector_store %arg15[%c0_1338, %c1024], %751 {strides = array<i32>} : memref<2x1600xf32, #tpu.memory_space<vmem>>, vector<2x64xf32>,
    %c34_1339 = arith.constant 34 : index
    %c0_1340 = arith.constant 0 : index
    %753 = vector.load %arg14[%c34_1339, %c0_1340] : memref<50x64xf32, #tpu.memory_space<vmem>>, vector<2x64xf32>
    %c0_1341 = arith.constant 0 : index
    %c1088 = arith.constant 1088 : index
    %754 = vector.load %arg15[%c0_1341, %c1088] : memref<2x1600xf32, #tpu.memory_space<vmem>>, vector<2x64xf32>
    tpu.vector_store %arg15[%c0_1341, %c1088], %753 {strides = array<i32>} : memref<2x1600xf32, #tpu.memory_space<vmem>>, vector<2x64xf32>,
    %c36_1342 = arith.constant 36 : index
    %c0_1343 = arith.constant 0 : index
    %755 = vector.load %arg14[%c36_1342, %c0_1343] : memref<50x64xf32, #tpu.memory_space<vmem>>, vector<2x64xf32>
    %c0_1344 = arith.constant 0 : index
    %c1152 = arith.constant 1152 : index
    %756 = vector.load %arg15[%c0_1344, %c1152] : memref<2x1600xf32, #tpu.memory_space<vmem>>, vector<2x64xf32>
    tpu.vector_store %arg15[%c0_1344, %c1152], %755 {strides = array<i32>} : memref<2x1600xf32, #tpu.memory_space<vmem>>, vector<2x64xf32>,
    %c38_1345 = arith.constant 38 : index
    %c0_1346 = arith.constant 0 : index
    %757 = vector.load %arg14[%c38_1345, %c0_1346] : memref<50x64xf32, #tpu.memory_space<vmem>>, vector<2x64xf32>
    %c0_1347 = arith.constant 0 : index
    %c1216 = arith.constant 1216 : index
    %758 = vector.load %arg15[%c0_1347, %c1216] : memref<2x1600xf32, #tpu.memory_space<vmem>>, vector<2x64xf32>
    tpu.vector_store %arg15[%c0_1347, %c1216], %757 {strides = array<i32>} : memref<2x1600xf32, #tpu.memory_space<vmem>>, vector<2x64xf32>,
    %c40_1348 = arith.constant 40 : index
    %c0_1349 = arith.constant 0 : index
    %759 = vector.load %arg14[%c40_1348, %c0_1349] : memref<50x64xf32, #tpu.memory_space<vmem>>, vector<2x64xf32>
    %c0_1350 = arith.constant 0 : index
    %c1280 = arith.constant 1280 : index
    %760 = vector.load %arg15[%c0_1350, %c1280] : memref<2x1600xf32, #tpu.memory_space<vmem>>, vector<2x64xf32>
    tpu.vector_store %arg15[%c0_1350, %c1280], %759 {strides = array<i32>} : memref<2x1600xf32, #tpu.memory_space<vmem>>, vector<2x64xf32>,
    %c42_1351 = arith.constant 42 : index
    %c0_1352 = arith.constant 0 : index
    %761 = vector.load %arg14[%c42_1351, %c0_1352] : memref<50x64xf32, #tpu.memory_space<vmem>>, vector<2x64xf32>
    %c0_1353 = arith.constant 0 : index
    %c1344 = arith.constant 1344 : index
    %762 = vector.load %arg15[%c0_1353, %c1344] : memref<2x1600xf32, #tpu.memory_space<vmem>>, vector<2x64xf32>
    tpu.vector_store %arg15[%c0_1353, %c1344], %761 {strides = array<i32>} : memref<2x1600xf32, #tpu.memory_space<vmem>>, vector<2x64xf32>,
    %c44_1354 = arith.constant 44 : index
    %c0_1355 = arith.constant 0 : index
    %763 = vector.load %arg14[%c44_1354, %c0_1355] : memref<50x64xf32, #tpu.memory_space<vmem>>, vector<2x64xf32>
    %c0_1356 = arith.constant 0 : index
    %c1408 = arith.constant 1408 : index
    %764 = vector.load %arg15[%c0_1356, %c1408] : memref<2x1600xf32, #tpu.memory_space<vmem>>, vector<2x64xf32>
    tpu.vector_store %arg15[%c0_1356, %c1408], %763 {strides = array<i32>} : memref<2x1600xf32, #tpu.memory_space<vmem>>, vector<2x64xf32>,
    %c46_1357 = arith.constant 46 : index
    %c0_1358 = arith.constant 0 : index
    %765 = vector.load %arg14[%c46_1357, %c0_1358] : memref<50x64xf32, #tpu.memory_space<vmem>>, vector<2x64xf32>
    %c0_1359 = arith.constant 0 : index
    %c1472 = arith.constant 1472 : index
    %766 = vector.load %arg15[%c0_1359, %c1472] : memref<2x1600xf32, #tpu.memory_space<vmem>>, vector<2x64xf32>
    tpu.vector_store %arg15[%c0_1359, %c1472], %765 {strides = array<i32>} : memref<2x1600xf32, #tpu.memory_space<vmem>>, vector<2x64xf32>,
    %c48_1360 = arith.constant 48 : index
    %c0_1361 = arith.constant 0 : index
    %767 = vector.load %arg14[%c48_1360, %c0_1361] : memref<50x64xf32, #tpu.memory_space<vmem>>, vector<2x64xf32>
    %c0_1362 = arith.constant 0 : index
    %c1536 = arith.constant 1536 : index
    %768 = vector.load %arg15[%c0_1362, %c1536] : memref<2x1600xf32, #tpu.memory_space<vmem>>, vector<2x64xf32>
    tpu.vector_store %arg15[%c0_1362, %c1536], %767 {strides = array<i32>} : memref<2x1600xf32, #tpu.memory_space<vmem>>, vector<2x64xf32>,
    %c0_1363 = arith.constant 0 : index
    %c0_1364 = arith.constant 0 : index
    %769 = vector.load %arg15[%c0_1363, %c0_1364] : memref<2x1600xf32, #tpu.memory_space<vmem>>, vector<2x1600xf32>
    %c0_1365 = arith.constant 0 : index
    %c0_1366 = arith.constant 0 : index
    %770 = vector.load %arg4[%c0_1365, %c0_1366] : memref<1600x128xf32, #tpu.memory_space<vmem>>, vector<1600x128xf32>
    %cst_1367 = arith.constant dense<0.000000e+00> : vector<2x128xf32>
    %771 = tpu.matmul %769, %770, %cst_1367 {dimension_numbers = #tpu.dot_dimension_numbers<[1], [0], [0], [1], [0, 0, 1, 1], [], []>} : vector<2x1600xf32>, vector<1600x128xf32>, vector<2x128xf32> -> vector<2x128xf32>
    %c0_1368 = arith.constant 0 : index
    %c0_1369 = arith.constant 0 : index
    %772 = vector.load %arg9[%c0_1368, %c0_1369] : memref<1x128xf32, #tpu.memory_space<vmem>>, vector<1x128xf32>
    %773 = vector.broadcast %772 : vector<1x128xf32> to vector<2x128xf32>
    %774 = arith.addf %771, %773 : vector<2x128xf32>
    %c0_1370 = arith.constant 0 : index
    %c0_1371 = arith.constant 0 : index
    %c0_1372 = arith.constant 0 : index
    %775 = vector.load %arg10[%c0_1370, %c0_1371, %c0_1372] : memref<1x2x128xf32, #tpu.memory_space<vmem>>, vector<1x2x128xf32>
    %776 = vector.shape_cast %775 : vector<1x2x128xf32> to vector<2x128xf32>
    %777 = vector.shape_cast %774 : vector<2x128xf32> to vector<1x2x128xf32>
    tpu.vector_store %arg10[%c0_1370, %c0_1371, %c0_1372], %777 {strides = array<i32>} : memref<1x2x128xf32, #tpu.memory_space<vmem>>, vector<1x2x128xf32>,
    return
  }
  func.func @transform_0(%arg0: i32) -> (i32, i32, i32) {
    %c0_i32 = arith.constant 0 : i32
    %c0_i32_0 = arith.constant 0 : i32
    %c0_i32_1 = arith.constant 0 : i32
    return %arg0, %c0_i32, %c0_i32_0 : i32, i32, i32
  }
  func.func @transform_1(%arg0: i32) -> (i32, i32) {
    %c0_i32 = arith.constant 0 : i32
    %c0_i32_0 = arith.constant 0 : i32
    %c0_i32_1 = arith.constant 0 : i32
    return %c0_i32, %c0_i32_0 : i32, i32
  }
  func.func @transform_2(%arg0: i32) -> (i32, i32) {
    %c0_i32 = arith.constant 0 : i32
    %c0_i32_0 = arith.constant 0 : i32
    %c0_i32_1 = arith.constant 0 : i32
    return %c0_i32, %c0_i32_0 : i32, i32
  }
  func.func @transform_3(%arg0: i32) -> (i32, i32) {
    %c0_i32 = arith.constant 0 : i32
    %c0_i32_0 = arith.constant 0 : i32
    %c0_i32_1 = arith.constant 0 : i32
    return %c0_i32, %c0_i32_0 : i32, i32
  }
  func.func @transform_4(%arg0: i32) -> (i32, i32) {
    %c0_i32 = arith.constant 0 : i32
    %c0_i32_0 = arith.constant 0 : i32
    %c0_i32_1 = arith.constant 0 : i32
    return %c0_i32, %c0_i32_0 : i32, i32
  }
  func.func @transform_5(%arg0: i32) -> (i32, i32) {
    %c0_i32 = arith.constant 0 : i32
    %c0_i32_0 = arith.constant 0 : i32
    %c0_i32_1 = arith.constant 0 : i32
    return %c0_i32, %c0_i32_0 : i32, i32
  }
  func.func @transform_6(%arg0: i32) -> (i32, i32) {
    %c0_i32 = arith.constant 0 : i32
    %c0_i32_0 = arith.constant 0 : i32
    %c0_i32_1 = arith.constant 0 : i32
    return %c0_i32, %c0_i32_0 : i32, i32
  }
  func.func @transform_7(%arg0: i32) -> (i32, i32) {
    %c0_i32 = arith.constant 0 : i32
    %c0_i32_0 = arith.constant 0 : i32
    %c0_i32_1 = arith.constant 0 : i32
    return %c0_i32, %c0_i32_0 : i32, i32
  }
  func.func @transform_8(%arg0: i32) -> (i32, i32) {
    %c0_i32 = arith.constant 0 : i32
    %c0_i32_0 = arith.constant 0 : i32
    %c0_i32_1 = arith.constant 0 : i32
    return %c0_i32, %c0_i32_0 : i32, i32
  }
  func.func @transform_9(%arg0: i32) -> (i32, i32, i32) {
    %c0_i32 = arith.constant 0 : i32
    %c0_i32_0 = arith.constant 0 : i32
    %c0_i32_1 = arith.constant 0 : i32
    return %arg0, %c0_i32, %c0_i32_0 : i32, i32, i32
  }
}

</mosaic_0001>

<llo_original>
// kernel: siamese_forward.1
$region0: #{siamese_forward.1}
  #allocation0 [shape = 'u32[]', space=smem, size = 0x4, offset = 0x4, fixed_abs, tag = 'smem constant byte address 0x4 - core index']
  #allocation1 [shape = 'u32[144,128]{1,0:T(1,128)}', space=vmem, size = 0x12000, scoped, tag = 'internal scratch']
  #allocation2 [shape = 'f32[648,32]{1,0:T(8,128)}', space=vmem, size = 0x51000, scoped, tag = 'scratch operand']
  #allocation3 [shape = 'f32[36,192]{1,0:T(8,128)}', space=vmem, size = 0xa000, scoped, tag = 'scratch operand']
  #allocation4 [shape = 'f32[50,1152]{1,0:T(8,128)}', space=vmem, size = 0x3f000, scoped, tag = 'scratch operand']
  #allocation5 [shape = 'f32[50,64]{1,0:T(8,128)}', space=vmem, size = 0x7000, scoped, tag = 'scratch operand']
  #allocation6 [shape = 'f32[2,1600]{1,0:T(2,128)}', space=vmem, size = 0x3400, scoped, tag = 'scratch operand']
  %s0 = inlined_call_operand.vmem [shape: f32[2,648,49], index: 0, kind: input, shape index: {}]
  %s1 = inlined_call_operand.vmem [shape: f32[49,32], index: 1, kind: input, shape index: {}]
  %s2 = inlined_call_operand.vmem [shape: f32[1152,64], index: 2, kind: input, shape index: {}]
  %s3 = inlined_call_operand.vmem [shape: f32[1600,128], index: 3, kind: input, shape index: {}]
  %s4 = inlined_call_operand.vmem [shape: f32[1,32], index: 4, kind: input, shape index: {}]
  %s5 = inlined_call_operand.vmem [shape: f32[1,32], index: 5, kind: input, shape index: {}]
  %s6 = inlined_call_operand.vmem [shape: f32[1,64], index: 6, kind: input, shape index: {}]
  %s7 = inlined_call_operand.vmem [shape: f32[1,64], index: 7, kind: input, shape index: {}]
  %s8 = inlined_call_operand.vmem [shape: f32[1,128], index: 8, kind: input, shape index: {}]
  %s9 = inlined_call_operand.vmem [shape: f32[2,2,128], index: 9, kind: output, shape index: {}]
  %s10 = sld [smem:[#allocation0]]
  $region69: #{siamese_forward.1} parent=0
    _
  %s12 = ssub.s32 1, %s10
  %s13 = scalar_select 0, %s12, %s10
  loop: start=0, step=1, limit=4
  $region2: #{siamese_forward.1} parent=0 // loop_pre_header
    _
  $region3: #{siamese_forward.1} parent=0 // loop_header
    %s15 = sphi 0, %s19
    %p16 = scmp.ge.s32.totalorder %s15, 4
    %s25 = sphi 0, %s27
    %s28 = sphi 0, %s25
    %s29 = sphi 0, %s28
    %s45 = sphi 0, %s29
    %s49 = sphi 0, %s49
    %s51 = sphi 0, %s49
    %s52 = sphi 0, %s51
    %s66 = sphi 0, %s52
    %s70 = sphi 0, %s70
    %s72 = sphi 0, %s70
    %s73 = sphi 0, %s72
    %s87 = sphi 0, %s73
    %s91 = sphi 0, %s91
    %s93 = sphi 0, %s91
    %s94 = sphi 0, %s93
    %s108 = sphi 0, %s94
    %s112 = sphi 0, %s112
    %s114 = sphi 0, %s112
    %s115 = sphi 0, %s114
    %s129 = sphi 0, %s115
    %s133 = sphi 0, %s133
    %s135 = sphi 0, %s133
    %s136 = sphi 0, %s135
    %s150 = sphi 0, %s136
    %s154 = sphi 0, %s154
    %s156 = sphi 0, %s154
    %s157 = sphi 0, %s156
    %s171 = sphi 0, %s157
    %s175 = sphi 0, %s175
    %s177 = sphi 0, %s175
    %s178 = sphi 0, %s177
    %s192 = sphi 0, %s178
    %s196 = sphi 0, %s196
    %s198 = sphi 0, %s196
    %s199 = sphi 0, %s198
    %s213 = sphi 0, %s199
    %s219 = sphi 0, %s221
    %s222 = sphi 0, %s219
    %s223 = sphi 0, %s222
    %s239 = sphi 0, %s223
  $region4: #{siamese_forward.1} parent=0 // loop_header_branch
    %18 = sbr.rel (%p16) target = $region8
  $region5: #{siamese_forward.1} parent=0 // loop_body
    %s20 = ssub.s32 %s15, 1
    %s21 = ssub.s32 %s15, 2
    %s22 = sadd.s32 %s15, 1
    %s23 = ssub.s32 %s15, %s22
    %p24 = scmp.eq.s32.totalorder %s23, 0
    %s26 = sadd.s32 %s25, 1
    %s27 = scalar_select %p24, %s25, %s26
    %p30 = pneg %p24
    %p31 = scmp.eq.s32.totalorder %s15, 1
    %p32 = por %p30, %p31
    %p33 = scmp.ne.s32.totalorder %s25, %s28
    %p34 = scmp.eq.s32.totalorder %s15, 0
    %p35 = por %p33, %p34
    %p36 = scmp.ne.s32.totalorder %s25, %s28
    %p37 = scmp.eq.s32.totalorder %s20, 1
    %p38 = por %p36, %p37
    %p39 = scmp.ne.s32.totalorder %s28, %s29
    %p40 = scmp.eq.s32.totalorder %s20, 0
    %p41 = por %p39, %p40
    %p42 = scmp.ne.s32.totalorder %s28, %s29
    %p43 = scmp.eq.s32.totalorder %s21, 1
    %p44 = por %p42, %p43
    %p46 = scmp.ne.s32.totalorder %s29, %s45
    %p47 = scmp.eq.s32.totalorder %s21, 0
    %p48 = por %p46, %p47
    %s50 = sadd.s32 %s49, 1
    %p53 = scmp.eq.s32.totalorder %s15, 1
    %p54 = scmp.ne.s32.totalorder %s49, %s51
    %p55 = scmp.eq.s32.totalorder %s15, 0
    %p56 = por %p54, %p55
    %p57 = scmp.ne.s32.totalorder %s49, %s51
    %p58 = scmp.eq.s32.totalorder %s20, 1
    %p59 = por %p57, %p58
    %p60 = scmp.ne.s32.totalorder %s51, %s52
    %p61 = scmp.eq.s32.totalorder %s20, 0
    %p62 = por %p60, %p61
    %p63 = scmp.ne.s32.totalorder %s51, %s52
    %p64 = scmp.eq.s32.totalorder %s21, 1
    %p65 = por %p63, %p64
    %p67 = scmp.ne.s32.totalorder %s52, %s66
    %p68 = scmp.eq.s32.totalorder %s21, 0
    %p69 = por %p67, %p68
    %s71 = sadd.s32 %s70, 1
    %p74 = scmp.eq.s32.totalorder %s15, 1
    %p75 = scmp.ne.s32.totalorder %s70, %s72
    %p76 = scmp.eq.s32.totalorder %s15, 0
    %p77 = por %p75, %p76
    %p78 = scmp.ne.s32.totalorder %s70, %s72
    %p79 = scmp.eq.s32.totalorder %s20, 1
    %p80 = por %p78, %p79
    %p81 = scmp.ne.s32.totalorder %s72, %s73
    %p82 = scmp.eq.s32.totalorder %s20, 0
    %p83 = por %p81, %p82
    %p84 = scmp.ne.s32.totalorder %s72, %s73
    %p85 = scmp.eq.s32.totalorder %s21, 1
    %p86 = por %p84, %p85
    %p88 = scmp.ne.s32.totalorder %s73, %s87
    %p89 = scmp.eq.s32.totalorder %s21, 0
    %p90 = por %p88, %p89
    %s92 = sadd.s32 %s91, 1
    %p95 = scmp.eq.s32.totalorder %s15, 1
    %p96 = scmp.ne.s32.totalorder %s91, %s93
    %p97 = scmp.eq.s32.totalorder %s15, 0
    %p98 = por %p96, %p97
    %p99 = scmp.ne.s32.totalorder %s91, %s93
    %p100 = scmp.eq.s32.totalorder %s20, 1
    %p101 = por %p99, %p100
    %p102 = scmp.ne.s32.totalorder %s93, %s94
    %p103 = scmp.eq.s32.totalorder %s20, 0
    %p104 = por %p102, %p103
    %p105 = scmp.ne.s32.totalorder %s93, %s94
    %p106 = scmp.eq.s32.totalorder %s21, 1
    %p107 = por %p105, %p106
    %p109 = scmp.ne.s32.totalorder %s94, %s108
    %p110 = scmp.eq.s32.totalorder %s21, 0
    %p111 = por %p109, %p110
    %s113 = sadd.s32 %s112, 1
    %p116 = scmp.eq.s32.totalorder %s15, 1
    %p117 = scmp.ne.s32.totalorder %s112, %s114
    %p118 = scmp.eq.s32.totalorder %s15, 0
    %p119 = por %p117, %p118
    %p120 = scmp.ne.s32.totalorder %s112, %s114
    %p121 = scmp.eq.s32.totalorder %s20, 1
    %p122 = por %p120, %p121
    %p123 = scmp.ne.s32.totalorder %s114, %s115
    %p124 = scmp.eq.s32.totalorder %s20, 0
    %p125 = por %p123, %p124
    %p126 = scmp.ne.s32.totalorder %s114, %s115
    %p127 = scmp.eq.s32.totalorder %s21, 1
    %p128 = por %p126, %p127
    %p130 = scmp.ne.s32.totalorder %s115, %s129
    %p131 = scmp.eq.s32.totalorder %s21, 0
    %p132 = por %p130, %p131
    %s134 = sadd.s32 %s133, 1
    %p137 = scmp.eq.s32.totalorder %s15, 1
    %p138 = scmp.ne.s32.totalorder %s133, %s135
    %p139 = scmp.eq.s32.totalorder %s15, 0
    %p140 = por %p138, %p139
    %p141 = scmp.ne.s32.totalorder %s133, %s135
    %p142 = scmp.eq.s32.totalorder %s20, 1
    %p143 = por %p141, %p142
    %p144 = scmp.ne.s32.totalorder %s135, %s136
    %p145 = scmp.eq.s32.totalorder %s20, 0
    %p146 = por %p144, %p145
    %p147 = scmp.ne.s32.totalorder %s135, %s136
    %p148 = scmp.eq.s32.totalorder %s21, 1
    %p149 = por %p147, %p148
    %p151 = scmp.ne.s32.totalorder %s136, %s150
    %p152 = scmp.eq.s32.totalorder %s21, 0
    %p153 = por %p151, %p152
    %s155 = sadd.s32 %s154, 1
    %p158 = scmp.eq.s32.totalorder %s15, 1
    %p159 = scmp.ne.s32.totalorder %s154, %s156
    %p160 = scmp.eq.s32.totalorder %s15, 0
    %p161 = por %p159, %p160
    %p162 = scmp.ne.s32.totalorder %s154, %s156
    %p163 = scmp.eq.s32.totalorder %s20, 1
    %p164 = por %p162, %p163
    %p165 = scmp.ne.s32.totalorder %s156, %s157
    %p166 = scmp.eq.s32.totalorder %s20, 0
    %p167 = por %p165, %p166
    %p168 = scmp.ne.s32.totalorder %s156, %s157
    %p169 = scmp.eq.s32.totalorder %s21, 1
    %p170 = por %p168, %p169
    %p172 = scmp.ne.s32.totalorder %s157, %s171
    %p173 = scmp.eq.s32.totalorder %s21, 0
    %p174 = por %p172, %p173
    %s176 = sadd.s32 %s175, 1
    %p179 = scmp.eq.s32.totalorder %s15, 1
    %p180 = scmp.ne.s32.totalorder %s175, %s177
    %p181 = scmp.eq.s32.totalorder %s15, 0
    %p182 = por %p180, %p181
    %p183 = scmp.ne.s32.totalorder %s175, %s177
    %p184 = scmp.eq.s32.totalorder %s20, 1
    %p185 = por %p183, %p184
    %p186 = scmp.ne.s32.totalorder %s177, %s178
    %p187 = scmp.eq.s32.totalorder %s20, 0
    %p188 = por %p186, %p187
    %p189 = scmp.ne.s32.totalorder %s177, %s178
    %p190 = scmp.eq.s32.totalorder %s21, 1
    %p191 = por %p189, %p190
    %p193 = scmp.ne.s32.totalorder %s178, %s192
    %p194 = scmp.eq.s32.totalorder %s21, 0
    %p195 = por %p193, %p194
    %s197 = sadd.s32 %s196, 1
    %p200 = scmp.eq.s32.totalorder %s15, 1
    %p201 = scmp.ne.s32.totalorder %s196, %s198
    %p202 = scmp.eq.s32.totalorder %s15, 0
    %p203 = por %p201, %p202
    %p204 = scmp.ne.s32.totalorder %s196, %s198
    %p205 = scmp.eq.s32.totalorder %s20, 1
    %p206 = por %p204, %p205
    %p207 = scmp.ne.s32.totalorder %s198, %s199
    %p208 = scmp.eq.s32.totalorder %s20, 0
    %p209 = por %p207, %p208
    %p210 = scmp.ne.s32.totalorder %s198, %s199
    %p211 = scmp.eq.s32.totalorder %s21, 1
    %p212 = por %p210, %p211
    %p214 = scmp.ne.s32.totalorder %s199, %s213
    %p215 = scmp.eq.s32.totalorder %s21, 0
    %p216 = por %p214, %p215
    %s217 = ssub.s32 %s15, %s22
    %p218 = scmp.eq.s32.totalorder %s217, 0
    %s220 = sadd.s32 %s219, 1
    %s221 = scalar_select %p218, %s219, %s220
    %p224 = pneg %p218
    %p225 = scmp.eq.s32.totalorder %s15, 1
    %p226 = por %p224, %p225
    %p227 = scmp.ne.s32.totalorder %s219, %s222
    %p228 = scmp.eq.s32.totalorder %s15, 0
    %p229 = por %p227, %p228
    %p230 = scmp.ne.s32.totalorder %s219, %s222
    %p231 = scmp.eq.s32.totalorder %s20, 1
    %p232 = por %p230, %p231
    %p233 = scmp.ne.s32.totalorder %s222, %s223
    %p234 = scmp.eq.s32.totalorder %s20, 0
    %p235 = por %p233, %p234
    %p236 = scmp.ne.s32.totalorder %s222, %s223
    %p237 = scmp.eq.s32.totalorder %s21, 1
    %p238 = por %p236, %p237
    %p240 = scmp.ne.s32.totalorder %s223, %s239
    %p241 = scmp.eq.s32.totalorder %s21, 0
    %p242 = por %p240, %p241
    %p243 = scmp.le.s32.totalorder 1, %s15
    %p244 = scmp.lt.s32.totalorder %s15, 3
    %p245 = pnand %p243, %p244
    %p246 = pneg %p245
    // Predicated region
    $region9: #{siamese_forward.1} parent=5 // pred_check
      _
    $region10: #{siamese_forward.1} parent=5 // pred_check_branch
      %248 = sbr.rel (%p245) target = $region12
    $region11: #{siamese_forward.1} parent=5 // pred_region
      %s249 = ssub.s32 %s15, 1
      // Predicated region
      $region13: #{siamese_forward.1} parent=11 // pred_check
        %p250 = pneg %p62
      $region14: #{siamese_forward.1} parent=11 // pred_check_branch
        %252 = sbr.rel (%p250) target = $region16
      $region15: #{siamese_forward.1} parent=11 // pred_region
        _
      $region16: #{siamese_forward.1} parent=11 // pred_fallthru
        _
      // Predicated region
      $region17: #{siamese_forward.1} parent=11 // pred_check
        %p253 = pneg %p83
      $region18: #{siamese_forward.1} parent=11 // pred_check_branch
        %255 = sbr.rel (%p253) target = $region20
      $region19: #{siamese_forward.1} parent=11 // pred_region
        _
      $region20: #{siamese_forward.1} parent=11 // pred_fallthru
        _
      // Predicated region
      $region21: #{siamese_forward.1} parent=11 // pred_check
        %p256 = pneg %p104
      $region22: #{siamese_forward.1} parent=11 // pred_check_branch
        %258 = sbr.rel (%p256) target = $region24
      $region23: #{siamese_forward.1} parent=11 // pred_region
        _
      $region24: #{siamese_forward.1} parent=11 // pred_fallthru
        _
      // Predicated region
      $region25: #{siamese_forward.1} parent=11 // pred_check
        %p259 = pneg %p125
      $region26: #{siamese_forward.1} parent=11 // pred_check_branch
        %261 = sbr.rel (%p259) target = $region28
      $region27: #{siamese_forward.1} parent=11 // pred_region
        _
      $region28: #{siamese_forward.1} parent=11 // pred_fallthru
        _
      // Predicated region
      $region29: #{siamese_forward.1} parent=11 // pred_check
        %p262 = pneg %p146
      $region30: #{siamese_forward.1} parent=11 // pred_check_branch
        %264 = sbr.rel (%p262) target = $region32
      $region31: #{siamese_forward.1} parent=11 // pred_region
        _
      $region32: #{siamese_forward.1} parent=11 // pred_fallthru
        _
      // Predicated region
      $region33: #{siamese_forward.1} parent=11 // pred_check
        %p265 = pneg %p167
      $region34: #{siamese_forward.1} parent=11 // pred_check_branch
        %267 = sbr.rel (%p265) target = $region36
      $region35: #{siamese_forward.1} parent=11 // pred_region
        _
      $region36: #{siamese_forward.1} parent=11 // pred_fallthru
        _
      // Predicated region
      $region37: #{siamese_forward.1} parent=11 // pred_check
        %p268 = pneg %p188
      $region38: #{siamese_forward.1} parent=11 // pred_check_branch
        %270 = sbr.rel (%p268) target = $region40
      $region39: #{siamese_forward.1} parent=11 // pred_region
        _
      $region40: #{siamese_forward.1} parent=11 // pred_fallthru
        _
      // Predicated region
      $region41: #{siamese_forward.1} parent=11 // pred_check
        %p271 = pneg %p209
      $region42: #{siamese_forward.1} parent=11 // pred_check_branch
        %273 = sbr.rel (%p271) target = $region44
      $region43: #{siamese_forward.1} parent=11 // pred_region
        _
      $region44: #{siamese_forward.1} parent=11 // pred_fallthru
        _
    $region12: #{siamese_forward.1} parent=5 // pred_fallthru
      _
    %p274 = scmp.lt.s32.totalorder %s15, 2
    // Predicated region
    $region45: #{siamese_forward.1} parent=5 // pred_check
      %p275 = pneg %p274
    $region46: #{siamese_forward.1} parent=5 // pred_check_branch
      %277 = sbr.rel (%p275) target = $region48
    $region47: #{siamese_forward.1} parent=5 // pred_region
      // Predicated region
      $region49: #{siamese_forward.1} parent=47 // pred_check
        %p278 = pneg %p35
      $region50: #{siamese_forward.1} parent=47 // pred_check_branch
        %280 = sbr.rel (%p278) target = $region52
      $region51: #{siamese_forward.1} parent=47 // pred_region
        %p281 = scmp.lt.s32.totalorder %s15, 1
        %s282 = scalar_select %p281, %s15, 1
        %s283 = smul.addr %s282, 81
        %s284 = smul.addr %s283, 8
        %s285 = scalar_lea.vmem %s0, %s284
      $region52: #{siamese_forward.1} parent=47 // pred_fallthru
        _
    $region48: #{siamese_forward.1} parent=5 // pred_fallthru
      _
    %p286 = scmp.le.s32.totalorder 1, %s15
    %p287 = scmp.lt.s32.totalorder %s15, 3
    %p288 = pnand %p286, %p287
    %p289 = pneg %p288
    // Predicated region
    $region53: #{siamese_forward.1} parent=5 // pred_check
      _
    $region54: #{siamese_forward.1} parent=5 // pred_check_branch
      %291 = sbr.rel (%p288) target = $region56
    $region55: #{siamese_forward.1} parent=5 // pred_region
      %s292 = ssub.s32 %s15, 1
      %p293 = scmp.lt.s32.totalorder %s20, 1
      %s294 = scalar_select %p293, %s20, 1
      %s295 = smul.addr %s294, 81
      %s296 = smul.addr %s295, 8
      %s297 = scalar_lea.vmem %s0, %s296
      %p298 = pneg %p41
      %p299 = pneg %p38
      %p300 = pneg %p62
      %p301 = pneg %p59
      %p302 = pneg %p83
      %p303 = pneg %p80
      %p304 = pneg %p104
      %p305 = pneg %p101
      %p306 = pneg %p125
      %p307 = pneg %p122
      %p308 = pneg %p146
      %p309 = pneg %p143
      %p310 = pneg %p167
      %p311 = pneg %p164
      %p312 = pneg %p188
      %p313 = pneg %p185
      %p314 = pneg %p209
      %p315 = pneg %p206
      %p316 = pneg %p235
      %p317 = pneg %p232
      %p318 = scmp.lt.s32.totalorder %s20, 1
      %s319 = scalar_select %p318, %s20, 1
      %s320 = smul.addr %s319, 2
      %s321 = scalar_lea.vmem %s9, %s320
      %p322 = scmp.lt.s32.totalorder %s20, 1
      %s323 = scalar_select %p322, %s20, 1
      %s324 = smul.addr %s323, 81
      %s325 = smul.addr %s324, 8
      %s326 = scalar_lea.vmem %s0, %s325
      %p327 = scmp.lt.s32.totalorder %s20, 1
      %s328 = scalar_select %p327, %s20, 1
      %s329 = smul.addr %s328, 2
      %s330 = scalar_lea.vmem %s9, %s329
      %v331 = vld [vmem:[%s326] sm:$0xff]
      %v332 = vld [vmem:[%s326 + $0x8] sm:$0xff]
      %v333 = vld [vmem:[%s326 + $0x10] sm:$0xff]
      %v334 = vld [vmem:[%s326 + $0x18] sm:$0xff]
      %v335 = vld [vmem:[%s326 + $0x20] sm:$0xff]
      %v336 = vld [vmem:[%s326 + $0x28] sm:$0xff]
      %v337 = vld [vmem:[%s326 + $0x30] sm:$0xff]
      %v338 = vld [vmem:[%s326 + $0x38] sm:$0xff]
      %v339 = vld [vmem:[%s326 + $0x40] sm:$0xff]
      %v340 = vld [vmem:[%s326 + $0x48] sm:$0xff]
      %v341 = vld [vmem:[%s326 + $0x50] sm:$0xff]
      %v342 = vld [vmem:[%s326 + $0x58] sm:$0xff]
      %v343 = vld [vmem:[%s326 + $0x60] sm:$0xff]
      %v344 = vld [vmem:[%s326 + $0x68] sm:$0xff]
      %v345 = vld [vmem:[%s326 + $0x70] sm:$0xff]
      %v346 = vld [vmem:[%s326 + $0x78] sm:$0xff]
      %v347 = vld [vmem:[%s326 + $0x80] sm:$0xff]
      %v348 = vld [vmem:[%s326 + $0x88] sm:$0xff]
      %v349 = vld [vmem:[%s326 + $0x90] sm:$0xff]
      %v350 = vld [vmem:[%s326 + $0x98] sm:$0xff]
      %v351 = vld [vmem:[%s326 + $0xa0] sm:$0xff]
      %v352 = vld [vmem:[%s326 + $0xa8] sm:$0xff]
      %v353 = vld [vmem:[%s326 + $0xb0] sm:$0xff]
      %v354 = vld [vmem:[%s326 + $0xb8] sm:$0xff]
      %v355 = vld [vmem:[%s326 + $0xc0] sm:$0xff]
      %v356 = vld [vmem:[%s326 + $0xc8] sm:$0xff]
      %v357 = vld [vmem:[%s326 + $0xd0] sm:$0xff]
      %v358 = vld [vmem:[%s326 + $0xd8] sm:$0xff]
      %v359 = vld [vmem:[%s326 + $0xe0] sm:$0xff]
      %v360 = vld [vmem:[%s326 + $0xe8] sm:$0xff]
      %v361 = vld [vmem:[%s326 + $0xf0] sm:$0xff]
      %v362 = vld [vmem:[%s326 + $0xf8] sm:$0xff]
      %v363 = vld [vmem:[%s326 + $0x100] sm:$0xff]
      %v364 = vld [vmem:[%s326 + $0x108] sm:$0xff]
      %v365 = vld [vmem:[%s326 + $0x110] sm:$0xff]
      %v366 = vld [vmem:[%s326 + $0x118] sm:$0xff]
      %v367 = vld [vmem:[%s326 + $0x120] sm:$0xff]
      %v368 = vld [vmem:[%s326 + $0x128] sm:$0xff]
      %v369 = vld [vmem:[%s326 + $0x130] sm:$0xff]
      %v370 = vld [vmem:[%s326 + $0x138] sm:$0xff]
      %v371 = vld [vmem:[%s326 + $0x140] sm:$0xff]
      %v372 = vld [vmem:[%s326 + $0x148] sm:$0xff]
      %v373 = vld [vmem:[%s326 + $0x150] sm:$0xff]
      %v374 = vld [vmem:[%s326 + $0x158] sm:$0xff]
      %v375 = vld [vmem:[%s326 + $0x160] sm:$0xff]
      %v376 = vld [vmem:[%s326 + $0x168] sm:$0xff]
      %v377 = vld [vmem:[%s326 + $0x170] sm:$0xff]
      %v378 = vld [vmem:[%s326 + $0x178] sm:$0xff]
      %v379 = vld [vmem:[%s326 + $0x180] sm:$0xff]
      %v380 = vld [vmem:[%s326 + $0x188] sm:$0xff]
      %v381 = vld [vmem:[%s326 + $0x190] sm:$0xff]
      %v382 = vld [vmem:[%s326 + $0x198] sm:$0xff]
      %v383 = vld [vmem:[%s326 + $0x1a0] sm:$0xff]
      %v384 = vld [vmem:[%s326 + $0x1a8] sm:$0xff]
      %v385 = vld [vmem:[%s326 + $0x1b0] sm:$0xff]
      %v386 = vld [vmem:[%s326 + $0x1b8] sm:$0xff]
      %v387 = vld [vmem:[%s326 + $0x1c0] sm:$0xff]
      %v388 = vld [vmem:[%s326 + $0x1c8] sm:$0xff]
      %v389 = vld [vmem:[%s326 + $0x1d0] sm:$0xff]
      %v390 = vld [vmem:[%s326 + $0x1d8] sm:$0xff]
      %v391 = vld [vmem:[%s326 + $0x1e0] sm:$0xff]
      %v392 = vld [vmem:[%s326 + $0x1e8] sm:$0xff]
      %v393 = vld [vmem:[%s326 + $0x1f0] sm:$0xff]
      %v394 = vld [vmem:[%s326 + $0x1f8] sm:$0xff]
      %v395 = vld [vmem:[%s326 + $0x200] sm:$0xff]
      %v396 = vld [vmem:[%s326 + $0x208] sm:$0xff]
      %v397 = vld [vmem:[%s326 + $0x210] sm:$0xff]
      %v398 = vld [vmem:[%s326 + $0x218] sm:$0xff]
      %v399 = vld [vmem:[%s326 + $0x220] sm:$0xff]
      %v400 = vld [vmem:[%s326 + $0x228] sm:$0xff]
      %v401 = vld [vmem:[%s326 + $0x230] sm:$0xff]
      %v402 = vld [vmem:[%s326 + $0x238] sm:$0xff]
      %v403 = vld [vmem:[%s326 + $0x240] sm:$0xff]
      %v404 = vld [vmem:[%s326 + $0x248] sm:$0xff]
      %v405 = vld [vmem:[%s326 + $0x250] sm:$0xff]
      %v406 = vld [vmem:[%s326 + $0x258] sm:$0xff]
      %v407 = vld [vmem:[%s326 + $0x260] sm:$0xff]
      %v408 = vld [vmem:[%s326 + $0x268] sm:$0xff]
      %v409 = vld [vmem:[%s326 + $0x270] sm:$0xff]
      %v410 = vld [vmem:[%s326 + $0x278] sm:$0xff]
      %v411 = vld [vmem:[%s326 + $0x280] sm:$0xff]
      %v412 = vld [vmem:[%s1] sm:$0xff]
      %v413 = vld [vmem:[%s1 + $0x8] sm:$0xff]
      %v414 = vld [vmem:[%s1 + $0x10] sm:$0xff]
      %v415 = vld [vmem:[%s1 + $0x18] sm:$0xff]
      %v416 = vld [vmem:[%s1 + $0x20] sm:$0xff]
      %v417 = vld [vmem:[%s1 + $0x28] sm:$0xff]
      %v418 = vld [vmem:[%s1 + $0x30] sm:$0x1]
      %vm419 = vcmask 400384
      %v421 = vsel %vm419, %v331, 0
      %v424 = vsel %vm419, %v332, 0
      %v427 = vsel %vm419, %v333, 0
      %v430 = vsel %vm419, %v334, 0
      %v433 = vsel %vm419, %v335, 0
      %v436 = vsel %vm419, %v336, 0
      %v439 = vsel %vm419, %v337, 0
      %v442 = vsel %vm419, %v338, 0
      %v445 = vsel %vm419, %v339, 0
      %v448 = vsel %vm419, %v340, 0
      %v451 = vsel %vm419, %v341, 0
      %v454 = vsel %vm419, %v342, 0
      %v457 = vsel %vm419, %v343, 0
      %v460 = vsel %vm419, %v344, 0
      %v463 = vsel %vm419, %v345, 0
      %v466 = vsel %vm419, %v346, 0
      %v469 = vsel %vm419, %v347, 0
      %v472 = vsel %vm419, %v348, 0
      %v475 = vsel %vm419, %v349, 0
      %v478 = vsel %vm419, %v350, 0
      %v481 = vsel %vm419, %v351, 0
      %v484 = vsel %vm419, %v352, 0
      %v487 = vsel %vm419, %v353, 0
      %v490 = vsel %vm419, %v354, 0
      %v493 = vsel %vm419, %v355, 0
      %v496 = vsel %vm419, %v356, 0
      %v499 = vsel %vm419, %v357, 0
      %v502 = vsel %vm419, %v358, 0
      %v505 = vsel %vm419, %v359, 0
      %v508 = vsel %vm419, %v360, 0
      %v511 = vsel %vm419, %v361, 0
      %v514 = vsel %vm419, %v362, 0
      %v517 = vsel %vm419, %v363, 0
      %v520 = vsel %vm419, %v364, 0
      %v523 = vsel %vm419, %v365, 0
      %v526 = vsel %vm419, %v366, 0
      %v529 = vsel %vm419, %v367, 0
      %v532 = vsel %vm419, %v368, 0
      %v535 = vsel %vm419, %v369, 0
      %v538 = vsel %vm419, %v370, 0
      %v541 = vsel %vm419, %v371, 0
      %v544 = vsel %vm419, %v372, 0
      %v547 = vsel %vm419, %v373, 0
      %v550 = vsel %vm419, %v374, 0
      %v553 = vsel %vm419, %v375, 0
      %v556 = vsel %vm419, %v376, 0
      %v559 = vsel %vm419, %v377, 0
      %v562 = vsel %vm419, %v378, 0
      %v565 = vsel %vm419, %v379, 0
      %v568 = vsel %vm419, %v380, 0
      %v571 = vsel %vm419, %v381, 0
      %v574 = vsel %vm419, %v382, 0
      %v577 = vsel %vm419, %v383, 0
      %v580 = vsel %vm419, %v384, 0
      %v583 = vsel %vm419, %v385, 0
      %v586 = vsel %vm419, %v386, 0
      %v589 = vsel %vm419, %v387, 0
      %v592 = vsel %vm419, %v388, 0
      %v595 = vsel %vm419, %v389, 0
      %v598 = vsel %vm419, %v390, 0
      %v601 = vsel %vm419, %v391, 0
      %v604 = vsel %vm419, %v392, 0
      %v607 = vsel %vm419, %v393, 0
      %v610 = vsel %vm419, %v394, 0
      %v613 = vsel %vm419, %v395, 0
      %v616 = vsel %vm419, %v396, 0
      %v619 = vsel %vm419, %v397, 0
      %v622 = vsel %vm419, %v398, 0
      %v625 = vsel %vm419, %v399, 0
      %v628 = vsel %vm419, %v400, 0
      %v631 = vsel %vm419, %v401, 0
      %v634 = vsel %vm419, %v402, 0
      %v637 = vsel %vm419, %v403, 0
      %v640 = vsel %vm419, %v404, 0
      %v643 = vsel %vm419, %v405, 0
      %v646 = vsel %vm419, %v406, 0
      %v649 = vsel %vm419, %v407, 0
      %v652 = vsel %vm419, %v408, 0
      %v655 = vsel %vm419, %v409, 0
      %v658 = vsel %vm419, %v410, 0
      %v661 = vsel %vm419, %v411, 0
      %vm663 = vcmask 1040384
      %v665 = vsel %vm663, %v418, 0
      %667 = vmatprep.subr.mxu0 0.0
      %668 = vmatpush1.msra.mxu0 %v412
      %669 = vmatprep.subr.mxu0 0.0
      %670 = vmatpush1.msra.mxu0 %v413
      %671 = vmatprep.subr.mxu0 0.0
      %672 = vmatpush1.msra.mxu0 %v414
      %673 = vmatprep.subr.mxu0 0.0
      %674 = vmatpush1.msra.mxu0 %v415
      %675 = vmatprep.subr.mxu0 0.0
      %676 = vmatpush1.msra.mxu0 %v416
      %677 = vmatprep.subr.mxu0 0.0
      %678 = vmatpush1.msra.mxu0 %v417
      %679 = vmatprep.subr.mxu0 0.0
      %680 = vmatpush1.msra.mxu0 %v665
      %681 = vmatprep.subr.mxu0 0.0
      %682 = vmatpush1.msra.mxu0 0.0
      %683 = vmatprep.subr.mxu0 0.0
      %684 = vmatpush1.msra.mxu0 0.0
      %685 = vmatprep.subr.mxu0 0.0
      %686 = vmatpush1.msra.mxu0 0.0
      %687 = vmatprep.subr.mxu0 0.0
      %688 = vmatpush1.msra.mxu0 0.0
      %689 = vmatprep.subr.mxu0 0.0
      %690 = vmatpush1.msra.mxu0 0.0
      %691 = vmatprep.subr.mxu0 0.0
      %692 = vmatpush1.msra.mxu0 0.0
      %693 = vmatprep.subr.mxu0 0.0
      %694 = vmatpush1.msra.mxu0 0.0
      %695 = vmatprep.subr.mxu0 0.0
      %696 = vmatpush1.msra.mxu0 0.0
      %697 = vmatprep.subr.mxu0 0.0
      %698 = vmatpush1.msra.mxu0 0.0
      %699 = vmatprep.subr.mxu0 0.0
      %700 = vmatpush1.msra.mxu0 0.0
      %701 = vmatprep.subr.mxu0 0.0
      %702 = vmatpush1.msra.mxu0 0.0
      %703 = vmatprep.subr.mxu0 0.0
      %704 = vmatpush1.msra.mxu0 0.0
      %705 = vmatprep.subr.mxu0 0.0
      %706 = vmatpush1.msra.mxu0 0.0
      %707 = vmatprep.subr.mxu0 0.0
      %708 = vmatpush1.msra.mxu0 0.0
      %709 = vmatprep.subr.mxu0 0.0
      %710 = vmatpush1.msra.mxu0 0.0
      %711 = vmatprep.subr.mxu0 0.0
      %712 = vmatpush1.msra.mxu0 0.0
      %713 = vmatprep.subr.mxu0 0.0
      %714 = vmatpush1.msra.mxu0 0.0
      %715 = vmatprep.subr.mxu0 0.0
      %716 = vmatpush1.msra.mxu0 0.0
      %717 = vmatprep.subr.mxu0 0.0
      %718 = vmatpush1.msra.mxu0 0.0
      %719 = vmatprep.subr.mxu0 0.0
      %720 = vmatpush1.msra.mxu0 0.0
      %721 = vmatprep.subr.mxu0 0.0
      %722 = vmatpush1.msra.mxu0 0.0
      %723 = vmatprep.subr.mxu0 0.0
      %724 = vmatpush1.msra.mxu0 0.0
      %725 = vmatprep.subr.mxu0 0.0
      %726 = vmatpush1.msra.mxu0 0.0
      %727 = vmatprep.subr.mxu0 0.0
      %728 = vmatpush1.msra.mxu0 0.0
      %729 = vmatprep.subr.mxu0 0.0
      %730 = vmatpush1.msra.mxu0 0.0
      %731 = vmatprep.mubr.f32.mxu0 0.0
      %732 = vmatmul.mubr.f32.gmra.mrb[0].mxu0 %v421
      %v733 = vpop.f32.mrb[0].mxu0
      %v734 = vadd.f32 0.0, %v733
      %v735 = vpop.f32.mrb[0].mxu0
      %736 = vmatprep.mubr.f32.mxu0 0.0
      %737 = vmatmul.mubr.f32.gmra.mrb[0].mxu0 %v424
      %v738 = vpop.f32.mrb[0].mxu0
      %v739 = vadd.f32 0.0, %v738
      %v740 = vpop.f32.mrb[0].mxu0
      %741 = vmatprep.mubr.f32.mxu0 0.0
      %742 = vmatmul.mubr.f32.gmra.mrb[0].mxu0 %v427
      %v743 = vpop.f32.mrb[0].mxu0
      %v744 = vadd.f32 0.0, %v743
      %v745 = vpop.f32.mrb[0].mxu0
      %746 = vmatprep.mubr.f32.mxu0 0.0
      %747 = vmatmul.mubr.f32.gmra.mrb[0].mxu0 %v430
      %v748 = vpop.f32.mrb[0].mxu0
      %v749 = vadd.f32 0.0, %v748
      %v750 = vpop.f32.mrb[0].mxu0
      %751 = vmatprep.mubr.f32.mxu0 0.0
      %752 = vmatmul.mubr.f32.gmra.mrb[0].mxu0 %v433
      %v753 = vpop.f32.mrb[0].mxu0
      %v754 = vadd.f32 0.0, %v753
      %v755 = vpop.f32.mrb[0].mxu0
      %756 = vmatprep.mubr.f32.mxu0 0.0
      %757 = vmatmul.mubr.f32.gmra.mrb[0].mxu0 %v436
      %v758 = vpop.f32.mrb[0].mxu0
      %v759 = vadd.f32 0.0, %v758
      %v760 = vpop.f32.mrb[0].mxu0
      %761 = vmatprep.mubr.f32.mxu0 0.0
      %762 = vmatmul.mubr.f32.gmra.mrb[0].mxu0 %v439
      %v763 = vpop.f32.mrb[0].mxu0
      %v764 = vadd.f32 0.0, %v763
      %v765 = vpop.f32.mrb[0].mxu0
      %766 = vmatprep.mubr.f32.mxu0 0.0
      %767 = vmatmul.mubr.f32.gmra.mrb[0].mxu0 %v442
      %v768 = vpop.f32.mrb[0].mxu0
      %v769 = vadd.f32 0.0, %v768
      %v770 = vpop.f32.mrb[0].mxu0
      %771 = vmatprep.mubr.f32.mxu0 0.0
      %772 = vmatmul.mubr.f32.gmra.mrb[0].mxu0 %v445
      %v773 = vpop.f32.mrb[0].mxu0
      %v774 = vadd.f32 0.0, %v773
      %v775 = vpop.f32.mrb[0].mxu0
      %776 = vmatprep.mubr.f32.mxu0 0.0
      %777 = vmatmul.mubr.f32.gmra.mrb[0].mxu0 %v448
      %v778 = vpop.f32.mrb[0].mxu0
      %v779 = vadd.f32 0.0, %v778
      %v780 = vpop.f32.mrb[0].mxu0
      %781 = vmatprep.mubr.f32.mxu0 0.0
      %782 = vmatmul.mubr.f32.gmra.mrb[0].mxu0 %v451
      %v783 = vpop.f32.mrb[0].mxu0
      %v784 = vadd.f32 0.0, %v783
      %v785 = vpop.f32.mrb[0].mxu0
      %786 = vmatprep.mubr.f32.mxu0 0.0
      %787 = vmatmul.mubr.f32.gmra.mrb[0].mxu0 %v454
      %v788 = vpop.f32.mrb[0].mxu0
      %v789 = vadd.f32 0.0, %v788
      %v790 = vpop.f32.mrb[0].mxu0
      %791 = vmatprep.mubr.f32.mxu0 0.0
      %792 = vmatmul.mubr.f32.gmra.mrb[0].mxu0 %v457
      %v793 = vpop.f32.mrb[0].mxu0
      %v794 = vadd.f32 0.0, %v793
      %v795 = vpop.f32.mrb[0].mxu0
      %796 = vmatprep.mubr.f32.mxu0 0.0
      %797 = vmatmul.mubr.f32.gmra.mrb[0].mxu0 %v460
      %v798 = vpop.f32.mrb[0].mxu0
      %v799 = vadd.f32 0.0, %v798
      %v800 = vpop.f32.mrb[0].mxu0
      %801 = vmatprep.mubr.f32.mxu0 0.0
      %802 = vmatmul.mubr.f32.gmra.mrb[0].mxu0 %v463
      %v803 = vpop.f32.mrb[0].mxu0
      %v804 = vadd.f32 0.0, %v803
      %v805 = vpop.f32.mrb[0].mxu0
      %806 = vmatprep.mubr.f32.mxu0 0.0
      %807 = vmatmul.mubr.f32.gmra.mrb[0].mxu0 %v466
      %v808 = vpop.f32.mrb[0].mxu0
      %v809 = vadd.f32 0.0, %v808
      %v810 = vpop.f32.mrb[0].mxu0
      %811 = vmatprep.mubr.f32.mxu0 0.0
      %812 = vmatmul.mubr.f32.gmra.mrb[0].mxu0 %v469
      %v813 = vpop.f32.mrb[0].mxu0
      %v814 = vadd.f32 0.0, %v813
      %v815 = vpop.f32.mrb[0].mxu0
      %816 = vmatprep.mubr.f32.mxu0 0.0
      %817 = vmatmul.mubr.f32.gmra.mrb[0].mxu0 %v472
      %v818 = vpop.f32.mrb[0].mxu0
      %v819 = vadd.f32 0.0, %v818
      %v820 = vpop.f32.mrb[0].mxu0
      %821 = vmatprep.mubr.f32.mxu0 0.0
      %822 = vmatmul.mubr.f32.gmra.mrb[0].mxu0 %v475
      %v823 = vpop.f32.mrb[0].mxu0
      %v824 = vadd.f32 0.0, %v823
      %v825 = vpop.f32.mrb[0].mxu0
      %826 = vmatprep.mubr.f32.mxu0 0.0
      %827 = vmatmul.mubr.f32.gmra.mrb[0].mxu0 %v478
      %v828 = vpop.f32.mrb[0].mxu0
      %v829 = vadd.f32 0.0, %v828
      %v830 = vpop.f32.mrb[0].mxu0
      %831 = vmatprep.mubr.f32.mxu0 0.0
      %832 = vmatmul.mubr.f32.gmra.mrb[0].mxu0 %v481
      %v833 = vpop.f32.mrb[0].mxu0
      %v834 = vadd.f32 0.0, %v833
      %v835 = vpop.f32.mrb[0].mxu0
      %836 = vmatprep.mubr.f32.mxu0 0.0
      %837 = vmatmul.mubr.f32.gmra.mrb[0].mxu0 %v484
      %v838 = vpop.f32.mrb[0].mxu0
      %v839 = vadd.f32 0.0, %v838
      %v840 = vpop.f32.mrb[0].mxu0
      %841 = vmatprep.mubr.f32.mxu0 0.0
      %842 = vmatmul.mubr.f32.gmra.mrb[0].mxu0 %v487
      %v843 = vpop.f32.mrb[0].mxu0
      %v844 = vadd.f32 0.0, %v843
      %v845 = vpop.f32.mrb[0].mxu0
      %846 = vmatprep.mubr.f32.mxu0 0.0
      %847 = vmatmul.mubr.f32.gmra.mrb[0].mxu0 %v490
      %v848 = vpop.f32.mrb[0].mxu0
      %v849 = vadd.f32 0.0, %v848
      %v850 = vpop.f32.mrb[0].mxu0
      %851 = vmatprep.mubr.f32.mxu0 0.0
      %852 = vmatmul.mubr.f32.gmra.mrb[0].mxu0 %v493
      %v853 = vpop.f32.mrb[0].mxu0
      %v854 = vadd.f32 0.0, %v853
      %v855 = vpop.f32.mrb[0].mxu0
      %856 = vmatprep.mubr.f32.mxu0 0.0
      %857 = vmatmul.mubr.f32.gmra.mrb[0].mxu0 %v496
      %v858 = vpop.f32.mrb[0].mxu0
      %v859 = vadd.f32 0.0, %v858
      %v860 = vpop.f32.mrb[0].mxu0
      %861 = vmatprep.mubr.f32.mxu0 0.0
      %862 = vmatmul.mubr.f32.gmra.mrb[0].mxu0 %v499
      %v863 = vpop.f32.mrb[0].mxu0
      %v864 = vadd.f32 0.0, %v863
      %v865 = vpop.f32.mrb[0].mxu0
      %866 = vmatprep.mubr.f32.mxu0 0.0
      %867 = vmatmul.mubr.f32.gmra.mrb[0].mxu0 %v502
      %v868 = vpop.f32.mrb[0].mxu0
      %v869 = vadd.f32 0.0, %v868
      %v870 = vpop.f32.mrb[0].mxu0
      %871 = vmatprep.mubr.f32.mxu0 0.0
      %872 = vmatmul.mubr.f32.gmra.mrb[0].mxu0 %v505
      %v873 = vpop.f32.mrb[0].mxu0
      %v874 = vadd.f32 0.0, %v873
      %v875 = vpop.f32.mrb[0].mxu0
      %876 = vmatprep.mubr.f32.mxu0 0.0
      %877 = vmatmul.mubr.f32.gmra.mrb[0].mxu0 %v508
      %v878 = vpop.f32.mrb[0].mxu0
      %v879 = vadd.f32 0.0, %v878
      %v880 = vpop.f32.mrb[0].mxu0
      %881 = vmatprep.mubr.f32.mxu0 0.0
      %882 = vmatmul.mubr.f32.gmra.mrb[0].mxu0 %v511
      %v883 = vpop.f32.mrb[0].mxu0
      %v884 = vadd.f32 0.0, %v883
      %v885 = vpop.f32.mrb[0].mxu0
      %886 = vmatprep.mubr.f32.mxu0 0.0
      %887 = vmatmul.mubr.f32.gmra.mrb[0].mxu0 %v514
      %v888 = vpop.f32.mrb[0].mxu0
      %v889 = vadd.f32 0.0, %v888
      %v890 = vpop.f32.mrb[0].mxu0
      %891 = vmatprep.mubr.f32.mxu0 0.0
      %892 = vmatmul.mubr.f32.gmra.mrb[0].mxu0 %v517
      %v893 = vpop.f32.mrb[0].mxu0
      %v894 = vadd.f32 0.0, %v893
      %v895 = vpop.f32.mrb[0].mxu0
      %896 = vmatprep.mubr.f32.mxu0 0.0
      %897 = vmatmul.mubr.f32.gmra.mrb[0].mxu0 %v520
      %v898 = vpop.f32.mrb[0].mxu0
      %v899 = vadd.f32 0.0, %v898
      %v900 = vpop.f32.mrb[0].mxu0
      %901 = vmatprep.mubr.f32.mxu0 0.0
      %902 = vmatmul.mubr.f32.gmra.mrb[0].mxu0 %v523
      %v903 = vpop.f32.mrb[0].mxu0
      %v904 = vadd.f32 0.0, %v903
      %v905 = vpop.f32.mrb[0].mxu0
      %906 = vmatprep.mubr.f32.mxu0 0.0
      %907 = vmatmul.mubr.f32.gmra.mrb[0].mxu0 %v526
      %v908 = vpop.f32.mrb[0].mxu0
      %v909 = vadd.f32 0.0, %v908
      %v910 = vpop.f32.mrb[0].mxu0
      %911 = vmatprep.mubr.f32.mxu0 0.0
      %912 = vmatmul.mubr.f32.gmra.mrb[0].mxu0 %v529
      %v913 = vpop.f32.mrb[0].mxu0
      %v914 = vadd.f32 0.0, %v913
      %v915 = vpop.f32.mrb[0].mxu0
      %916 = vmatprep.mubr.f32.mxu0 0.0
      %917 = vmatmul.mubr.f32.gmra.mrb[0].mxu0 %v532
      %v918 = vpop.f32.mrb[0].mxu0
      %v919 = vadd.f32 0.0, %v918
      %v920 = vpop.f32.mrb[0].mxu0
      %921 = vmatprep.mubr.f32.mxu0 0.0
      %922 = vmatmul.mubr.f32.gmra.mrb[0].mxu0 %v535
      %v923 = vpop.f32.mrb[0].mxu0
      %v924 = vadd.f32 0.0, %v923
      %v925 = vpop.f32.mrb[0].mxu0
      %926 = vmatprep.mubr.f32.mxu0 0.0
      %927 = vmatmul.mubr.f32.gmra.mrb[0].mxu0 %v538
      %v928 = vpop.f32.mrb[0].mxu0
      %v929 = vadd.f32 0.0, %v928
      %v930 = vpop.f32.mrb[0].mxu0
      %931 = vmatprep.mubr.f32.mxu0 0.0
      %932 = vmatmul.mubr.f32.gmra.mrb[0].mxu0 %v541
      %v933 = vpop.f32.mrb[0].mxu0
      %v934 = vadd.f32 0.0, %v933
      %v935 = vpop.f32.mrb[0].mxu0
      %936 = vmatprep.mubr.f32.mxu0 0.0
      %937 = vmatmul.mubr.f32.gmra.mrb[0].mxu0 %v544
      %v938 = vpop.f32.mrb[0].mxu0
      %v939 = vadd.f32 0.0, %v938
      %v940 = vpop.f32.mrb[0].mxu0
      %941 = vmatprep.mubr.f32.mxu0 0.0
      %942 = vmatmul.mubr.f32.gmra.mrb[0].mxu0 %v547
      %v943 = vpop.f32.mrb[0].mxu0
      %v944 = vadd.f32 0.0, %v943
      %v945 = vpop.f32.mrb[0].mxu0
      %946 = vmatprep.mubr.f32.mxu0 0.0
      %947 = vmatmul.mubr.f32.gmra.mrb[0].mxu0 %v550
      %v948 = vpop.f32.mrb[0].mxu0
      %v949 = vadd.f32 0.0, %v948
      %v950 = vpop.f32.mrb[0].mxu0
      %951 = vmatprep.mubr.f32.mxu0 0.0
      %952 = vmatmul.mubr.f32.gmra.mrb[0].mxu0 %v553
      %v953 = vpop.f32.mrb[0].mxu0
      %v954 = vadd.f32 0.0, %v953
      %v955 = vpop.f32.mrb[0].mxu0
      %956 = vmatprep.mubr.f32.mxu0 0.0
      %957 = vmatmul.mubr.f32.gmra.mrb[0].mxu0 %v556
      %v958 = vpop.f32.mrb[0].mxu0
      %v959 = vadd.f32 0.0, %v958
      %v960 = vpop.f32.mrb[0].mxu0
      %961 = vmatprep.mubr.f32.mxu0 0.0
      %962 = vmatmul.mubr.f32.gmra.mrb[0].mxu0 %v559
      %v963 = vpop.f32.mrb[0].mxu0
      %v964 = vadd.f32 0.0, %v963
      %v965 = vpop.f32.mrb[0].mxu0
      %966 = vmatprep.mubr.f32.mxu0 0.0
      %967 = vmatmul.mubr.f32.gmra.mrb[0].mxu0 %v562
      %v968 = vpop.f32.mrb[0].mxu0
      %v969 = vadd.f32 0.0, %v968
      %v970 = vpop.f32.mrb[0].mxu0
      %971 = vmatprep.mubr.f32.mxu0 0.0
      %972 = vmatmul.mubr.f32.gmra.mrb[0].mxu0 %v565
      %v973 = vpop.f32.mrb[0].mxu0
      %v974 = vadd.f32 0.0, %v973
      %v975 = vpop.f32.mrb[0].mxu0
      %976 = vmatprep.mubr.f32.mxu0 0.0
      %977 = vmatmul.mubr.f32.gmra.mrb[0].mxu0 %v568
      %v978 = vpop.f32.mrb[0].mxu0
      %v979 = vadd.f32 0.0, %v978
      %v980 = vpop.f32.mrb[0].mxu0
      %981 = vmatprep.mubr.f32.mxu0 0.0
      %982 = vmatmul.mubr.f32.gmra.mrb[0].mxu0 %v571
      %v983 = vpop.f32.mrb[0].mxu0
      %v984 = vadd.f32 0.0, %v983
      %v985 = vpop.f32.mrb[0].mxu0
      %986 = vmatprep.mubr.f32.mxu0 0.0
      %987 = vmatmul.mubr.f32.gmra.mrb[0].mxu0 %v574
      %v988 = vpop.f32.mrb[0].mxu0
      %v989 = vadd.f32 0.0, %v988
      %v990 = vpop.f32.mrb[0].mxu0
      %991 = vmatprep.mubr.f32.mxu0 0.0
      %992 = vmatmul.mubr.f32.gmra.mrb[0].mxu0 %v577
      %v993 = vpop.f32.mrb[0].mxu0
      %v994 = vadd.f32 0.0, %v993
      %v995 = vpop.f32.mrb[0].mxu0
      %996 = vmatprep.mubr.f32.mxu0 0.0
      %997 = vmatmul.mubr.f32.gmra.mrb[0].mxu0 %v580
      %v998 = vpop.f32.mrb[0].mxu0
      %v999 = vadd.f32 0.0, %v998
      %v1000 = vpop.f32.mrb[0].mxu0
      %1001 = vmatprep.mubr.f32.mxu0 0.0
      %1002 = vmatmul.mubr.f32.gmra.mrb[0].mxu0 %v583
      %v1003 = vpop.f32.mrb[0].mxu0
      %v1004 = vadd.f32 0.0, %v1003
      %v1005 = vpop.f32.mrb[0].mxu0
      %1006 = vmatprep.mubr.f32.mxu0 0.0
      %1007 = vmatmul.mubr.f32.gmra.mrb[0].mxu0 %v586
      %v1008 = vpop.f32.mrb[0].mxu0
      %v1009 = vadd.f32 0.0, %v1008
      %v1010 = vpop.f32.mrb[0].mxu0
      %1011 = vmatprep.mubr.f32.mxu0 0.0
      %1012 = vmatmul.mubr.f32.gmra.mrb[0].mxu0 %v589
      %v1013 = vpop.f32.mrb[0].mxu0
      %v1014 = vadd.f32 0.0, %v1013
      %v1015 = vpop.f32.mrb[0].mxu0
      %1016 = vmatprep.mubr.f32.mxu0 0.0
      %1017 = vmatmul.mubr.f32.gmra.mrb[0].mxu0 %v592
      %v1018 = vpop.f32.mrb[0].mxu0
      %v1019 = vadd.f32 0.0, %v1018
      %v1020 = vpop.f32.mrb[0].mxu0
      %1021 = vmatprep.mubr.f32.mxu0 0.0
      %1022 = vmatmul.mubr.f32.gmra.mrb[0].mxu0 %v595
      %v1023 = vpop.f32.mrb[0].mxu0
      %v1024 = vadd.f32 0.0, %v1023
      %v1025 = vpop.f32.mrb[0].mxu0
      %1026 = vmatprep.mubr.f32.mxu0 0.0
      %1027 = vmatmul.mubr.f32.gmra.mrb[0].mxu0 %v598
      %v1028 = vpop.f32.mrb[0].mxu0
      %v1029 = vadd.f32 0.0, %v1028
      %v1030 = vpop.f32.mrb[0].mxu0
      %1031 = vmatprep.mubr.f32.mxu0 0.0
      %1032 = vmatmul.mubr.f32.gmra.mrb[0].mxu0 %v601
      %v1033 = vpop.f32.mrb[0].mxu0
      %v1034 = vadd.f32 0.0, %v1033
      %v1035 = vpop.f32.mrb[0].mxu0
      %1036 = vmatprep.mubr.f32.mxu0 0.0
      %1037 = vmatmul.mubr.f32.gmra.mrb[0].mxu0 %v604
      %v1038 = vpop.f32.mrb[0].mxu0
      %v1039 = vadd.f32 0.0, %v1038
      %v1040 = vpop.f32.mrb[0].mxu0
      %1041 = vmatprep.mubr.f32.mxu0 0.0
      %1042 = vmatmul.mubr.f32.gmra.mrb[0].mxu0 %v607
      %v1043 = vpop.f32.mrb[0].mxu0
      %v1044 = vadd.f32 0.0, %v1043
      %v1045 = vpop.f32.mrb[0].mxu0
      %1046 = vmatprep.mubr.f32.mxu0 0.0
      %1047 = vmatmul.mubr.f32.gmra.mrb[0].mxu0 %v610
      %v1048 = vpop.f32.mrb[0].mxu0
      %v1049 = vadd.f32 0.0, %v1048
      %v1050 = vpop.f32.mrb[0].mxu0
      %1051 = vmatprep.mubr.f32.mxu0 0.0
      %1052 = vmatmul.mubr.f32.gmra.mrb[0].mxu0 %v613
      %v1053 = vpop.f32.mrb[0].mxu0
      %v1054 = vadd.f32 0.0, %v1053
      %v1055 = vpop.f32.mrb[0].mxu0
      %1056 = vmatprep.mubr.f32.mxu0 0.0
      %1057 = vmatmul.mubr.f32.gmra.mrb[0].mxu0 %v616
      %v1058 = vpop.f32.mrb[0].mxu0
      %v1059 = vadd.f32 0.0, %v1058
      %v1060 = vpop.f32.mrb[0].mxu0
      %1061 = vmatprep.mubr.f32.mxu0 0.0
      %1062 = vmatmul.mubr.f32.gmra.mrb[0].mxu0 %v619
      %v1063 = vpop.f32.mrb[0].mxu0
      %v1064 = vadd.f32 0.0, %v1063
      %v1065 = vpop.f32.mrb[0].mxu0
      %1066 = vmatprep.mubr.f32.mxu0 0.0
      %1067 = vmatmul.mubr.f32.gmra.mrb[0].mxu0 %v622
      %v1068 = vpop.f32.mrb[0].mxu0
      %v1069 = vadd.f32 0.0, %v1068
      %v1070 = vpop.f32.mrb[0].mxu0
      %1071 = vmatprep.mubr.f32.mxu0 0.0
      %1072 = vmatmul.mubr.f32.gmra.mrb[0].mxu0 %v625
      %v1073 = vpop.f32.mrb[0].mxu0
      %v1074 = vadd.f32 0.0, %v1073
      %v1075 = vpop.f32.mrb[0].mxu0
      %1076 = vmatprep.mubr.f32.mxu0 0.0
      %1077 = vmatmul.mubr.f32.gmra.mrb[0].mxu0 %v628
      %v1078 = vpop.f32.mrb[0].mxu0
      %v1079 = vadd.f32 0.0, %v1078
      %v1080 = vpop.f32.mrb[0].mxu0
      %1081 = vmatprep.mubr.f32.mxu0 0.0
      %1082 = vmatmul.mubr.f32.gmra.mrb[0].mxu0 %v631
      %v1083 = vpop.f32.mrb[0].mxu0
      %v1084 = vadd.f32 0.0, %v1083
      %v1085 = vpop.f32.mrb[0].mxu0
      %1086 = vmatprep.mubr.f32.mxu0 0.0
      %1087 = vmatmul.mubr.f32.gmra.mrb[0].mxu0 %v634
      %v1088 = vpop.f32.mrb[0].mxu0
      %v1089 = vadd.f32 0.0, %v1088
      %v1090 = vpop.f32.mrb[0].mxu0
      %1091 = vmatprep.mubr.f32.mxu0 0.0
      %1092 = vmatmul.mubr.f32.gmra.mrb[0].mxu0 %v637
      %v1093 = vpop.f32.mrb[0].mxu0
      %v1094 = vadd.f32 0.0, %v1093
      %v1095 = vpop.f32.mrb[0].mxu0
      %1096 = vmatprep.mubr.f32.mxu0 0.0
      %1097 = vmatmul.mubr.f32.gmra.mrb[0].mxu0 %v640
      %v1098 = vpop.f32.mrb[0].mxu0
      %v1099 = vadd.f32 0.0, %v1098
      %v1100 = vpop.f32.mrb[0].mxu0
      %1101 = vmatprep.mubr.f32.mxu0 0.0
      %1102 = vmatmul.mubr.f32.gmra.mrb[0].mxu0 %v643
      %v1103 = vpop.f32.mrb[0].mxu0
      %v1104 = vadd.f32 0.0, %v1103
      %v1105 = vpop.f32.mrb[0].mxu0
      %1106 = vmatprep.mubr.f32.mxu0 0.0
      %1107 = vmatmul.mubr.f32.gmra.mrb[0].mxu0 %v646
      %v1108 = vpop.f32.mrb[0].mxu0
      %v1109 = vadd.f32 0.0, %v1108
      %v1110 = vpop.f32.mrb[0].mxu0
      %1111 = vmatprep.mubr.f32.mxu0 0.0
      %1112 = vmatmul.mubr.f32.gmra.mrb[0].mxu0 %v649
      %v1113 = vpop.f32.mrb[0].mxu0
      %v1114 = vadd.f32 0.0, %v1113
      %v1115 = vpop.f32.mrb[0].mxu0
      %1116 = vmatprep.mubr.f32.mxu0 0.0
      %1117 = vmatmul.mubr.f32.gmra.mrb[0].mxu0 %v652
      %v1118 = vpop.f32.mrb[0].mxu0
      %v1119 = vadd.f32 0.0, %v1118
      %v1120 = vpop.f32.mrb[0].mxu0
      %1121 = vmatprep.mubr.f32.mxu0 0.0
      %1122 = vmatmul.mubr.f32.gmra.mrb[0].mxu0 %v655
      %v1123 = vpop.f32.mrb[0].mxu0
      %v1124 = vadd.f32 0.0, %v1123
      %v1125 = vpop.f32.mrb[0].mxu0
      %1126 = vmatprep.mubr.f32.mxu0 0.0
      %1127 = vmatmul.mubr.f32.gmra.mrb[0].mxu0 %v658
      %v1128 = vpop.f32.mrb[0].mxu0
      %v1129 = vadd.f32 0.0, %v1128
      %v1130 = vpop.f32.mrb[0].mxu0
      %1131 = vmatprep.mubr.f32.mxu0 0.0
      %1132 = vmatmul.mubr.f32.gmra.mrb[0].mxu0 %v661
      %v1133 = vpop.f32.mrb[0].mxu0
      %v1134 = vadd.f32 0.0, %v1133
      %v1135 = vpop.f32.mrb[0].mxu0
      %1136 = vdwg.mxu0
      %vm1137 = vcmask 261120
      %v1138 = vsel %vm1137, %v734, 0.0
      %v1139 = vsel %vm1137, %v739, 0.0
      %v1140 = vadd.f32 %v1138, %v1139
      %v1141 = vsel %vm1137, %v744, 0.0
      %v1142 = vadd.f32 %v1140, %v1141
      %v1143 = vsel %vm1137, %v749, 0.0
      %v1144 = vadd.f32 %v1142, %v1143
      %v1145 = vsel %vm1137, %v754, 0.0
      %v1146 = vadd.f32 %v1144, %v1145
      %v1147 = vsel %vm1137, %v759, 0.0
      %v1148 = vadd.f32 %v1146, %v1147
      %v1149 = vsel %vm1137, %v764, 0.0
      %v1150 = vadd.f32 %v1148, %v1149
      %v1151 = vsel %vm1137, %v769, 0.0
      %v1152 = vadd.f32 %v1150, %v1151
      %v1153 = vsel %vm1137, %v774, 0.0
      %v1154 = vadd.f32 %v1152, %v1153
      %v1155 = vsel %vm1137, %v779, 0.0
      %v1156 = vadd.f32 %v1154, %v1155
      %v1157 = vsel %vm1137, %v784, 0.0
      %v1158 = vadd.f32 %v1156, %v1157
      %v1159 = vsel %vm1137, %v789, 0.0
      %v1160 = vadd.f32 %v1158, %v1159
      %v1161 = vsel %vm1137, %v794, 0.0
      %v1162 = vadd.f32 %v1160, %v1161
      %v1163 = vsel %vm1137, %v799, 0.0
      %v1164 = vadd.f32 %v1162, %v1163
      %v1165 = vsel %vm1137, %v804, 0.0
      %v1166 = vadd.f32 %v1164, %v1165
      %v1167 = vsel %vm1137, %v809, 0.0
      %v1168 = vadd.f32 %v1166, %v1167
      %v1169 = vsel %vm1137, %v814, 0.0
      %v1170 = vadd.f32 %v1168, %v1169
      %v1171 = vsel %vm1137, %v819, 0.0
      %v1172 = vadd.f32 %v1170, %v1171
      %v1173 = vsel %vm1137, %v824, 0.0
      %v1174 = vadd.f32 %v1172, %v1173
      %v1175 = vsel %vm1137, %v829, 0.0
      %v1176 = vadd.f32 %v1174, %v1175
      %v1177 = vsel %vm1137, %v834, 0.0
      %v1178 = vadd.f32 %v1176, %v1177
      %v1179 = vsel %vm1137, %v839, 0.0
      %v1180 = vadd.f32 %v1178, %v1179
      %v1181 = vsel %vm1137, %v844, 0.0
      %v1182 = vadd.f32 %v1180, %v1181
      %v1183 = vsel %vm1137, %v849, 0.0
      %v1184 = vadd.f32 %v1182, %v1183
      %v1185 = vsel %vm1137, %v854, 0.0
      %v1186 = vadd.f32 %v1184, %v1185
      %v1187 = vsel %vm1137, %v859, 0.0
      %v1188 = vadd.f32 %v1186, %v1187
      %v1189 = vsel %vm1137, %v864, 0.0
      %v1190 = vadd.f32 %v1188, %v1189
      %v1191 = vsel %vm1137, %v869, 0.0
      %v1192 = vadd.f32 %v1190, %v1191
      %v1193 = vsel %vm1137, %v874, 0.0
      %v1194 = vadd.f32 %v1192, %v1193
      %v1195 = vsel %vm1137, %v879, 0.0
      %v1196 = vadd.f32 %v1194, %v1195
      %v1197 = vsel %vm1137, %v884, 0.0
      %v1198 = vadd.f32 %v1196, %v1197
      %v1199 = vsel %vm1137, %v889, 0.0
      %v1200 = vadd.f32 %v1198, %v1199
      %v1201 = vsel %vm1137, %v894, 0.0
      %v1202 = vadd.f32 %v1200, %v1201
      %v1203 = vsel %vm1137, %v899, 0.0
      %v1204 = vadd.f32 %v1202, %v1203
      %v1205 = vsel %vm1137, %v904, 0.0
      %v1206 = vadd.f32 %v1204, %v1205
      %v1207 = vsel %vm1137, %v909, 0.0
      %v1208 = vadd.f32 %v1206, %v1207
      %v1209 = vsel %vm1137, %v914, 0.0
      %v1210 = vadd.f32 %v1208, %v1209
      %v1211 = vsel %vm1137, %v919, 0.0
      %v1212 = vadd.f32 %v1210, %v1211
      %v1213 = vsel %vm1137, %v924, 0.0
      %v1214 = vadd.f32 %v1212, %v1213
      %v1215 = vsel %vm1137, %v929, 0.0
      %v1216 = vadd.f32 %v1214, %v1215
      %v1217 = vsel %vm1137, %v934, 0.0
      %v1218 = vadd.f32 %v1216, %v1217
      %v1219 = vsel %vm1137, %v939, 0.0
      %v1220 = vadd.f32 %v1218, %v1219
      %v1221 = vsel %vm1137, %v944, 0.0
      %v1222 = vadd.f32 %v1220, %v1221
      %v1223 = vsel %vm1137, %v949, 0.0
      %v1224 = vadd.f32 %v1222, %v1223
      %v1225 = vsel %vm1137, %v954, 0.0
      %v1226 = vadd.f32 %v1224, %v1225
      %v1227 = vsel %vm1137, %v959, 0.0
      %v1228 = vadd.f32 %v1226, %v1227
      %v1229 = vsel %vm1137, %v964, 0.0
      %v1230 = vadd.f32 %v1228, %v1229
      %v1231 = vsel %vm1137, %v969, 0.0
      %v1232 = vadd.f32 %v1230, %v1231
      %v1233 = vsel %vm1137, %v974, 0.0
      %v1234 = vadd.f32 %v1232, %v1233
      %v1235 = vsel %vm1137, %v979, 0.0
      %v1236 = vadd.f32 %v1234, %v1235
      %v1237 = vsel %vm1137, %v984, 0.0
      %v1238 = vadd.f32 %v1236, %v1237
      %v1239 = vsel %vm1137, %v989, 0.0
      %v1240 = vadd.f32 %v1238, %v1239
      %v1241 = vsel %vm1137, %v994, 0.0
      %v1242 = vadd.f32 %v1240, %v1241
      %v1243 = vsel %vm1137, %v999, 0.0
      %v1244 = vadd.f32 %v1242, %v1243
      %v1245 = vsel %vm1137, %v1004, 0.0
      %v1246 = vadd.f32 %v1244, %v1245
      %v1247 = vsel %vm1137, %v1009, 0.0
      %v1248 = vadd.f32 %v1246, %v1247
      %v1249 = vsel %vm1137, %v1014, 0.0
      %v1250 = vadd.f32 %v1248, %v1249
      %v1251 = vsel %vm1137, %v1019, 0.0
      %v1252 = vadd.f32 %v1250, %v1251
      %v1253 = vsel %vm1137, %v1024, 0.0
      %v1254 = vadd.f32 %v1252, %v1253
      %v1255 = vsel %vm1137, %v1029, 0.0
      %v1256 = vadd.f32 %v1254, %v1255
      %v1257 = vsel %vm1137, %v1034, 0.0
      %v1258 = vadd.f32 %v1256, %v1257
      %v1259 = vsel %vm1137, %v1039, 0.0
      %v1260 = vadd.f32 %v1258, %v1259
      %v1261 = vsel %vm1137, %v1044, 0.0
      %v1262 = vadd.f32 %v1260, %v1261
      %v1263 = vsel %vm1137, %v1049, 0.0
      %v1264 = vadd.f32 %v1262, %v1263
      %v1265 = vsel %vm1137, %v1054, 0.0
      %v1266 = vadd.f32 %v1264, %v1265
      %v1267 = vsel %vm1137, %v1059, 0.0
      %v1268 = vadd.f32 %v1266, %v1267
      %v1269 = vsel %vm1137, %v1064, 0.0
      %v1270 = vadd.f32 %v1268, %v1269
      %v1271 = vsel %vm1137, %v1069, 0.0
      %v1272 = vadd.f32 %v1270, %v1271
      %v1273 = vsel %vm1137, %v1074, 0.0
      %v1274 = vadd.f32 %v1272, %v1273
      %v1275 = vsel %vm1137, %v1079, 0.0
      %v1276 = vadd.f32 %v1274, %v1275
      %v1277 = vsel %vm1137, %v1084, 0.0
      %v1278 = vadd.f32 %v1276, %v1277
      %v1279 = vsel %vm1137, %v1089, 0.0
      %v1280 = vadd.f32 %v1278, %v1279
      %v1281 = vsel %vm1137, %v1094, 0.0
      %v1282 = vadd.f32 %v1280, %v1281
      %v1283 = vsel %vm1137, %v1099, 0.0
      %v1284 = vadd.f32 %v1282, %v1283
      %v1285 = vsel %vm1137, %v1104, 0.0
      %v1286 = vadd.f32 %v1284, %v1285
      %v1287 = vsel %vm1137, %v1109, 0.0
      %v1288 = vadd.f32 %v1286, %v1287
      %v1289 = vsel %vm1137, %v1114, 0.0
      %v1290 = vadd.f32 %v1288, %v1289
      %v1291 = vsel %vm1137, %v1119, 0.0
      %v1292 = vadd.f32 %v1290, %v1291
      %v1293 = vsel %vm1137, %v1124, 0.0
      %v1294 = vadd.f32 %v1292, %v1293
      %v1295 = vsel %vm1137, %v1129, 0.0
      %v1296 = vadd.f32 %v1294, %v1295
      %v1297 = vsel %vm1137, %v1134, 0.0
      %v1298 = vadd.f32 %v1296, %v1297
      %v1299 = vrot.slane %v1298, 4
      %v1300 = vadd.f32 %v1298, %v1299
      %v1301 = vrot.slane %v1300, 2
      %v1302 = vadd.f32 %v1300, %v1301
      %v1303 = vrot.slane %v1302, 1
      %v1304 = vadd.f32 %v1302, %v1303
      %v1305 = vrcp.pop 648.0
      %v1306 = vmul.f32 %v1304, %v1305
      %v1307 = vmul.f32 %v734, %v734
      %v1308 = vmul.f32 %v739, %v739
      %v1309 = vmul.f32 %v744, %v744
      %v1310 = vmul.f32 %v749, %v749
      %v1311 = vmul.f32 %v754, %v754
      %v1312 = vmul.f32 %v759, %v759
      %v1313 = vmul.f32 %v764, %v764
      %v1314 = vmul.f32 %v769, %v769
      %v1315 = vmul.f32 %v774, %v774
      %v1316 = vmul.f32 %v779, %v779
      %v1317 = vmul.f32 %v784, %v784
      %v1318 = vmul.f32 %v789, %v789
      %v1319 = vmul.f32 %v794, %v794
      %v1320 = vmul.f32 %v799, %v799
      %v1321 = vmul.f32 %v804, %v804
      %v1322 = vmul.f32 %v809, %v809
      %v1323 = vmul.f32 %v814, %v814
      %v1324 = vmul.f32 %v819, %v819
      %v1325 = vmul.f32 %v824, %v824
      %v1326 = vmul.f32 %v829, %v829
      %v1327 = vmul.f32 %v834, %v834
      %v1328 = vmul.f32 %v839, %v839
      %v1329 = vmul.f32 %v844, %v844
      %v1330 = vmul.f32 %v849, %v849
      %v1331 = vmul.f32 %v854, %v854
      %v1332 = vmul.f32 %v859, %v859
      %v1333 = vmul.f32 %v864, %v864
      %v1334 = vmul.f32 %v869, %v869
      %v1335 = vmul.f32 %v874, %v874
      %v1336 = vmul.f32 %v879, %v879
      %v1337 = vmul.f32 %v884, %v884
      %v1338 = vmul.f32 %v889, %v889
      %v1339 = vmul.f32 %v894, %v894
      %v1340 = vmul.f32 %v899, %v899
      %v1341 = vmul.f32 %v904, %v904
      %v1342 = vmul.f32 %v909, %v909
      %v1343 = vmul.f32 %v914, %v914
      %v1344 = vmul.f32 %v919, %v919
      %v1345 = vmul.f32 %v924, %v924
      %v1346 = vmul.f32 %v929, %v929
      %v1347 = vmul.f32 %v934, %v934
      %v1348 = vmul.f32 %v939, %v939
      %v1349 = vmul.f32 %v944, %v944
      %v1350 = vmul.f32 %v949, %v949
      %v1351 = vmul.f32 %v954, %v954
      %v1352 = vmul.f32 %v959, %v959
      %v1353 = vmul.f32 %v964, %v964
      %v1354 = vmul.f32 %v969, %v969
      %v1355 = vmul.f32 %v974, %v974
      %v1356 = vmul.f32 %v979, %v979
      %v1357 = vmul.f32 %v984, %v984
      %v1358 = vmul.f32 %v989, %v989
      %v1359 = vmul.f32 %v994, %v994
      %v1360 = vmul.f32 %v999, %v999
      %v1361 = vmul.f32 %v1004, %v1004
      %v1362 = vmul.f32 %v1009, %v1009
      %v1363 = vmul.f32 %v1014, %v1014
      %v1364 = vmul.f32 %v1019, %v1019
      %v1365 = vmul.f32 %v1024, %v1024
      %v1366 = vmul.f32 %v1029, %v1029
      %v1367 = vmul.f32 %v1034, %v1034
      %v1368 = vmul.f32 %v1039, %v1039
      %v1369 = vmul.f32 %v1044, %v1044
      %v1370 = vmul.f32 %v1049, %v1049
      %v1371 = vmul.f32 %v1054, %v1054
      %v1372 = vmul.f32 %v1059, %v1059
      %v1373 = vmul.f32 %v1064, %v1064
      %v1374 = vmul.f32 %v1069, %v1069
      %v1375 = vmul.f32 %v1074, %v1074
      %v1376 = vmul.f32 %v1079, %v1079
      %v1377 = vmul.f32 %v1084, %v1084
      %v1378 = vmul.f32 %v1089, %v1089
      %v1379 = vmul.f32 %v1094, %v1094
      %v1380 = vmul.f32 %v1099, %v1099
      %v1381 = vmul.f32 %v1104, %v1104
      %v1382 = vmul.f32 %v1109, %v1109
      %v1383 = vmul.f32 %v1114, %v1114
      %v1384 = vmul.f32 %v1119, %v1119
      %v1385 = vmul.f32 %v1124, %v1124
      %v1386 = vmul.f32 %v1129, %v1129
      %v1387 = vmul.f32 %v1134, %v1134
      %v1388 = vsel %vm1137, %v1307, 0.0
      %v1389 = vsel %vm1137, %v1308, 0.0
      %v1390 = vadd.f32 %v1388, %v1389
      %v1391 = vsel %vm1137, %v1309, 0.0
      %v1392 = vadd.f32 %v1390, %v1391
      %v1393 = vsel %vm1137, %v1310, 0.0
      %v1394 = vadd.f32 %v1392, %v1393
      %v1395 = vsel %vm1137, %v1311, 0.0
      %v1396 = vadd.f32 %v1394, %v1395
      %v1397 = vsel %vm1137, %v1312, 0.0
      %v1398 = vadd.f32 %v1396, %v1397
      %v1399 = vsel %vm1137, %v1313, 0.0
      %v1400 = vadd.f32 %v1398, %v1399
      %v1401 = vsel %vm1137, %v1314, 0.0
      %v1402 = vadd.f32 %v1400, %v1401
      %v1403 = vsel %vm1137, %v1315, 0.0
      %v1404 = vadd.f32 %v1402, %v1403
      %v1405 = vsel %vm1137, %v1316, 0.0
      %v1406 = vadd.f32 %v1404, %v1405
      %v1407 = vsel %vm1137, %v1317, 0.0
      %v1408 = vadd.f32 %v1406, %v1407
      %v1409 = vsel %vm1137, %v1318, 0.0
      %v1410 = vadd.f32 %v1408, %v1409
      %v1411 = vsel %vm1137, %v1319, 0.0
      %v1412 = vadd.f32 %v1410, %v1411
      %v1413 = vsel %vm1137, %v1320, 0.0
      %v1414 = vadd.f32 %v1412, %v1413
      %v1415 = vsel %vm1137, %v1321, 0.0
      %v1416 = vadd.f32 %v1414, %v1415
      %v1417 = vsel %vm1137, %v1322, 0.0
      %v1418 = vadd.f32 %v1416, %v1417
      %v1419 = vsel %vm1137, %v1323, 0.0
      %v1420 = vadd.f32 %v1418, %v1419
      %v1421 = vsel %vm1137, %v1324, 0.0
      %v1422 = vadd.f32 %v1420, %v1421
      %v1423 = vsel %vm1137, %v1325, 0.0
      %v1424 = vadd.f32 %v1422, %v1423
      %v1425 = vsel %vm1137, %v1326, 0.0
      %v1426 = vadd.f32 %v1424, %v1425
      %v1427 = vsel %vm1137, %v1327, 0.0
      %v1428 = vadd.f32 %v1426, %v1427
      %v1429 = vsel %vm1137, %v1328, 0.0
      %v1430 = vadd.f32 %v1428, %v1429
      %v1431 = vsel %vm1137, %v1329, 0.0
      %v1432 = vadd.f32 %v1430, %v1431
      %v1433 = vsel %vm1137, %v1330, 0.0
      %v1434 = vadd.f32 %v1432, %v1433
      %v1435 = vsel %vm1137, %v1331, 0.0
      %v1436 = vadd.f32 %v1434, %v1435
      %v1437 = vsel %vm1137, %v1332, 0.0
      %v1438 = vadd.f32 %v1436, %v1437
      %v1439 = vsel %vm1137, %v1333, 0.0
      %v1440 = vadd.f32 %v1438, %v1439
      %v1441 = vsel %vm1137, %v1334, 0.0
      %v1442 = vadd.f32 %v1440, %v1441
      %v1443 = vsel %vm1137, %v1335, 0.0
      %v1444 = vadd.f32 %v1442, %v1443
      %v1445 = vsel %vm1137, %v1336, 0.0
      %v1446 = vadd.f32 %v1444, %v1445
      %v1447 = vsel %vm1137, %v1337, 0.0
      %v1448 = vadd.f32 %v1446, %v1447
      %v1449 = vsel %vm1137, %v1338, 0.0
      %v1450 = vadd.f32 %v1448, %v1449
      %v1451 = vsel %vm1137, %v1339, 0.0
      %v1452 = vadd.f32 %v1450, %v1451
      %v1453 = vsel %vm1137, %v1340, 0.0
      %v1454 = vadd.f32 %v1452, %v1453
      %v1455 = vsel %vm1137, %v1341, 0.0
      %v1456 = vadd.f32 %v1454, %v1455
      %v1457 = vsel %vm1137, %v1342, 0.0
      %v1458 = vadd.f32 %v1456, %v1457
      %v1459 = vsel %vm1137, %v1343, 0.0
      %v1460 = vadd.f32 %v1458, %v1459
      %v1461 = vsel %vm1137, %v1344, 0.0
      %v1462 = vadd.f32 %v1460, %v1461
      %v1463 = vsel %vm1137, %v1345, 0.0
      %v1464 = vadd.f32 %v1462, %v1463
      %v1465 = vsel %vm1137, %v1346, 0.0
      %v1466 = vadd.f32 %v1464, %v1465
      %v1467 = vsel %vm1137, %v1347, 0.0
      %v1468 = vadd.f32 %v1466, %v1467
      %v1469 = vsel %vm1137, %v1348, 0.0
      %v1470 = vadd.f32 %v1468, %v1469
      %v1471 = vsel %vm1137, %v1349, 0.0
      %v1472 = vadd.f32 %v1470, %v1471
      %v1473 = vsel %vm1137, %v1350, 0.0
      %v1474 = vadd.f32 %v1472, %v1473
      %v1475 = vsel %vm1137, %v1351, 0.0
      %v1476 = vadd.f32 %v1474, %v1475
      %v1477 = vsel %vm1137, %v1352, 0.0
      %v1478 = vadd.f32 %v1476, %v1477
      %v1479 = vsel %vm1137, %v1353, 0.0
      %v1480 = vadd.f32 %v1478, %v1479
      %v1481 = vsel %vm1137, %v1354, 0.0
      %v1482 = vadd.f32 %v1480, %v1481
      %v1483 = vsel %vm1137, %v1355, 0.0
      %v1484 = vadd.f32 %v1482, %v1483
      %v1485 = vsel %vm1137, %v1356, 0.0
      %v1486 = vadd.f32 %v1484, %v1485
      %v1487 = vsel %vm1137, %v1357, 0.0
      %v1488 = vadd.f32 %v1486, %v1487
      %v1489 = vsel %vm1137, %v1358, 0.0
      %v1490 = vadd.f32 %v1488, %v1489
      %v1491 = vsel %vm1137, %v1359, 0.0
      %v1492 = vadd.f32 %v1490, %v1491
      %v1493 = vsel %vm1137, %v1360, 0.0
      %v1494 = vadd.f32 %v1492, %v1493
      %v1495 = vsel %vm1137, %v1361, 0.0
      %v1496 = vadd.f32 %v1494, %v1495
      %v1497 = vsel %vm1137, %v1362, 0.0
      %v1498 = vadd.f32 %v1496, %v1497
      %v1499 = vsel %vm1137, %v1363, 0.0
      %v1500 = vadd.f32 %v1498, %v1499
      %v1501 = vsel %vm1137, %v1364, 0.0
      %v1502 = vadd.f32 %v1500, %v1501
      %v1503 = vsel %vm1137, %v1365, 0.0
      %v1504 = vadd.f32 %v1502, %v1503
      %v1505 = vsel %vm1137, %v1366, 0.0
      %v1506 = vadd.f32 %v1504, %v1505
      %v1507 = vsel %vm1137, %v1367, 0.0
      %v1508 = vadd.f32 %v1506, %v1507
      %v1509 = vsel %vm1137, %v1368, 0.0
      %v1510 = vadd.f32 %v1508, %v1509
      %v1511 = vsel %vm1137, %v1369, 0.0
      %v1512 = vadd.f32 %v1510, %v1511
      %v1513 = vsel %vm1137, %v1370, 0.0
      %v1514 = vadd.f32 %v1512, %v1513
      %v1515 = vsel %vm1137, %v1371, 0.0
      %v1516 = vadd.f32 %v1514, %v1515
      %v1517 = vsel %vm1137, %v1372, 0.0
      %v1518 = vadd.f32 %v1516, %v1517
      %v1519 = vsel %vm1137, %v1373, 0.0
      %v1520 = vadd.f32 %v1518, %v1519
      %v1521 = vsel %vm1137, %v1374, 0.0
      %v1522 = vadd.f32 %v1520, %v1521
      %v1523 = vsel %vm1137, %v1375, 0.0
      %v1524 = vadd.f32 %v1522, %v1523
      %v1525 = vsel %vm1137, %v1376, 0.0
      %v1526 = vadd.f32 %v1524, %v1525
      %v1527 = vsel %vm1137, %v1377, 0.0
      %v1528 = vadd.f32 %v1526, %v1527
      %v1529 = vsel %vm1137, %v1378, 0.0
      %v1530 = vadd.f32 %v1528, %v1529
      %v1531 = vsel %vm1137, %v1379, 0.0
      %v1532 = vadd.f32 %v1530, %v1531
      %v1533 = vsel %vm1137, %v1380, 0.0
      %v1534 = vadd.f32 %v1532, %v1533
      %v1535 = vsel %vm1137, %v1381, 0.0
      %v1536 = vadd.f32 %v1534, %v1535
      %v1537 = vsel %vm1137, %v1382, 0.0
      %v1538 = vadd.f32 %v1536, %v1537
      %v1539 = vsel %vm1137, %v1383, 0.0
      %v1540 = vadd.f32 %v1538, %v1539
      %v1541 = vsel %vm1137, %v1384, 0.0
      %v1542 = vadd.f32 %v1540, %v1541
      %v1543 = vsel %vm1137, %v1385, 0.0
      %v1544 = vadd.f32 %v1542, %v1543
      %v1545 = vsel %vm1137, %v1386, 0.0
      %v1546 = vadd.f32 %v1544, %v1545
      %v1547 = vsel %vm1137, %v1387, 0.0
      %v1548 = vadd.f32 %v1546, %v1547
      %v1549 = vrot.slane %v1548, 4
      %v1550 = vadd.f32 %v1548, %v1549
      %v1551 = vrot.slane %v1550, 2
      %v1552 = vadd.f32 %v1550, %v1551
      %v1553 = vrot.slane %v1552, 1
      %v1554 = vadd.f32 %v1552, %v1553
      %v1555 = vmul.f32 %v1554, %v1305
      %v1556 = vmul.f32 %v1306, %v1306
      %v1557 = vsub.f32 %v1555, %v1556
      %v1558 = vld [vmem:[%s4] sm:$0x1]
      %v1559 = vadd.f32 %v1557, 1e-05
      %v1560 = vrsqrt.pop %v1559
      %v1561 = vmul.f32 %v1558, %v1560
      %v1562 = vld [vmem:[%s5] sm:$0x1]
      %v1563 = vmul.f32 %v1306, %v1561
      %v1564 = vsub.f32 %v1562, %v1563
      %v1566 = vlaneseq
      %v1567 = vshrl.u32 %v1566, 7
      %v1568 = vsub.s32 0, %v1567
      %v1569 = vrot.slane %v1561, %v1568
      %v1571 = vmul.f32 %v734, %v1569
      %v1572 = vmul.f32 %v739, %v1569
      %v1573 = vmul.f32 %v744, %v1569
      %v1574 = vmul.f32 %v749, %v1569
      %v1575 = vmul.f32 %v754, %v1569
      %v1576 = vmul.f32 %v759, %v1569
      %v1577 = vmul.f32 %v764, %v1569
      %v1578 = vmul.f32 %v769, %v1569
      %v1579 = vmul.f32 %v774, %v1569
      %v1580 = vmul.f32 %v779, %v1569
      %v1581 = vmul.f32 %v784, %v1569
      %v1582 = vmul.f32 %v789, %v1569
      %v1583 = vmul.f32 %v794, %v1569
      %v1584 = vmul.f32 %v799, %v1569
      %v1585 = vmul.f32 %v804, %v1569
      %v1586 = vmul.f32 %v809, %v1569
      %v1587 = vmul.f32 %v814, %v1569
      %v1588 = vmul.f32 %v819, %v1569
      %v1589 = vmul.f32 %v824, %v1569
      %v1590 = vmul.f32 %v829, %v1569
      %v1591 = vmul.f32 %v834, %v1569
      %v1592 = vmul.f32 %v839, %v1569
      %v1593 = vmul.f32 %v844, %v1569
      %v1594 = vmul.f32 %v849, %v1569
      %v1595 = vmul.f32 %v854, %v1569
      %v1596 = vmul.f32 %v859, %v1569
      %v1597 = vmul.f32 %v864, %v1569
      %v1598 = vmul.f32 %v869, %v1569
      %v1599 = vmul.f32 %v874, %v1569
      %v1600 = vmul.f32 %v879, %v1569
      %v1601 = vmul.f32 %v884, %v1569
      %v1602 = vmul.f32 %v889, %v1569
      %v1603 = vmul.f32 %v894, %v1569
      %v1604 = vmul.f32 %v899, %v1569
      %v1605 = vmul.f32 %v904, %v1569
      %v1606 = vmul.f32 %v909, %v1569
      %v1607 = vmul.f32 %v914, %v1569
      %v1608 = vmul.f32 %v919, %v1569
      %v1609 = vmul.f32 %v924, %v1569
      %v1610 = vmul.f32 %v929, %v1569
      %v1611 = vmul.f32 %v934, %v1569
      %v1612 = vmul.f32 %v939, %v1569
      %v1613 = vmul.f32 %v944, %v1569
      %v1614 = vmul.f32 %v949, %v1569
      %v1615 = vmul.f32 %v954, %v1569
      %v1616 = vmul.f32 %v959, %v1569
      %v1617 = vmul.f32 %v964, %v1569
      %v1618 = vmul.f32 %v969, %v1569
      %v1619 = vmul.f32 %v974, %v1569
      %v1620 = vmul.f32 %v979, %v1569
      %v1621 = vmul.f32 %v984, %v1569
      %v1622 = vmul.f32 %v989, %v1569
      %v1623 = vmul.f32 %v994, %v1569
      %v1624 = vmul.f32 %v999, %v1569
      %v1625 = vmul.f32 %v1004, %v1569
      %v1626 = vmul.f32 %v1009, %v1569
      %v1627 = vmul.f32 %v1014, %v1569
      %v1628 = vmul.f32 %v1019, %v1569
      %v1629 = vmul.f32 %v1024, %v1569
      %v1630 = vmul.f32 %v1029, %v1569
      %v1631 = vmul.f32 %v1034, %v1569
      %v1632 = vmul.f32 %v1039, %v1569
      %v1633 = vmul.f32 %v1044, %v1569
      %v1634 = vmul.f32 %v1049, %v1569
      %v1635 = vmul.f32 %v1054, %v1569
      %v1636 = vmul.f32 %v1059, %v1569
      %v1637 = vmul.f32 %v1064, %v1569
      %v1638 = vmul.f32 %v1069, %v1569
      %v1639 = vmul.f32 %v1074, %v1569
      %v1640 = vmul.f32 %v1079, %v1569
      %v1641 = vmul.f32 %v1084, %v1569
      %v1642 = vmul.f32 %v1089, %v1569
      %v1643 = vmul.f32 %v1094, %v1569
      %v1644 = vmul.f32 %v1099, %v1569
      %v1645 = vmul.f32 %v1104, %v1569
      %v1646 = vmul.f32 %v1109, %v1569
      %v1647 = vmul.f32 %v1114, %v1569
      %v1648 = vmul.f32 %v1119, %v1569
      %v1649 = vmul.f32 %v1124, %v1569
      %v1650 = vmul.f32 %v1129, %v1569
      %v1651 = vmul.f32 %v1134, %v1569
      %v1653 = vlaneseq
      %v1654 = vshrl.u32 %v1653, 7
      %v1655 = vsub.s32 0, %v1654
      %v1656 = vrot.slane %v1564, %v1655
      %v1658 = vadd.f32 %v1571, %v1656
      %v1659 = vadd.f32 %v1572, %v1656
      %v1660 = vadd.f32 %v1573, %v1656
      %v1661 = vadd.f32 %v1574, %v1656
      %v1662 = vadd.f32 %v1575, %v1656
      %v1663 = vadd.f32 %v1576, %v1656
      %v1664 = vadd.f32 %v1577, %v1656
      %v1665 = vadd.f32 %v1578, %v1656
      %v1666 = vadd.f32 %v1579, %v1656
      %v1667 = vadd.f32 %v1580, %v1656
      %v1668 = vadd.f32 %v1581, %v1656
      %v1669 = vadd.f32 %v1582, %v1656
      %v1670 = vadd.f32 %v1583, %v1656
      %v1671 = vadd.f32 %v1584, %v1656
      %v1672 = vadd.f32 %v1585, %v1656
      %v1673 = vadd.f32 %v1586, %v1656
      %v1674 = vadd.f32 %v1587, %v1656
      %v1675 = vadd.f32 %v1588, %v1656
      %v1676 = vadd.f32 %v1589, %v1656
      %v1677 = vadd.f32 %v1590, %v1656
      %v1678 = vadd.f32 %v1591, %v1656
      %v1679 = vadd.f32 %v1592, %v1656
      %v1680 = vadd.f32 %v1593, %v1656
      %v1681 = vadd.f32 %v1594, %v1656
      %v1682 = vadd.f32 %v1595, %v1656
      %v1683 = vadd.f32 %v1596, %v1656
      %v1684 = vadd.f32 %v1597, %v1656
      %v1685 = vadd.f32 %v1598, %v1656
      %v1686 = vadd.f32 %v1599, %v1656
      %v1687 = vadd.f32 %v1600, %v1656
      %v1688 = vadd.f32 %v1601, %v1656
      %v1689 = vadd.f32 %v1602, %v1656
      %v1690 = vadd.f32 %v1603, %v1656
      %v1691 = vadd.f32 %v1604, %v1656
      %v1692 = vadd.f32 %v1605, %v1656
      %v1693 = vadd.f32 %v1606, %v1656
      %v1694 = vadd.f32 %v1607, %v1656
      %v1695 = vadd.f32 %v1608, %v1656
      %v1696 = vadd.f32 %v1609, %v1656
      %v1697 = vadd.f32 %v1610, %v1656
      %v1698 = vadd.f32 %v1611, %v1656
      %v1699 = vadd.f32 %v1612, %v1656
      %v1700 = vadd.f32 %v1613, %v1656
      %v1701 = vadd.f32 %v1614, %v1656
      %v1702 = vadd.f32 %v1615, %v1656
      %v1703 = vadd.f32 %v1616, %v1656
      %v1704 = vadd.f32 %v1617, %v1656
      %v1705 = vadd.f32 %v1618, %v1656
      %v1706 = vadd.f32 %v1619, %v1656
      %v1707 = vadd.f32 %v1620, %v1656
      %v1708 = vadd.f32 %v1621, %v1656
      %v1709 = vadd.f32 %v1622, %v1656
      %v1710 = vadd.f32 %v1623, %v1656
      %v1711 = vadd.f32 %v1624, %v1656
      %v1712 = vadd.f32 %v1625, %v1656
      %v1713 = vadd.f32 %v1626, %v1656
      %v1714 = vadd.f32 %v1627, %v1656
      %v1715 = vadd.f32 %v1628, %v1656
      %v1716 = vadd.f32 %v1629, %v1656
      %v1717 = vadd.f32 %v1630, %v1656
      %v1718 = vadd.f32 %v1631, %v1656
      %v1719 = vadd.f32 %v1632, %v1656
      %v1720 = vadd.f32 %v1633, %v1656
      %v1721 = vadd.f32 %v1634, %v1656
      %v1722 = vadd.f32 %v1635, %v1656
      %v1723 = vadd.f32 %v1636, %v1656
      %v1724 = vadd.f32 %v1637, %v1656
      %v1725 = vadd.f32 %v1638, %v1656
      %v1726 = vadd.f32 %v1639, %v1656
      %v1727 = vadd.f32 %v1640, %v1656
      %v1728 = vadd.f32 %v1641, %v1656
      %v1729 = vadd.f32 %v1642, %v1656
      %v1730 = vadd.f32 %v1643, %v1656
      %v1731 = vadd.f32 %v1644, %v1656
      %v1732 = vadd.f32 %v1645, %v1656
      %v1733 = vadd.f32 %v1646, %v1656
      %v1734 = vadd.f32 %v1647, %v1656
      %v1735 = vadd.f32 %v1648, %v1656
      %v1736 = vadd.f32 %v1649, %v1656
      %v1737 = vadd.f32 %v1650, %v1656
      %v1738 = vadd.f32 %v1651, %v1656
      %v1739 = vmax.f32 %v1658, 0.0
      %v1740 = vmax.f32 %v1659, 0.0
      %v1741 = vmax.f32 %v1660, 0.0
      %v1742 = vmax.f32 %v1661, 0.0
      %v1743 = vmax.f32 %v1662, 0.0
      %v1744 = vmax.f32 %v1663, 0.0
      %v1745 = vmax.f32 %v1664, 0.0
      %v1746 = vmax.f32 %v1665, 0.0
      %v1747 = vmax.f32 %v1666, 0.0
      %v1748 = vmax.f32 %v1667, 0.0
      %v1749 = vmax.f32 %v1668, 0.0
      %v1750 = vmax.f32 %v1669, 0.0
      %v1751 = vmax.f32 %v1670, 0.0
      %v1752 = vmax.f32 %v1671, 0.0
      %v1753 = vmax.f32 %v1672, 0.0
      %v1754 = vmax.f32 %v1673, 0.0
      %v1755 = vmax.f32 %v1674, 0.0
      %v1756 = vmax.f32 %v1675, 0.0
      %v1757 = vmax.f32 %v1676, 0.0
      %v1758 = vmax.f32 %v1677, 0.0
      %v1759 = vmax.f32 %v1678, 0.0
      %v1760 = vmax.f32 %v1679, 0.0
      %v1761 = vmax.f32 %v1680, 0.0
      %v1762 = vmax.f32 %v1681, 0.0
      %v1763 = vmax.f32 %v1682, 0.0
      %v1764 = vmax.f32 %v1683, 0.0
      %v1765 = vmax.f32 %v1684, 0.0
      %v1766 = vmax.f32 %v1685, 0.0
      %v1767 = vmax.f32 %v1686, 0.0
      %v1768 = vmax.f32 %v1687, 0.0
      %v1769 = vmax.f32 %v1688, 0.0
      %v1770 = vmax.f32 %v1689, 0.0
      %v1771 = vmax.f32 %v1690, 0.0
      %v1772 = vmax.f32 %v1691, 0.0
      %v1773 = vmax.f32 %v1692, 0.0
      %v1774 = vmax.f32 %v1693, 0.0
      %v1775 = vmax.f32 %v1694, 0.0
      %v1776 = vmax.f32 %v1695, 0.0
      %v1777 = vmax.f32 %v1696, 0.0
      %v1778 = vmax.f32 %v1697, 0.0
      %v1779 = vmax.f32 %v1698, 0.0
      %v1780 = vmax.f32 %v1699, 0.0
      %v1781 = vmax.f32 %v1700, 0.0
      %v1782 = vmax.f32 %v1701, 0.0
      %v1783 = vmax.f32 %v1702, 0.0
      %v1784 = vmax.f32 %v1703, 0.0
      %v1785 = vmax.f32 %v1704, 0.0
      %v1786 = vmax.f32 %v1705, 0.0
      %v1787 = vmax.f32 %v1706, 0.0
      %v1788 = vmax.f32 %v1707, 0.0
      %v1789 = vmax.f32 %v1708, 0.0
      %v1790 = vmax.f32 %v1709, 0.0
      %v1791 = vmax.f32 %v1710, 0.0
      %v1792 = vmax.f32 %v1711, 0.0
      %v1793 = vmax.f32 %v1712, 0.0
      %v1794 = vmax.f32 %v1713, 0.0
      %v1795 = vmax.f32 %v1714, 0.0
      %v1796 = vmax.f32 %v1715, 0.0
      %v1797 = vmax.f32 %v1716, 0.0
      %v1798 = vmax.f32 %v1717, 0.0
      %v1799 = vmax.f32 %v1718, 0.0
      %v1800 = vmax.f32 %v1719, 0.0
      %v1801 = vmax.f32 %v1720, 0.0
      %v1802 = vmax.f32 %v1721, 0.0
      %v1803 = vmax.f32 %v1722, 0.0
      %v1804 = vmax.f32 %v1723, 0.0
      %v1805 = vmax.f32 %v1724, 0.0
      %v1806 = vmax.f32 %v1725, 0.0
      %v1807 = vmax.f32 %v1726, 0.0
      %v1808 = vmax.f32 %v1727, 0.0
      %v1809 = vmax.f32 %v1728, 0.0
      %v1810 = vmax.f32 %v1729, 0.0
      %v1811 = vmax.f32 %v1730, 0.0
      %v1812 = vmax.f32 %v1731, 0.0
      %v1813 = vmax.f32 %v1732, 0.0
      %v1814 = vmax.f32 %v1733, 0.0
      %v1815 = vmax.f32 %v1734, 0.0
      %v1816 = vmax.f32 %v1735, 0.0
      %v1817 = vmax.f32 %v1736, 0.0
      %v1818 = vmax.f32 %v1737, 0.0
      %v1819 = vmax.f32 %v1738, 0.0
      %1820 = vst.msk [vmem:[#allocation2] sm:$0xff] %vm1137, %v1739
      %1821 = vst.msk [vmem:[#allocation2 + $0x8] sm:$0xff] %vm1137, %v1740
      %1822 = vst.msk [vmem:[#allocation2 + $0x10] sm:$0xff] %vm1137, %v1741
      %1823 = vst.msk [vmem:[#allocation2 + $0x18] sm:$0xff] %vm1137, %v1742
      %1824 = vst.msk [vmem:[#allocation2 + $0x20] sm:$0xff] %vm1137, %v1743
      %1825 = vst.msk [vmem:[#allocation2 + $0x28] sm:$0xff] %vm1137, %v1744
      %1826 = vst.msk [vmem:[#allocation2 + $0x30] sm:$0xff] %vm1137, %v1745
      %1827 = vst.msk [vmem:[#allocation2 + $0x38] sm:$0xff] %vm1137, %v1746
      %1828 = vst.msk [vmem:[#allocation2 + $0x40] sm:$0xff] %vm1137, %v1747
      %1829 = vst.msk [vmem:[#allocation2 + $0x48] sm:$0xff] %vm1137, %v1748
      %1830 = vst.msk [vmem:[#allocation2 + $0x50] sm:$0xff] %vm1137, %v1749
      %1831 = vst.msk [vmem:[#allocation2 + $0x58] sm:$0xff] %vm1137, %v1750
      %1832 = vst.msk [vmem:[#allocation2 + $0x60] sm:$0xff] %vm1137, %v1751
      %1833 = vst.msk [vmem:[#allocation2 + $0x68] sm:$0xff] %vm1137, %v1752
      %1834 = vst.msk [vmem:[#allocation2 + $0x70] sm:$0xff] %vm1137, %v1753
      %1835 = vst.msk [vmem:[#allocation2 + $0x78] sm:$0xff] %vm1137, %v1754
      %1836 = vst.msk [vmem:[#allocation2 + $0x80] sm:$0xff] %vm1137, %v1755
      %1837 = vst.msk [vmem:[#allocation2 + $0x88] sm:$0xff] %vm1137, %v1756
      %1838 = vst.msk [vmem:[#allocation2 + $0x90] sm:$0xff] %vm1137, %v1757
      %1839 = vst.msk [vmem:[#allocation2 + $0x98] sm:$0xff] %vm1137, %v1758
      %1840 = vst.msk [vmem:[#allocation2 + $0xa0] sm:$0xff] %vm1137, %v1759
      %1841 = vst.msk [vmem:[#allocation2 + $0xa8] sm:$0xff] %vm1137, %v1760
      %1842 = vst.msk [vmem:[#allocation2 + $0xb0] sm:$0xff] %vm1137, %v1761
      %1843 = vst.msk [vmem:[#allocation2 + $0xb8] sm:$0xff] %vm1137, %v1762
      %1844 = vst.msk [vmem:[#allocation2 + $0xc0] sm:$0xff] %vm1137, %v1763
      %1845 = vst.msk [vmem:[#allocation2 + $0xc8] sm:$0xff] %vm1137, %v1764
      %1846 = vst.msk [vmem:[#allocation2 + $0xd0] sm:$0xff] %vm1137, %v1765
      %1847 = vst.msk [vmem:[#allocation2 + $0xd8] sm:$0xff] %vm1137, %v1766
      %1848 = vst.msk [vmem:[#allocation2 + $0xe0] sm:$0xff] %vm1137, %v1767
      %1849 = vst.msk [vmem:[#allocation2 + $0xe8] sm:$0xff] %vm1137, %v1768
      %1850 = vst.msk [vmem:[#allocation2 + $0xf0] sm:$0xff] %vm1137, %v1769
      %1851 = vst.msk [vmem:[#allocation2 + $0xf8] sm:$0xff] %vm1137, %v1770
      %1852 = vst.msk [vmem:[#allocation2 + $0x100] sm:$0xff] %vm1137, %v1771
      %1853 = vst.msk [vmem:[#allocation2 + $0x108] sm:$0xff] %vm1137, %v1772
      %1854 = vst.msk [vmem:[#allocation2 + $0x110] sm:$0xff] %vm1137, %v1773
      %1855 = vst.msk [vmem:[#allocation2 + $0x118] sm:$0xff] %vm1137, %v1774
      %1856 = vst.msk [vmem:[#allocation2 + $0x120] sm:$0xff] %vm1137, %v1775
      %1857 = vst.msk [vmem:[#allocation2 + $0x128] sm:$0xff] %vm1137, %v1776
      %1858 = vst.msk [vmem:[#allocation2 + $0x130] sm:$0xff] %vm1137, %v1777
      %1859 = vst.msk [vmem:[#allocation2 + $0x138] sm:$0xff] %vm1137, %v1778
      %1860 = vst.msk [vmem:[#allocation2 + $0x140] sm:$0xff] %vm1137, %v1779
      %1861 = vst.msk [vmem:[#allocation2 + $0x148] sm:$0xff] %vm1137, %v1780
      %1862 = vst.msk [vmem:[#allocation2 + $0x150] sm:$0xff] %vm1137, %v1781
      %1863 = vst.msk [vmem:[#allocation2 + $0x158] sm:$0xff] %vm1137, %v1782
      %1864 = vst.msk [vmem:[#allocation2 + $0x160] sm:$0xff] %vm1137, %v1783
      %1865 = vst.msk [vmem:[#allocation2 + $0x168] sm:$0xff] %vm1137, %v1784
      %1866 = vst.msk [vmem:[#allocation2 + $0x170] sm:$0xff] %vm1137, %v1785
      %1867 = vst.msk [vmem:[#allocation2 + $0x178] sm:$0xff] %vm1137, %v1786
      %1868 = vst.msk [vmem:[#allocation2 + $0x180] sm:$0xff] %vm1137, %v1787
      %1869 = vst.msk [vmem:[#allocation2 + $0x188] sm:$0xff] %vm1137, %v1788
      %1870 = vst.msk [vmem:[#allocation2 + $0x190] sm:$0xff] %vm1137, %v1789
      %1871 = vst.msk [vmem:[#allocation2 + $0x198] sm:$0xff] %vm1137, %v1790
      %1872 = vst.msk [vmem:[#allocation2 + $0x1a0] sm:$0xff] %vm1137, %v1791
      %1873 = vst.msk [vmem:[#allocation2 + $0x1a8] sm:$0xff] %vm1137, %v1792
      %1874 = vst.msk [vmem:[#allocation2 + $0x1b0] sm:$0xff] %vm1137, %v1793
      %1875 = vst.msk [vmem:[#allocation2 + $0x1b8] sm:$0xff] %vm1137, %v1794
      %1876 = vst.msk [vmem:[#allocation2 + $0x1c0] sm:$0xff] %vm1137, %v1795
      %1877 = vst.msk [vmem:[#allocation2 + $0x1c8] sm:$0xff] %vm1137, %v1796
      %1878 = vst.msk [vmem:[#allocation2 + $0x1d0] sm:$0xff] %vm1137, %v1797
      %1879 = vst.msk [vmem:[#allocation2 + $0x1d8] sm:$0xff] %vm1137, %v1798
      %1880 = vst.msk [vmem:[#allocation2 + $0x1e0] sm:$0xff] %vm1137, %v1799
      %1881 = vst.msk [vmem:[#allocation2 + $0x1e8] sm:$0xff] %vm1137, %v1800
      %1882 = vst.msk [vmem:[#allocation2 + $0x1f0] sm:$0xff] %vm1137, %v1801
      %1883 = vst.msk [vmem:[#allocation2 + $0x1f8] sm:$0xff] %vm1137, %v1802
      %1884 = vst.msk [vmem:[#allocation2 + $0x200] sm:$0xff] %vm1137, %v1803
      %1885 = vst.msk [vmem:[#allocation2 + $0x208] sm:$0xff] %vm1137, %v1804
      %1886 = vst.msk [vmem:[#allocation2 + $0x210] sm:$0xff] %vm1137, %v1805
      %1887 = vst.msk [vmem:[#allocation2 + $0x218] sm:$0xff] %vm1137, %v1806
      %1888 = vst.msk [vmem:[#allocation2 + $0x220] sm:$0xff] %vm1137, %v1807
      %1889 = vst.msk [vmem:[#allocation2 + $0x228] sm:$0xff] %vm1137, %v1808
      %1890 = vst.msk [vmem:[#allocation2 + $0x230] sm:$0xff] %vm1137, %v1809
      %1891 = vst.msk [vmem:[#allocation2 + $0x238] sm:$0xff] %vm1137, %v1810
      %1892 = vst.msk [vmem:[#allocation2 + $0x240] sm:$0xff] %vm1137, %v1811
      %1893 = vst.msk [vmem:[#allocation2 + $0x248] sm:$0xff] %vm1137, %v1812
      %1894 = vst.msk [vmem:[#allocation2 + $0x250] sm:$0xff] %vm1137, %v1813
      %1895 = vst.msk [vmem:[#allocation2 + $0x258] sm:$0xff] %vm1137, %v1814
      %1896 = vst.msk [vmem:[#allocation2 + $0x260] sm:$0xff] %vm1137, %v1815
      %1897 = vst.msk [vmem:[#allocation2 + $0x268] sm:$0xff] %vm1137, %v1816
      %1898 = vst.msk [vmem:[#allocation2 + $0x270] sm:$0xff] %vm1137, %v1817
      %1899 = vst.msk [vmem:[#allocation2 + $0x278] sm:$0xff] %vm1137, %v1818
      %1900 = vst.msk [vmem:[#allocation2 + $0x280] sm:$0xff] %vm1137, %v1819
      %v1901 = vld [vmem:[#allocation2] sm:$0xff]
      %v1902 = vld [vmem:[#allocation2 + $0x8] sm:$0xff]
      %v1903 = vld [vmem:[#allocation2 + $0x10] sm:$0xff]
      %v1904 = vld [vmem:[#allocation2 + $0x18] sm:$0xff]
      %v1905 = vld [vmem:[#allocation2 + $0x20] sm:$0xf]
      %1906 = vst.msk [vmem:[#allocation3] sm:$0xff] %vm1137, %v1901
      %1907 = vst.msk [vmem:[#allocation3 + $0x10] sm:$0xff] %vm1137, %v1902
      %1908 = vst.msk [vmem:[#allocation3 + $0x20] sm:$0xff] %vm1137, %v1903
      %1909 = vst.msk [vmem:[#allocation3 + $0x30] sm:$0xff] %vm1137, %v1904
      %vm1910 = vcmask 257024
      %1911 = vst.msk [vmem:[#allocation3 + $0x40] sm:$0xf] %vm1910, %v1905
      %v1912 = vld [vmem:[#allocation2 + $0x24] sm:$0xff]
      %v1913 = vld [vmem:[#allocation2 + $0x2c] sm:$0xff]
      %v1914 = vld [vmem:[#allocation2 + $0x34] sm:$0xff]
      %v1915 = vld [vmem:[#allocation2 + $0x3c] sm:$0xff]
      %v1916 = vld [vmem:[#allocation2 + $0x44] sm:$0xf]
      %1922 = vrot.lane.b32.xlu0 %v1912, 32
      %v1923 = vpop.permute.xlu0 %1922
      %1924 = vrot.lane.b32.xlu0 %v1913, 32
      %v1925 = vpop.permute.xlu0 %1924
      %1926 = vrot.lane.b32.xlu0 %v1914, 32
      %v1927 = vpop.permute.xlu0 %1926
      %1928 = vrot.lane.b32.xlu0 %v1915, 32
      %v1929 = vpop.permute.xlu0 %1928
      %1930 = vrot.lane.b32.xlu0 %v1916, 32
      %v1931 = vpop.permute.xlu0 %1930
      %vm1937 = vcmask 523520
      %1938 = vst.msk [vmem:[#allocation3] sm:$0xff] %vm1937, %v1923
      %1939 = vst.msk [vmem:[#allocation3 + $0x10] sm:$0xff] %vm1937, %v1925
      %1940 = vst.msk [vmem:[#allocation3 + $0x20] sm:$0xff] %vm1937, %v1927
      %1941 = vst.msk [vmem:[#allocation3 + $0x30] sm:$0xff] %vm1937, %v1929
      %vm1942 = vcmask 519424
      %1943 = vst.msk [vmem:[#allocation3 + $0x40] sm:$0xf] %vm1942, %v1931
      %v1944 = vld [vmem:[#allocation2 + $0x48] sm:$0xff]
      %v1945 = vld [vmem:[#allocation2 + $0x50] sm:$0xff]
      %v1946 = vld [vmem:[#allocation2 + $0x58] sm:$0xff]
      %v1947 = vld [vmem:[#allocation2 + $0x60] sm:$0xff]
      %v1948 = vld [vmem:[#allocation2 + $0x68] sm:$0xf]
      %1954 = vrot.lane.b32.xlu0 %v1944, 64
      %v1955 = vpop.permute.xlu0 %1954
      %1956 = vrot.lane.b32.xlu0 %v1945, 64
      %v1957 = vpop.permute.xlu0 %1956
      %1958 = vrot.lane.b32.xlu0 %v1946, 64
      %v1959 = vpop.permute.xlu0 %1958
      %1960 = vrot.lane.b32.xlu0 %v1947, 64
      %v1961 = vpop.permute.xlu0 %1960
      %1962 = vrot.lane.b32.xlu0 %v1948, 64
      %v1963 = vpop.permute.xlu0 %1962
      %vm1969 = vcmask 785920
      %1970 = vst.msk [vmem:[#allocation3] sm:$0xff] %vm1969, %v1955
      %1971 = vst.msk [vmem:[#allocation3 + $0x10] sm:$0xff] %vm1969, %v1957
      %1972 = vst.msk [vmem:[#allocation3 + $0x20] sm:$0xff] %vm1969, %v1959
      %1973 = vst.msk [vmem:[#allocation3 + $0x30] sm:$0xff] %vm1969, %v1961
      %vm1974 = vcmask 781824
      %1975 = vst.msk [vmem:[#allocation3 + $0x40] sm:$0xf] %vm1974, %v1963
      %v1976 = vld [vmem:[#allocation2 + $0x6c] sm:$0xff]
      %v1977 = vld [vmem:[#allocation2 + $0x74] sm:$0xff]
      %v1978 = vld [vmem:[#allocation2 + $0x7c] sm:$0xff]
      %v1979 = vld [vmem:[#allocation2 + $0x84] sm:$0xff]
      %v1980 = vld [vmem:[#allocation2 + $0x8c] sm:$0xf]
      %1986 = vrot.lane.b32.xlu0 %v1976, 96
      %v1987 = vpop.permute.xlu0 %1986
      %1988 = vrot.lane.b32.xlu0 %v1977, 96
      %v1989 = vpop.permute.xlu0 %1988
      %1990 = vrot.lane.b32.xlu0 %v1978, 96
      %v1991 = vpop.permute.xlu0 %1990
      %1992 = vrot.lane.b32.xlu0 %v1979, 96
      %v1993 = vpop.permute.xlu0 %1992
      %1994 = vrot.lane.b32.xlu0 %v1980, 96
      %v1995 = vpop.permute.xlu0 %1994
      %vm2001 = vcmask 1048320
      %2002 = vst.msk [vmem:[#allocation3] sm:$0xff] %vm2001, %v1987
      %2003 = vst.msk [vmem:[#allocation3 + $0x10] sm:$0xff] %vm2001, %v1989
      %2004 = vst.msk [vmem:[#allocation3 + $0x20] sm:$0xff] %vm2001, %v1991
      %2005 = vst.msk [vmem:[#allocation3 + $0x30] sm:$0xff] %vm2001, %v1993
      %vm2006 = vcmask 1044224
      %2007 = vst.msk [vmem:[#allocation3 + $0x40] sm:$0xf] %vm2006, %v1995
      %v2008 = vld [vmem:[#allocation2 + $0x90] sm:$0xff]
      %v2009 = vld [vmem:[#allocation2 + $0x98] sm:$0xff]
      %v2010 = vld [vmem:[#allocation2 + $0xa0] sm:$0xff]
      %v2011 = vld [vmem:[#allocation2 + $0xa8] sm:$0xff]
      %v2012 = vld [vmem:[#allocation2 + $0xb0] sm:$0xf]
      %2013 = vst.msk [vmem:[#allocation3 + $0x8] sm:$0xff] %vm1137, %v2008
      %2014 = vst.msk [vmem:[#allocation3 + $0x18] sm:$0xff] %vm1137, %v2009
      %2015 = vst.msk [vmem:[#allocation3 + $0x28] sm:$0xff] %vm1137, %v2010
      %2016 = vst.msk [vmem:[#allocation3 + $0x38] sm:$0xff] %vm1137, %v2011
      %2017 = vst.msk [vmem:[#allocation3 + $0x48] sm:$0xf] %vm1910, %v2012
      %v2018 = vld [vmem:[#allocation2 + $0xb4] sm:$0xff]
      %v2019 = vld [vmem:[#allocation2 + $0xbc] sm:$0xff]
      %v2020 = vld [vmem:[#allocation2 + $0xc4] sm:$0xff]
      %v2021 = vld [vmem:[#allocation2 + $0xcc] sm:$0xff]
      %v2022 = vld [vmem:[#allocation2 + $0xd4] sm:$0xf]
      %2028 = vrot.lane.b32.xlu0 %v2018, 32
      %v2029 = vpop.permute.xlu0 %2028
      %2030 = vrot.lane.b32.xlu0 %v2019, 32
      %v2031 = vpop.permute.xlu0 %2030
      %2032 = vrot.lane.b32.xlu0 %v2020, 32
      %v2033 = vpop.permute.xlu0 %2032
      %2034 = vrot.lane.b32.xlu0 %v2021, 32
      %v2035 = vpop.permute.xlu0 %2034
      %2036 = vrot.lane.b32.xlu0 %v2022, 32
      %v2037 = vpop.permute.xlu0 %2036
      %2043 = vst.msk [vmem:[#allocation3 + $0x8] sm:$0xff] %vm1937, %v2029
      %2044 = vst.msk [vmem:[#allocation3 + $0x18] sm:$0xff] %vm1937, %v2031
      %2045 = vst.msk [vmem:[#allocation3 + $0x28] sm:$0xff] %vm1937, %v2033
      %2046 = vst.msk [vmem:[#allocation3 + $0x38] sm:$0xff] %vm1937, %v2035
      %2047 = vst.msk [vmem:[#allocation3 + $0x48] sm:$0xf] %vm1942, %v2037
      %v2048 = vld [vmem:[#allocation3] ss:$8 sm:$0x3]
      %v2049 = vlaneseq
      %vm2050 = vcmp.ge.s32.totalorder %v2049, 0
      %vm2051 = vcmp.lt.s32.totalorder %v2049, 192
      %vm2052 = vmand %vm2050, %vm2051
      %2053 = vst.msk [vmem:[#allocation4] ss:$8 sm:$0x3] %vm2052, %v2048
      %2054 = vst.msk [vmem:[#allocation4] ss:$8 sm:$0x0] %vm2052, %v2048
      %s2055 = scalar_lea.vmem [#allocation3], 1
      %v2056 = vld [vmem:[%s2055] ss:$8 sm:$0x3]
      %2058 = vrot.lane.b32.xlu0 %v2056, 64
      %v2059 = vpop.permute.xlu0 %2058
      %v2060 = vrot.slane %v2059, 7
      %vm2061 = vcmask 523264
      %v2062 = vsel %vm2061, %v2060, %v2059
      %vm2064 = vcmp.ge.s32.totalorder %v2049, 64
      %vm2065 = vcmp.lt.s32.totalorder %v2049, 256
      %vm2066 = vmand %vm2064, %vm2065
      %s2067 = scalar_lea.vmem [#allocation4], 8
      %2068 = vst.msk [vmem:[%s2067] ss:$8 sm:$0x3] %vm2066, %v2062
      %2069 = vst.msk [vmem:[%s2067] ss:$8 sm:$0x0] %vm2066, %v2062
      %s2070 = scalar_lea.vmem [#allocation3], 2
      %v2071 = vld [vmem:[%s2070] ss:$8 sm:$0x3]
      %s2072 = scalar_lea.vmem [#allocation4], 24
      %2073 = vst.msk [vmem:[%s2072] ss:$8 sm:$0x3] %vm2052, %v2071
      %2074 = vst.msk [vmem:[%s2072] ss:$8 sm:$0x0] %vm2052, %v2071
      %s2075 = scalar_lea.vmem [#allocation3], 3
      %v2076 = vld [vmem:[%s2075] ss:$8 sm:$0x3]
      %2078 = vrot.lane.b32.xlu0 %v2076, 64
      %v2079 = vpop.permute.xlu0 %2078
      %v2080 = vrot.slane %v2079, 7
      %v2081 = vsel %vm2061, %v2080, %v2079
      %s2083 = scalar_lea.vmem [#allocation4], 32
      %2084 = vst.msk [vmem:[%s2083] ss:$8 sm:$0x3] %vm2066, %v2081
      %2085 = vst.msk [vmem:[%s2083] ss:$8 sm:$0x0] %vm2066, %v2081
      %s2086 = scalar_lea.vmem [#allocation3], 4
      %v2087 = vld [vmem:[%s2086] ss:$8 sm:$0x3]
      %s2088 = scalar_lea.vmem [#allocation4], 48
      %2089 = vst.msk [vmem:[%s2088] ss:$8 sm:$0x3] %vm2052, %v2087
      %2090 = vst.msk [vmem:[%s2088] ss:$8 sm:$0x0] %vm2052, %v2087
      %s2091 = scalar_lea.vmem [#allocation3], 5
      %v2092 = vld [vmem:[%s2091] ss:$8 sm:$0x3]
      %2094 = vrot.lane.b32.xlu0 %v2092, 64
      %v2095 = vpop.permute.xlu0 %2094
      %v2096 = vrot.slane %v2095, 7
      %v2097 = vsel %vm2061, %v2096, %v2095
      %s2099 = scalar_lea.vmem [#allocation4], 56
      %2100 = vst.msk [vmem:[%s2099] ss:$8 sm:$0x3] %vm2066, %v2097
      %2101 = vst.msk [vmem:[%s2099] ss:$8 sm:$0x0] %vm2066, %v2097
      %s2102 = scalar_lea.vmem [#allocation3], 34
      %v2103 = vld [vmem:[%s2102] ss:$8 sm:$0x3]
      %s2104 = scalar_lea.vmem [#allocation4], 1
      %2105 = vst.msk [vmem:[%s2104] ss:$8 sm:$0x3] %vm2052, %v2103
      %2106 = vst.msk [vmem:[%s2104] ss:$8 sm:$0x0] %vm2052, %v2103
      %s2107 = scalar_lea.vmem [#allocation3], 35
      %v2108 = vld [vmem:[%s2107] ss:$8 sm:$0x3]
      %2110 = vrot.lane.b32.xlu0 %v2108, 64
      %v2111 = vpop.permute.xlu0 %2110
      %v2112 = vrot.slane %v2111, 7
      %v2113 = vsel %vm2061, %v2112, %v2111
      %s2115 = scalar_lea.vmem [#allocation4], 9
      %2116 = vst.msk [vmem:[%s2115] ss:$8 sm:$0x3] %vm2066, %v2113
      %2117 = vst.msk [vmem:[%s2115] ss:$8 sm:$0x0] %vm2066, %v2113
      %s2118 = scalar_lea.vmem [#allocation3], 36
      %v2119 = vld [vmem:[%s2118] ss:$8 sm:$0x3]
      %s2120 = scalar_lea.vmem [#allocation4], 25
      %2121 = vst.msk [vmem:[%s2120] ss:$8 sm:$0x3] %vm2052, %v2119
      %2122 = vst.msk [vmem:[%s2120] ss:$8 sm:$0x0] %vm2052, %v2119
      %s2123 = scalar_lea.vmem [#allocation3], 37
      %v2124 = vld [vmem:[%s2123] ss:$8 sm:$0x3]
      %2126 = vrot.lane.b32.xlu0 %v2124, 64
      %v2127 = vpop.permute.xlu0 %2126
      %v2128 = vrot.slane %v2127, 7
      %v2129 = vsel %vm2061, %v2128, %v2127
      %s2131 = scalar_lea.vmem [#allocation4], 33
      %2132 = vst.msk [vmem:[%s2131] ss:$8 sm:$0x3] %vm2066, %v2129
      %2133 = vst.msk [vmem:[%s2131] ss:$8 sm:$0x0] %vm2066, %v2129
      %s2134 = scalar_lea.vmem [#allocation3], 38
      %v2135 = vld [vmem:[%s2134] ss:$8 sm:$0x3]
      %s2136 = scalar_lea.vmem [#allocation4], 49
      %2137 = vst.msk [vmem:[%s2136] ss:$8 sm:$0x3] %vm2052, %v2135
      %2138 = vst.msk [vmem:[%s2136] ss:$8 sm:$0x0] %vm2052, %v2135
      %s2139 = scalar_lea.vmem [#allocation3], 39
      %v2140 = vld [vmem:[%s2139] ss:$8 sm:$0x3]
      %2142 = vrot.lane.b32.xlu0 %v2140, 64
      %v2143 = vpop.permute.xlu0 %2142
      %v2144 = vrot.slane %v2143, 7
      %v2145 = vsel %vm2061, %v2144, %v2143
      %s2147 = scalar_lea.vmem [#allocation4], 57
      %2148 = vst.msk [vmem:[%s2147] ss:$8 sm:$0x3] %vm2066, %v2145
      %2149 = vst.msk [vmem:[%s2147] ss:$8 sm:$0x0] %vm2066, %v2145
      %v2150 = vld [vmem:[%s2075] ss:$8 sm:$0x3]
      %s2151 = scalar_lea.vmem [#allocation4], 74
      %2152 = vst.msk [vmem:[%s2151] ss:$8 sm:$0x3] %vm2052, %v2150
      %2153 = vst.msk [vmem:[%s2151] ss:$8 sm:$0x0] %vm2052, %v2150
      %v2154 = vld [vmem:[%s2086] ss:$8 sm:$0x3]
      %2156 = vrot.lane.b32.xlu0 %v2154, 64
      %v2157 = vpop.permute.xlu0 %2156
      %v2158 = vrot.slane %v2157, 7
      %v2159 = vsel %vm2061, %v2158, %v2157
      %s2161 = scalar_lea.vmem [#allocation4], 82
      %2162 = vst.msk [vmem:[%s2161] ss:$8 sm:$0x3] %vm2066, %v2159
      %2163 = vst.msk [vmem:[%s2161] ss:$8 sm:$0x0] %vm2066, %v2159
      %v2164 = vld [vmem:[%s2091] ss:$8 sm:$0x3]
      %s2165 = scalar_lea.vmem [#allocation4], 98
      %2166 = vst.msk [vmem:[%s2165] ss:$8 sm:$0x3] %vm2052, %v2164
      %2167 = vst.msk [vmem:[%s2165] ss:$8 sm:$0x0] %vm2052, %v2164
      %s2168 = scalar_lea.vmem [#allocation3], 6
      %v2169 = vld [vmem:[%s2168] ss:$8 sm:$0x3]
      %2171 = vrot.lane.b32.xlu0 %v2169, 64
      %v2172 = vpop.permute.xlu0 %2171
      %v2173 = vrot.slane %v2172, 7
      %v2174 = vsel %vm2061, %v2173, %v2172
      %s2176 = scalar_lea.vmem [#allocation4], 106
      %2177 = vst.msk [vmem:[%s2176] ss:$8 sm:$0x3] %vm2066, %v2174
      %2178 = vst.msk [vmem:[%s2176] ss:$8 sm:$0x0] %vm2066, %v2174
      %s2179 = scalar_lea.vmem [#allocation3], 7
      %v2180 = vld [vmem:[%s2179] ss:$8 sm:$0x3]
      %s2181 = scalar_lea.vmem [#allocation4], 122
      %2182 = vst.msk [vmem:[%s2181] ss:$8 sm:$0x3] %vm2052, %v2180
      %2183 = vst.msk [vmem:[%s2181] ss:$8 sm:$0x0] %vm2052, %v2180
      %s2184 = scalar_lea.vmem [#allocation3], 16
      %v2185 = vld [vmem:[%s2184] ss:$8 sm:$0x3]
      %2187 = vrot.lane.b32.xlu0 %v2185, 64
      %v2188 = vpop.permute.xlu0 %2187
      %v2189 = vrot.slane %v2188, 7
      %v2190 = vsel %vm2061, %v2189, %v2188
      %s2192 = scalar_lea.vmem [#allocation4], 130
      %2193 = vst.msk [vmem:[%s2192] ss:$8 sm:$0x3] %vm2066, %v2190
      %2194 = vst.msk [vmem:[%s2192] ss:$8 sm:$0x0] %vm2066, %v2190
      %v2195 = vld [vmem:[%s2123] ss:$8 sm:$0x3]
      %s2196 = scalar_lea.vmem [#allocation4], 75
      %2197 = vst.msk [vmem:[%s2196] ss:$8 sm:$0x3] %vm2052, %v2195
      %2198 = vst.msk [vmem:[%s2196] ss:$8 sm:$0x0] %vm2052, %v2195
      %v2199 = vld [vmem:[%s2134] ss:$8 sm:$0x3]
      %2201 = vrot.lane.b32.xlu0 %v2199, 64
      %v2202 = vpop.permute.xlu0 %2201
      %v2203 = vrot.slane %v2202, 7
      %v2204 = vsel %vm2061, %v2203, %v2202
      %s2206 = scalar_lea.vmem [#allocation4], 83
      %2207 = vst.msk [vmem:[%s2206] ss:$8 sm:$0x3] %vm2066, %v2204
      %2208 = vst.msk [vmem:[%s2206] ss:$8 sm:$0x0] %vm2066, %v2204
      %v2209 = vld [vmem:[%s2139] ss:$8 sm:$0x3]
      %s2210 = scalar_lea.vmem [#allocation4], 99
      %2211 = vst.msk [vmem:[%s2210] ss:$8 sm:$0x3] %vm2052, %v2209
      %2212 = vst.msk [vmem:[%s2210] ss:$8 sm:$0x0] %vm2052, %v2209
      %s2213 = scalar_lea.vmem [#allocation3], 48
      %v2214 = vld [vmem:[%s2213] ss:$8 sm:$0x3]
      %2216 = vrot.lane.b32.xlu0 %v2214, 64
      %v2217 = vpop.permute.xlu0 %2216
      %v2218 = vrot.slane %v2217, 7
      %v2219 = vsel %vm2061, %v2218, %v2217
      %s2221 = scalar_lea.vmem [#allocation4], 107
      %2222 = vst.msk [vmem:[%s2221] ss:$8 sm:$0x3] %vm2066, %v2219
      %2223 = vst.msk [vmem:[%s2221] ss:$8 sm:$0x0] %vm2066, %v2219
      %s2224 = scalar_lea.vmem [#allocation3], 49
      %v2225 = vld [vmem:[%s2224] ss:$8 sm:$0x3]
      %s2226 = scalar_lea.vmem [#allocation4], 123
      %2227 = vst.msk [vmem:[%s2226] ss:$8 sm:$0x3] %vm2052, %v2225
      %2228 = vst.msk [vmem:[%s2226] ss:$8 sm:$0x0] %vm2052, %v2225
      %s2229 = scalar_lea.vmem [#allocation3], 50
      %v2230 = vld [vmem:[%s2229] ss:$8 sm:$0x3]
      %2232 = vrot.lane.b32.xlu0 %v2230, 64
      %v2233 = vpop.permute.xlu0 %2232
      %v2234 = vrot.slane %v2233, 7
      %v2235 = vsel %vm2061, %v2234, %v2233
      %s2237 = scalar_lea.vmem [#allocation4], 131
      %2238 = vst.msk [vmem:[%s2237] ss:$8 sm:$0x3] %vm2066, %v2235
      %2239 = vst.msk [vmem:[%s2237] ss:$8 sm:$0x0] %vm2066, %v2235
      %v2240 = vld [vmem:[%s2168] ss:$8 sm:$0x3]
      %s2241 = scalar_lea.vmem [#allocation4], 148
      %2242 = vst.msk [vmem:[%s2241] ss:$8 sm:$0x3] %vm2052, %v2240
      %2243 = vst.msk [vmem:[%s2241] ss:$8 sm:$0x0] %vm2052, %v2240
      %v2244 = vld [vmem:[%s2179] ss:$8 sm:$0x3]
      %2246 = vrot.lane.b32.xlu0 %v2244, 64
      %v2247 = vpop.permute.xlu0 %2246
      %v2248 = vrot.slane %v2247, 7
      %v2249 = vsel %vm2061, %v2248, %v2247
      %s2251 = scalar_lea.vmem [#allocation4], 156
      %2252 = vst.msk [vmem:[%s2251] ss:$8 sm:$0x3] %vm2066, %v2249
      %2253 = vst.msk [vmem:[%s2251] ss:$8 sm:$0x0] %vm2066, %v2249
      %v2254 = vld [vmem:[%s2184] ss:$8 sm:$0x3]
      %s2255 = scalar_lea.vmem [#allocation4], 172
      %2256 = vst.msk [vmem:[%s2255] ss:$8 sm:$0x3] %vm2052, %v2254
      %2257 = vst.msk [vmem:[%s2255] ss:$8 sm:$0x0] %vm2052, %v2254
      %s2258 = scalar_lea.vmem [#allocation3], 17
      %v2259 = vld [vmem:[%s2258] ss:$8 sm:$0x3]
      %2261 = vrot.lane.b32.xlu0 %v2259, 64
      %v2262 = vpop.permute.xlu0 %2261
      %v2263 = vrot.slane %v2262, 7
      %v2264 = vsel %vm2061, %v2263, %v2262
      %s2266 = scalar_lea.vmem [#allocation4], 180
      %2267 = vst.msk [vmem:[%s2266] ss:$8 sm:$0x3] %vm2066, %v2264
      %2268 = vst.msk [vmem:[%s2266] ss:$8 sm:$0x0] %vm2066, %v2264
      %s2269 = scalar_lea.vmem [#allocation3], 18
      %v2270 = vld [vmem:[%s2269] ss:$8 sm:$0x3]
      %s2271 = scalar_lea.vmem [#allocation4], 196
      %2272 = vst.msk [vmem:[%s2271] ss:$8 sm:$0x3] %vm2052, %v2270
      %2273 = vst.msk [vmem:[%s2271] ss:$8 sm:$0x0] %vm2052, %v2270
      %s2274 = scalar_lea.vmem [#allocation3], 19
      %v2275 = vld [vmem:[%s2274] ss:$8 sm:$0x3]
      %2277 = vrot.lane.b32.xlu0 %v2275, 64
      %v2278 = vpop.permute.xlu0 %2277
      %v2279 = vrot.slane %v2278, 7
      %v2280 = vsel %vm2061, %v2279, %v2278
      %s2282 = scalar_lea.vmem [#allocation4], 204
      %2283 = vst.msk [vmem:[%s2282] ss:$8 sm:$0x3] %vm2066, %v2280
      %2284 = vst.msk [vmem:[%s2282] ss:$8 sm:$0x0] %vm2066, %v2280
      %v2285 = vld [vmem:[%s2213] ss:$8 sm:$0x3]
      %s2286 = scalar_lea.vmem [#allocation4], 149
      %2287 = vst.msk [vmem:[%s2286] ss:$8 sm:$0x3] %vm2052, %v2285
      %2288 = vst.msk [vmem:[%s2286] ss:$8 sm:$0x0] %vm2052, %v2285
      %v2289 = vld [vmem:[%s2224] ss:$8 sm:$0x3]
      %2291 = vrot.lane.b32.xlu0 %v2289, 64
      %v2292 = vpop.permute.xlu0 %2291
      %v2293 = vrot.slane %v2292, 7
      %v2294 = vsel %vm2061, %v2293, %v2292
      %s2296 = scalar_lea.vmem [#allocation4], 157
      %2297 = vst.msk [vmem:[%s2296] ss:$8 sm:$0x3] %vm2066, %v2294
      %2298 = vst.msk [vmem:[%s2296] ss:$8 sm:$0x0] %vm2066, %v2294
      %v2299 = vld [vmem:[%s2229] ss:$8 sm:$0x3]
      %s2300 = scalar_lea.vmem [#allocation4], 173
      %2301 = vst.msk [vmem:[%s2300] ss:$8 sm:$0x3] %vm2052, %v2299
      %2302 = vst.msk [vmem:[%s2300] ss:$8 sm:$0x0] %vm2052, %v2299
      %s2303 = scalar_lea.vmem [#allocation3], 51
      %v2304 = vld [vmem:[%s2303] ss:$8 sm:$0x3]
      %2306 = vrot.lane.b32.xlu0 %v2304, 64
      %v2307 = vpop.permute.xlu0 %2306
      %v2308 = vrot.slane %v2307, 7
      %v2309 = vsel %vm2061, %v2308, %v2307
      %s2311 = scalar_lea.vmem [#allocation4], 181
      %2312 = vst.msk [vmem:[%s2311] ss:$8 sm:$0x3] %vm2066, %v2309
      %2313 = vst.msk [vmem:[%s2311] ss:$8 sm:$0x0] %vm2066, %v2309
      %s2314 = scalar_lea.vmem [#allocation3], 52
      %v2315 = vld [vmem:[%s2314] ss:$8 sm:$0x3]
      %s2316 = scalar_lea.vmem [#allocation4], 197
      %2317 = vst.msk [vmem:[%s2316] ss:$8 sm:$0x3] %vm2052, %v2315
      %2318 = vst.msk [vmem:[%s2316] ss:$8 sm:$0x0] %vm2052, %v2315
      %s2319 = scalar_lea.vmem [#allocation3], 53
      %v2320 = vld [vmem:[%s2319] ss:$8 sm:$0x3]
      %2322 = vrot.lane.b32.xlu0 %v2320, 64
      %v2323 = vpop.permute.xlu0 %2322
      %v2324 = vrot.slane %v2323, 7
      %v2325 = vsel %vm2061, %v2324, %v2323
      %s2327 = scalar_lea.vmem [#allocation4], 205
      %2328 = vst.msk [vmem:[%s2327] ss:$8 sm:$0x3] %vm2066, %v2325
      %2329 = vst.msk [vmem:[%s2327] ss:$8 sm:$0x0] %vm2066, %v2325
      %v2330 = vld [vmem:[%s2258] ss:$8 sm:$0x3]
      %s2331 = scalar_lea.vmem [#allocation4], 222
      %2332 = vst.msk [vmem:[%s2331] ss:$8 sm:$0x3] %vm2052, %v2330
      %2333 = vst.msk [vmem:[%s2331] ss:$8 sm:$0x0] %vm2052, %v2330
      %v2334 = vld [vmem:[%s2269] ss:$8 sm:$0x3]
      %2336 = vrot.lane.b32.xlu0 %v2334, 64
      %v2337 = vpop.permute.xlu0 %2336
      %v2338 = vrot.slane %v2337, 7
      %v2339 = vsel %vm2061, %v2338, %v2337
      %s2341 = scalar_lea.vmem [#allocation4], 230
      %2342 = vst.msk [vmem:[%s2341] ss:$8 sm:$0x3] %vm2066, %v2339
      %2343 = vst.msk [vmem:[%s2341] ss:$8 sm:$0x0] %vm2066, %v2339
      %v2344 = vld [vmem:[%s2274] ss:$8 sm:$0x3]
      %s2345 = scalar_lea.vmem [#allocation4], 246
      %2346 = vst.msk [vmem:[%s2345] ss:$8 sm:$0x3] %vm2052, %v2344
      %2347 = vst.msk [vmem:[%s2345] ss:$8 sm:$0x0] %vm2052, %v2344
      %s2348 = scalar_lea.vmem [#allocation3], 20
      %v2349 = vld [vmem:[%s2348] ss:$8 sm:$0x3]
      %2351 = vrot.lane.b32.xlu0 %v2349, 64
      %v2352 = vpop.permute.xlu0 %2351
      %v2353 = vrot.slane %v2352, 7
      %v2354 = vsel %vm2061, %v2353, %v2352
      %s2356 = scalar_lea.vmem [#allocation4], 254
      %2357 = vst.msk [vmem:[%s2356] ss:$8 sm:$0x3] %vm2066, %v2354
      %2358 = vst.msk [vmem:[%s2356] ss:$8 sm:$0x0] %vm2066, %v2354
      %s2359 = scalar_lea.vmem [#allocation3], 21
      %v2360 = vld [vmem:[%s2359] ss:$8 sm:$0x3]
      %s2361 = scalar_lea.vmem [#allocation4], 270
      %2362 = vst.msk [vmem:[%s2361] ss:$8 sm:$0x3] %vm2052, %v2360
      %2363 = vst.msk [vmem:[%s2361] ss:$8 sm:$0x0] %vm2052, %v2360
      %s2364 = scalar_lea.vmem [#allocation3], 22
      %v2365 = vld [vmem:[%s2364] ss:$8 sm:$0x3]
      %2367 = vrot.lane.b32.xlu0 %v2365, 64
      %v2368 = vpop.permute.xlu0 %2367
      %v2369 = vrot.slane %v2368, 7
      %v2370 = vsel %vm2061, %v2369, %v2368
      %s2372 = scalar_lea.vmem [#allocation4], 278
      %2373 = vst.msk [vmem:[%s2372] ss:$8 sm:$0x3] %vm2066, %v2370
      %2374 = vst.msk [vmem:[%s2372] ss:$8 sm:$0x0] %vm2066, %v2370
      %v2375 = vld [vmem:[%s2303] ss:$8 sm:$0x3]
      %s2376 = scalar_lea.vmem [#allocation4], 223
      %2377 = vst.msk [vmem:[%s2376] ss:$8 sm:$0x3] %vm2052, %v2375
      %2378 = vst.msk [vmem:[%s2376] ss:$8 sm:$0x0] %vm2052, %v2375
      %v2379 = vld [vmem:[%s2314] ss:$8 sm:$0x3]
      %2381 = vrot.lane.b32.xlu0 %v2379, 64
      %v2382 = vpop.permute.xlu0 %2381
      %v2383 = vrot.slane %v2382, 7
      %v2384 = vsel %vm2061, %v2383, %v2382
      %s2386 = scalar_lea.vmem [#allocation4], 231
      %2387 = vst.msk [vmem:[%s2386] ss:$8 sm:$0x3] %vm2066, %v2384
      %2388 = vst.msk [vmem:[%s2386] ss:$8 sm:$0x0] %vm2066, %v2384
      %v2389 = vld [vmem:[%s2319] ss:$8 sm:$0x3]
      %s2390 = scalar_lea.vmem [#allocation4], 247
      %2391 = vst.msk [vmem:[%s2390] ss:$8 sm:$0x3] %vm2052, %v2389
      %2392 = vst.msk [vmem:[%s2390] ss:$8 sm:$0x0] %vm2052, %v2389
      %s2393 = scalar_lea.vmem [#allocation3], 54
      %v2394 = vld [vmem:[%s2393] ss:$8 sm:$0x3]
      %2396 = vrot.lane.b32.xlu0 %v2394, 64
      %v2397 = vpop.permute.xlu0 %2396
      %v2398 = vrot.slane %v2397, 7
      %v2399 = vsel %vm2061, %v2398, %v2397
      %s2401 = scalar_lea.vmem [#allocation4], 255
      %2402 = vst.msk [vmem:[%s2401] ss:$8 sm:$0x3] %vm2066, %v2399
      %2403 = vst.msk [vmem:[%s2401] ss:$8 sm:$0x0] %vm2066, %v2399
      %s2404 = scalar_lea.vmem [#allocation3], 55
      %v2405 = vld [vmem:[%s2404] ss:$8 sm:$0x3]
      %s2406 = scalar_lea.vmem [#allocation4], 271
      %2407 = vst.msk [vmem:[%s2406] ss:$8 sm:$0x3] %vm2052, %v2405
      %2408 = vst.msk [vmem:[%s2406] ss:$8 sm:$0x0] %vm2052, %v2405
      %s2409 = scalar_lea.vmem [#allocation3], 64
      %v2410 = vld [vmem:[%s2409] ss:$8 sm:$0x3]
      %2412 = vrot.lane.b32.xlu0 %v2410, 64
      %v2413 = vpop.permute.xlu0 %2412
      %v2414 = vrot.slane %v2413, 7
      %v2415 = vsel %vm2061, %v2414, %v2413
      %s2417 = scalar_lea.vmem [#allocation4], 279
      %2418 = vst.msk [vmem:[%s2417] ss:$8 sm:$0x3] %vm2066, %v2415
      %2419 = vst.msk [vmem:[%s2417] ss:$8 sm:$0x0] %vm2066, %v2415
      %v2420 = vld [vmem:[%s2348] ss:$8 sm:$0x3]
      %s2421 = scalar_lea.vmem [#allocation4], 360
      %2422 = vst.msk [vmem:[%s2421] ss:$8 sm:$0x3] %vm2052, %v2420
      %2423 = vst.msk [vmem:[%s2421] ss:$8 sm:$0x0] %vm2052, %v2420
      %v2424 = vld [vmem:[%s2359] ss:$8 sm:$0x3]
      %2426 = vrot.lane.b32.xlu0 %v2424, 64
      %v2427 = vpop.permute.xlu0 %2426
      %v2428 = vrot.slane %v2427, 7
      %v2429 = vsel %vm2061, %v2428, %v2427
      %s2431 = scalar_lea.vmem [#allocation4], 368
      %2432 = vst.msk [vmem:[%s2431] ss:$8 sm:$0x3] %vm2066, %v2429
      %2433 = vst.msk [vmem:[%s2431] ss:$8 sm:$0x0] %vm2066, %v2429
      %v2434 = vld [vmem:[%s2364] ss:$8 sm:$0x3]
      %s2435 = scalar_lea.vmem [#allocation4], 384
      %2436 = vst.msk [vmem:[%s2435] ss:$8 sm:$0x3] %vm2052, %v2434
      %2437 = vst.msk [vmem:[%s2435] ss:$8 sm:$0x0] %vm2052, %v2434
      %s2438 = scalar_lea.vmem [#allocation3], 23
      %v2439 = vld [vmem:[%s2438] ss:$8 sm:$0x3]
      %2441 = vrot.lane.b32.xlu0 %v2439, 64
      %v2442 = vpop.permute.xlu0 %2441
      %v2443 = vrot.slane %v2442, 7
      %v2444 = vsel %vm2061, %v2443, %v2442
      %s2446 = scalar_lea.vmem [#allocation4], 392
      %2447 = vst.msk [vmem:[%s2446] ss:$8 sm:$0x3] %vm2066, %v2444
      %2448 = vst.msk [vmem:[%s2446] ss:$8 sm:$0x0] %vm2066, %v2444
      %s2449 = scalar_lea.vmem [#allocation3], 32
      %v2450 = vld [vmem:[%s2449] ss:$8 sm:$0x3]
      %s2451 = scalar_lea.vmem [#allocation4], 408
      %2452 = vst.msk [vmem:[%s2451] ss:$8 sm:$0x3] %vm2052, %v2450
      %2453 = vst.msk [vmem:[%s2451] ss:$8 sm:$0x0] %vm2052, %v2450
      %s2454 = scalar_lea.vmem [#allocation3], 33
      %v2455 = vld [vmem:[%s2454] ss:$8 sm:$0x3]
      %2457 = vrot.lane.b32.xlu0 %v2455, 64
      %v2458 = vpop.permute.xlu0 %2457
      %v2459 = vrot.slane %v2458, 7
      %v2460 = vsel %vm2061, %v2459, %v2458
      %s2462 = scalar_lea.vmem [#allocation4], 416
      %2463 = vst.msk [vmem:[%s2462] ss:$8 sm:$0x3] %vm2066, %v2460
      %2464 = vst.msk [vmem:[%s2462] ss:$8 sm:$0x0] %vm2066, %v2460
      %v2465 = vld [vmem:[%s2393] ss:$8 sm:$0x3]
      %s2466 = scalar_lea.vmem [#allocation4], 361
      %2467 = vst.msk [vmem:[%s2466] ss:$8 sm:$0x3] %vm2052, %v2465
      %2468 = vst.msk [vmem:[%s2466] ss:$8 sm:$0x0] %vm2052, %v2465
      %v2469 = vld [vmem:[%s2404] ss:$8 sm:$0x3]
      %2471 = vrot.lane.b32.xlu0 %v2469, 64
      %v2472 = vpop.permute.xlu0 %2471
      %v2473 = vrot.slane %v2472, 7
      %v2474 = vsel %vm2061, %v2473, %v2472
      %s2476 = scalar_lea.vmem [#allocation4], 369
      %2477 = vst.msk [vmem:[%s2476] ss:$8 sm:$0x3] %vm2066, %v2474
      %2478 = vst.msk [vmem:[%s2476] ss:$8 sm:$0x0] %vm2066, %v2474
      %v2479 = vld [vmem:[%s2409] ss:$8 sm:$0x3]
      %s2480 = scalar_lea.vmem [#allocation4], 385
      %2481 = vst.msk [vmem:[%s2480] ss:$8 sm:$0x3] %vm2052, %v2479
      %2482 = vst.msk [vmem:[%s2480] ss:$8 sm:$0x0] %vm2052, %v2479
      %s2483 = scalar_lea.vmem [#allocation3], 65
      %v2484 = vld [vmem:[%s2483] ss:$8 sm:$0x3]
      %2486 = vrot.lane.b32.xlu0 %v2484, 64
      %v2487 = vpop.permute.xlu0 %2486
      %v2488 = vrot.slane %v2487, 7
      %v2489 = vsel %vm2061, %v2488, %v2487
      %s2491 = scalar_lea.vmem [#allocation4], 393
      %2492 = vst.msk [vmem:[%s2491] ss:$8 sm:$0x3] %vm2066, %v2489
      %2493 = vst.msk [vmem:[%s2491] ss:$8 sm:$0x0] %vm2066, %v2489
      %s2494 = scalar_lea.vmem [#allocation3], 66
      %v2495 = vld [vmem:[%s2494] ss:$8 sm:$0x3]
      %s2496 = scalar_lea.vmem [#allocation4], 409
      %2497 = vst.msk [vmem:[%s2496] ss:$8 sm:$0x3] %vm2052, %v2495
      %2498 = vst.msk [vmem:[%s2496] ss:$8 sm:$0x0] %vm2052, %v2495
      %s2499 = scalar_lea.vmem [#allocation3], 67
      %v2500 = vld [vmem:[%s2499] ss:$8 sm:$0x3]
      %2502 = vrot.lane.b32.xlu0 %v2500, 64
      %v2503 = vpop.permute.xlu0 %2502
      %v2504 = vrot.slane %v2503, 7
      %v2505 = vsel %vm2061, %v2504, %v2503
      %s2507 = scalar_lea.vmem [#allocation4], 417
      %2508 = vst.msk [vmem:[%s2507] ss:$8 sm:$0x3] %vm2066, %v2505
      %2509 = vst.msk [vmem:[%s2507] ss:$8 sm:$0x0] %vm2066, %v2505
      %v2510 = vld [vmem:[#allocation2 + $0x6c] sm:$0xff]
      %v2511 = vld [vmem:[#allocation2 + $0x74] sm:$0xff]
      %v2512 = vld [vmem:[#allocation2 + $0x7c] sm:$0xff]
      %v2513 = vld [vmem:[#allocation2 + $0x84] sm:$0xff]
      %v2514 = vld [vmem:[#allocation2 + $0x8c] sm:$0xf]
      %2515 = vst.msk [vmem:[#allocation3] sm:$0xff] %vm1137, %v2510
      %2516 = vst.msk [vmem:[#allocation3 + $0x10] sm:$0xff] %vm1137, %v2511
      %2517 = vst.msk [vmem:[#allocation3 + $0x20] sm:$0xff] %vm1137, %v2512
      %2518 = vst.msk [vmem:[#allocation3 + $0x30] sm:$0xff] %vm1137, %v2513
      %2519 = vst.msk [vmem:[#allocation3 + $0x40] sm:$0xf] %vm1910, %v2514
      %v2520 = vld [vmem:[#allocation2 + $0x90] sm:$0xff]
      %v2521 = vld [vmem:[#allocation2 + $0x98] sm:$0xff]
      %v2522 = vld [vmem:[#allocation2 + $0xa0] sm:$0xff]
      %v2523 = vld [vmem:[#allocation2 + $0xa8] sm:$0xff]
      %v2524 = vld [vmem:[#allocation2 + $0xb0] sm:$0xf]
      %2530 = vrot.lane.b32.xlu0 %v2520, 32
      %v2531 = vpop.permute.xlu0 %2530
      %2532 = vrot.lane.b32.xlu0 %v2521, 32
      %v2533 = vpop.permute.xlu0 %2532
      %2534 = vrot.lane.b32.xlu0 %v2522, 32
      %v2535 = vpop.permute.xlu0 %2534
      %2536 = vrot.lane.b32.xlu0 %v2523, 32
      %v2537 = vpop.permute.xlu0 %2536
      %2538 = vrot.lane.b32.xlu0 %v2524, 32
      %v2539 = vpop.permute.xlu0 %2538
      %2545 = vst.msk [vmem:[#allocation3] sm:$0xff] %vm1937, %v2531
      %2546 = vst.msk [vmem:[#allocation3 + $0x10] sm:$0xff] %vm1937, %v2533
      %2547 = vst.msk [vmem:[#allocation3 + $0x20] sm:$0xff] %vm1937, %v2535
      %2548 = vst.msk [vmem:[#allocation3 + $0x30] sm:$0xff] %vm1937, %v2537
      %2549 = vst.msk [vmem:[#allocation3 + $0x40] sm:$0xf] %vm1942, %v2539
      %v2550 = vld [vmem:[#allocation2 + $0xb4] sm:$0xff]
      %v2551 = vld [vmem:[#allocation2 + $0xbc] sm:$0xff]
      %v2552 = vld [vmem:[#allocation2 + $0xc4] sm:$0xff]
      %v2553 = vld [vmem:[#allocation2 + $0xcc] sm:$0xff]
      %v2554 = vld [vmem:[#allocation2 + $0xd4] sm:$0xf]
      %2560 = vrot.lane.b32.xlu0 %v2550, 64
      %v2561 = vpop.permute.xlu0 %2560
      %2562 = vrot.lane.b32.xlu0 %v2551, 64
      %v2563 = vpop.permute.xlu0 %2562
      %2564 = vrot.lane.b32.xlu0 %v2552, 64
      %v2565 = vpop.permute.xlu0 %2564
      %2566 = vrot.lane.b32.xlu0 %v2553, 64
      %v2567 = vpop.permute.xlu0 %2566
      %2568 = vrot.lane.b32.xlu0 %v2554, 64
      %v2569 = vpop.permute.xlu0 %2568
      %2575 = vst.msk [vmem:[#allocation3] sm:$0xff] %vm1969, %v2561
      %2576 = vst.msk [vmem:[#allocation3 + $0x10] sm:$0xff] %vm1969, %v2563
      %2577 = vst.msk [vmem:[#allocation3 + $0x20] sm:$0xff] %vm1969, %v2565
      %2578 = vst.msk [vmem:[#allocation3 + $0x30] sm:$0xff] %vm1969, %v2567
      %2579 = vst.msk [vmem:[#allocation3 + $0x40] sm:$0xf] %vm1974, %v2569
      %v2580 = vld [vmem:[#allocation2 + $0xd8] sm:$0xff]
      %v2581 = vld [vmem:[#allocation2 + $0xe0] sm:$0xff]
      %v2582 = vld [vmem:[#allocation2 + $0xe8] sm:$0xff]
      %v2583 = vld [vmem:[#allocation2 + $0xf0] sm:$0xff]
      %v2584 = vld [vmem:[#allocation2 + $0xf8] sm:$0xf]
      %2590 = vrot.lane.b32.xlu0 %v2580, 96
      %v2591 = vpop.permute.xlu0 %2590
      %2592 = vrot.lane.b32.xlu0 %v2581, 96
      %v2593 = vpop.permute.xlu0 %2592
      %2594 = vrot.lane.b32.xlu0 %v2582, 96
      %v2595 = vpop.permute.xlu0 %2594
      %2596 = vrot.lane.b32.xlu0 %v2583, 96
      %v2597 = vpop.permute.xlu0 %2596
      %2598 = vrot.lane.b32.xlu0 %v2584, 96
      %v2599 = vpop.permute.xlu0 %2598
      %2605 = vst.msk [vmem:[#allocation3] sm:$0xff] %vm2001, %v2591
      %2606 = vst.msk [vmem:[#allocation3 + $0x10] sm:$0xff] %vm2001, %v2593
      %2607 = vst.msk [vmem:[#allocation3 + $0x20] sm:$0xff] %vm2001, %v2595
      %2608 = vst.msk [vmem:[#allocation3 + $0x30] sm:$0xff] %vm2001, %v2597
      %2609 = vst.msk [vmem:[#allocation3 + $0x40] sm:$0xf] %vm2006, %v2599
      %v2610 = vld [vmem:[#allocation2 + $0xfc] sm:$0xff]
      %v2611 = vld [vmem:[#allocation2 + $0x104] sm:$0xff]
      %v2612 = vld [vmem:[#allocation2 + $0x10c] sm:$0xff]
      %v2613 = vld [vmem:[#allocation2 + $0x114] sm:$0xff]
      %v2614 = vld [vmem:[#allocation2 + $0x11c] sm:$0xf]
      %2615 = vst.msk [vmem:[#allocation3 + $0x8] sm:$0xff] %vm1137, %v2610
      %2616 = vst.msk [vmem:[#allocation3 + $0x18] sm:$0xff] %vm1137, %v2611
      %2617 = vst.msk [vmem:[#allocation3 + $0x28] sm:$0xff] %vm1137, %v2612
      %2618 = vst.msk [vmem:[#allocation3 + $0x38] sm:$0xff] %vm1137, %v2613
      %2619 = vst.msk [vmem:[#allocation3 + $0x48] sm:$0xf] %vm1910, %v2614
      %v2620 = vld [vmem:[#allocation2 + $0x120] sm:$0xff]
      %v2621 = vld [vmem:[#allocation2 + $0x128] sm:$0xff]
      %v2622 = vld [vmem:[#allocation2 + $0x130] sm:$0xff]
      %v2623 = vld [vmem:[#allocation2 + $0x138] sm:$0xff]
      %v2624 = vld [vmem:[#allocation2 + $0x140] sm:$0xf]
      %2630 = vrot.lane.b32.xlu0 %v2620, 32
      %v2631 = vpop.permute.xlu0 %2630
      %2632 = vrot.lane.b32.xlu0 %v2621, 32
      %v2633 = vpop.permute.xlu0 %2632
      %2634 = vrot.lane.b32.xlu0 %v2622, 32
      %v2635 = vpop.permute.xlu0 %2634
      %2636 = vrot.lane.b32.xlu0 %v2623, 32
      %v2637 = vpop.permute.xlu0 %2636
      %2638 = vrot.lane.b32.xlu0 %v2624, 32
      %v2639 = vpop.permute.xlu0 %2638
      %2645 = vst.msk [vmem:[#allocation3 + $0x8] sm:$0xff] %vm1937, %v2631
      %2646 = vst.msk [vmem:[#allocation3 + $0x18] sm:$0xff] %vm1937, %v2633
      %2647 = vst.msk [vmem:[#allocation3 + $0x28] sm:$0xff] %vm1937, %v2635
      %2648 = vst.msk [vmem:[#allocation3 + $0x38] sm:$0xff] %vm1937, %v2637
      %2649 = vst.msk [vmem:[#allocation3 + $0x48] sm:$0xf] %vm1942, %v2639
      %v2650 = vld [vmem:[#allocation3] ss:$8 sm:$0x3]
      %s2651 = scalar_lea.vmem [#allocation4], 2
      %2652 = vst.msk [vmem:[%s2651] ss:$8 sm:$0x3] %vm2052, %v2650
      %2653 = vst.msk [vmem:[%s2651] ss:$8 sm:$0x0] %vm2052, %v2650
      %v2654 = vld [vmem:[%s2055] ss:$8 sm:$0x3]
      %2656 = vrot.lane.b32.xlu0 %v2654, 64
      %v2657 = vpop.permute.xlu0 %2656
      %v2658 = vrot.slane %v2657, 7
      %v2659 = vsel %vm2061, %v2658, %v2657
      %s2661 = scalar_lea.vmem [#allocation4], 10
      %2662 = vst.msk [vmem:[%s2661] ss:$8 sm:$0x3] %vm2066, %v2659
      %2663 = vst.msk [vmem:[%s2661] ss:$8 sm:$0x0] %vm2066, %v2659
      %v2664 = vld [vmem:[%s2070] ss:$8 sm:$0x3]
      %s2665 = scalar_lea.vmem [#allocation4], 26
      %2666 = vst.msk [vmem:[%s2665] ss:$8 sm:$0x3] %vm2052, %v2664
      %2667 = vst.msk [vmem:[%s2665] ss:$8 sm:$0x0] %vm2052, %v2664
      %v2668 = vld [vmem:[%s2075] ss:$8 sm:$0x3]
      %2670 = vrot.lane.b32.xlu0 %v2668, 64
      %v2671 = vpop.permute.xlu0 %2670
      %v2672 = vrot.slane %v2671, 7
      %v2673 = vsel %vm2061, %v2672, %v2671
      %s2675 = scalar_lea.vmem [#allocation4], 34
      %2676 = vst.msk [vmem:[%s2675] ss:$8 sm:$0x3] %vm2066, %v2673
      %2677 = vst.msk [vmem:[%s2675] ss:$8 sm:$0x0] %vm2066, %v2673
      %v2678 = vld [vmem:[%s2086] ss:$8 sm:$0x3]
      %s2679 = scalar_lea.vmem [#allocation4], 50
      %2680 = vst.msk [vmem:[%s2679] ss:$8 sm:$0x3] %vm2052, %v2678
      %2681 = vst.msk [vmem:[%s2679] ss:$8 sm:$0x0] %vm2052, %v2678
      %v2682 = vld [vmem:[%s2091] ss:$8 sm:$0x3]
      %2684 = vrot.lane.b32.xlu0 %v2682, 64
      %v2685 = vpop.permute.xlu0 %2684
      %v2686 = vrot.slane %v2685, 7
      %v2687 = vsel %vm2061, %v2686, %v2685
      %s2689 = scalar_lea.vmem [#allocation4], 58
      %2690 = vst.msk [vmem:[%s2689] ss:$8 sm:$0x3] %vm2066, %v2687
      %2691 = vst.msk [vmem:[%s2689] ss:$8 sm:$0x0] %vm2066, %v2687
      %v2692 = vld [vmem:[%s2102] ss:$8 sm:$0x3]
      %s2693 = scalar_lea.vmem [#allocation4], 3
      %2694 = vst.msk [vmem:[%s2693] ss:$8 sm:$0x3] %vm2052, %v2692
      %2695 = vst.msk [vmem:[%s2693] ss:$8 sm:$0x0] %vm2052, %v2692
      %v2696 = vld [vmem:[%s2107] ss:$8 sm:$0x3]
      %2698 = vrot.lane.b32.xlu0 %v2696, 64
      %v2699 = vpop.permute.xlu0 %2698
      %v2700 = vrot.slane %v2699, 7
      %v2701 = vsel %vm2061, %v2700, %v2699
      %s2703 = scalar_lea.vmem [#allocation4], 11
      %2704 = vst.msk [vmem:[%s2703] ss:$8 sm:$0x3] %vm2066, %v2701
      %2705 = vst.msk [vmem:[%s2703] ss:$8 sm:$0x0] %vm2066, %v2701
      %v2706 = vld [vmem:[%s2118] ss:$8 sm:$0x3]
      %s2707 = scalar_lea.vmem [#allocation4], 27
      %2708 = vst.msk [vmem:[%s2707] ss:$8 sm:$0x3] %vm2052, %v2706
      %2709 = vst.msk [vmem:[%s2707] ss:$8 sm:$0x0] %vm2052, %v2706
      %v2710 = vld [vmem:[%s2123] ss:$8 sm:$0x3]
      %2712 = vrot.lane.b32.xlu0 %v2710, 64
      %v2713 = vpop.permute.xlu0 %2712
      %v2714 = vrot.slane %v2713, 7
      %v2715 = vsel %vm2061, %v2714, %v2713
      %s2717 = scalar_lea.vmem [#allocation4], 35
      %2718 = vst.msk [vmem:[%s2717] ss:$8 sm:$0x3] %vm2066, %v2715
      %2719 = vst.msk [vmem:[%s2717] ss:$8 sm:$0x0] %vm2066, %v2715
      %v2720 = vld [vmem:[%s2134] ss:$8 sm:$0x3]
      %s2721 = scalar_lea.vmem [#allocation4], 51
      %2722 = vst.msk [vmem:[%s2721] ss:$8 sm:$0x3] %vm2052, %v2720
      %2723 = vst.msk [vmem:[%s2721] ss:$8 sm:$0x0] %vm2052, %v2720
      %v2724 = vld [vmem:[%s2139] ss:$8 sm:$0x3]
      %2726 = vrot.lane.b32.xlu0 %v2724, 64
      %v2727 = vpop.permute.xlu0 %2726
      %v2728 = vrot.slane %v2727, 7
      %v2729 = vsel %vm2061, %v2728, %v2727
      %s2731 = scalar_lea.vmem [#allocation4], 59
      %2732 = vst.msk [vmem:[%s2731] ss:$8 sm:$0x3] %vm2066, %v2729
      %2733 = vst.msk [vmem:[%s2731] ss:$8 sm:$0x0] %vm2066, %v2729
      %v2734 = vld [vmem:[%s2075] ss:$8 sm:$0x3]
      %s2735 = scalar_lea.vmem [#allocation4], 76
      %2736 = vst.msk [vmem:[%s2735] ss:$8 sm:$0x3] %vm2052, %v2734
      %2737 = vst.msk [vmem:[%s2735] ss:$8 sm:$0x0] %vm2052, %v2734
      %v2738 = vld [vmem:[%s2086] ss:$8 sm:$0x3]
      %2740 = vrot.lane.b32.xlu0 %v2738, 64
      %v2741 = vpop.permute.xlu0 %2740
      %v2742 = vrot.slane %v2741, 7
      %v2743 = vsel %vm2061, %v2742, %v2741
      %s2745 = scalar_lea.vmem [#allocation4], 84
      %2746 = vst.msk [vmem:[%s2745] ss:$8 sm:$0x3] %vm2066, %v2743
      %2747 = vst.msk [vmem:[%s2745] ss:$8 sm:$0x0] %vm2066, %v2743
      %v2748 = vld [vmem:[%s2091] ss:$8 sm:$0x3]
      %s2749 = scalar_lea.vmem [#allocation4], 100
      %2750 = vst.msk [vmem:[%s2749] ss:$8 sm:$0x3] %vm2052, %v2748
      %2751 = vst.msk [vmem:[%s2749] ss:$8 sm:$0x0] %vm2052, %v2748
      %v2752 = vld [vmem:[%s2168] ss:$8 sm:$0x3]
      %2754 = vrot.lane.b32.xlu0 %v2752, 64
      %v2755 = vpop.permute.xlu0 %2754
      %v2756 = vrot.slane %v2755, 7
      %v2757 = vsel %vm2061, %v2756, %v2755
      %s2759 = scalar_lea.vmem [#allocation4], 108
      %2760 = vst.msk [vmem:[%s2759] ss:$8 sm:$0x3] %vm2066, %v2757
      %2761 = vst.msk [vmem:[%s2759] ss:$8 sm:$0x0] %vm2066, %v2757
      %v2762 = vld [vmem:[%s2179] ss:$8 sm:$0x3]
      %s2763 = scalar_lea.vmem [#allocation4], 124
      %2764 = vst.msk [vmem:[%s2763] ss:$8 sm:$0x3] %vm2052, %v2762
      %2765 = vst.msk [vmem:[%s2763] ss:$8 sm:$0x0] %vm2052, %v2762
      %v2766 = vld [vmem:[%s2184] ss:$8 sm:$0x3]
      %2768 = vrot.lane.b32.xlu0 %v2766, 64
      %v2769 = vpop.permute.xlu0 %2768
      %v2770 = vrot.slane %v2769, 7
      %v2771 = vsel %vm2061, %v2770, %v2769
      %s2773 = scalar_lea.vmem [#allocation4], 132
      %2774 = vst.msk [vmem:[%s2773] ss:$8 sm:$0x3] %vm2066, %v2771
      %2775 = vst.msk [vmem:[%s2773] ss:$8 sm:$0x0] %vm2066, %v2771
      %v2776 = vld [vmem:[%s2123] ss:$8 sm:$0x3]
      %s2777 = scalar_lea.vmem [#allocation4], 77
      %2778 = vst.msk [vmem:[%s2777] ss:$8 sm:$0x3] %vm2052, %v2776
      %2779 = vst.msk [vmem:[%s2777] ss:$8 sm:$0x0] %vm2052, %v2776
      %v2780 = vld [vmem:[%s2134] ss:$8 sm:$0x3]
      %2782 = vrot.lane.b32.xlu0 %v2780, 64
      %v2783 = vpop.permute.xlu0 %2782
      %v2784 = vrot.slane %v2783, 7
      %v2785 = vsel %vm2061, %v2784, %v2783
      %s2787 = scalar_lea.vmem [#allocation4], 85
      %2788 = vst.msk [vmem:[%s2787] ss:$8 sm:$0x3] %vm2066, %v2785
      %2789 = vst.msk [vmem:[%s2787] ss:$8 sm:$0x0] %vm2066, %v2785
      %v2790 = vld [vmem:[%s2139] ss:$8 sm:$0x3]
      %s2791 = scalar_lea.vmem [#allocation4], 101
      %2792 = vst.msk [vmem:[%s2791] ss:$8 sm:$0x3] %vm2052, %v2790
      %2793 = vst.msk [vmem:[%s2791] ss:$8 sm:$0x0] %vm2052, %v2790
      %v2794 = vld [vmem:[%s2213] ss:$8 sm:$0x3]
      %2796 = vrot.lane.b32.xlu0 %v2794, 64
      %v2797 = vpop.permute.xlu0 %2796
      %v2798 = vrot.slane %v2797, 7
      %v2799 = vsel %vm2061, %v2798, %v2797
      %s2801 = scalar_lea.vmem [#allocation4], 109
      %2802 = vst.msk [vmem:[%s2801] ss:$8 sm:$0x3] %vm2066, %v2799
      %2803 = vst.msk [vmem:[%s2801] ss:$8 sm:$0x0] %vm2066, %v2799
      %v2804 = vld [vmem:[%s2224] ss:$8 sm:$0x3]
      %s2805 = scalar_lea.vmem [#allocation4], 125
      %2806 = vst.msk [vmem:[%s2805] ss:$8 sm:$0x3] %vm2052, %v2804
      %2807 = vst.msk [vmem:[%s2805] ss:$8 sm:$0x0] %vm2052, %v2804
      %v2808 = vld [vmem:[%s2229] ss:$8 sm:$0x3]
      %2810 = vrot.lane.b32.xlu0 %v2808, 64
      %v2811 = vpop.permute.xlu0 %2810
      %v2812 = vrot.slane %v2811, 7
      %v2813 = vsel %vm2061, %v2812, %v2811
      %s2815 = scalar_lea.vmem [#allocation4], 133
      %2816 = vst.msk [vmem:[%s2815] ss:$8 sm:$0x3] %vm2066, %v2813
      %2817 = vst.msk [vmem:[%s2815] ss:$8 sm:$0x0] %vm2066, %v2813
      %v2818 = vld [vmem:[%s2168] ss:$8 sm:$0x3]
      %s2819 = scalar_lea.vmem [#allocation4], 150
      %2820 = vst.msk [vmem:[%s2819] ss:$8 sm:$0x3] %vm2052, %v2818
      %2821 = vst.msk [vmem:[%s2819] ss:$8 sm:$0x0] %vm2052, %v2818
      %v2822 = vld [vmem:[%s2179] ss:$8 sm:$0x3]
      %2824 = vrot.lane.b32.xlu0 %v2822, 64
      %v2825 = vpop.permute.xlu0 %2824
      %v2826 = vrot.slane %v2825, 7
      %v2827 = vsel %vm2061, %v2826, %v2825
      %s2829 = scalar_lea.vmem [#allocation4], 158
      %2830 = vst.msk [vmem:[%s2829] ss:$8 sm:$0x3] %vm2066, %v2827
      %2831 = vst.msk [vmem:[%s2829] ss:$8 sm:$0x0] %vm2066, %v2827
      %v2832 = vld [vmem:[%s2184] ss:$8 sm:$0x3]
      %s2833 = scalar_lea.vmem [#allocation4], 174
      %2834 = vst.msk [vmem:[%s2833] ss:$8 sm:$0x3] %vm2052, %v2832
      %2835 = vst.msk [vmem:[%s2833] ss:$8 sm:$0x0] %vm2052, %v2832
      %v2836 = vld [vmem:[%s2258] ss:$8 sm:$0x3]
      %2838 = vrot.lane.b32.xlu0 %v2836, 64
      %v2839 = vpop.permute.xlu0 %2838
      %v2840 = vrot.slane %v2839, 7
      %v2841 = vsel %vm2061, %v2840, %v2839
      %s2843 = scalar_lea.vmem [#allocation4], 182
      %2844 = vst.msk [vmem:[%s2843] ss:$8 sm:$0x3] %vm2066, %v2841
      %2845 = vst.msk [vmem:[%s2843] ss:$8 sm:$0x0] %vm2066, %v2841
      %v2846 = vld [vmem:[%s2269] ss:$8 sm:$0x3]
      %s2847 = scalar_lea.vmem [#allocation4], 198
      %2848 = vst.msk [vmem:[%s2847] ss:$8 sm:$0x3] %vm2052, %v2846
      %2849 = vst.msk [vmem:[%s2847] ss:$8 sm:$0x0] %vm2052, %v2846
      %v2850 = vld [vmem:[%s2274] ss:$8 sm:$0x3]
      %2852 = vrot.lane.b32.xlu0 %v2850, 64
      %v2853 = vpop.permute.xlu0 %2852
      %v2854 = vrot.slane %v2853, 7
      %v2855 = vsel %vm2061, %v2854, %v2853
      %s2857 = scalar_lea.vmem [#allocation4], 206
      %2858 = vst.msk [vmem:[%s2857] ss:$8 sm:$0x3] %vm2066, %v2855
      %2859 = vst.msk [vmem:[%s2857] ss:$8 sm:$0x0] %vm2066, %v2855
      %v2860 = vld [vmem:[%s2213] ss:$8 sm:$0x3]
      %s2861 = scalar_lea.vmem [#allocation4], 151
      %2862 = vst.msk [vmem:[%s2861] ss:$8 sm:$0x3] %vm2052, %v2860
      %2863 = vst.msk [vmem:[%s2861] ss:$8 sm:$0x0] %vm2052, %v2860
      %v2864 = vld [vmem:[%s2224] ss:$8 sm:$0x3]
      %2866 = vrot.lane.b32.xlu0 %v2864, 64
      %v2867 = vpop.permute.xlu0 %2866
      %v2868 = vrot.slane %v2867, 7
      %v2869 = vsel %vm2061, %v2868, %v2867
      %s2871 = scalar_lea.vmem [#allocation4], 159
      %2872 = vst.msk [vmem:[%s2871] ss:$8 sm:$0x3] %vm2066, %v2869
      %2873 = vst.msk [vmem:[%s2871] ss:$8 sm:$0x0] %vm2066, %v2869
      %v2874 = vld [vmem:[%s2229] ss:$8 sm:$0x3]
      %s2875 = scalar_lea.vmem [#allocation4], 175
      %2876 = vst.msk [vmem:[%s2875] ss:$8 sm:$0x3] %vm2052, %v2874
      %2877 = vst.msk [vmem:[%s2875] ss:$8 sm:$0x0] %vm2052, %v2874
      %v2878 = vld [vmem:[%s2303] ss:$8 sm:$0x3]
      %2880 = vrot.lane.b32.xlu0 %v2878, 64
      %v2881 = vpop.permute.xlu0 %2880
      %v2882 = vrot.slane %v2881, 7
      %v2883 = vsel %vm2061, %v2882, %v2881
      %s2885 = scalar_lea.vmem [#allocation4], 183
      %2886 = vst.msk [vmem:[%s2885] ss:$8 sm:$0x3] %vm2066, %v2883
      %2887 = vst.msk [vmem:[%s2885] ss:$8 sm:$0x0] %vm2066, %v2883
      %v2888 = vld [vmem:[%s2314] ss:$8 sm:$0x3]
      %s2889 = scalar_lea.vmem [#allocation4], 199
      %2890 = vst.msk [vmem:[%s2889] ss:$8 sm:$0x3] %vm2052, %v2888
      %2891 = vst.msk [vmem:[%s2889] ss:$8 sm:$0x0] %vm2052, %v2888
      %v2892 = vld [vmem:[%s2319] ss:$8 sm:$0x3]
      %2894 = vrot.lane.b32.xlu0 %v2892, 64
      %v2895 = vpop.permute.xlu0 %2894
      %v2896 = vrot.slane %v2895, 7
      %v2897 = vsel %vm2061, %v2896, %v2895
      %s2899 = scalar_lea.vmem [#allocation4], 207
      %2900 = vst.msk [vmem:[%s2899] ss:$8 sm:$0x3] %vm2066, %v2897
      %2901 = vst.msk [vmem:[%s2899] ss:$8 sm:$0x0] %vm2066, %v2897
      %v2902 = vld [vmem:[%s2258] ss:$8 sm:$0x3]
      %s2903 = scalar_lea.vmem [#allocation4], 288
      %2904 = vst.msk [vmem:[%s2903] ss:$8 sm:$0x3] %vm2052, %v2902
      %2905 = vst.msk [vmem:[%s2903] ss:$8 sm:$0x0] %vm2052, %v2902
      %v2906 = vld [vmem:[%s2269] ss:$8 sm:$0x3]
      %2908 = vrot.lane.b32.xlu0 %v2906, 64
      %v2909 = vpop.permute.xlu0 %2908
      %v2910 = vrot.slane %v2909, 7
      %v2911 = vsel %vm2061, %v2910, %v2909
      %s2913 = scalar_lea.vmem [#allocation4], 296
      %2914 = vst.msk [vmem:[%s2913] ss:$8 sm:$0x3] %vm2066, %v2911
      %2915 = vst.msk [vmem:[%s2913] ss:$8 sm:$0x0] %vm2066, %v2911
      %v2916 = vld [vmem:[%s2274] ss:$8 sm:$0x3]
      %s2917 = scalar_lea.vmem [#allocation4], 312
      %2918 = vst.msk [vmem:[%s2917] ss:$8 sm:$0x3] %vm2052, %v2916
      %2919 = vst.msk [vmem:[%s2917] ss:$8 sm:$0x0] %vm2052, %v2916
      %v2920 = vld [vmem:[%s2348] ss:$8 sm:$0x3]
      %2922 = vrot.lane.b32.xlu0 %v2920, 64
      %v2923 = vpop.permute.xlu0 %2922
      %v2924 = vrot.slane %v2923, 7
      %v2925 = vsel %vm2061, %v2924, %v2923
      %s2927 = scalar_lea.vmem [#allocation4], 320
      %2928 = vst.msk [vmem:[%s2927] ss:$8 sm:$0x3] %vm2066, %v2925
      %2929 = vst.msk [vmem:[%s2927] ss:$8 sm:$0x0] %vm2066, %v2925
      %v2930 = vld [vmem:[%s2359] ss:$8 sm:$0x3]
      %s2931 = scalar_lea.vmem [#allocation4], 336
      %2932 = vst.msk [vmem:[%s2931] ss:$8 sm:$0x3] %vm2052, %v2930
      %2933 = vst.msk [vmem:[%s2931] ss:$8 sm:$0x0] %vm2052, %v2930
      %v2934 = vld [vmem:[%s2364] ss:$8 sm:$0x3]
      %2936 = vrot.lane.b32.xlu0 %v2934, 64
      %v2937 = vpop.permute.xlu0 %2936
      %v2938 = vrot.slane %v2937, 7
      %v2939 = vsel %vm2061, %v2938, %v2937
      %s2941 = scalar_lea.vmem [#allocation4], 344
      %2942 = vst.msk [vmem:[%s2941] ss:$8 sm:$0x3] %vm2066, %v2939
      %2943 = vst.msk [vmem:[%s2941] ss:$8 sm:$0x0] %vm2066, %v2939
      %v2944 = vld [vmem:[%s2303] ss:$8 sm:$0x3]
      %s2945 = scalar_lea.vmem [#allocation4], 289
      %2946 = vst.msk [vmem:[%s2945] ss:$8 sm:$0x3] %vm2052, %v2944
      %2947 = vst.msk [vmem:[%s2945] ss:$8 sm:$0x0] %vm2052, %v2944
      %v2948 = vld [vmem:[%s2314] ss:$8 sm:$0x3]
      %2950 = vrot.lane.b32.xlu0 %v2948, 64
      %v2951 = vpop.permute.xlu0 %2950
      %v2952 = vrot.slane %v2951, 7
      %v2953 = vsel %vm2061, %v2952, %v2951
      %s2955 = scalar_lea.vmem [#allocation4], 297
      %2956 = vst.msk [vmem:[%s2955] ss:$8 sm:$0x3] %vm2066, %v2953
      %2957 = vst.msk [vmem:[%s2955] ss:$8 sm:$0x0] %vm2066, %v2953
      %v2958 = vld [vmem:[%s2319] ss:$8 sm:$0x3]
      %s2959 = scalar_lea.vmem [#allocation4], 313
      %2960 = vst.msk [vmem:[%s2959] ss:$8 sm:$0x3] %vm2052, %v2958
      %2961 = vst.msk [vmem:[%s2959] ss:$8 sm:$0x0] %vm2052, %v2958
      %v2962 = vld [vmem:[%s2393] ss:$8 sm:$0x3]
      %2964 = vrot.lane.b32.xlu0 %v2962, 64
      %v2965 = vpop.permute.xlu0 %2964
      %v2966 = vrot.slane %v2965, 7
      %v2967 = vsel %vm2061, %v2966, %v2965
      %s2969 = scalar_lea.vmem [#allocation4], 321
      %2970 = vst.msk [vmem:[%s2969] ss:$8 sm:$0x3] %vm2066, %v2967
      %2971 = vst.msk [vmem:[%s2969] ss:$8 sm:$0x0] %vm2066, %v2967
      %v2972 = vld [vmem:[%s2404] ss:$8 sm:$0x3]
      %s2973 = scalar_lea.vmem [#allocation4], 337
      %2974 = vst.msk [vmem:[%s2973] ss:$8 sm:$0x3] %vm2052, %v2972
      %2975 = vst.msk [vmem:[%s2973] ss:$8 sm:$0x0] %vm2052, %v2972
      %v2976 = vld [vmem:[%s2409] ss:$8 sm:$0x3]
      %2978 = vrot.lane.b32.xlu0 %v2976, 64
      %v2979 = vpop.permute.xlu0 %2978
      %v2980 = vrot.slane %v2979, 7
      %v2981 = vsel %vm2061, %v2980, %v2979
      %s2983 = scalar_lea.vmem [#allocation4], 345
      %2984 = vst.msk [vmem:[%s2983] ss:$8 sm:$0x3] %vm2066, %v2981
      %2985 = vst.msk [vmem:[%s2983] ss:$8 sm:$0x0] %vm2066, %v2981
      %v2986 = vld [vmem:[%s2348] ss:$8 sm:$0x3]
      %s2987 = scalar_lea.vmem [#allocation4], 362
      %2988 = vst.msk [vmem:[%s2987] ss:$8 sm:$0x3] %vm2052, %v2986
      %2989 = vst.msk [vmem:[%s2987] ss:$8 sm:$0x0] %vm2052, %v2986
      %v2990 = vld [vmem:[%s2359] ss:$8 sm:$0x3]
      %2992 = vrot.lane.b32.xlu0 %v2990, 64
      %v2993 = vpop.permute.xlu0 %2992
      %v2994 = vrot.slane %v2993, 7
      %v2995 = vsel %vm2061, %v2994, %v2993
      %s2997 = scalar_lea.vmem [#allocation4], 370
      %2998 = vst.msk [vmem:[%s2997] ss:$8 sm:$0x3] %vm2066, %v2995
      %2999 = vst.msk [vmem:[%s2997] ss:$8 sm:$0x0] %vm2066, %v2995
      %v3000 = vld [vmem:[%s2364] ss:$8 sm:$0x3]
      %s3001 = scalar_lea.vmem [#allocation4], 386
      %3002 = vst.msk [vmem:[%s3001] ss:$8 sm:$0x3] %vm2052, %v3000
      %3003 = vst.msk [vmem:[%s3001] ss:$8 sm:$0x0] %vm2052, %v3000
      %v3004 = vld [vmem:[%s2438] ss:$8 sm:$0x3]
      %3006 = vrot.lane.b32.xlu0 %v3004, 64
      %v3007 = vpop.permute.xlu0 %3006
      %v3008 = vrot.slane %v3007, 7
      %v3009 = vsel %vm2061, %v3008, %v3007
      %s3011 = scalar_lea.vmem [#allocation4], 394
      %3012 = vst.msk [vmem:[%s3011] ss:$8 sm:$0x3] %vm2066, %v3009
      %3013 = vst.msk [vmem:[%s3011] ss:$8 sm:$0x0] %vm2066, %v3009
      %v3014 = vld [vmem:[%s2449] ss:$8 sm:$0x3]
      %s3015 = scalar_lea.vmem [#allocation4], 410
      %3016 = vst.msk [vmem:[%s3015] ss:$8 sm:$0x3] %vm2052, %v3014
      %3017 = vst.msk [vmem:[%s3015] ss:$8 sm:$0x0] %vm2052, %v3014
      %v3018 = vld [vmem:[%s2454] ss:$8 sm:$0x3]
      %3020 = vrot.lane.b32.xlu0 %v3018, 64
      %v3021 = vpop.permute.xlu0 %3020
      %v3022 = vrot.slane %v3021, 7
      %v3023 = vsel %vm2061, %v3022, %v3021
      %s3025 = scalar_lea.vmem [#allocation4], 418
      %3026 = vst.msk [vmem:[%s3025] ss:$8 sm:$0x3] %vm2066, %v3023
      %3027 = vst.msk [vmem:[%s3025] ss:$8 sm:$0x0] %vm2066, %v3023
      %v3028 = vld [vmem:[%s2393] ss:$8 sm:$0x3]
      %s3029 = scalar_lea.vmem [#allocation4], 363
      %3030 = vst.msk [vmem:[%s3029] ss:$8 sm:$0x3] %vm2052, %v3028
      %3031 = vst.msk [vmem:[%s3029] ss:$8 sm:$0x0] %vm2052, %v3028
      %v3032 = vld [vmem:[%s2404] ss:$8 sm:$0x3]
      %3034 = vrot.lane.b32.xlu0 %v3032, 64
      %v3035 = vpop.permute.xlu0 %3034
      %v3036 = vrot.slane %v3035, 7
      %v3037 = vsel %vm2061, %v3036, %v3035
      %s3039 = scalar_lea.vmem [#allocation4], 371
      %3040 = vst.msk [vmem:[%s3039] ss:$8 sm:$0x3] %vm2066, %v3037
      %3041 = vst.msk [vmem:[%s3039] ss:$8 sm:$0x0] %vm2066, %v3037
      %v3042 = vld [vmem:[%s2409] ss:$8 sm:$0x3]
      %s3043 = scalar_lea.vmem [#allocation4], 387
      %3044 = vst.msk [vmem:[%s3043] ss:$8 sm:$0x3] %vm2052, %v3042
      %3045 = vst.msk [vmem:[%s3043] ss:$8 sm:$0x0] %vm2052, %v3042
      %v3046 = vld [vmem:[%s2483] ss:$8 sm:$0x3]
      %3048 = vrot.lane.b32.xlu0 %v3046, 64
      %v3049 = vpop.permute.xlu0 %3048
      %v3050 = vrot.slane %v3049, 7
      %v3051 = vsel %vm2061, %v3050, %v3049
      %s3053 = scalar_lea.vmem [#allocation4], 395
      %3054 = vst.msk [vmem:[%s3053] ss:$8 sm:$0x3] %vm2066, %v3051
      %3055 = vst.msk [vmem:[%s3053] ss:$8 sm:$0x0] %vm2066, %v3051
      %v3056 = vld [vmem:[%s2494] ss:$8 sm:$0x3]
      %s3057 = scalar_lea.vmem [#allocation4], 411
      %3058 = vst.msk [vmem:[%s3057] ss:$8 sm:$0x3] %vm2052, %v3056
      %3059 = vst.msk [vmem:[%s3057] ss:$8 sm:$0x0] %vm2052, %v3056
      %v3060 = vld [vmem:[%s2499] ss:$8 sm:$0x3]
      %3062 = vrot.lane.b32.xlu0 %v3060, 64
      %v3063 = vpop.permute.xlu0 %3062
      %v3064 = vrot.slane %v3063, 7
      %v3065 = vsel %vm2061, %v3064, %v3063
      %s3067 = scalar_lea.vmem [#allocation4], 419
      %3068 = vst.msk [vmem:[%s3067] ss:$8 sm:$0x3] %vm2066, %v3065
      %3069 = vst.msk [vmem:[%s3067] ss:$8 sm:$0x0] %vm2066, %v3065
      %v3070 = vld [vmem:[#allocation2 + $0xd8] sm:$0xff]
      %v3071 = vld [vmem:[#allocation2 + $0xe0] sm:$0xff]
      %v3072 = vld [vmem:[#allocation2 + $0xe8] sm:$0xff]
      %v3073 = vld [vmem:[#allocation2 + $0xf0] sm:$0xff]
      %v3074 = vld [vmem:[#allocation2 + $0xf8] sm:$0xf]
      %3075 = vst.msk [vmem:[#allocation3] sm:$0xff] %vm1137, %v3070
      %3076 = vst.msk [vmem:[#allocation3 + $0x10] sm:$0xff] %vm1137, %v3071
      %3077 = vst.msk [vmem:[#allocation3 + $0x20] sm:$0xff] %vm1137, %v3072
      %3078 = vst.msk [vmem:[#allocation3 + $0x30] sm:$0xff] %vm1137, %v3073
      %3079 = vst.msk [vmem:[#allocation3 + $0x40] sm:$0xf] %vm1910, %v3074
      %v3080 = vld [vmem:[#allocation2 + $0xfc] sm:$0xff]
      %v3081 = vld [vmem:[#allocation2 + $0x104] sm:$0xff]
      %v3082 = vld [vmem:[#allocation2 + $0x10c] sm:$0xff]
      %v3083 = vld [vmem:[#allocation2 + $0x114] sm:$0xff]
      %v3084 = vld [vmem:[#allocation2 + $0x11c] sm:$0xf]
      %3090 = vrot.lane.b32.xlu0 %v3080, 32
      %v3091 = vpop.permute.xlu0 %3090
      %3092 = vrot.lane.b32.xlu0 %v3081, 32
      %v3093 = vpop.permute.xlu0 %3092
      %3094 = vrot.lane.b32.xlu0 %v3082, 32
      %v3095 = vpop.permute.xlu0 %3094
      %3096 = vrot.lane.b32.xlu0 %v3083, 32
      %v3097 = vpop.permute.xlu0 %3096
      %3098 = vrot.lane.b32.xlu0 %v3084, 32
      %v3099 = vpop.permute.xlu0 %3098
      %3105 = vst.msk [vmem:[#allocation3] sm:$0xff] %vm1937, %v3091
      %3106 = vst.msk [vmem:[#allocation3 + $0x10] sm:$0xff] %vm1937, %v3093
      %3107 = vst.msk [vmem:[#allocation3 + $0x20] sm:$0xff] %vm1937, %v3095
      %3108 = vst.msk [vmem:[#allocation3 + $0x30] sm:$0xff] %vm1937, %v3097
      %3109 = vst.msk [vmem:[#allocation3 + $0x40] sm:$0xf] %vm1942, %v3099
      %v3110 = vld [vmem:[#allocation2 + $0x120] sm:$0xff]
      %v3111 = vld [vmem:[#allocation2 + $0x128] sm:$0xff]
      %v3112 = vld [vmem:[#allocation2 + $0x130] sm:$0xff]
      %v3113 = vld [vmem:[#allocation2 + $0x138] sm:$0xff]
      %v3114 = vld [vmem:[#allocation2 + $0x140] sm:$0xf]
      %3120 = vrot.lane.b32.xlu0 %v3110, 64
      %v3121 = vpop.permute.xlu0 %3120
      %3122 = vrot.lane.b32.xlu0 %v3111, 64
      %v3123 = vpop.permute.xlu0 %3122
      %3124 = vrot.lane.b32.xlu0 %v3112, 64
      %v3125 = vpop.permute.xlu0 %3124
      %3126 = vrot.lane.b32.xlu0 %v3113, 64
      %v3127 = vpop.permute.xlu0 %3126
      %3128 = vrot.lane.b32.xlu0 %v3114, 64
      %v3129 = vpop.permute.xlu0 %3128
      %3135 = vst.msk [vmem:[#allocation3] sm:$0xff] %vm1969, %v3121
      %3136 = vst.msk [vmem:[#allocation3 + $0x10] sm:$0xff] %vm1969, %v3123
      %3137 = vst.msk [vmem:[#allocation3 + $0x20] sm:$0xff] %vm1969, %v3125
      %3138 = vst.msk [vmem:[#allocation3 + $0x30] sm:$0xff] %vm1969, %v3127
      %3139 = vst.msk [vmem:[#allocation3 + $0x40] sm:$0xf] %vm1974, %v3129
      %v3140 = vld [vmem:[#allocation2 + $0x144] sm:$0xff]
      %v3141 = vld [vmem:[#allocation2 + $0x14c] sm:$0xff]
      %v3142 = vld [vmem:[#allocation2 + $0x154] sm:$0xff]
      %v3143 = vld [vmem:[#allocation2 + $0x15c] sm:$0xff]
      %v3144 = vld [vmem:[#allocation2 + $0x164] sm:$0xf]
      %3150 = vrot.lane.b32.xlu0 %v3140, 96
      %v3151 = vpop.permute.xlu0 %3150
      %3152 = vrot.lane.b32.xlu0 %v3141, 96
      %v3153 = vpop.permute.xlu0 %3152
      %3154 = vrot.lane.b32.xlu0 %v3142, 96
      %v3155 = vpop.permute.xlu0 %3154
      %3156 = vrot.lane.b32.xlu0 %v3143, 96
      %v3157 = vpop.permute.xlu0 %3156
      %3158 = vrot.lane.b32.xlu0 %v3144, 96
      %v3159 = vpop.permute.xlu0 %3158
      %3165 = vst.msk [vmem:[#allocation3] sm:$0xff] %vm2001, %v3151
      %3166 = vst.msk [vmem:[#allocation3 + $0x10] sm:$0xff] %vm2001, %v3153
      %3167 = vst.msk [vmem:[#allocation3 + $0x20] sm:$0xff] %vm2001, %v3155
      %3168 = vst.msk [vmem:[#allocation3 + $0x30] sm:$0xff] %vm2001, %v3157
      %3169 = vst.msk [vmem:[#allocation3 + $0x40] sm:$0xf] %vm2006, %v3159
      %v3170 = vld [vmem:[#allocation2 + $0x168] sm:$0xff]
      %v3171 = vld [vmem:[#allocation2 + $0x170] sm:$0xff]
      %v3172 = vld [vmem:[#allocation2 + $0x178] sm:$0xff]
      %v3173 = vld [vmem:[#allocation2 + $0x180] sm:$0xff]
      %v3174 = vld [vmem:[#allocation2 + $0x188] sm:$0xf]
      %3175 = vst.msk [vmem:[#allocation3 + $0x8] sm:$0xff] %vm1137, %v3170
      %3176 = vst.msk [vmem:[#allocation3 + $0x18] sm:$0xff] %vm1137, %v3171
      %3177 = vst.msk [vmem:[#allocation3 + $0x28] sm:$0xff] %vm1137, %v3172
      %3178 = vst.msk [vmem:[#allocation3 + $0x38] sm:$0xff] %vm1137, %v3173
      %3179 = vst.msk [vmem:[#allocation3 + $0x48] sm:$0xf] %vm1910, %v3174
      %v3180 = vld [vmem:[#allocation2 + $0x18c] sm:$0xff]
      %v3181 = vld [vmem:[#allocation2 + $0x194] sm:$0xff]
      %v3182 = vld [vmem:[#allocation2 + $0x19c] sm:$0xff]
      %v3183 = vld [vmem:[#allocation2 + $0x1a4] sm:$0xff]
      %v3184 = vld [vmem:[#allocation2 + $0x1ac] sm:$0xf]
      %3190 = vrot.lane.b32.xlu0 %v3180, 32
      %v3191 = vpop.permute.xlu0 %3190
      %3192 = vrot.lane.b32.xlu0 %v3181, 32
      %v3193 = vpop.permute.xlu0 %3192
      %3194 = vrot.lane.b32.xlu0 %v3182, 32
      %v3195 = vpop.permute.xlu0 %3194
      %3196 = vrot.lane.b32.xlu0 %v3183, 32
      %v3197 = vpop.permute.xlu0 %3196
      %3198 = vrot.lane.b32.xlu0 %v3184, 32
      %v3199 = vpop.permute.xlu0 %3198
      %3205 = vst.msk [vmem:[#allocation3 + $0x8] sm:$0xff] %vm1937, %v3191
      %3206 = vst.msk [vmem:[#allocation3 + $0x18] sm:$0xff] %vm1937, %v3193
      %3207 = vst.msk [vmem:[#allocation3 + $0x28] sm:$0xff] %vm1937, %v3195
      %3208 = vst.msk [vmem:[#allocation3 + $0x38] sm:$0xff] %vm1937, %v3197
      %3209 = vst.msk [vmem:[#allocation3 + $0x48] sm:$0xf] %vm1942, %v3199
      %v3210 = vld [vmem:[#allocation3] ss:$8 sm:$0x3]
      %s3211 = scalar_lea.vmem [#allocation4], 4
      %3212 = vst.msk [vmem:[%s3211] ss:$8 sm:$0x3] %vm2052, %v3210
      %3213 = vst.msk [vmem:[%s3211] ss:$8 sm:$0x0] %vm2052, %v3210
      %v3214 = vld [vmem:[%s2055] ss:$8 sm:$0x3]
      %3216 = vrot.lane.b32.xlu0 %v3214, 64
      %v3217 = vpop.permute.xlu0 %3216
      %v3218 = vrot.slane %v3217, 7
      %v3219 = vsel %vm2061, %v3218, %v3217
      %s3221 = scalar_lea.vmem [#allocation4], 12
      %3222 = vst.msk [vmem:[%s3221] ss:$8 sm:$0x3] %vm2066, %v3219
      %3223 = vst.msk [vmem:[%s3221] ss:$8 sm:$0x0] %vm2066, %v3219
      %v3224 = vld [vmem:[%s2070] ss:$8 sm:$0x3]
      %s3225 = scalar_lea.vmem [#allocation4], 28
      %3226 = vst.msk [vmem:[%s3225] ss:$8 sm:$0x3] %vm2052, %v3224
      %3227 = vst.msk [vmem:[%s3225] ss:$8 sm:$0x0] %vm2052, %v3224
      %v3228 = vld [vmem:[%s2075] ss:$8 sm:$0x3]
      %3230 = vrot.lane.b32.xlu0 %v3228, 64
      %v3231 = vpop.permute.xlu0 %3230
      %v3232 = vrot.slane %v3231, 7
      %v3233 = vsel %vm2061, %v3232, %v3231
      %s3235 = scalar_lea.vmem [#allocation4], 36
      %3236 = vst.msk [vmem:[%s3235] ss:$8 sm:$0x3] %vm2066, %v3233
      %3237 = vst.msk [vmem:[%s3235] ss:$8 sm:$0x0] %vm2066, %v3233
      %v3238 = vld [vmem:[%s2086] ss:$8 sm:$0x3]
      %s3239 = scalar_lea.vmem [#allocation4], 52
      %3240 = vst.msk [vmem:[%s3239] ss:$8 sm:$0x3] %vm2052, %v3238
      %3241 = vst.msk [vmem:[%s3239] ss:$8 sm:$0x0] %vm2052, %v3238
      %v3242 = vld [vmem:[%s2091] ss:$8 sm:$0x3]
      %3244 = vrot.lane.b32.xlu0 %v3242, 64
      %v3245 = vpop.permute.xlu0 %3244
      %v3246 = vrot.slane %v3245, 7
      %v3247 = vsel %vm2061, %v3246, %v3245
      %s3249 = scalar_lea.vmem [#allocation4], 60
      %3250 = vst.msk [vmem:[%s3249] ss:$8 sm:$0x3] %vm2066, %v3247
      %3251 = vst.msk [vmem:[%s3249] ss:$8 sm:$0x0] %vm2066, %v3247
      %v3252 = vld [vmem:[%s2102] ss:$8 sm:$0x3]
      %s3253 = scalar_lea.vmem [#allocation4], 5
      %3254 = vst.msk [vmem:[%s3253] ss:$8 sm:$0x3] %vm2052, %v3252
      %3255 = vst.msk [vmem:[%s3253] ss:$8 sm:$0x0] %vm2052, %v3252
      %v3256 = vld [vmem:[%s2107] ss:$8 sm:$0x3]
      %3258 = vrot.lane.b32.xlu0 %v3256, 64
      %v3259 = vpop.permute.xlu0 %3258
      %v3260 = vrot.slane %v3259, 7
      %v3261 = vsel %vm2061, %v3260, %v3259
      %s3263 = scalar_lea.vmem [#allocation4], 13
      %3264 = vst.msk [vmem:[%s3263] ss:$8 sm:$0x3] %vm2066, %v3261
      %3265 = vst.msk [vmem:[%s3263] ss:$8 sm:$0x0] %vm2066, %v3261
      %v3266 = vld [vmem:[%s2118] ss:$8 sm:$0x3]
      %s3267 = scalar_lea.vmem [#allocation4], 29
      %3268 = vst.msk [vmem:[%s3267] ss:$8 sm:$0x3] %vm2052, %v3266
      %3269 = vst.msk [vmem:[%s3267] ss:$8 sm:$0x0] %vm2052, %v3266
      %v3270 = vld [vmem:[%s2123] ss:$8 sm:$0x3]
      %3272 = vrot.lane.b32.xlu0 %v3270, 64
      %v3273 = vpop.permute.xlu0 %3272
      %v3274 = vrot.slane %v3273, 7
      %v3275 = vsel %vm2061, %v3274, %v3273
      %s3277 = scalar_lea.vmem [#allocation4], 37
      %3278 = vst.msk [vmem:[%s3277] ss:$8 sm:$0x3] %vm2066, %v3275
      %3279 = vst.msk [vmem:[%s3277] ss:$8 sm:$0x0] %vm2066, %v3275
      %v3280 = vld [vmem:[%s2134] ss:$8 sm:$0x3]
      %s3281 = scalar_lea.vmem [#allocation4], 53
      %3282 = vst.msk [vmem:[%s3281] ss:$8 sm:$0x3] %vm2052, %v3280
      %3283 = vst.msk [vmem:[%s3281] ss:$8 sm:$0x0] %vm2052, %v3280
      %v3284 = vld [vmem:[%s2139] ss:$8 sm:$0x3]
      %3286 = vrot.lane.b32.xlu0 %v3284, 64
      %v3287 = vpop.permute.xlu0 %3286
      %v3288 = vrot.slane %v3287, 7
      %v3289 = vsel %vm2061, %v3288, %v3287
      %s3291 = scalar_lea.vmem [#allocation4], 61
      %3292 = vst.msk [vmem:[%s3291] ss:$8 sm:$0x3] %vm2066, %v3289
      %3293 = vst.msk [vmem:[%s3291] ss:$8 sm:$0x0] %vm2066, %v3289
      %v3294 = vld [vmem:[%s2075] ss:$8 sm:$0x3]
      %s3295 = scalar_lea.vmem [#allocation4], 78
      %3296 = vst.msk [vmem:[%s3295] ss:$8 sm:$0x3] %vm2052, %v3294
      %3297 = vst.msk [vmem:[%s3295] ss:$8 sm:$0x0] %vm2052, %v3294
      %v3298 = vld [vmem:[%s2086] ss:$8 sm:$0x3]
      %3300 = vrot.lane.b32.xlu0 %v3298, 64
      %v3301 = vpop.permute.xlu0 %3300
      %v3302 = vrot.slane %v3301, 7
      %v3303 = vsel %vm2061, %v3302, %v3301
      %s3305 = scalar_lea.vmem [#allocation4], 86
      %3306 = vst.msk [vmem:[%s3305] ss:$8 sm:$0x3] %vm2066, %v3303
      %3307 = vst.msk [vmem:[%s3305] ss:$8 sm:$0x0] %vm2066, %v3303
      %v3308 = vld [vmem:[%s2091] ss:$8 sm:$0x3]
      %s3309 = scalar_lea.vmem [#allocation4], 102
      %3310 = vst.msk [vmem:[%s3309] ss:$8 sm:$0x3] %vm2052, %v3308
      %3311 = vst.msk [vmem:[%s3309] ss:$8 sm:$0x0] %vm2052, %v3308
      %v3312 = vld [vmem:[%s2168] ss:$8 sm:$0x3]
      %3314 = vrot.lane.b32.xlu0 %v3312, 64
      %v3315 = vpop.permute.xlu0 %3314
      %v3316 = vrot.slane %v3315, 7
      %v3317 = vsel %vm2061, %v3316, %v3315
      %s3319 = scalar_lea.vmem [#allocation4], 110
      %3320 = vst.msk [vmem:[%s3319] ss:$8 sm:$0x3] %vm2066, %v3317
      %3321 = vst.msk [vmem:[%s3319] ss:$8 sm:$0x0] %vm2066, %v3317
      %v3322 = vld [vmem:[%s2179] ss:$8 sm:$0x3]
      %s3323 = scalar_lea.vmem [#allocation4], 126
      %3324 = vst.msk [vmem:[%s3323] ss:$8 sm:$0x3] %vm2052, %v3322
      %3325 = vst.msk [vmem:[%s3323] ss:$8 sm:$0x0] %vm2052, %v3322
      %v3326 = vld [vmem:[%s2184] ss:$8 sm:$0x3]
      %3328 = vrot.lane.b32.xlu0 %v3326, 64
      %v3329 = vpop.permute.xlu0 %3328
      %v3330 = vrot.slane %v3329, 7
      %v3331 = vsel %vm2061, %v3330, %v3329
      %s3333 = scalar_lea.vmem [#allocation4], 134
      %3334 = vst.msk [vmem:[%s3333] ss:$8 sm:$0x3] %vm2066, %v3331
      %3335 = vst.msk [vmem:[%s3333] ss:$8 sm:$0x0] %vm2066, %v3331
      %v3336 = vld [vmem:[%s2123] ss:$8 sm:$0x3]
      %s3337 = scalar_lea.vmem [#allocation4], 79
      %3338 = vst.msk [vmem:[%s3337] ss:$8 sm:$0x3] %vm2052, %v3336
      %3339 = vst.msk [vmem:[%s3337] ss:$8 sm:$0x0] %vm2052, %v3336
      %v3340 = vld [vmem:[%s2134] ss:$8 sm:$0x3]
      %3342 = vrot.lane.b32.xlu0 %v3340, 64
      %v3343 = vpop.permute.xlu0 %3342
      %v3344 = vrot.slane %v3343, 7
      %v3345 = vsel %vm2061, %v3344, %v3343
      %s3347 = scalar_lea.vmem [#allocation4], 87
      %3348 = vst.msk [vmem:[%s3347] ss:$8 sm:$0x3] %vm2066, %v3345
      %3349 = vst.msk [vmem:[%s3347] ss:$8 sm:$0x0] %vm2066, %v3345
      %v3350 = vld [vmem:[%s2139] ss:$8 sm:$0x3]
      %s3351 = scalar_lea.vmem [#allocation4], 103
      %3352 = vst.msk [vmem:[%s3351] ss:$8 sm:$0x3] %vm2052, %v3350
      %3353 = vst.msk [vmem:[%s3351] ss:$8 sm:$0x0] %vm2052, %v3350
      %v3354 = vld [vmem:[%s2213] ss:$8 sm:$0x3]
      %3356 = vrot.lane.b32.xlu0 %v3354, 64
      %v3357 = vpop.permute.xlu0 %3356
      %v3358 = vrot.slane %v3357, 7
      %v3359 = vsel %vm2061, %v3358, %v3357
      %s3361 = scalar_lea.vmem [#allocation4], 111
      %3362 = vst.msk [vmem:[%s3361] ss:$8 sm:$0x3] %vm2066, %v3359
      %3363 = vst.msk [vmem:[%s3361] ss:$8 sm:$0x0] %vm2066, %v3359
      %v3364 = vld [vmem:[%s2224] ss:$8 sm:$0x3]
      %s3365 = scalar_lea.vmem [#allocation4], 127
      %3366 = vst.msk [vmem:[%s3365] ss:$8 sm:$0x3] %vm2052, %v3364
      %3367 = vst.msk [vmem:[%s3365] ss:$8 sm:$0x0] %vm2052, %v3364
      %v3368 = vld [vmem:[%s2229] ss:$8 sm:$0x3]
      %3370 = vrot.lane.b32.xlu0 %v3368, 64
      %v3371 = vpop.permute.xlu0 %3370
      %v3372 = vrot.slane %v3371, 7
      %v3373 = vsel %vm2061, %v3372, %v3371
      %s3375 = scalar_lea.vmem [#allocation4], 135
      %3376 = vst.msk [vmem:[%s3375] ss:$8 sm:$0x3] %vm2066, %v3373
      %3377 = vst.msk [vmem:[%s3375] ss:$8 sm:$0x0] %vm2066, %v3373
      %v3378 = vld [vmem:[%s2168] ss:$8 sm:$0x3]
      %s3379 = scalar_lea.vmem [#allocation4], 216
      %3380 = vst.msk [vmem:[%s3379] ss:$8 sm:$0x3] %vm2052, %v3378
      %3381 = vst.msk [vmem:[%s3379] ss:$8 sm:$0x0] %vm2052, %v3378
      %v3382 = vld [vmem:[%s2179] ss:$8 sm:$0x3]
      %3384 = vrot.lane.b32.xlu0 %v3382, 64
      %v3385 = vpop.permute.xlu0 %3384
      %v3386 = vrot.slane %v3385, 7
      %v3387 = vsel %vm2061, %v3386, %v3385
      %s3389 = scalar_lea.vmem [#allocation4], 224
      %3390 = vst.msk [vmem:[%s3389] ss:$8 sm:$0x3] %vm2066, %v3387
      %3391 = vst.msk [vmem:[%s3389] ss:$8 sm:$0x0] %vm2066, %v3387
      %v3392 = vld [vmem:[%s2184] ss:$8 sm:$0x3]
      %s3393 = scalar_lea.vmem [#allocation4], 240
      %3394 = vst.msk [vmem:[%s3393] ss:$8 sm:$0x3] %vm2052, %v3392
      %3395 = vst.msk [vmem:[%s3393] ss:$8 sm:$0x0] %vm2052, %v3392
      %v3396 = vld [vmem:[%s2258] ss:$8 sm:$0x3]
      %3398 = vrot.lane.b32.xlu0 %v3396, 64
      %v3399 = vpop.permute.xlu0 %3398
      %v3400 = vrot.slane %v3399, 7
      %v3401 = vsel %vm2061, %v3400, %v3399
      %s3403 = scalar_lea.vmem [#allocation4], 248
      %3404 = vst.msk [vmem:[%s3403] ss:$8 sm:$0x3] %vm2066, %v3401
      %3405 = vst.msk [vmem:[%s3403] ss:$8 sm:$0x0] %vm2066, %v3401
      %v3406 = vld [vmem:[%s2269] ss:$8 sm:$0x3]
      %s3407 = scalar_lea.vmem [#allocation4], 264
      %3408 = vst.msk [vmem:[%s3407] ss:$8 sm:$0x3] %vm2052, %v3406
      %3409 = vst.msk [vmem:[%s3407] ss:$8 sm:$0x0] %vm2052, %v3406
      %v3410 = vld [vmem:[%s2274] ss:$8 sm:$0x3]
      %3412 = vrot.lane.b32.xlu0 %v3410, 64
      %v3413 = vpop.permute.xlu0 %3412
      %v3414 = vrot.slane %v3413, 7
      %v3415 = vsel %vm2061, %v3414, %v3413
      %s3417 = scalar_lea.vmem [#allocation4], 272
      %3418 = vst.msk [vmem:[%s3417] ss:$8 sm:$0x3] %vm2066, %v3415
      %3419 = vst.msk [vmem:[%s3417] ss:$8 sm:$0x0] %vm2066, %v3415
      %v3420 = vld [vmem:[%s2213] ss:$8 sm:$0x3]
      %s3421 = scalar_lea.vmem [#allocation4], 217
      %3422 = vst.msk [vmem:[%s3421] ss:$8 sm:$0x3] %vm2052, %v3420
      %3423 = vst.msk [vmem:[%s3421] ss:$8 sm:$0x0] %vm2052, %v3420
      %v3424 = vld [vmem:[%s2224] ss:$8 sm:$0x3]
      %3426 = vrot.lane.b32.xlu0 %v3424, 64
      %v3427 = vpop.permute.xlu0 %3426
      %v3428 = vrot.slane %v3427, 7
      %v3429 = vsel %vm2061, %v3428, %v3427
      %s3431 = scalar_lea.vmem [#allocation4], 225
      %3432 = vst.msk [vmem:[%s3431] ss:$8 sm:$0x3] %vm2066, %v3429
      %3433 = vst.msk [vmem:[%s3431] ss:$8 sm:$0x0] %vm2066, %v3429
      %v3434 = vld [vmem:[%s2229] ss:$8 sm:$0x3]
      %s3435 = scalar_lea.vmem [#allocation4], 241
      %3436 = vst.msk [vmem:[%s3435] ss:$8 sm:$0x3] %vm2052, %v3434
      %3437 = vst.msk [vmem:[%s3435] ss:$8 sm:$0x0] %vm2052, %v3434
      %v3438 = vld [vmem:[%s2303] ss:$8 sm:$0x3]
      %3440 = vrot.lane.b32.xlu0 %v3438, 64
      %v3441 = vpop.permute.xlu0 %3440
      %v3442 = vrot.slane %v3441, 7
      %v3443 = vsel %vm2061, %v3442, %v3441
      %s3445 = scalar_lea.vmem [#allocation4], 249
      %3446 = vst.msk [vmem:[%s3445] ss:$8 sm:$0x3] %vm2066, %v3443
      %3447 = vst.msk [vmem:[%s3445] ss:$8 sm:$0x0] %vm2066, %v3443
      %v3448 = vld [vmem:[%s2314] ss:$8 sm:$0x3]
      %s3449 = scalar_lea.vmem [#allocation4], 265
      %3450 = vst.msk [vmem:[%s3449] ss:$8 sm:$0x3] %vm2052, %v3448
      %3451 = vst.msk [vmem:[%s3449] ss:$8 sm:$0x0] %vm2052, %v3448
      %v3452 = vld [vmem:[%s2319] ss:$8 sm:$0x3]
      %3454 = vrot.lane.b32.xlu0 %v3452, 64
      %v3455 = vpop.permute.xlu0 %3454
      %v3456 = vrot.slane %v3455, 7
      %v3457 = vsel %vm2061, %v3456, %v3455
      %s3459 = scalar_lea.vmem [#allocation4], 273
      %3460 = vst.msk [vmem:[%s3459] ss:$8 sm:$0x3] %vm2066, %v3457
      %3461 = vst.msk [vmem:[%s3459] ss:$8 sm:$0x0] %vm2066, %v3457
      %v3462 = vld [vmem:[%s2258] ss:$8 sm:$0x3]
      %s3463 = scalar_lea.vmem [#allocation4], 290
      %3464 = vst.msk [vmem:[%s3463] ss:$8 sm:$0x3] %vm2052, %v3462
      %3465 = vst.msk [vmem:[%s3463] ss:$8 sm:$0x0] %vm2052, %v3462
      %v3466 = vld [vmem:[%s2269] ss:$8 sm:$0x3]
      %3468 = vrot.lane.b32.xlu0 %v3466, 64
      %v3469 = vpop.permute.xlu0 %3468
      %v3470 = vrot.slane %v3469, 7
      %v3471 = vsel %vm2061, %v3470, %v3469
      %s3473 = scalar_lea.vmem [#allocation4], 298
      %3474 = vst.msk [vmem:[%s3473] ss:$8 sm:$0x3] %vm2066, %v3471
      %3475 = vst.msk [vmem:[%s3473] ss:$8 sm:$0x0] %vm2066, %v3471
      %v3476 = vld [vmem:[%s2274] ss:$8 sm:$0x3]
      %s3477 = scalar_lea.vmem [#allocation4], 314
      %3478 = vst.msk [vmem:[%s3477] ss:$8 sm:$0x3] %vm2052, %v3476
      %3479 = vst.msk [vmem:[%s3477] ss:$8 sm:$0x0] %vm2052, %v3476
      %v3480 = vld [vmem:[%s2348] ss:$8 sm:$0x3]
      %3482 = vrot.lane.b32.xlu0 %v3480, 64
      %v3483 = vpop.permute.xlu0 %3482
      %v3484 = vrot.slane %v3483, 7
      %v3485 = vsel %vm2061, %v3484, %v3483
      %s3487 = scalar_lea.vmem [#allocation4], 322
      %3488 = vst.msk [vmem:[%s3487] ss:$8 sm:$0x3] %vm2066, %v3485
      %3489 = vst.msk [vmem:[%s3487] ss:$8 sm:$0x0] %vm2066, %v3485
      %v3490 = vld [vmem:[%s2359] ss:$8 sm:$0x3]
      %s3491 = scalar_lea.vmem [#allocation4], 338
      %3492 = vst.msk [vmem:[%s3491] ss:$8 sm:$0x3] %vm2052, %v3490
      %3493 = vst.msk [vmem:[%s3491] ss:$8 sm:$0x0] %vm2052, %v3490
      %v3494 = vld [vmem:[%s2364] ss:$8 sm:$0x3]
      %3496 = vrot.lane.b32.xlu0 %v3494, 64
      %v3497 = vpop.permute.xlu0 %3496
      %v3498 = vrot.slane %v3497, 7
      %v3499 = vsel %vm2061, %v3498, %v3497
      %s3501 = scalar_lea.vmem [#allocation4], 346
      %3502 = vst.msk [vmem:[%s3501] ss:$8 sm:$0x3] %vm2066, %v3499
      %3503 = vst.msk [vmem:[%s3501] ss:$8 sm:$0x0] %vm2066, %v3499
      %v3504 = vld [vmem:[%s2303] ss:$8 sm:$0x3]
      %s3505 = scalar_lea.vmem [#allocation4], 291
      %3506 = vst.msk [vmem:[%s3505] ss:$8 sm:$0x3] %vm2052, %v3504
      %3507 = vst.msk [vmem:[%s3505] ss:$8 sm:$0x0] %vm2052, %v3504
      %v3508 = vld [vmem:[%s2314] ss:$8 sm:$0x3]
      %3510 = vrot.lane.b32.xlu0 %v3508, 64
      %v3511 = vpop.permute.xlu0 %3510
      %v3512 = vrot.slane %v3511, 7
      %v3513 = vsel %vm2061, %v3512, %v3511
      %s3515 = scalar_lea.vmem [#allocation4], 299
      %3516 = vst.msk [vmem:[%s3515] ss:$8 sm:$0x3] %vm2066, %v3513
      %3517 = vst.msk [vmem:[%s3515] ss:$8 sm:$0x0] %vm2066, %v3513
      %v3518 = vld [vmem:[%s2319] ss:$8 sm:$0x3]
      %s3519 = scalar_lea.vmem [#allocation4], 315
      %3520 = vst.msk [vmem:[%s3519] ss:$8 sm:$0x3] %vm2052, %v3518
      %3521 = vst.msk [vmem:[%s3519] ss:$8 sm:$0x0] %vm2052, %v3518
      %v3522 = vld [vmem:[%s2393] ss:$8 sm:$0x3]
      %3524 = vrot.lane.b32.xlu0 %v3522, 64
      %v3525 = vpop.permute.xlu0 %3524
      %v3526 = vrot.slane %v3525, 7
      %v3527 = vsel %vm2061, %v3526, %v3525
      %s3529 = scalar_lea.vmem [#allocation4], 323
      %3530 = vst.msk [vmem:[%s3529] ss:$8 sm:$0x3] %vm2066, %v3527
      %3531 = vst.msk [vmem:[%s3529] ss:$8 sm:$0x0] %vm2066, %v3527
      %v3532 = vld [vmem:[%s2404] ss:$8 sm:$0x3]
      %s3533 = scalar_lea.vmem [#allocation4], 339
      %3534 = vst.msk [vmem:[%s3533] ss:$8 sm:$0x3] %vm2052, %v3532
      %3535 = vst.msk [vmem:[%s3533] ss:$8 sm:$0x0] %vm2052, %v3532
      %v3536 = vld [vmem:[%s2409] ss:$8 sm:$0x3]
      %3538 = vrot.lane.b32.xlu0 %v3536, 64
      %v3539 = vpop.permute.xlu0 %3538
      %v3540 = vrot.slane %v3539, 7
      %v3541 = vsel %vm2061, %v3540, %v3539
      %s3543 = scalar_lea.vmem [#allocation4], 347
      %3544 = vst.msk [vmem:[%s3543] ss:$8 sm:$0x3] %vm2066, %v3541
      %3545 = vst.msk [vmem:[%s3543] ss:$8 sm:$0x0] %vm2066, %v3541
      %v3546 = vld [vmem:[%s2348] ss:$8 sm:$0x3]
      %s3547 = scalar_lea.vmem [#allocation4], 364
      %3548 = vst.msk [vmem:[%s3547] ss:$8 sm:$0x3] %vm2052, %v3546
      %3549 = vst.msk [vmem:[%s3547] ss:$8 sm:$0x0] %vm2052, %v3546
      %v3550 = vld [vmem:[%s2359] ss:$8 sm:$0x3]
      %3552 = vrot.lane.b32.xlu0 %v3550, 64
      %v3553 = vpop.permute.xlu0 %3552
      %v3554 = vrot.slane %v3553, 7
      %v3555 = vsel %vm2061, %v3554, %v3553
      %s3557 = scalar_lea.vmem [#allocation4], 372
      %3558 = vst.msk [vmem:[%s3557] ss:$8 sm:$0x3] %vm2066, %v3555
      %3559 = vst.msk [vmem:[%s3557] ss:$8 sm:$0x0] %vm2066, %v3555
      %v3560 = vld [vmem:[%s2364] ss:$8 sm:$0x3]
      %s3561 = scalar_lea.vmem [#allocation4], 388
      %3562 = vst.msk [vmem:[%s3561] ss:$8 sm:$0x3] %vm2052, %v3560
      %3563 = vst.msk [vmem:[%s3561] ss:$8 sm:$0x0] %vm2052, %v3560
      %v3564 = vld [vmem:[%s2438] ss:$8 sm:$0x3]
      %3566 = vrot.lane.b32.xlu0 %v3564, 64
      %v3567 = vpop.permute.xlu0 %3566
      %v3568 = vrot.slane %v3567, 7
      %v3569 = vsel %vm2061, %v3568, %v3567
      %s3571 = scalar_lea.vmem [#allocation4], 396
      %3572 = vst.msk [vmem:[%s3571] ss:$8 sm:$0x3] %vm2066, %v3569
      %3573 = vst.msk [vmem:[%s3571] ss:$8 sm:$0x0] %vm2066, %v3569
      %v3574 = vld [vmem:[%s2449] ss:$8 sm:$0x3]
      %s3575 = scalar_lea.vmem [#allocation4], 412
      %3576 = vst.msk [vmem:[%s3575] ss:$8 sm:$0x3] %vm2052, %v3574
      %3577 = vst.msk [vmem:[%s3575] ss:$8 sm:$0x0] %vm2052, %v3574
      %v3578 = vld [vmem:[%s2454] ss:$8 sm:$0x3]
      %3580 = vrot.lane.b32.xlu0 %v3578, 64
      %v3581 = vpop.permute.xlu0 %3580
      %v3582 = vrot.slane %v3581, 7
      %v3583 = vsel %vm2061, %v3582, %v3581
      %s3585 = scalar_lea.vmem [#allocation4], 420
      %3586 = vst.msk [vmem:[%s3585] ss:$8 sm:$0x3] %vm2066, %v3583
      %3587 = vst.msk [vmem:[%s3585] ss:$8 sm:$0x0] %vm2066, %v3583
      %v3588 = vld [vmem:[%s2393] ss:$8 sm:$0x3]
      %s3589 = scalar_lea.vmem [#allocation4], 365
      %3590 = vst.msk [vmem:[%s3589] ss:$8 sm:$0x3] %vm2052, %v3588
      %3591 = vst.msk [vmem:[%s3589] ss:$8 sm:$0x0] %vm2052, %v3588
      %v3592 = vld [vmem:[%s2404] ss:$8 sm:$0x3]
      %3594 = vrot.lane.b32.xlu0 %v3592, 64
      %v3595 = vpop.permute.xlu0 %3594
      %v3596 = vrot.slane %v3595, 7
      %v3597 = vsel %vm2061, %v3596, %v3595
      %s3599 = scalar_lea.vmem [#allocation4], 373
      %3600 = vst.msk [vmem:[%s3599] ss:$8 sm:$0x3] %vm2066, %v3597
      %3601 = vst.msk [vmem:[%s3599] ss:$8 sm:$0x0] %vm2066, %v3597
      %v3602 = vld [vmem:[%s2409] ss:$8 sm:$0x3]
      %s3603 = scalar_lea.vmem [#allocation4], 389
      %3604 = vst.msk [vmem:[%s3603] ss:$8 sm:$0x3] %vm2052, %v3602
      %3605 = vst.msk [vmem:[%s3603] ss:$8 sm:$0x0] %vm2052, %v3602
      %v3606 = vld [vmem:[%s2483] ss:$8 sm:$0x3]
      %3608 = vrot.lane.b32.xlu0 %v3606, 64
      %v3609 = vpop.permute.xlu0 %3608
      %v3610 = vrot.slane %v3609, 7
      %v3611 = vsel %vm2061, %v3610, %v3609
      %s3613 = scalar_lea.vmem [#allocation4], 397
      %3614 = vst.msk [vmem:[%s3613] ss:$8 sm:$0x3] %vm2066, %v3611
      %3615 = vst.msk [vmem:[%s3613] ss:$8 sm:$0x0] %vm2066, %v3611
      %v3616 = vld [vmem:[%s2494] ss:$8 sm:$0x3]
      %s3617 = scalar_lea.vmem [#allocation4], 413
      %3618 = vst.msk [vmem:[%s3617] ss:$8 sm:$0x3] %vm2052, %v3616
      %3619 = vst.msk [vmem:[%s3617] ss:$8 sm:$0x0] %vm2052, %v3616
      %v3620 = vld [vmem:[%s2499] ss:$8 sm:$0x3]
      %3622 = vrot.lane.b32.xlu0 %v3620, 64
      %v3623 = vpop.permute.xlu0 %3622
      %v3624 = vrot.slane %v3623, 7
      %v3625 = vsel %vm2061, %v3624, %v3623
      %s3627 = scalar_lea.vmem [#allocation4], 421
      %3628 = vst.msk [vmem:[%s3627] ss:$8 sm:$0x3] %vm2066, %v3625
      %3629 = vst.msk [vmem:[%s3627] ss:$8 sm:$0x0] %vm2066, %v3625
      %v3630 = vld [vmem:[#allocation2 + $0x144] sm:$0xff]
      %v3631 = vld [vmem:[#allocation2 + $0x14c] sm:$0xff]
      %v3632 = vld [vmem:[#allocation2 + $0x154] sm:$0xff]
      %v3633 = vld [vmem:[#allocation2 + $0x15c] sm:$0xff]
      %v3634 = vld [vmem:[#allocation2 + $0x164] sm:$0xf]
      %3635 = vst.msk [vmem:[#allocation3] sm:$0xff] %vm1137, %v3630
      %3636 = vst.msk [vmem:[#allocation3 + $0x10] sm:$0xff] %vm1137, %v3631
      %3637 = vst.msk [vmem:[#allocation3 + $0x20] sm:$0xff] %vm1137, %v3632
      %3638 = vst.msk [vmem:[#allocation3 + $0x30] sm:$0xff] %vm1137, %v3633
      %3639 = vst.msk [vmem:[#allocation3 + $0x40] sm:$0xf] %vm1910, %v3634
      %v3640 = vld [vmem:[#allocation2 + $0x168] sm:$0xff]
      %v3641 = vld [vmem:[#allocation2 + $0x170] sm:$0xff]
      %v3642 = vld [vmem:[#allocation2 + $0x178] sm:$0xff]
      %v3643 = vld [vmem:[#allocation2 + $0x180] sm:$0xff]
      %v3644 = vld [vmem:[#allocation2 + $0x188] sm:$0xf]
      %3650 = vrot.lane.b32.xlu0 %v3640, 32
      %v3651 = vpop.permute.xlu0 %3650
      %3652 = vrot.lane.b32.xlu0 %v3641, 32
      %v3653 = vpop.permute.xlu0 %3652
      %3654 = vrot.lane.b32.xlu0 %v3642, 32
      %v3655 = vpop.permute.xlu0 %3654
      %3656 = vrot.lane.b32.xlu0 %v3643, 32
      %v3657 = vpop.permute.xlu0 %3656
      %3658 = vrot.lane.b32.xlu0 %v3644, 32
      %v3659 = vpop.permute.xlu0 %3658
      %3665 = vst.msk [vmem:[#allocation3] sm:$0xff] %vm1937, %v3651
      %3666 = vst.msk [vmem:[#allocation3 + $0x10] sm:$0xff] %vm1937, %v3653
      %3667 = vst.msk [vmem:[#allocation3 + $0x20] sm:$0xff] %vm1937, %v3655
      %3668 = vst.msk [vmem:[#allocation3 + $0x30] sm:$0xff] %vm1937, %v3657
      %3669 = vst.msk [vmem:[#allocation3 + $0x40] sm:$0xf] %vm1942, %v3659
      %v3670 = vld [vmem:[#allocation2 + $0x18c] sm:$0xff]
      %v3671 = vld [vmem:[#allocation2 + $0x194] sm:$0xff]
      %v3672 = vld [vmem:[#allocation2 + $0x19c] sm:$0xff]
      %v3673 = vld [vmem:[#allocation2 + $0x1a4] sm:$0xff]
      %v3674 = vld [vmem:[#allocation2 + $0x1ac] sm:$0xf]
      %3680 = vrot.lane.b32.xlu0 %v3670, 64
      %v3681 = vpop.permute.xlu0 %3680
      %3682 = vrot.lane.b32.xlu0 %v3671, 64
      %v3683 = vpop.permute.xlu0 %3682
      %3684 = vrot.lane.b32.xlu0 %v3672, 64
      %v3685 = vpop.permute.xlu0 %3684
      %3686 = vrot.lane.b32.xlu0 %v3673, 64
      %v3687 = vpop.permute.xlu0 %3686
      %3688 = vrot.lane.b32.xlu0 %v3674, 64
      %v3689 = vpop.permute.xlu0 %3688
      %3695 = vst.msk [vmem:[#allocation3] sm:$0xff] %vm1969, %v3681
      %3696 = vst.msk [vmem:[#allocation3 + $0x10] sm:$0xff] %vm1969, %v3683
      %3697 = vst.msk [vmem:[#allocation3 + $0x20] sm:$0xff] %vm1969, %v3685
      %3698 = vst.msk [vmem:[#allocation3 + $0x30] sm:$0xff] %vm1969, %v3687
      %3699 = vst.msk [vmem:[#allocation3 + $0x40] sm:$0xf] %vm1974, %v3689
      %v3700 = vld [vmem:[#allocation2 + $0x1b0] sm:$0xff]
      %v3701 = vld [vmem:[#allocation2 + $0x1b8] sm:$0xff]
      %v3702 = vld [vmem:[#allocation2 + $0x1c0] sm:$0xff]
      %v3703 = vld [vmem:[#allocation2 + $0x1c8] sm:$0xff]
      %v3704 = vld [vmem:[#allocation2 + $0x1d0] sm:$0xf]
      %3710 = vrot.lane.b32.xlu0 %v3700, 96
      %v3711 = vpop.permute.xlu0 %3710
      %3712 = vrot.lane.b32.xlu0 %v3701, 96
      %v3713 = vpop.permute.xlu0 %3712
      %3714 = vrot.lane.b32.xlu0 %v3702, 96
      %v3715 = vpop.permute.xlu0 %3714
      %3716 = vrot.lane.b32.xlu0 %v3703, 96
      %v3717 = vpop.permute.xlu0 %3716
      %3718 = vrot.lane.b32.xlu0 %v3704, 96
      %v3719 = vpop.permute.xlu0 %3718
      %3725 = vst.msk [vmem:[#allocation3] sm:$0xff] %vm2001, %v3711
      %3726 = vst.msk [vmem:[#allocation3 + $0x10] sm:$0xff] %vm2001, %v3713
      %3727 = vst.msk [vmem:[#allocation3 + $0x20] sm:$0xff] %vm2001, %v3715
      %3728 = vst.msk [vmem:[#allocation3 + $0x30] sm:$0xff] %vm2001, %v3717
      %3729 = vst.msk [vmem:[#allocation3 + $0x40] sm:$0xf] %vm2006, %v3719
      %v3730 = vld [vmem:[#allocation2 + $0x1d4] sm:$0xff]
      %v3731 = vld [vmem:[#allocation2 + $0x1dc] sm:$0xff]
      %v3732 = vld [vmem:[#allocation2 + $0x1e4] sm:$0xff]
      %v3733 = vld [vmem:[#allocation2 + $0x1ec] sm:$0xff]
      %v3734 = vld [vmem:[#allocation2 + $0x1f4] sm:$0xf]
      %3735 = vst.msk [vmem:[#allocation3 + $0x8] sm:$0xff] %vm1137, %v3730
      %3736 = vst.msk [vmem:[#allocation3 + $0x18] sm:$0xff] %vm1137, %v3731
      %3737 = vst.msk [vmem:[#allocation3 + $0x28] sm:$0xff] %vm1137, %v3732
      %3738 = vst.msk [vmem:[#allocation3 + $0x38] sm:$0xff] %vm1137, %v3733
      %3739 = vst.msk [vmem:[#allocation3 + $0x48] sm:$0xf] %vm1910, %v3734
      %v3740 = vld [vmem:[#allocation2 + $0x1f8] sm:$0xff]
      %v3741 = vld [vmem:[#allocation2 + $0x200] sm:$0xff]
      %v3742 = vld [vmem:[#allocation2 + $0x208] sm:$0xff]
      %v3743 = vld [vmem:[#allocation2 + $0x210] sm:$0xff]
      %v3744 = vld [vmem:[#allocation2 + $0x218] sm:$0xf]
      %3750 = vrot.lane.b32.xlu0 %v3740, 32
      %v3751 = vpop.permute.xlu0 %3750
      %3752 = vrot.lane.b32.xlu0 %v3741, 32
      %v3753 = vpop.permute.xlu0 %3752
      %3754 = vrot.lane.b32.xlu0 %v3742, 32
      %v3755 = vpop.permute.xlu0 %3754
      %3756 = vrot.lane.b32.xlu0 %v3743, 32
      %v3757 = vpop.permute.xlu0 %3756
      %3758 = vrot.lane.b32.xlu0 %v3744, 32
      %v3759 = vpop.permute.xlu0 %3758
      %3765 = vst.msk [vmem:[#allocation3 + $0x8] sm:$0xff] %vm1937, %v3751
      %3766 = vst.msk [vmem:[#allocation3 + $0x18] sm:$0xff] %vm1937, %v3753
      %3767 = vst.msk [vmem:[#allocation3 + $0x28] sm:$0xff] %vm1937, %v3755
      %3768 = vst.msk [vmem:[#allocation3 + $0x38] sm:$0xff] %vm1937, %v3757
      %3769 = vst.msk [vmem:[#allocation3 + $0x48] sm:$0xf] %vm1942, %v3759
      %v3770 = vld [vmem:[#allocation3] ss:$8 sm:$0x3]
      %s3771 = scalar_lea.vmem [#allocation4], 6
      %3772 = vst.msk [vmem:[%s3771] ss:$8 sm:$0x3] %vm2052, %v3770
      %3773 = vst.msk [vmem:[%s3771] ss:$8 sm:$0x0] %vm2052, %v3770
      %v3774 = vld [vmem:[%s2055] ss:$8 sm:$0x3]
      %3776 = vrot.lane.b32.xlu0 %v3774, 64
      %v3777 = vpop.permute.xlu0 %3776
      %v3778 = vrot.slane %v3777, 7
      %v3779 = vsel %vm2061, %v3778, %v3777
      %s3781 = scalar_lea.vmem [#allocation4], 14
      %3782 = vst.msk [vmem:[%s3781] ss:$8 sm:$0x3] %vm2066, %v3779
      %3783 = vst.msk [vmem:[%s3781] ss:$8 sm:$0x0] %vm2066, %v3779
      %v3784 = vld [vmem:[%s2070] ss:$8 sm:$0x3]
      %s3785 = scalar_lea.vmem [#allocation4], 30
      %3786 = vst.msk [vmem:[%s3785] ss:$8 sm:$0x3] %vm2052, %v3784
      %3787 = vst.msk [vmem:[%s3785] ss:$8 sm:$0x0] %vm2052, %v3784
      %v3788 = vld [vmem:[%s2075] ss:$8 sm:$0x3]
      %3790 = vrot.lane.b32.xlu0 %v3788, 64
      %v3791 = vpop.permute.xlu0 %3790
      %v3792 = vrot.slane %v3791, 7
      %v3793 = vsel %vm2061, %v3792, %v3791
      %s3795 = scalar_lea.vmem [#allocation4], 38
      %3796 = vst.msk [vmem:[%s3795] ss:$8 sm:$0x3] %vm2066, %v3793
      %3797 = vst.msk [vmem:[%s3795] ss:$8 sm:$0x0] %vm2066, %v3793
      %v3798 = vld [vmem:[%s2086] ss:$8 sm:$0x3]
      %s3799 = scalar_lea.vmem [#allocation4], 54
      %3800 = vst.msk [vmem:[%s3799] ss:$8 sm:$0x3] %vm2052, %v3798
      %3801 = vst.msk [vmem:[%s3799] ss:$8 sm:$0x0] %vm2052, %v3798
      %v3802 = vld [vmem:[%s2091] ss:$8 sm:$0x3]
      %3804 = vrot.lane.b32.xlu0 %v3802, 64
      %v3805 = vpop.permute.xlu0 %3804
      %v3806 = vrot.slane %v3805, 7
      %v3807 = vsel %vm2061, %v3806, %v3805
      %s3809 = scalar_lea.vmem [#allocation4], 62
      %3810 = vst.msk [vmem:[%s3809] ss:$8 sm:$0x3] %vm2066, %v3807
      %3811 = vst.msk [vmem:[%s3809] ss:$8 sm:$0x0] %vm2066, %v3807
      %v3812 = vld [vmem:[%s2102] ss:$8 sm:$0x3]
      %s3813 = scalar_lea.vmem [#allocation4], 7
      %3814 = vst.msk [vmem:[%s3813] ss:$8 sm:$0x3] %vm2052, %v3812
      %3815 = vst.msk [vmem:[%s3813] ss:$8 sm:$0x0] %vm2052, %v3812
      %v3816 = vld [vmem:[%s2107] ss:$8 sm:$0x3]
      %3818 = vrot.lane.b32.xlu0 %v3816, 64
      %v3819 = vpop.permute.xlu0 %3818
      %v3820 = vrot.slane %v3819, 7
      %v3821 = vsel %vm2061, %v3820, %v3819
      %s3823 = scalar_lea.vmem [#allocation4], 15
      %3824 = vst.msk [vmem:[%s3823] ss:$8 sm:$0x3] %vm2066, %v3821
      %3825 = vst.msk [vmem:[%s3823] ss:$8 sm:$0x0] %vm2066, %v3821
      %v3826 = vld [vmem:[%s2118] ss:$8 sm:$0x3]
      %s3827 = scalar_lea.vmem [#allocation4], 31
      %3828 = vst.msk [vmem:[%s3827] ss:$8 sm:$0x3] %vm2052, %v3826
      %3829 = vst.msk [vmem:[%s3827] ss:$8 sm:$0x0] %vm2052, %v3826
      %v3830 = vld [vmem:[%s2123] ss:$8 sm:$0x3]
      %3832 = vrot.lane.b32.xlu0 %v3830, 64
      %v3833 = vpop.permute.xlu0 %3832
      %v3834 = vrot.slane %v3833, 7
      %v3835 = vsel %vm2061, %v3834, %v3833
      %s3837 = scalar_lea.vmem [#allocation4], 39
      %3838 = vst.msk [vmem:[%s3837] ss:$8 sm:$0x3] %vm2066, %v3835
      %3839 = vst.msk [vmem:[%s3837] ss:$8 sm:$0x0] %vm2066, %v3835
      %v3840 = vld [vmem:[%s2134] ss:$8 sm:$0x3]
      %s3841 = scalar_lea.vmem [#allocation4], 55
      %3842 = vst.msk [vmem:[%s3841] ss:$8 sm:$0x3] %vm2052, %v3840
      %3843 = vst.msk [vmem:[%s3841] ss:$8 sm:$0x0] %vm2052, %v3840
      %v3844 = vld [vmem:[%s2139] ss:$8 sm:$0x3]
      %3846 = vrot.lane.b32.xlu0 %v3844, 64
      %v3847 = vpop.permute.xlu0 %3846
      %v3848 = vrot.slane %v3847, 7
      %v3849 = vsel %vm2061, %v3848, %v3847
      %s3851 = scalar_lea.vmem [#allocation4], 63
      %3852 = vst.msk [vmem:[%s3851] ss:$8 sm:$0x3] %vm2066, %v3849
      %3853 = vst.msk [vmem:[%s3851] ss:$8 sm:$0x0] %vm2066, %v3849
      %v3854 = vld [vmem:[%s2075] ss:$8 sm:$0x3]
      %s3855 = scalar_lea.vmem [#allocation4], 144
      %3856 = vst.msk [vmem:[%s3855] ss:$8 sm:$0x3] %vm2052, %v3854
      %3857 = vst.msk [vmem:[%s3855] ss:$8 sm:$0x0] %vm2052, %v3854
      %v3858 = vld [vmem:[%s2086] ss:$8 sm:$0x3]
      %3860 = vrot.lane.b32.xlu0 %v3858, 64
      %v3861 = vpop.permute.xlu0 %3860
      %v3862 = vrot.slane %v3861, 7
      %v3863 = vsel %vm2061, %v3862, %v3861
      %s3865 = scalar_lea.vmem [#allocation4], 152
      %3866 = vst.msk [vmem:[%s3865] ss:$8 sm:$0x3] %vm2066, %v3863
      %3867 = vst.msk [vmem:[%s3865] ss:$8 sm:$0x0] %vm2066, %v3863
      %v3868 = vld [vmem:[%s2091] ss:$8 sm:$0x3]
      %s3869 = scalar_lea.vmem [#allocation4], 168
      %3870 = vst.msk [vmem:[%s3869] ss:$8 sm:$0x3] %vm2052, %v3868
      %3871 = vst.msk [vmem:[%s3869] ss:$8 sm:$0x0] %vm2052, %v3868
      %v3872 = vld [vmem:[%s2168] ss:$8 sm:$0x3]
      %3874 = vrot.lane.b32.xlu0 %v3872, 64
      %v3875 = vpop.permute.xlu0 %3874
      %v3876 = vrot.slane %v3875, 7
      %v3877 = vsel %vm2061, %v3876, %v3875
      %s3879 = scalar_lea.vmem [#allocation4], 176
      %3880 = vst.msk [vmem:[%s3879] ss:$8 sm:$0x3] %vm2066, %v3877
      %3881 = vst.msk [vmem:[%s3879] ss:$8 sm:$0x0] %vm2066, %v3877
      %v3882 = vld [vmem:[%s2179] ss:$8 sm:$0x3]
      %s3883 = scalar_lea.vmem [#allocation4], 192
      %3884 = vst.msk [vmem:[%s3883] ss:$8 sm:$0x3] %vm2052, %v3882
      %3885 = vst.msk [vmem:[%s3883] ss:$8 sm:$0x0] %vm2052, %v3882
      %v3886 = vld [vmem:[%s2184] ss:$8 sm:$0x3]
      %3888 = vrot.lane.b32.xlu0 %v3886, 64
      %v3889 = vpop.permute.xlu0 %3888
      %v3890 = vrot.slane %v3889, 7
      %v3891 = vsel %vm2061, %v3890, %v3889
      %s3893 = scalar_lea.vmem [#allocation4], 200
      %3894 = vst.msk [vmem:[%s3893] ss:$8 sm:$0x3] %vm2066, %v3891
      %3895 = vst.msk [vmem:[%s3893] ss:$8 sm:$0x0] %vm2066, %v3891
      %v3896 = vld [vmem:[%s2123] ss:$8 sm:$0x3]
      %s3897 = scalar_lea.vmem [#allocation4], 145
      %3898 = vst.msk [vmem:[%s3897] ss:$8 sm:$0x3] %vm2052, %v3896
      %3899 = vst.msk [vmem:[%s3897] ss:$8 sm:$0x0] %vm2052, %v3896
      %v3900 = vld [vmem:[%s2134] ss:$8 sm:$0x3]
      %3902 = vrot.lane.b32.xlu0 %v3900, 64
      %v3903 = vpop.permute.xlu0 %3902
      %v3904 = vrot.slane %v3903, 7
      %v3905 = vsel %vm2061, %v3904, %v3903
      %s3907 = scalar_lea.vmem [#allocation4], 153
      %3908 = vst.msk [vmem:[%s3907] ss:$8 sm:$0x3] %vm2066, %v3905
      %3909 = vst.msk [vmem:[%s3907] ss:$8 sm:$0x0] %vm2066, %v3905
      %v3910 = vld [vmem:[%s2139] ss:$8 sm:$0x3]
      %s3911 = scalar_lea.vmem [#allocation4], 169
      %3912 = vst.msk [vmem:[%s3911] ss:$8 sm:$0x3] %vm2052, %v3910
      %3913 = vst.msk [vmem:[%s3911] ss:$8 sm:$0x0] %vm2052, %v3910
      %v3914 = vld [vmem:[%s2213] ss:$8 sm:$0x3]
      %3916 = vrot.lane.b32.xlu0 %v3914, 64
      %v3917 = vpop.permute.xlu0 %3916
      %v3918 = vrot.slane %v3917, 7
      %v3919 = vsel %vm2061, %v3918, %v3917
      %s3921 = scalar_lea.vmem [#allocation4], 177
      %3922 = vst.msk [vmem:[%s3921] ss:$8 sm:$0x3] %vm2066, %v3919
      %3923 = vst.msk [vmem:[%s3921] ss:$8 sm:$0x0] %vm2066, %v3919
      %v3924 = vld [vmem:[%s2224] ss:$8 sm:$0x3]
      %s3925 = scalar_lea.vmem [#allocation4], 193
      %3926 = vst.msk [vmem:[%s3925] ss:$8 sm:$0x3] %vm2052, %v3924
      %3927 = vst.msk [vmem:[%s3925] ss:$8 sm:$0x0] %vm2052, %v3924
      %v3928 = vld [vmem:[%s2229] ss:$8 sm:$0x3]
      %3930 = vrot.lane.b32.xlu0 %v3928, 64
      %v3931 = vpop.permute.xlu0 %3930
      %v3932 = vrot.slane %v3931, 7
      %v3933 = vsel %vm2061, %v3932, %v3931
      %s3935 = scalar_lea.vmem [#allocation4], 201
      %3936 = vst.msk [vmem:[%s3935] ss:$8 sm:$0x3] %vm2066, %v3933
      %3937 = vst.msk [vmem:[%s3935] ss:$8 sm:$0x0] %vm2066, %v3933
      %v3938 = vld [vmem:[%s2168] ss:$8 sm:$0x3]
      %s3939 = scalar_lea.vmem [#allocation4], 218
      %3940 = vst.msk [vmem:[%s3939] ss:$8 sm:$0x3] %vm2052, %v3938
      %3941 = vst.msk [vmem:[%s3939] ss:$8 sm:$0x0] %vm2052, %v3938
      %v3942 = vld [vmem:[%s2179] ss:$8 sm:$0x3]
      %3944 = vrot.lane.b32.xlu0 %v3942, 64
      %v3945 = vpop.permute.xlu0 %3944
      %v3946 = vrot.slane %v3945, 7
      %v3947 = vsel %vm2061, %v3946, %v3945
      %s3949 = scalar_lea.vmem [#allocation4], 226
      %3950 = vst.msk [vmem:[%s3949] ss:$8 sm:$0x3] %vm2066, %v3947
      %3951 = vst.msk [vmem:[%s3949] ss:$8 sm:$0x0] %vm2066, %v3947
      %v3952 = vld [vmem:[%s2184] ss:$8 sm:$0x3]
      %s3953 = scalar_lea.vmem [#allocation4], 242
      %3954 = vst.msk [vmem:[%s3953] ss:$8 sm:$0x3] %vm2052, %v3952
      %3955 = vst.msk [vmem:[%s3953] ss:$8 sm:$0x0] %vm2052, %v3952
      %v3956 = vld [vmem:[%s2258] ss:$8 sm:$0x3]
      %3958 = vrot.lane.b32.xlu0 %v3956, 64
      %v3959 = vpop.permute.xlu0 %3958
      %v3960 = vrot.slane %v3959, 7
      %v3961 = vsel %vm2061, %v3960, %v3959
      %s3963 = scalar_lea.vmem [#allocation4], 250
      %3964 = vst.msk [vmem:[%s3963] ss:$8 sm:$0x3] %vm2066, %v3961
      %3965 = vst.msk [vmem:[%s3963] ss:$8 sm:$0x0] %vm2066, %v3961
      %v3966 = vld [vmem:[%s2269] ss:$8 sm:$0x3]
      %s3967 = scalar_lea.vmem [#allocation4], 266
      %3968 = vst.msk [vmem:[%s3967] ss:$8 sm:$0x3] %vm2052, %v3966
      %3969 = vst.msk [vmem:[%s3967] ss:$8 sm:$0x0] %vm2052, %v3966
      %v3970 = vld [vmem:[%s2274] ss:$8 sm:$0x3]
      %3972 = vrot.lane.b32.xlu0 %v3970, 64
      %v3973 = vpop.permute.xlu0 %3972
      %v3974 = vrot.slane %v3973, 7
      %v3975 = vsel %vm2061, %v3974, %v3973
      %s3977 = scalar_lea.vmem [#allocation4], 274
      %3978 = vst.msk [vmem:[%s3977] ss:$8 sm:$0x3] %vm2066, %v3975
      %3979 = vst.msk [vmem:[%s3977] ss:$8 sm:$0x0] %vm2066, %v3975
      %v3980 = vld [vmem:[%s2213] ss:$8 sm:$0x3]
      %s3981 = scalar_lea.vmem [#allocation4], 219
      %3982 = vst.msk [vmem:[%s3981] ss:$8 sm:$0x3] %vm2052, %v3980
      %3983 = vst.msk [vmem:[%s3981] ss:$8 sm:$0x0] %vm2052, %v3980
      %v3984 = vld [vmem:[%s2224] ss:$8 sm:$0x3]
      %3986 = vrot.lane.b32.xlu0 %v3984, 64
      %v3987 = vpop.permute.xlu0 %3986
      %v3988 = vrot.slane %v3987, 7
      %v3989 = vsel %vm2061, %v3988, %v3987
      %s3991 = scalar_lea.vmem [#allocation4], 227
      %3992 = vst.msk [vmem:[%s3991] ss:$8 sm:$0x3] %vm2066, %v3989
      %3993 = vst.msk [vmem:[%s3991] ss:$8 sm:$0x0] %vm2066, %v3989
      %v3994 = vld [vmem:[%s2229] ss:$8 sm:$0x3]
      %s3995 = scalar_lea.vmem [#allocation4], 243
      %3996 = vst.msk [vmem:[%s3995] ss:$8 sm:$0x3] %vm2052, %v3994
      %3997 = vst.msk [vmem:[%s3995] ss:$8 sm:$0x0] %vm2052, %v3994
      %v3998 = vld [vmem:[%s2303] ss:$8 sm:$0x3]
      %4000 = vrot.lane.b32.xlu0 %v3998, 64
      %v4001 = vpop.permute.xlu0 %4000
      %v4002 = vrot.slane %v4001, 7
      %v4003 = vsel %vm2061, %v4002, %v4001
      %s4005 = scalar_lea.vmem [#allocation4], 251
      %4006 = vst.msk [vmem:[%s4005] ss:$8 sm:$0x3] %vm2066, %v4003
      %4007 = vst.msk [vmem:[%s4005] ss:$8 sm:$0x0] %vm2066, %v4003
      %v4008 = vld [vmem:[%s2314] ss:$8 sm:$0x3]
      %s4009 = scalar_lea.vmem [#allocation4], 267
      %4010 = vst.msk [vmem:[%s4009] ss:$8 sm:$0x3] %vm2052, %v4008
      %4011 = vst.msk [vmem:[%s4009] ss:$8 sm:$0x0] %vm2052, %v4008
      %v4012 = vld [vmem:[%s2319] ss:$8 sm:$0x3]
      %4014 = vrot.lane.b32.xlu0 %v4012, 64
      %v4015 = vpop.permute.xlu0 %4014
      %v4016 = vrot.slane %v4015, 7
      %v4017 = vsel %vm2061, %v4016, %v4015
      %s4019 = scalar_lea.vmem [#allocation4], 275
      %4020 = vst.msk [vmem:[%s4019] ss:$8 sm:$0x3] %vm2066, %v4017
      %4021 = vst.msk [vmem:[%s4019] ss:$8 sm:$0x0] %vm2066, %v4017
      %v4022 = vld [vmem:[%s2258] ss:$8 sm:$0x3]
      %s4023 = scalar_lea.vmem [#allocation4], 292
      %4024 = vst.msk [vmem:[%s4023] ss:$8 sm:$0x3] %vm2052, %v4022
      %4025 = vst.msk [vmem:[%s4023] ss:$8 sm:$0x0] %vm2052, %v4022
      %v4026 = vld [vmem:[%s2269] ss:$8 sm:$0x3]
      %4028 = vrot.lane.b32.xlu0 %v4026, 64
      %v4029 = vpop.permute.xlu0 %4028
      %v4030 = vrot.slane %v4029, 7
      %v4031 = vsel %vm2061, %v4030, %v4029
      %s4033 = scalar_lea.vmem [#allocation4], 300
      %4034 = vst.msk [vmem:[%s4033] ss:$8 sm:$0x3] %vm2066, %v4031
      %4035 = vst.msk [vmem:[%s4033] ss:$8 sm:$0x0] %vm2066, %v4031
      %v4036 = vld [vmem:[%s2274] ss:$8 sm:$0x3]
      %s4037 = scalar_lea.vmem [#allocation4], 316
      %4038 = vst.msk [vmem:[%s4037] ss:$8 sm:$0x3] %vm2052, %v4036
      %4039 = vst.msk [vmem:[%s4037] ss:$8 sm:$0x0] %vm2052, %v4036
      %v4040 = vld [vmem:[%s2348] ss:$8 sm:$0x3]
      %4042 = vrot.lane.b32.xlu0 %v4040, 64
      %v4043 = vpop.permute.xlu0 %4042
      %v4044 = vrot.slane %v4043, 7
      %v4045 = vsel %vm2061, %v4044, %v4043
      %s4047 = scalar_lea.vmem [#allocation4], 324
      %4048 = vst.msk [vmem:[%s4047] ss:$8 sm:$0x3] %vm2066, %v4045
      %4049 = vst.msk [vmem:[%s4047] ss:$8 sm:$0x0] %vm2066, %v4045
      %v4050 = vld [vmem:[%s2359] ss:$8 sm:$0x3]
      %s4051 = scalar_lea.vmem [#allocation4], 340
      %4052 = vst.msk [vmem:[%s4051] ss:$8 sm:$0x3] %vm2052, %v4050
      %4053 = vst.msk [vmem:[%s4051] ss:$8 sm:$0x0] %vm2052, %v4050
      %v4054 = vld [vmem:[%s2364] ss:$8 sm:$0x3]
      %4056 = vrot.lane.b32.xlu0 %v4054, 64
      %v4057 = vpop.permute.xlu0 %4056
      %v4058 = vrot.slane %v4057, 7
      %v4059 = vsel %vm2061, %v4058, %v4057
      %s4061 = scalar_lea.vmem [#allocation4], 348
      %4062 = vst.msk [vmem:[%s4061] ss:$8 sm:$0x3] %vm2066, %v4059
      %4063 = vst.msk [vmem:[%s4061] ss:$8 sm:$0x0] %vm2066, %v4059
      %v4064 = vld [vmem:[%s2303] ss:$8 sm:$0x3]
      %s4065 = scalar_lea.vmem [#allocation4], 293
      %4066 = vst.msk [vmem:[%s4065] ss:$8 sm:$0x3] %vm2052, %v4064
      %4067 = vst.msk [vmem:[%s4065] ss:$8 sm:$0x0] %vm2052, %v4064
      %v4068 = vld [vmem:[%s2314] ss:$8 sm:$0x3]
      %4070 = vrot.lane.b32.xlu0 %v4068, 64
      %v4071 = vpop.permute.xlu0 %4070
      %v4072 = vrot.slane %v4071, 7
      %v4073 = vsel %vm2061, %v4072, %v4071
      %s4075 = scalar_lea.vmem [#allocation4], 301
      %4076 = vst.msk [vmem:[%s4075] ss:$8 sm:$0x3] %vm2066, %v4073
      %4077 = vst.msk [vmem:[%s4075] ss:$8 sm:$0x0] %vm2066, %v4073
      %v4078 = vld [vmem:[%s2319] ss:$8 sm:$0x3]
      %s4079 = scalar_lea.vmem [#allocation4], 317
      %4080 = vst.msk [vmem:[%s4079] ss:$8 sm:$0x3] %vm2052, %v4078
      %4081 = vst.msk [vmem:[%s4079] ss:$8 sm:$0x0] %vm2052, %v4078
      %v4082 = vld [vmem:[%s2393] ss:$8 sm:$0x3]
      %4084 = vrot.lane.b32.xlu0 %v4082, 64
      %v4085 = vpop.permute.xlu0 %4084
      %v4086 = vrot.slane %v4085, 7
      %v4087 = vsel %vm2061, %v4086, %v4085
      %s4089 = scalar_lea.vmem [#allocation4], 325
      %4090 = vst.msk [vmem:[%s4089] ss:$8 sm:$0x3] %vm2066, %v4087
      %4091 = vst.msk [vmem:[%s4089] ss:$8 sm:$0x0] %vm2066, %v4087
      %v4092 = vld [vmem:[%s2404] ss:$8 sm:$0x3]
      %s4093 = scalar_lea.vmem [#allocation4], 341
      %4094 = vst.msk [vmem:[%s4093] ss:$8 sm:$0x3] %vm2052, %v4092
      %4095 = vst.msk [vmem:[%s4093] ss:$8 sm:$0x0] %vm2052, %v4092
      %v4096 = vld [vmem:[%s2409] ss:$8 sm:$0x3]
      %4098 = vrot.lane.b32.xlu0 %v4096, 64
      %v4099 = vpop.permute.xlu0 %4098
      %v4100 = vrot.slane %v4099, 7
      %v4101 = vsel %vm2061, %v4100, %v4099
      %s4103 = scalar_lea.vmem [#allocation4], 349
      %4104 = vst.msk [vmem:[%s4103] ss:$8 sm:$0x3] %vm2066, %v4101
      %4105 = vst.msk [vmem:[%s4103] ss:$8 sm:$0x0] %vm2066, %v4101
      %v4106 = vld [vmem:[%s2348] ss:$8 sm:$0x3]
      %s4107 = scalar_lea.vmem [#allocation4], 366
      %4108 = vst.msk [vmem:[%s4107] ss:$8 sm:$0x3] %vm2052, %v4106
      %4109 = vst.msk [vmem:[%s4107] ss:$8 sm:$0x0] %vm2052, %v4106
      %v4110 = vld [vmem:[%s2359] ss:$8 sm:$0x3]
      %4112 = vrot.lane.b32.xlu0 %v4110, 64
      %v4113 = vpop.permute.xlu0 %4112
      %v4114 = vrot.slane %v4113, 7
      %v4115 = vsel %vm2061, %v4114, %v4113
      %s4117 = scalar_lea.vmem [#allocation4], 374
      %4118 = vst.msk [vmem:[%s4117] ss:$8 sm:$0x3] %vm2066, %v4115
      %4119 = vst.msk [vmem:[%s4117] ss:$8 sm:$0x0] %vm2066, %v4115
      %v4120 = vld [vmem:[%s2364] ss:$8 sm:$0x3]
      %s4121 = scalar_lea.vmem [#allocation4], 390
      %4122 = vst.msk [vmem:[%s4121] ss:$8 sm:$0x3] %vm2052, %v4120
      %4123 = vst.msk [vmem:[%s4121] ss:$8 sm:$0x0] %vm2052, %v4120
      %v4124 = vld [vmem:[%s2438] ss:$8 sm:$0x3]
      %4126 = vrot.lane.b32.xlu0 %v4124, 64
      %v4127 = vpop.permute.xlu0 %4126
      %v4128 = vrot.slane %v4127, 7
      %v4129 = vsel %vm2061, %v4128, %v4127
      %s4131 = scalar_lea.vmem [#allocation4], 398
      %4132 = vst.msk [vmem:[%s4131] ss:$8 sm:$0x3] %vm2066, %v4129
      %4133 = vst.msk [vmem:[%s4131] ss:$8 sm:$0x0] %vm2066, %v4129
      %v4134 = vld [vmem:[%s2449] ss:$8 sm:$0x3]
      %s4135 = scalar_lea.vmem [#allocation4], 414
      %4136 = vst.msk [vmem:[%s4135] ss:$8 sm:$0x3] %vm2052, %v4134
      %4137 = vst.msk [vmem:[%s4135] ss:$8 sm:$0x0] %vm2052, %v4134
      %v4138 = vld [vmem:[%s2454] ss:$8 sm:$0x3]
      %4140 = vrot.lane.b32.xlu0 %v4138, 64
      %v4141 = vpop.permute.xlu0 %4140
      %v4142 = vrot.slane %v4141, 7
      %v4143 = vsel %vm2061, %v4142, %v4141
      %s4145 = scalar_lea.vmem [#allocation4], 422
      %4146 = vst.msk [vmem:[%s4145] ss:$8 sm:$0x3] %vm2066, %v4143
      %4147 = vst.msk [vmem:[%s4145] ss:$8 sm:$0x0] %vm2066, %v4143
      %v4148 = vld [vmem:[%s2393] ss:$8 sm:$0x3]
      %s4149 = scalar_lea.vmem [#allocation4], 367
      %4150 = vst.msk [vmem:[%s4149] ss:$8 sm:$0x3] %vm2052, %v4148
      %4151 = vst.msk [vmem:[%s4149] ss:$8 sm:$0x0] %vm2052, %v4148
      %v4152 = vld [vmem:[%s2404] ss:$8 sm:$0x3]
      %4154 = vrot.lane.b32.xlu0 %v4152, 64
      %v4155 = vpop.permute.xlu0 %4154
      %v4156 = vrot.slane %v4155, 7
      %v4157 = vsel %vm2061, %v4156, %v4155
      %s4159 = scalar_lea.vmem [#allocation4], 375
      %4160 = vst.msk [vmem:[%s4159] ss:$8 sm:$0x3] %vm2066, %v4157
      %4161 = vst.msk [vmem:[%s4159] ss:$8 sm:$0x0] %vm2066, %v4157
      %v4162 = vld [vmem:[%s2409] ss:$8 sm:$0x3]
      %s4163 = scalar_lea.vmem [#allocation4], 391
      %4164 = vst.msk [vmem:[%s4163] ss:$8 sm:$0x3] %vm2052, %v4162
      %4165 = vst.msk [vmem:[%s4163] ss:$8 sm:$0x0] %vm2052, %v4162
      %v4166 = vld [vmem:[%s2483] ss:$8 sm:$0x3]
      %4168 = vrot.lane.b32.xlu0 %v4166, 64
      %v4169 = vpop.permute.xlu0 %4168
      %v4170 = vrot.slane %v4169, 7
      %v4171 = vsel %vm2061, %v4170, %v4169
      %s4173 = scalar_lea.vmem [#allocation4], 399
      %4174 = vst.msk [vmem:[%s4173] ss:$8 sm:$0x3] %vm2066, %v4171
      %4175 = vst.msk [vmem:[%s4173] ss:$8 sm:$0x0] %vm2066, %v4171
      %v4176 = vld [vmem:[%s2494] ss:$8 sm:$0x3]
      %s4177 = scalar_lea.vmem [#allocation4], 415
      %4178 = vst.msk [vmem:[%s4177] ss:$8 sm:$0x3] %vm2052, %v4176
      %4179 = vst.msk [vmem:[%s4177] ss:$8 sm:$0x0] %vm2052, %v4176
      %v4180 = vld [vmem:[%s2499] ss:$8 sm:$0x3]
      %4182 = vrot.lane.b32.xlu0 %v4180, 64
      %v4183 = vpop.permute.xlu0 %4182
      %v4184 = vrot.slane %v4183, 7
      %v4185 = vsel %vm2061, %v4184, %v4183
      %s4187 = scalar_lea.vmem [#allocation4], 423
      %4188 = vst.msk [vmem:[%s4187] ss:$8 sm:$0x3] %vm2066, %v4185
      %4189 = vst.msk [vmem:[%s4187] ss:$8 sm:$0x0] %vm2066, %v4185
      %v4190 = vld [vmem:[#allocation2 + $0x1b0] sm:$0xff]
      %v4191 = vld [vmem:[#allocation2 + $0x1b8] sm:$0xff]
      %v4192 = vld [vmem:[#allocation2 + $0x1c0] sm:$0xff]
      %v4193 = vld [vmem:[#allocation2 + $0x1c8] sm:$0xff]
      %v4194 = vld [vmem:[#allocation2 + $0x1d0] sm:$0xf]
      %4195 = vst.msk [vmem:[#allocation3] sm:$0xff] %vm1137, %v4190
      %4196 = vst.msk [vmem:[#allocation3 + $0x10] sm:$0xff] %vm1137, %v4191
      %4197 = vst.msk [vmem:[#allocation3 + $0x20] sm:$0xff] %vm1137, %v4192
      %4198 = vst.msk [vmem:[#allocation3 + $0x30] sm:$0xff] %vm1137, %v4193
      %4199 = vst.msk [vmem:[#allocation3 + $0x40] sm:$0xf] %vm1910, %v4194
      %v4200 = vld [vmem:[#allocation2 + $0x1d4] sm:$0xff]
      %v4201 = vld [vmem:[#allocation2 + $0x1dc] sm:$0xff]
      %v4202 = vld [vmem:[#allocation2 + $0x1e4] sm:$0xff]
      %v4203 = vld [vmem:[#allocation2 + $0x1ec] sm:$0xff]
      %v4204 = vld [vmem:[#allocation2 + $0x1f4] sm:$0xf]
      %4210 = vrot.lane.b32.xlu0 %v4200, 32
      %v4211 = vpop.permute.xlu0 %4210
      %4212 = vrot.lane.b32.xlu0 %v4201, 32
      %v4213 = vpop.permute.xlu0 %4212
      %4214 = vrot.lane.b32.xlu0 %v4202, 32
      %v4215 = vpop.permute.xlu0 %4214
      %4216 = vrot.lane.b32.xlu0 %v4203, 32
      %v4217 = vpop.permute.xlu0 %4216
      %4218 = vrot.lane.b32.xlu0 %v4204, 32
      %v4219 = vpop.permute.xlu0 %4218
      %4225 = vst.msk [vmem:[#allocation3] sm:$0xff] %vm1937, %v4211
      %4226 = vst.msk [vmem:[#allocation3 + $0x10] sm:$0xff] %vm1937, %v4213
      %4227 = vst.msk [vmem:[#allocation3 + $0x20] sm:$0xff] %vm1937, %v4215
      %4228 = vst.msk [vmem:[#allocation3 + $0x30] sm:$0xff] %vm1937, %v4217
      %4229 = vst.msk [vmem:[#allocation3 + $0x40] sm:$0xf] %vm1942, %v4219
      %v4230 = vld [vmem:[#allocation2 + $0x1f8] sm:$0xff]
      %v4231 = vld [vmem:[#allocation2 + $0x200] sm:$0xff]
      %v4232 = vld [vmem:[#allocation2 + $0x208] sm:$0xff]
      %v4233 = vld [vmem:[#allocation2 + $0x210] sm:$0xff]
      %v4234 = vld [vmem:[#allocation2 + $0x218] sm:$0xf]
      %4240 = vrot.lane.b32.xlu0 %v4230, 64
      %v4241 = vpop.permute.xlu0 %4240
      %4242 = vrot.lane.b32.xlu0 %v4231, 64
      %v4243 = vpop.permute.xlu0 %4242
      %4244 = vrot.lane.b32.xlu0 %v4232, 64
      %v4245 = vpop.permute.xlu0 %4244
      %4246 = vrot.lane.b32.xlu0 %v4233, 64
      %v4247 = vpop.permute.xlu0 %4246
      %4248 = vrot.lane.b32.xlu0 %v4234, 64
      %v4249 = vpop.permute.xlu0 %4248
      %4255 = vst.msk [vmem:[#allocation3] sm:$0xff] %vm1969, %v4241
      %4256 = vst.msk [vmem:[#allocation3 + $0x10] sm:$0xff] %vm1969, %v4243
      %4257 = vst.msk [vmem:[#allocation3 + $0x20] sm:$0xff] %vm1969, %v4245
      %4258 = vst.msk [vmem:[#allocation3 + $0x30] sm:$0xff] %vm1969, %v4247
      %4259 = vst.msk [vmem:[#allocation3 + $0x40] sm:$0xf] %vm1974, %v4249
      %v4260 = vld [vmem:[#allocation2 + $0x21c] sm:$0xff]
      %v4261 = vld [vmem:[#allocation2 + $0x224] sm:$0xff]
      %v4262 = vld [vmem:[#allocation2 + $0x22c] sm:$0xff]
      %v4263 = vld [vmem:[#allocation2 + $0x234] sm:$0xff]
      %v4264 = vld [vmem:[#allocation2 + $0x23c] sm:$0xf]
      %4270 = vrot.lane.b32.xlu0 %v4260, 96
      %v4271 = vpop.permute.xlu0 %4270
      %4272 = vrot.lane.b32.xlu0 %v4261, 96
      %v4273 = vpop.permute.xlu0 %4272
      %4274 = vrot.lane.b32.xlu0 %v4262, 96
      %v4275 = vpop.permute.xlu0 %4274
      %4276 = vrot.lane.b32.xlu0 %v4263, 96
      %v4277 = vpop.permute.xlu0 %4276
      %4278 = vrot.lane.b32.xlu0 %v4264, 96
      %v4279 = vpop.permute.xlu0 %4278
      %4285 = vst.msk [vmem:[#allocation3] sm:$0xff] %vm2001, %v4271
      %4286 = vst.msk [vmem:[#allocation3 + $0x10] sm:$0xff] %vm2001, %v4273
      %4287 = vst.msk [vmem:[#allocation3 + $0x20] sm:$0xff] %vm2001, %v4275
      %4288 = vst.msk [vmem:[#allocation3 + $0x30] sm:$0xff] %vm2001, %v4277
      %4289 = vst.msk [vmem:[#allocation3 + $0x40] sm:$0xf] %vm2006, %v4279
      %v4290 = vld [vmem:[#allocation2 + $0x240] sm:$0xff]
      %v4291 = vld [vmem:[#allocation2 + $0x248] sm:$0xff]
      %v4292 = vld [vmem:[#allocation2 + $0x250] sm:$0xff]
      %v4293 = vld [vmem:[#allocation2 + $0x258] sm:$0xff]
      %v4294 = vld [vmem:[#allocation2 + $0x260] sm:$0xf]
      %4295 = vst.msk [vmem:[#allocation3 + $0x8] sm:$0xff] %vm1137, %v4290
      %4296 = vst.msk [vmem:[#allocation3 + $0x18] sm:$0xff] %vm1137, %v4291
      %4297 = vst.msk [vmem:[#allocation3 + $0x28] sm:$0xff] %vm1137, %v4292
      %4298 = vst.msk [vmem:[#allocation3 + $0x38] sm:$0xff] %vm1137, %v4293
      %4299 = vst.msk [vmem:[#allocation3 + $0x48] sm:$0xf] %vm1910, %v4294
      %v4300 = vld [vmem:[#allocation2 + $0x264] sm:$0xff]
      %v4301 = vld [vmem:[#allocation2 + $0x26c] sm:$0xff]
      %v4302 = vld [vmem:[#allocation2 + $0x274] sm:$0xff]
      %v4303 = vld [vmem:[#allocation2 + $0x27c] sm:$0xff]
      %v4304 = vld [vmem:[#allocation2 + $0x284] sm:$0xf]
      %4310 = vrot.lane.b32.xlu0 %v4300, 32
      %v4311 = vpop.permute.xlu0 %4310
      %4312 = vrot.lane.b32.xlu0 %v4301, 32
      %v4313 = vpop.permute.xlu0 %4312
      %4314 = vrot.lane.b32.xlu0 %v4302, 32
      %v4315 = vpop.permute.xlu0 %4314
      %4316 = vrot.lane.b32.xlu0 %v4303, 32
      %v4317 = vpop.permute.xlu0 %4316
      %4318 = vrot.lane.b32.xlu0 %v4304, 32
      %v4319 = vpop.permute.xlu0 %4318
      %4325 = vst.msk [vmem:[#allocation3 + $0x8] sm:$0xff] %vm1937, %v4311
      %4326 = vst.msk [vmem:[#allocation3 + $0x18] sm:$0xff] %vm1937, %v4313
      %4327 = vst.msk [vmem:[#allocation3 + $0x28] sm:$0xff] %vm1937, %v4315
      %4328 = vst.msk [vmem:[#allocation3 + $0x38] sm:$0xff] %vm1937, %v4317
      %4329 = vst.msk [vmem:[#allocation3 + $0x48] sm:$0xf] %vm1942, %v4319
      %v4330 = vld [vmem:[#allocation3] ss:$8 sm:$0x3]
      %s4331 = scalar_lea.vmem [#allocation4], 72
      %4332 = vst.msk [vmem:[%s4331] ss:$8 sm:$0x3] %vm2052, %v4330
      %4333 = vst.msk [vmem:[%s4331] ss:$8 sm:$0x0] %vm2052, %v4330
      %v4334 = vld [vmem:[%s2055] ss:$8 sm:$0x3]
      %4336 = vrot.lane.b32.xlu0 %v4334, 64
      %v4337 = vpop.permute.xlu0 %4336
      %v4338 = vrot.slane %v4337, 7
      %v4339 = vsel %vm2061, %v4338, %v4337
      %s4341 = scalar_lea.vmem [#allocation4], 80
      %4342 = vst.msk [vmem:[%s4341] ss:$8 sm:$0x3] %vm2066, %v4339
      %4343 = vst.msk [vmem:[%s4341] ss:$8 sm:$0x0] %vm2066, %v4339
      %v4344 = vld [vmem:[%s2070] ss:$8 sm:$0x3]
      %s4345 = scalar_lea.vmem [#allocation4], 96
      %4346 = vst.msk [vmem:[%s4345] ss:$8 sm:$0x3] %vm2052, %v4344
      %4347 = vst.msk [vmem:[%s4345] ss:$8 sm:$0x0] %vm2052, %v4344
      %v4348 = vld [vmem:[%s2075] ss:$8 sm:$0x3]
      %4350 = vrot.lane.b32.xlu0 %v4348, 64
      %v4351 = vpop.permute.xlu0 %4350
      %v4352 = vrot.slane %v4351, 7
      %v4353 = vsel %vm2061, %v4352, %v4351
      %s4355 = scalar_lea.vmem [#allocation4], 104
      %4356 = vst.msk [vmem:[%s4355] ss:$8 sm:$0x3] %vm2066, %v4353
      %4357 = vst.msk [vmem:[%s4355] ss:$8 sm:$0x0] %vm2066, %v4353
      %v4358 = vld [vmem:[%s2086] ss:$8 sm:$0x3]
      %s4359 = scalar_lea.vmem [#allocation4], 120
      %4360 = vst.msk [vmem:[%s4359] ss:$8 sm:$0x3] %vm2052, %v4358
      %4361 = vst.msk [vmem:[%s4359] ss:$8 sm:$0x0] %vm2052, %v4358
      %v4362 = vld [vmem:[%s2091] ss:$8 sm:$0x3]
      %4364 = vrot.lane.b32.xlu0 %v4362, 64
      %v4365 = vpop.permute.xlu0 %4364
      %v4366 = vrot.slane %v4365, 7
      %v4367 = vsel %vm2061, %v4366, %v4365
      %s4369 = scalar_lea.vmem [#allocation4], 128
      %4370 = vst.msk [vmem:[%s4369] ss:$8 sm:$0x3] %vm2066, %v4367
      %4371 = vst.msk [vmem:[%s4369] ss:$8 sm:$0x0] %vm2066, %v4367
      %v4372 = vld [vmem:[%s2102] ss:$8 sm:$0x3]
      %s4373 = scalar_lea.vmem [#allocation4], 73
      %4374 = vst.msk [vmem:[%s4373] ss:$8 sm:$0x3] %vm2052, %v4372
      %4375 = vst.msk [vmem:[%s4373] ss:$8 sm:$0x0] %vm2052, %v4372
      %v4376 = vld [vmem:[%s2107] ss:$8 sm:$0x3]
      %4378 = vrot.lane.b32.xlu0 %v4376, 64
      %v4379 = vpop.permute.xlu0 %4378
      %v4380 = vrot.slane %v4379, 7
      %v4381 = vsel %vm2061, %v4380, %v4379
      %s4383 = scalar_lea.vmem [#allocation4], 81
      %4384 = vst.msk [vmem:[%s4383] ss:$8 sm:$0x3] %vm2066, %v4381
      %4385 = vst.msk [vmem:[%s4383] ss:$8 sm:$0x0] %vm2066, %v4381
      %v4386 = vld [vmem:[%s2118] ss:$8 sm:$0x3]
      %s4387 = scalar_lea.vmem [#allocation4], 97
      %4388 = vst.msk [vmem:[%s4387] ss:$8 sm:$0x3] %vm2052, %v4386
      %4389 = vst.msk [vmem:[%s4387] ss:$8 sm:$0x0] %vm2052, %v4386
      %v4390 = vld [vmem:[%s2123] ss:$8 sm:$0x3]
      %4392 = vrot.lane.b32.xlu0 %v4390, 64
      %v4393 = vpop.permute.xlu0 %4392
      %v4394 = vrot.slane %v4393, 7
      %v4395 = vsel %vm2061, %v4394, %v4393
      %s4397 = scalar_lea.vmem [#allocation4], 105
      %4398 = vst.msk [vmem:[%s4397] ss:$8 sm:$0x3] %vm2066, %v4395
      %4399 = vst.msk [vmem:[%s4397] ss:$8 sm:$0x0] %vm2066, %v4395
      %v4400 = vld [vmem:[%s2134] ss:$8 sm:$0x3]
      %s4401 = scalar_lea.vmem [#allocation4], 121
      %4402 = vst.msk [vmem:[%s4401] ss:$8 sm:$0x3] %vm2052, %v4400
      %4403 = vst.msk [vmem:[%s4401] ss:$8 sm:$0x0] %vm2052, %v4400
      %v4404 = vld [vmem:[%s2139] ss:$8 sm:$0x3]
      %4406 = vrot.lane.b32.xlu0 %v4404, 64
      %v4407 = vpop.permute.xlu0 %4406
      %v4408 = vrot.slane %v4407, 7
      %v4409 = vsel %vm2061, %v4408, %v4407
      %s4411 = scalar_lea.vmem [#allocation4], 129
      %4412 = vst.msk [vmem:[%s4411] ss:$8 sm:$0x3] %vm2066, %v4409
      %4413 = vst.msk [vmem:[%s4411] ss:$8 sm:$0x0] %vm2066, %v4409
      %v4414 = vld [vmem:[%s2075] ss:$8 sm:$0x3]
      %s4415 = scalar_lea.vmem [#allocation4], 146
      %4416 = vst.msk [vmem:[%s4415] ss:$8 sm:$0x3] %vm2052, %v4414
      %4417 = vst.msk [vmem:[%s4415] ss:$8 sm:$0x0] %vm2052, %v4414
      %v4418 = vld [vmem:[%s2086] ss:$8 sm:$0x3]
      %4420 = vrot.lane.b32.xlu0 %v4418, 64
      %v4421 = vpop.permute.xlu0 %4420
      %v4422 = vrot.slane %v4421, 7
      %v4423 = vsel %vm2061, %v4422, %v4421
      %s4425 = scalar_lea.vmem [#allocation4], 154
      %4426 = vst.msk [vmem:[%s4425] ss:$8 sm:$0x3] %vm2066, %v4423
      %4427 = vst.msk [vmem:[%s4425] ss:$8 sm:$0x0] %vm2066, %v4423
      %v4428 = vld [vmem:[%s2091] ss:$8 sm:$0x3]
      %s4429 = scalar_lea.vmem [#allocation4], 170
      %4430 = vst.msk [vmem:[%s4429] ss:$8 sm:$0x3] %vm2052, %v4428
      %4431 = vst.msk [vmem:[%s4429] ss:$8 sm:$0x0] %vm2052, %v4428
      %v4432 = vld [vmem:[%s2168] ss:$8 sm:$0x3]
      %4434 = vrot.lane.b32.xlu0 %v4432, 64
      %v4435 = vpop.permute.xlu0 %4434
      %v4436 = vrot.slane %v4435, 7
      %v4437 = vsel %vm2061, %v4436, %v4435
      %s4439 = scalar_lea.vmem [#allocation4], 178
      %4440 = vst.msk [vmem:[%s4439] ss:$8 sm:$0x3] %vm2066, %v4437
      %4441 = vst.msk [vmem:[%s4439] ss:$8 sm:$0x0] %vm2066, %v4437
      %v4442 = vld [vmem:[%s2179] ss:$8 sm:$0x3]
      %s4443 = scalar_lea.vmem [#allocation4], 194
      %4444 = vst.msk [vmem:[%s4443] ss:$8 sm:$0x3] %vm2052, %v4442
      %4445 = vst.msk [vmem:[%s4443] ss:$8 sm:$0x0] %vm2052, %v4442
      %v4446 = vld [vmem:[%s2184] ss:$8 sm:$0x3]
      %4448 = vrot.lane.b32.xlu0 %v4446, 64
      %v4449 = vpop.permute.xlu0 %4448
      %v4450 = vrot.slane %v4449, 7
      %v4451 = vsel %vm2061, %v4450, %v4449
      %s4453 = scalar_lea.vmem [#allocation4], 202
      %4454 = vst.msk [vmem:[%s4453] ss:$8 sm:$0x3] %vm2066, %v4451
      %4455 = vst.msk [vmem:[%s4453] ss:$8 sm:$0x0] %vm2066, %v4451
      %v4456 = vld [vmem:[%s2123] ss:$8 sm:$0x3]
      %s4457 = scalar_lea.vmem [#allocation4], 147
      %4458 = vst.msk [vmem:[%s4457] ss:$8 sm:$0x3] %vm2052, %v4456
      %4459 = vst.msk [vmem:[%s4457] ss:$8 sm:$0x0] %vm2052, %v4456
      %v4460 = vld [vmem:[%s2134] ss:$8 sm:$0x3]
      %4462 = vrot.lane.b32.xlu0 %v4460, 64
      %v4463 = vpop.permute.xlu0 %4462
      %v4464 = vrot.slane %v4463, 7
      %v4465 = vsel %vm2061, %v4464, %v4463
      %s4467 = scalar_lea.vmem [#allocation4], 155
      %4468 = vst.msk [vmem:[%s4467] ss:$8 sm:$0x3] %vm2066, %v4465
      %4469 = vst.msk [vmem:[%s4467] ss:$8 sm:$0x0] %vm2066, %v4465
      %v4470 = vld [vmem:[%s2139] ss:$8 sm:$0x3]
      %s4471 = scalar_lea.vmem [#allocation4], 171
      %4472 = vst.msk [vmem:[%s4471] ss:$8 sm:$0x3] %vm2052, %v4470
      %4473 = vst.msk [vmem:[%s4471] ss:$8 sm:$0x0] %vm2052, %v4470
      %v4474 = vld [vmem:[%s2213] ss:$8 sm:$0x3]
      %4476 = vrot.lane.b32.xlu0 %v4474, 64
      %v4477 = vpop.permute.xlu0 %4476
      %v4478 = vrot.slane %v4477, 7
      %v4479 = vsel %vm2061, %v4478, %v4477
      %s4481 = scalar_lea.vmem [#allocation4], 179
      %4482 = vst.msk [vmem:[%s4481] ss:$8 sm:$0x3] %vm2066, %v4479
      %4483 = vst.msk [vmem:[%s4481] ss:$8 sm:$0x0] %vm2066, %v4479
      %v4484 = vld [vmem:[%s2224] ss:$8 sm:$0x3]
      %s4485 = scalar_lea.vmem [#allocation4], 195
      %4486 = vst.msk [vmem:[%s4485] ss:$8 sm:$0x3] %vm2052, %v4484
      %4487 = vst.msk [vmem:[%s4485] ss:$8 sm:$0x0] %vm2052, %v4484
      %v4488 = vld [vmem:[%s2229] ss:$8 sm:$0x3]
      %4490 = vrot.lane.b32.xlu0 %v4488, 64
      %v4491 = vpop.permute.xlu0 %4490
      %v4492 = vrot.slane %v4491, 7
      %v4493 = vsel %vm2061, %v4492, %v4491
      %s4495 = scalar_lea.vmem [#allocation4], 203
      %4496 = vst.msk [vmem:[%s4495] ss:$8 sm:$0x3] %vm2066, %v4493
      %4497 = vst.msk [vmem:[%s4495] ss:$8 sm:$0x0] %vm2066, %v4493
      %v4498 = vld [vmem:[%s2168] ss:$8 sm:$0x3]
      %s4499 = scalar_lea.vmem [#allocation4], 220
      %4500 = vst.msk [vmem:[%s4499] ss:$8 sm:$0x3] %vm2052, %v4498
      %4501 = vst.msk [vmem:[%s4499] ss:$8 sm:$0x0] %vm2052, %v4498
      %v4502 = vld [vmem:[%s2179] ss:$8 sm:$0x3]
      %4504 = vrot.lane.b32.xlu0 %v4502, 64
      %v4505 = vpop.permute.xlu0 %4504
      %v4506 = vrot.slane %v4505, 7
      %v4507 = vsel %vm2061, %v4506, %v4505
      %s4509 = scalar_lea.vmem [#allocation4], 228
      %4510 = vst.msk [vmem:[%s4509] ss:$8 sm:$0x3] %vm2066, %v4507
      %4511 = vst.msk [vmem:[%s4509] ss:$8 sm:$0x0] %vm2066, %v4507
      %v4512 = vld [vmem:[%s2184] ss:$8 sm:$0x3]
      %s4513 = scalar_lea.vmem [#allocation4], 244
      %4514 = vst.msk [vmem:[%s4513] ss:$8 sm:$0x3] %vm2052, %v4512
      %4515 = vst.msk [vmem:[%s4513] ss:$8 sm:$0x0] %vm2052, %v4512
      %v4516 = vld [vmem:[%s2258] ss:$8 sm:$0x3]
      %4518 = vrot.lane.b32.xlu0 %v4516, 64
      %v4519 = vpop.permute.xlu0 %4518
      %v4520 = vrot.slane %v4519, 7
      %v4521 = vsel %vm2061, %v4520, %v4519
      %s4523 = scalar_lea.vmem [#allocation4], 252
      %4524 = vst.msk [vmem:[%s4523] ss:$8 sm:$0x3] %vm2066, %v4521
      %4525 = vst.msk [vmem:[%s4523] ss:$8 sm:$0x0] %vm2066, %v4521
      %v4526 = vld [vmem:[%s2269] ss:$8 sm:$0x3]
      %s4527 = scalar_lea.vmem [#allocation4], 268
      %4528 = vst.msk [vmem:[%s4527] ss:$8 sm:$0x3] %vm2052, %v4526
      %4529 = vst.msk [vmem:[%s4527] ss:$8 sm:$0x0] %vm2052, %v4526
      %v4530 = vld [vmem:[%s2274] ss:$8 sm:$0x3]
      %4532 = vrot.lane.b32.xlu0 %v4530, 64
      %v4533 = vpop.permute.xlu0 %4532
      %v4534 = vrot.slane %v4533, 7
      %v4535 = vsel %vm2061, %v4534, %v4533
      %s4537 = scalar_lea.vmem [#allocation4], 276
      %4538 = vst.msk [vmem:[%s4537] ss:$8 sm:$0x3] %vm2066, %v4535
      %4539 = vst.msk [vmem:[%s4537] ss:$8 sm:$0x0] %vm2066, %v4535
      %v4540 = vld [vmem:[%s2213] ss:$8 sm:$0x3]
      %s4541 = scalar_lea.vmem [#allocation4], 221
      %4542 = vst.msk [vmem:[%s4541] ss:$8 sm:$0x3] %vm2052, %v4540
      %4543 = vst.msk [vmem:[%s4541] ss:$8 sm:$0x0] %vm2052, %v4540
      %v4544 = vld [vmem:[%s2224] ss:$8 sm:$0x3]
      %4546 = vrot.lane.b32.xlu0 %v4544, 64
      %v4547 = vpop.permute.xlu0 %4546
      %v4548 = vrot.slane %v4547, 7
      %v4549 = vsel %vm2061, %v4548, %v4547
      %s4551 = scalar_lea.vmem [#allocation4], 229
      %4552 = vst.msk [vmem:[%s4551] ss:$8 sm:$0x3] %vm2066, %v4549
      %4553 = vst.msk [vmem:[%s4551] ss:$8 sm:$0x0] %vm2066, %v4549
      %v4554 = vld [vmem:[%s2229] ss:$8 sm:$0x3]
      %s4555 = scalar_lea.vmem [#allocation4], 245
      %4556 = vst.msk [vmem:[%s4555] ss:$8 sm:$0x3] %vm2052, %v4554
      %4557 = vst.msk [vmem:[%s4555] ss:$8 sm:$0x0] %vm2052, %v4554
      %v4558 = vld [vmem:[%s2303] ss:$8 sm:$0x3]
      %4560 = vrot.lane.b32.xlu0 %v4558, 64
      %v4561 = vpop.permute.xlu0 %4560
      %v4562 = vrot.slane %v4561, 7
      %v4563 = vsel %vm2061, %v4562, %v4561
      %s4565 = scalar_lea.vmem [#allocation4], 253
      %4566 = vst.msk [vmem:[%s4565] ss:$8 sm:$0x3] %vm2066, %v4563
      %4567 = vst.msk [vmem:[%s4565] ss:$8 sm:$0x0] %vm2066, %v4563
      %v4568 = vld [vmem:[%s2314] ss:$8 sm:$0x3]
      %s4569 = scalar_lea.vmem [#allocation4], 269
      %4570 = vst.msk [vmem:[%s4569] ss:$8 sm:$0x3] %vm2052, %v4568
      %4571 = vst.msk [vmem:[%s4569] ss:$8 sm:$0x0] %vm2052, %v4568
      %v4572 = vld [vmem:[%s2319] ss:$8 sm:$0x3]
      %4574 = vrot.lane.b32.xlu0 %v4572, 64
      %v4575 = vpop.permute.xlu0 %4574
      %v4576 = vrot.slane %v4575, 7
      %v4577 = vsel %vm2061, %v4576, %v4575
      %s4579 = scalar_lea.vmem [#allocation4], 277
      %4580 = vst.msk [vmem:[%s4579] ss:$8 sm:$0x3] %vm2066, %v4577
      %4581 = vst.msk [vmem:[%s4579] ss:$8 sm:$0x0] %vm2066, %v4577
      %v4582 = vld [vmem:[%s2258] ss:$8 sm:$0x3]
      %s4583 = scalar_lea.vmem [#allocation4], 294
      %4584 = vst.msk [vmem:[%s4583] ss:$8 sm:$0x3] %vm2052, %v4582
      %4585 = vst.msk [vmem:[%s4583] ss:$8 sm:$0x0] %vm2052, %v4582
      %v4586 = vld [vmem:[%s2269] ss:$8 sm:$0x3]
      %4588 = vrot.lane.b32.xlu0 %v4586, 64
      %v4589 = vpop.permute.xlu0 %4588
      %v4590 = vrot.slane %v4589, 7
      %v4591 = vsel %vm2061, %v4590, %v4589
      %s4593 = scalar_lea.vmem [#allocation4], 302
      %4594 = vst.msk [vmem:[%s4593] ss:$8 sm:$0x3] %vm2066, %v4591
      %4595 = vst.msk [vmem:[%s4593] ss:$8 sm:$0x0] %vm2066, %v4591
      %v4596 = vld [vmem:[%s2274] ss:$8 sm:$0x3]
      %s4597 = scalar_lea.vmem [#allocation4], 318
      %4598 = vst.msk [vmem:[%s4597] ss:$8 sm:$0x3] %vm2052, %v4596
      %4599 = vst.msk [vmem:[%s4597] ss:$8 sm:$0x0] %vm2052, %v4596
      %v4600 = vld [vmem:[%s2348] ss:$8 sm:$0x3]
      %4602 = vrot.lane.b32.xlu0 %v4600, 64
      %v4603 = vpop.permute.xlu0 %4602
      %v4604 = vrot.slane %v4603, 7
      %v4605 = vsel %vm2061, %v4604, %v4603
      %s4607 = scalar_lea.vmem [#allocation4], 326
      %4608 = vst.msk [vmem:[%s4607] ss:$8 sm:$0x3] %vm2066, %v4605
      %4609 = vst.msk [vmem:[%s4607] ss:$8 sm:$0x0] %vm2066, %v4605
      %v4610 = vld [vmem:[%s2359] ss:$8 sm:$0x3]
      %s4611 = scalar_lea.vmem [#allocation4], 342
      %4612 = vst.msk [vmem:[%s4611] ss:$8 sm:$0x3] %vm2052, %v4610
      %4613 = vst.msk [vmem:[%s4611] ss:$8 sm:$0x0] %vm2052, %v4610
      %v4614 = vld [vmem:[%s2364] ss:$8 sm:$0x3]
      %4616 = vrot.lane.b32.xlu0 %v4614, 64
      %v4617 = vpop.permute.xlu0 %4616
      %v4618 = vrot.slane %v4617, 7
      %v4619 = vsel %vm2061, %v4618, %v4617
      %s4621 = scalar_lea.vmem [#allocation4], 350
      %4622 = vst.msk [vmem:[%s4621] ss:$8 sm:$0x3] %vm2066, %v4619
      %4623 = vst.msk [vmem:[%s4621] ss:$8 sm:$0x0] %vm2066, %v4619
      %v4624 = vld [vmem:[%s2303] ss:$8 sm:$0x3]
      %s4625 = scalar_lea.vmem [#allocation4], 295
      %4626 = vst.msk [vmem:[%s4625] ss:$8 sm:$0x3] %vm2052, %v4624
      %4627 = vst.msk [vmem:[%s4625] ss:$8 sm:$0x0] %vm2052, %v4624
      %v4628 = vld [vmem:[%s2314] ss:$8 sm:$0x3]
      %4630 = vrot.lane.b32.xlu0 %v4628, 64
      %v4631 = vpop.permute.xlu0 %4630
      %v4632 = vrot.slane %v4631, 7
      %v4633 = vsel %vm2061, %v4632, %v4631
      %s4635 = scalar_lea.vmem [#allocation4], 303
      %4636 = vst.msk [vmem:[%s4635] ss:$8 sm:$0x3] %vm2066, %v4633
      %4637 = vst.msk [vmem:[%s4635] ss:$8 sm:$0x0] %vm2066, %v4633
      %v4638 = vld [vmem:[%s2319] ss:$8 sm:$0x3]
      %s4639 = scalar_lea.vmem [#allocation4], 319
      %4640 = vst.msk [vmem:[%s4639] ss:$8 sm:$0x3] %vm2052, %v4638
      %4641 = vst.msk [vmem:[%s4639] ss:$8 sm:$0x0] %vm2052, %v4638
      %v4642 = vld [vmem:[%s2393] ss:$8 sm:$0x3]
      %4644 = vrot.lane.b32.xlu0 %v4642, 64
      %v4645 = vpop.permute.xlu0 %4644
      %v4646 = vrot.slane %v4645, 7
      %v4647 = vsel %vm2061, %v4646, %v4645
      %s4649 = scalar_lea.vmem [#allocation4], 327
      %4650 = vst.msk [vmem:[%s4649] ss:$8 sm:$0x3] %vm2066, %v4647
      %4651 = vst.msk [vmem:[%s4649] ss:$8 sm:$0x0] %vm2066, %v4647
      %v4652 = vld [vmem:[%s2404] ss:$8 sm:$0x3]
      %s4653 = scalar_lea.vmem [#allocation4], 343
      %4654 = vst.msk [vmem:[%s4653] ss:$8 sm:$0x3] %vm2052, %v4652
      %4655 = vst.msk [vmem:[%s4653] ss:$8 sm:$0x0] %vm2052, %v4652
      %v4656 = vld [vmem:[%s2409] ss:$8 sm:$0x3]
      %4658 = vrot.lane.b32.xlu0 %v4656, 64
      %v4659 = vpop.permute.xlu0 %4658
      %v4660 = vrot.slane %v4659, 7
      %v4661 = vsel %vm2061, %v4660, %v4659
      %s4663 = scalar_lea.vmem [#allocation4], 351
      %4664 = vst.msk [vmem:[%s4663] ss:$8 sm:$0x3] %vm2066, %v4661
      %4665 = vst.msk [vmem:[%s4663] ss:$8 sm:$0x0] %vm2066, %v4661
      %v4666 = vld [vmem:[%s2348] ss:$8 sm:$0x3]
      %s4667 = scalar_lea.vmem [#allocation4], 432
      %4668 = vst.msk [vmem:[%s4667] ss:$8 sm:$0x3] %vm2052, %v4666
      %4669 = vst.msk [vmem:[%s4667] ss:$8 sm:$0x0] %vm2052, %v4666
      %v4670 = vld [vmem:[%s2359] ss:$8 sm:$0x3]
      %4672 = vrot.lane.b32.xlu0 %v4670, 64
      %v4673 = vpop.permute.xlu0 %4672
      %v4674 = vrot.slane %v4673, 7
      %v4675 = vsel %vm2061, %v4674, %v4673
      %s4677 = scalar_lea.vmem [#allocation4], 440
      %4678 = vst.msk [vmem:[%s4677] ss:$8 sm:$0x3] %vm2066, %v4675
      %4679 = vst.msk [vmem:[%s4677] ss:$8 sm:$0x0] %vm2066, %v4675
      %v4680 = vld [vmem:[%s2364] ss:$8 sm:$0x3]
      %s4681 = scalar_lea.vmem [#allocation4], 456
      %4682 = vst.msk [vmem:[%s4681] ss:$8 sm:$0x3] %vm2052, %v4680
      %4683 = vst.msk [vmem:[%s4681] ss:$8 sm:$0x0] %vm2052, %v4680
      %v4684 = vld [vmem:[%s2438] ss:$8 sm:$0x3]
      %4686 = vrot.lane.b32.xlu0 %v4684, 64
      %v4687 = vpop.permute.xlu0 %4686
      %v4688 = vrot.slane %v4687, 7
      %v4689 = vsel %vm2061, %v4688, %v4687
      %s4691 = scalar_lea.vmem [#allocation4], 464
      %4692 = vst.msk [vmem:[%s4691] ss:$8 sm:$0x3] %vm2066, %v4689
      %4693 = vst.msk [vmem:[%s4691] ss:$8 sm:$0x0] %vm2066, %v4689
      %v4694 = vld [vmem:[%s2449] ss:$8 sm:$0x3]
      %s4695 = scalar_lea.vmem [#allocation4], 480
      %4696 = vst.msk [vmem:[%s4695] ss:$8 sm:$0x3] %vm2052, %v4694
      %4697 = vst.msk [vmem:[%s4695] ss:$8 sm:$0x0] %vm2052, %v4694
      %v4698 = vld [vmem:[%s2454] ss:$8 sm:$0x3]
      %4700 = vrot.lane.b32.xlu0 %v4698, 64
      %v4701 = vpop.permute.xlu0 %4700
      %v4702 = vrot.slane %v4701, 7
      %v4703 = vsel %vm2061, %v4702, %v4701
      %s4705 = scalar_lea.vmem [#allocation4], 488
      %4706 = vst.msk [vmem:[%s4705] ss:$8 sm:$0x3] %vm2066, %v4703
      %4707 = vst.msk [vmem:[%s4705] ss:$8 sm:$0x0] %vm2066, %v4703
      %v4708 = vld [vmem:[%s2393] ss:$8 sm:$0x3]
      %s4709 = scalar_lea.vmem [#allocation4], 433
      %4710 = vst.msk [vmem:[%s4709] ss:$8 sm:$0x3] %vm2052, %v4708
      %4711 = vst.msk [vmem:[%s4709] ss:$8 sm:$0x0] %vm2052, %v4708
      %v4712 = vld [vmem:[%s2404] ss:$8 sm:$0x3]
      %4714 = vrot.lane.b32.xlu0 %v4712, 64
      %v4715 = vpop.permute.xlu0 %4714
      %v4716 = vrot.slane %v4715, 7
      %v4717 = vsel %vm2061, %v4716, %v4715
      %s4719 = scalar_lea.vmem [#allocation4], 441
      %4720 = vst.msk [vmem:[%s4719] ss:$8 sm:$0x3] %vm2066, %v4717
      %4721 = vst.msk [vmem:[%s4719] ss:$8 sm:$0x0] %vm2066, %v4717
      %v4722 = vld [vmem:[%s2409] ss:$8 sm:$0x3]
      %s4723 = scalar_lea.vmem [#allocation4], 457
      %4724 = vst.msk [vmem:[%s4723] ss:$8 sm:$0x3] %vm2052, %v4722
      %4725 = vst.msk [vmem:[%s4723] ss:$8 sm:$0x0] %vm2052, %v4722
      %v4726 = vld [vmem:[%s2483] ss:$8 sm:$0x3]
      %4728 = vrot.lane.b32.xlu0 %v4726, 64
      %v4729 = vpop.permute.xlu0 %4728
      %v4730 = vrot.slane %v4729, 7
      %v4731 = vsel %vm2061, %v4730, %v4729
      %s4733 = scalar_lea.vmem [#allocation4], 465
      %4734 = vst.msk [vmem:[%s4733] ss:$8 sm:$0x3] %vm2066, %v4731
      %4735 = vst.msk [vmem:[%s4733] ss:$8 sm:$0x0] %vm2066, %v4731
      %v4736 = vld [vmem:[%s2494] ss:$8 sm:$0x3]
      %s4737 = scalar_lea.vmem [#allocation4], 481
      %4738 = vst.msk [vmem:[%s4737] ss:$8 sm:$0x3] %vm2052, %v4736
      %4739 = vst.msk [vmem:[%s4737] ss:$8 sm:$0x0] %vm2052, %v4736
      %v4740 = vld [vmem:[%s2499] ss:$8 sm:$0x3]
      %4742 = vrot.lane.b32.xlu0 %v4740, 64
      %v4743 = vpop.permute.xlu0 %4742
      %v4744 = vrot.slane %v4743, 7
      %v4745 = vsel %vm2061, %v4744, %v4743
      %s4747 = scalar_lea.vmem [#allocation4], 489
      %4748 = vst.msk [vmem:[%s4747] ss:$8 sm:$0x3] %vm2066, %v4745
      %4749 = vst.msk [vmem:[%s4747] ss:$8 sm:$0x0] %vm2066, %v4745
      %v4750 = vld [vmem:[#allocation4] sm:$0xff]
      %v4751 = vld [vmem:[#allocation4 + $0x8] sm:$0xff]
      %v4752 = vld [vmem:[#allocation4 + $0x10] sm:$0xff]
      %v4753 = vld [vmem:[#allocation4 + $0x18] sm:$0xff]
      %v4754 = vld [vmem:[#allocation4 + $0x20] sm:$0xff]
      %v4755 = vld [vmem:[#allocation4 + $0x28] sm:$0xff]
      %v4756 = vld [vmem:[#allocation4 + $0x30] sm:$0xff]
      %v4757 = vld [vmem:[#allocation4 + $0x38] sm:$0xff]
      %v4758 = vld [vmem:[#allocation4 + $0x40] sm:$0xff]
      %v4759 = vld [vmem:[#allocation4 + $0x48] sm:$0xff]
      %v4760 = vld [vmem:[#allocation4 + $0x50] sm:$0xff]
      %v4761 = vld [vmem:[#allocation4 + $0x58] sm:$0xff]
      %v4762 = vld [vmem:[#allocation4 + $0x60] sm:$0xff]
      %v4763 = vld [vmem:[#allocation4 + $0x68] sm:$0xff]
      %v4764 = vld [vmem:[#allocation4 + $0x70] sm:$0xff]
      %v4765 = vld [vmem:[#allocation4 + $0x78] sm:$0xff]
      %v4766 = vld [vmem:[#allocation4 + $0x80] sm:$0xff]
      %v4767 = vld [vmem:[#allocation4 + $0x88] sm:$0xff]
      %v4768 = vld [vmem:[#allocation4 + $0x90] sm:$0xff]
      %v4769 = vld [vmem:[#allocation4 + $0x98] sm:$0xff]
      %v4770 = vld [vmem:[#allocation4 + $0xa0] sm:$0xff]
      %v4771 = vld [vmem:[#allocation4 + $0xa8] sm:$0xff]
      %v4772 = vld [vmem:[#allocation4 + $0xb0] sm:$0xff]
      %v4773 = vld [vmem:[#allocation4 + $0xb8] sm:$0xff]
      %v4774 = vld [vmem:[#allocation4 + $0xc0] sm:$0xff]
      %v4775 = vld [vmem:[#allocation4 + $0xc8] sm:$0xff]
      %v4776 = vld [vmem:[#allocation4 + $0xd0] sm:$0xff]
      %v4777 = vld [vmem:[#allocation4 + $0xd8] sm:$0xff]
      %v4778 = vld [vmem:[#allocation4 + $0xe0] sm:$0xff]
      %v4779 = vld [vmem:[#allocation4 + $0xe8] sm:$0xff]
      %v4780 = vld [vmem:[#allocation4 + $0xf0] sm:$0xff]
      %v4781 = vld [vmem:[#allocation4 + $0xf8] sm:$0xff]
      %v4782 = vld [vmem:[#allocation4 + $0x100] sm:$0xff]
      %v4783 = vld [vmem:[#allocation4 + $0x108] sm:$0xff]
      %v4784 = vld [vmem:[#allocation4 + $0x110] sm:$0xff]
      %v4785 = vld [vmem:[#allocation4 + $0x118] sm:$0xff]
      %v4786 = vld [vmem:[#allocation4 + $0x120] sm:$0xff]
      %v4787 = vld [vmem:[#allocation4 + $0x128] sm:$0xff]
      %v4788 = vld [vmem:[#allocation4 + $0x130] sm:$0xff]
      %v4789 = vld [vmem:[#allocation4 + $0x138] sm:$0xff]
      %v4790 = vld [vmem:[#allocation4 + $0x140] sm:$0xff]
      %v4791 = vld [vmem:[#allocation4 + $0x148] sm:$0xff]
      %v4792 = vld [vmem:[#allocation4 + $0x150] sm:$0xff]
      %v4793 = vld [vmem:[#allocation4 + $0x158] sm:$0xff]
      %v4794 = vld [vmem:[#allocation4 + $0x160] sm:$0xff]
      %v4795 = vld [vmem:[#allocation4 + $0x168] sm:$0xff]
      %v4796 = vld [vmem:[#allocation4 + $0x170] sm:$0xff]
      %v4797 = vld [vmem:[#allocation4 + $0x178] sm:$0xff]
      %v4798 = vld [vmem:[#allocation4 + $0x180] sm:$0xff]
      %v4799 = vld [vmem:[#allocation4 + $0x188] sm:$0xff]
      %v4800 = vld [vmem:[#allocation4 + $0x190] sm:$0xff]
      %v4801 = vld [vmem:[#allocation4 + $0x198] sm:$0xff]
      %v4802 = vld [vmem:[#allocation4 + $0x1a0] sm:$0xff]
      %v4803 = vld [vmem:[#allocation4 + $0x1a8] sm:$0xff]
      %v4804 = vld [vmem:[#allocation4 + $0x1b0] sm:$0x3]
      %v4805 = vld [vmem:[#allocation4 + $0x1b8] sm:$0x3]
      %v4806 = vld [vmem:[#allocation4 + $0x1c0] sm:$0x3]
      %v4807 = vld [vmem:[#allocation4 + $0x1c8] sm:$0x3]
      %v4808 = vld [vmem:[#allocation4 + $0x1d0] sm:$0x3]
      %v4809 = vld [vmem:[#allocation4 + $0x1d8] sm:$0x3]
      %v4810 = vld [vmem:[#allocation4 + $0x1e0] sm:$0x3]
      %v4811 = vld [vmem:[#allocation4 + $0x1e8] sm:$0x3]
      %v4812 = vld [vmem:[#allocation4 + $0x1f0] sm:$0x3]
      %v4813 = vld [vmem:[%s2] sm:$0xff]
      %v4814 = vld [vmem:[%s2 + $0x8] sm:$0xff]
      %v4815 = vld [vmem:[%s2 + $0x10] sm:$0xff]
      %v4816 = vld [vmem:[%s2 + $0x18] sm:$0xff]
      %v4817 = vld [vmem:[%s2 + $0x20] sm:$0xff]
      %v4818 = vld [vmem:[%s2 + $0x28] sm:$0xff]
      %v4819 = vld [vmem:[%s2 + $0x30] sm:$0xff]
      %v4820 = vld [vmem:[%s2 + $0x38] sm:$0xff]
      %v4821 = vld [vmem:[%s2 + $0x40] sm:$0xff]
      %v4822 = vld [vmem:[%s2 + $0x48] sm:$0xff]
      %v4823 = vld [vmem:[%s2 + $0x50] sm:$0xff]
      %v4824 = vld [vmem:[%s2 + $0x58] sm:$0xff]
      %v4825 = vld [vmem:[%s2 + $0x60] sm:$0xff]
      %v4826 = vld [vmem:[%s2 + $0x68] sm:$0xff]
      %v4827 = vld [vmem:[%s2 + $0x70] sm:$0xff]
      %v4828 = vld [vmem:[%s2 + $0x78] sm:$0xff]
      %v4829 = vld [vmem:[%s2 + $0x80] sm:$0xff]
      %v4830 = vld [vmem:[%s2 + $0x88] sm:$0xff]
      %v4831 = vld [vmem:[%s2 + $0x90] sm:$0xff]
      %v4832 = vld [vmem:[%s2 + $0x98] sm:$0xff]
      %v4833 = vld [vmem:[%s2 + $0xa0] sm:$0xff]
      %v4834 = vld [vmem:[%s2 + $0xa8] sm:$0xff]
      %v4835 = vld [vmem:[%s2 + $0xb0] sm:$0xff]
      %v4836 = vld [vmem:[%s2 + $0xb8] sm:$0xff]
      %v4837 = vld [vmem:[%s2 + $0xc0] sm:$0xff]
      %v4838 = vld [vmem:[%s2 + $0xc8] sm:$0xff]
      %v4839 = vld [vmem:[%s2 + $0xd0] sm:$0xff]
      %v4840 = vld [vmem:[%s2 + $0xd8] sm:$0xff]
      %v4841 = vld [vmem:[%s2 + $0xe0] sm:$0xff]
      %v4842 = vld [vmem:[%s2 + $0xe8] sm:$0xff]
      %v4843 = vld [vmem:[%s2 + $0xf0] sm:$0xff]
      %v4844 = vld [vmem:[%s2 + $0xf8] sm:$0xff]
      %v4845 = vld [vmem:[%s2 + $0x100] sm:$0xff]
      %v4846 = vld [vmem:[%s2 + $0x108] sm:$0xff]
      %v4847 = vld [vmem:[%s2 + $0x110] sm:$0xff]
      %v4848 = vld [vmem:[%s2 + $0x118] sm:$0xff]
      %v4849 = vld [vmem:[%s2 + $0x120] sm:$0xff]
      %v4850 = vld [vmem:[%s2 + $0x128] sm:$0xff]
      %v4851 = vld [vmem:[%s2 + $0x130] sm:$0xff]
      %v4852 = vld [vmem:[%s2 + $0x138] sm:$0xff]
      %v4853 = vld [vmem:[%s2 + $0x140] sm:$0xff]
      %v4854 = vld [vmem:[%s2 + $0x148] sm:$0xff]
      %v4855 = vld [vmem:[%s2 + $0x150] sm:$0xff]
      %v4856 = vld [vmem:[%s2 + $0x158] sm:$0xff]
      %v4857 = vld [vmem:[%s2 + $0x160] sm:$0xff]
      %v4858 = vld [vmem:[%s2 + $0x168] sm:$0xff]
      %v4859 = vld [vmem:[%s2 + $0x170] sm:$0xff]
      %v4860 = vld [vmem:[%s2 + $0x178] sm:$0xff]
      %v4861 = vld [vmem:[%s2 + $0x180] sm:$0xff]
      %v4862 = vld [vmem:[%s2 + $0x188] sm:$0xff]
      %v4863 = vld [vmem:[%s2 + $0x190] sm:$0xff]
      %v4864 = vld [vmem:[%s2 + $0x198] sm:$0xff]
      %v4865 = vld [vmem:[%s2 + $0x1a0] sm:$0xff]
      %v4866 = vld [vmem:[%s2 + $0x1a8] sm:$0xff]
      %v4867 = vld [vmem:[%s2 + $0x1b0] sm:$0xff]
      %v4868 = vld [vmem:[%s2 + $0x1b8] sm:$0xff]
      %v4869 = vld [vmem:[%s2 + $0x1c0] sm:$0xff]
      %v4870 = vld [vmem:[%s2 + $0x1c8] sm:$0xff]
      %v4871 = vld [vmem:[%s2 + $0x1d0] sm:$0xff]
      %v4872 = vld [vmem:[%s2 + $0x1d8] sm:$0xff]
      %v4873 = vld [vmem:[%s2 + $0x1e0] sm:$0xff]
      %v4874 = vld [vmem:[%s2 + $0x1e8] sm:$0xff]
      %v4875 = vld [vmem:[%s2 + $0x1f0] sm:$0xff]
      %v4876 = vld [vmem:[%s2 + $0x1f8] sm:$0xff]
      %v4877 = vld [vmem:[%s2 + $0x200] sm:$0xff]
      %v4878 = vld [vmem:[%s2 + $0x208] sm:$0xff]
      %v4879 = vld [vmem:[%s2 + $0x210] sm:$0xff]
      %v4880 = vld [vmem:[%s2 + $0x218] sm:$0xff]
      %v4881 = vld [vmem:[%s2 + $0x220] sm:$0xff]
      %v4882 = vld [vmem:[%s2 + $0x228] sm:$0xff]
      %v4883 = vld [vmem:[%s2 + $0x230] sm:$0xff]
      %v4884 = vld [vmem:[%s2 + $0x238] sm:$0xff]
      %v4885 = vld [vmem:[%s2 + $0x240] sm:$0xff]
      %v4886 = vld [vmem:[%s2 + $0x248] sm:$0xff]
      %v4887 = vld [vmem:[%s2 + $0x250] sm:$0xff]
      %v4888 = vld [vmem:[%s2 + $0x258] sm:$0xff]
      %v4889 = vld [vmem:[%s2 + $0x260] sm:$0xff]
      %v4890 = vld [vmem:[%s2 + $0x268] sm:$0xff]
      %v4891 = vld [vmem:[%s2 + $0x270] sm:$0xff]
      %v4892 = vld [vmem:[%s2 + $0x278] sm:$0xff]
      %v4893 = vld [vmem:[%s2 + $0x280] sm:$0xff]
      %v4894 = vld [vmem:[%s2 + $0x288] sm:$0xff]
      %v4895 = vld [vmem:[%s2 + $0x290] sm:$0xff]
      %v4896 = vld [vmem:[%s2 + $0x298] sm:$0xff]
      %v4897 = vld [vmem:[%s2 + $0x2a0] sm:$0xff]
      %v4898 = vld [vmem:[%s2 + $0x2a8] sm:$0xff]
      %v4899 = vld [vmem:[%s2 + $0x2b0] sm:$0xff]
      %v4900 = vld [vmem:[%s2 + $0x2b8] sm:$0xff]
      %v4901 = vld [vmem:[%s2 + $0x2c0] sm:$0xff]
      %v4902 = vld [vmem:[%s2 + $0x2c8] sm:$0xff]
      %v4903 = vld [vmem:[%s2 + $0x2d0] sm:$0xff]
      %v4904 = vld [vmem:[%s2 + $0x2d8] sm:$0xff]
      %v4905 = vld [vmem:[%s2 + $0x2e0] sm:$0xff]
      %v4906 = vld [vmem:[%s2 + $0x2e8] sm:$0xff]
      %v4907 = vld [vmem:[%s2 + $0x2f0] sm:$0xff]
      %v4908 = vld [vmem:[%s2 + $0x2f8] sm:$0xff]
      %v4909 = vld [vmem:[%s2 + $0x300] sm:$0xff]
      %v4910 = vld [vmem:[%s2 + $0x308] sm:$0xff]
      %v4911 = vld [vmem:[%s2 + $0x310] sm:$0xff]
      %v4912 = vld [vmem:[%s2 + $0x318] sm:$0xff]
      %v4913 = vld [vmem:[%s2 + $0x320] sm:$0xff]
      %v4914 = vld [vmem:[%s2 + $0x328] sm:$0xff]
      %v4915 = vld [vmem:[%s2 + $0x330] sm:$0xff]
      %v4916 = vld [vmem:[%s2 + $0x338] sm:$0xff]
      %v4917 = vld [vmem:[%s2 + $0x340] sm:$0xff]
      %v4918 = vld [vmem:[%s2 + $0x348] sm:$0xff]
      %v4919 = vld [vmem:[%s2 + $0x350] sm:$0xff]
      %v4920 = vld [vmem:[%s2 + $0x358] sm:$0xff]
      %v4921 = vld [vmem:[%s2 + $0x360] sm:$0xff]
      %v4922 = vld [vmem:[%s2 + $0x368] sm:$0xff]
      %v4923 = vld [vmem:[%s2 + $0x370] sm:$0xff]
      %v4924 = vld [vmem:[%s2 + $0x378] sm:$0xff]
      %v4925 = vld [vmem:[%s2 + $0x380] sm:$0xff]
      %v4926 = vld [vmem:[%s2 + $0x388] sm:$0xff]
      %v4927 = vld [vmem:[%s2 + $0x390] sm:$0xff]
      %v4928 = vld [vmem:[%s2 + $0x398] sm:$0xff]
      %v4929 = vld [vmem:[%s2 + $0x3a0] sm:$0xff]
      %v4930 = vld [vmem:[%s2 + $0x3a8] sm:$0xff]
      %v4931 = vld [vmem:[%s2 + $0x3b0] sm:$0xff]
      %v4932 = vld [vmem:[%s2 + $0x3b8] sm:$0xff]
      %v4933 = vld [vmem:[%s2 + $0x3c0] sm:$0xff]
      %v4934 = vld [vmem:[%s2 + $0x3c8] sm:$0xff]
      %v4935 = vld [vmem:[%s2 + $0x3d0] sm:$0xff]
      %v4936 = vld [vmem:[%s2 + $0x3d8] sm:$0xff]
      %v4937 = vld [vmem:[%s2 + $0x3e0] sm:$0xff]
      %v4938 = vld [vmem:[%s2 + $0x3e8] sm:$0xff]
      %v4939 = vld [vmem:[%s2 + $0x3f0] sm:$0xff]
      %v4940 = vld [vmem:[%s2 + $0x3f8] sm:$0xff]
      %v4941 = vld [vmem:[%s2 + $0x400] sm:$0xff]
      %v4942 = vld [vmem:[%s2 + $0x408] sm:$0xff]
      %v4943 = vld [vmem:[%s2 + $0x410] sm:$0xff]
      %v4944 = vld [vmem:[%s2 + $0x418] sm:$0xff]
      %v4945 = vld [vmem:[%s2 + $0x420] sm:$0xff]
      %v4946 = vld [vmem:[%s2 + $0x428] sm:$0xff]
      %v4947 = vld [vmem:[%s2 + $0x430] sm:$0xff]
      %v4948 = vld [vmem:[%s2 + $0x438] sm:$0xff]
      %v4949 = vld [vmem:[%s2 + $0x440] sm:$0xff]
      %v4950 = vld [vmem:[%s2 + $0x448] sm:$0xff]
      %v4951 = vld [vmem:[%s2 + $0x450] sm:$0xff]
      %v4952 = vld [vmem:[%s2 + $0x458] sm:$0xff]
      %v4953 = vld [vmem:[%s2 + $0x460] sm:$0xff]
      %v4954 = vld [vmem:[%s2 + $0x468] sm:$0xff]
      %v4955 = vld [vmem:[%s2 + $0x470] sm:$0xff]
      %v4956 = vld [vmem:[%s2 + $0x478] sm:$0xff]
      %4957 = vmatprep.subr.mxu0 0.0
      %4958 = vmatpush1.msra.mxu0 %v4813
      %4959 = vmatprep.subr.mxu0 0.0
      %4960 = vmatpush1.msra.mxu0 %v4814
      %4961 = vmatprep.subr.mxu0 0.0
      %4962 = vmatpush1.msra.mxu0 %v4815
      %4963 = vmatprep.subr.mxu0 0.0
      %4964 = vmatpush1.msra.mxu0 %v4816
      %4965 = vmatprep.subr.mxu0 0.0
      %4966 = vmatpush1.msra.mxu0 %v4817
      %4967 = vmatprep.subr.mxu0 0.0
      %4968 = vmatpush1.msra.mxu0 %v4818
      %4969 = vmatprep.subr.mxu0 0.0
      %4970 = vmatpush1.msra.mxu0 %v4819
      %4971 = vmatprep.subr.mxu0 0.0
      %4972 = vmatpush1.msra.mxu0 %v4820
      %4973 = vmatprep.subr.mxu0 0.0
      %4974 = vmatpush1.msra.mxu0 %v4821
      %4975 = vmatprep.subr.mxu0 0.0
      %4976 = vmatpush1.msra.mxu0 %v4822
      %4977 = vmatprep.subr.mxu0 0.0
      %4978 = vmatpush1.msra.mxu0 %v4823
      %4979 = vmatprep.subr.mxu0 0.0
      %4980 = vmatpush1.msra.mxu0 %v4824
      %4981 = vmatprep.subr.mxu0 0.0
      %4982 = vmatpush1.msra.mxu0 %v4825
      %4983 = vmatprep.subr.mxu0 0.0
      %4984 = vmatpush1.msra.mxu0 %v4826
      %4985 = vmatprep.subr.mxu0 0.0
      %4986 = vmatpush1.msra.mxu0 %v4827
      %4987 = vmatprep.subr.mxu0 0.0
      %4988 = vmatpush1.msra.mxu0 %v4828
      %4989 = vmatprep.subr.mxu0 0.0
      %4990 = vmatpush1.msra.mxu0 %v4829
      %4991 = vmatprep.subr.mxu0 0.0
      %4992 = vmatpush1.msra.mxu0 %v4830
      %4993 = vmatprep.subr.mxu0 0.0
      %4994 = vmatpush1.msra.mxu0 %v4831
      %4995 = vmatprep.subr.mxu0 0.0
      %4996 = vmatpush1.msra.mxu0 %v4832
      %4997 = vmatprep.subr.mxu0 0.0
      %4998 = vmatpush1.msra.mxu0 %v4833
      %4999 = vmatprep.subr.mxu0 0.0
      %5000 = vmatpush1.msra.mxu0 %v4834
      %5001 = vmatprep.subr.mxu0 0.0
      %5002 = vmatpush1.msra.mxu0 %v4835
      %5003 = vmatprep.subr.mxu0 0.0
      %5004 = vmatpush1.msra.mxu0 %v4836
      %5005 = vmatprep.subr.mxu0 0.0
      %5006 = vmatpush1.msra.mxu0 %v4837
      %5007 = vmatprep.subr.mxu0 0.0
      %5008 = vmatpush1.msra.mxu0 %v4838
      %5009 = vmatprep.subr.mxu0 0.0
      %5010 = vmatpush1.msra.mxu0 %v4839
      %5011 = vmatprep.subr.mxu0 0.0
      %5012 = vmatpush1.msra.mxu0 %v4840
      %5013 = vmatprep.subr.mxu0 0.0
      %5014 = vmatpush1.msra.mxu0 %v4841
      %5015 = vmatprep.subr.mxu0 0.0
      %5016 = vmatpush1.msra.mxu0 %v4842
      %5017 = vmatprep.subr.mxu0 0.0
      %5018 = vmatpush1.msra.mxu0 %v4843
      %5019 = vmatprep.subr.mxu0 0.0
      %5020 = vmatpush1.msra.mxu0 %v4844
      %5021 = vmatprep.mubr.f32.mxu0 %v4751
      %5022 = vmatmul.mubr.f32.gmra.mrb[0].mxu0 %v4750
      %v5023 = vpop.f32.mrb[0].mxu0
      %v5024 = vadd.f32 0.0, %v5023
      %v5025 = vpop.f32.mrb[0].mxu0
      %5026 = vmatprep.mubr.f32.mxu0 %v4760
      %5027 = vmatmul.mubr.f32.gmra.mrb[0].mxu0 %v4759
      %v5028 = vpop.f32.mrb[0].mxu0
      %v5029 = vadd.f32 0.0, %v5028
      %v5030 = vpop.f32.mrb[0].mxu0
      %5031 = vmatprep.mubr.f32.mxu0 %v4769
      %5032 = vmatmul.mubr.f32.gmra.mrb[0].mxu0 %v4768
      %v5033 = vpop.f32.mrb[0].mxu0
      %v5034 = vadd.f32 0.0, %v5033
      %v5035 = vpop.f32.mrb[0].mxu0
      %5036 = vmatprep.mubr.f32.mxu0 %v4778
      %5037 = vmatmul.mubr.f32.gmra.mrb[0].mxu0 %v4777
      %v5038 = vpop.f32.mrb[0].mxu0
      %v5039 = vadd.f32 0.0, %v5038
      %v5040 = vpop.f32.mrb[0].mxu0
      %5041 = vmatprep.mubr.f32.mxu0 %v4787
      %5042 = vmatmul.mubr.f32.gmra.mrb[0].mxu0 %v4786
      %v5043 = vpop.f32.mrb[0].mxu0
      %v5044 = vadd.f32 0.0, %v5043
      %v5045 = vpop.f32.mrb[0].mxu0
      %5046 = vmatprep.mubr.f32.mxu0 %v4796
      %5047 = vmatmul.mubr.f32.gmra.mrb[0].mxu0 %v4795
      %v5048 = vpop.f32.mrb[0].mxu0
      %v5049 = vadd.f32 0.0, %v5048
      %v5050 = vpop.f32.mrb[0].mxu0
      %5051 = vmatprep.mubr.f32.mxu0 %v4805
      %5052 = vmatmul.mubr.f32.gmra.mrb[0].mxu0 %v4804
      %v5053 = vpop.f32.mrb[0].mxu0
      %v5054 = vadd.f32 0.0, %v5053
      %v5055 = vpop.f32.mrb[0].mxu0
      %5056 = vdwg.mxu0
      %5057 = vmatprep.subr.mxu0 0.0
      %5058 = vmatpush1.msra.mxu0 %v4845
      %5059 = vmatprep.subr.mxu0 0.0
      %5060 = vmatpush1.msra.mxu0 %v4846
      %5061 = vmatprep.subr.mxu0 0.0
      %5062 = vmatpush1.msra.mxu0 %v4847
      %5063 = vmatprep.subr.mxu0 0.0
      %5064 = vmatpush1.msra.mxu0 %v4848
      %5065 = vmatprep.subr.mxu0 0.0
      %5066 = vmatpush1.msra.mxu0 %v4849
      %5067 = vmatprep.subr.mxu0 0.0
      %5068 = vmatpush1.msra.mxu0 %v4850
      %5069 = vmatprep.subr.mxu0 0.0
      %5070 = vmatpush1.msra.mxu0 %v4851
      %5071 = vmatprep.subr.mxu0 0.0
      %5072 = vmatpush1.msra.mxu0 %v4852
      %5073 = vmatprep.subr.mxu0 0.0
      %5074 = vmatpush1.msra.mxu0 %v4853
      %5075 = vmatprep.subr.mxu0 0.0
      %5076 = vmatpush1.msra.mxu0 %v4854
      %5077 = vmatprep.subr.mxu0 0.0
      %5078 = vmatpush1.msra.mxu0 %v4855
      %5079 = vmatprep.subr.mxu0 0.0
      %5080 = vmatpush1.msra.mxu0 %v4856
      %5081 = vmatprep.subr.mxu0 0.0
      %5082 = vmatpush1.msra.mxu0 %v4857
      %5083 = vmatprep.subr.mxu0 0.0
      %5084 = vmatpush1.msra.mxu0 %v4858
      %5085 = vmatprep.subr.mxu0 0.0
      %5086 = vmatpush1.msra.mxu0 %v4859
      %5087 = vmatprep.subr.mxu0 0.0
      %5088 = vmatpush1.msra.mxu0 %v4860
      %5089 = vmatprep.subr.mxu0 0.0
      %5090 = vmatpush1.msra.mxu0 %v4861
      %5091 = vmatprep.subr.mxu0 0.0
      %5092 = vmatpush1.msra.mxu0 %v4862
      %5093 = vmatprep.subr.mxu0 0.0
      %5094 = vmatpush1.msra.mxu0 %v4863
      %5095 = vmatprep.subr.mxu0 0.0
      %5096 = vmatpush1.msra.mxu0 %v4864
      %5097 = vmatprep.subr.mxu0 0.0
      %5098 = vmatpush1.msra.mxu0 %v4865
      %5099 = vmatprep.subr.mxu0 0.0
      %5100 = vmatpush1.msra.mxu0 %v4866
      %5101 = vmatprep.subr.mxu0 0.0
      %5102 = vmatpush1.msra.mxu0 %v4867
      %5103 = vmatprep.subr.mxu0 0.0
      %5104 = vmatpush1.msra.mxu0 %v4868
      %5105 = vmatprep.subr.mxu0 0.0
      %5106 = vmatpush1.msra.mxu0 %v4869
      %5107 = vmatprep.subr.mxu0 0.0
      %5108 = vmatpush1.msra.mxu0 %v4870
      %5109 = vmatprep.subr.mxu0 0.0
      %5110 = vmatpush1.msra.mxu0 %v4871
      %5111 = vmatprep.subr.mxu0 0.0
      %5112 = vmatpush1.msra.mxu0 %v4872
      %5113 = vmatprep.subr.mxu0 0.0
      %5114 = vmatpush1.msra.mxu0 %v4873
      %5115 = vmatprep.subr.mxu0 0.0
      %5116 = vmatpush1.msra.mxu0 %v4874
      %5117 = vmatprep.subr.mxu0 0.0
      %5118 = vmatpush1.msra.mxu0 %v4875
      %5119 = vmatprep.subr.mxu0 0.0
      %5120 = vmatpush1.msra.mxu0 %v4876
      %5121 = vmatprep.mubr.f32.mxu0 %v4753
      %5122 = vmatmul.mubr.f32.gmra.mrb[0].mxu0 %v4752
      %v5123 = vpop.f32.mrb[0].mxu0
      %v5124 = vadd.f32 %v5024, %v5123
      %v5125 = vpop.f32.mrb[0].mxu0
      %5126 = vmatprep.mubr.f32.mxu0 %v4762
      %5127 = vmatmul.mubr.f32.gmra.mrb[0].mxu0 %v4761
      %v5128 = vpop.f32.mrb[0].mxu0
      %v5129 = vadd.f32 %v5029, %v5128
      %v5130 = vpop.f32.mrb[0].mxu0
      %5131 = vmatprep.mubr.f32.mxu0 %v4771
      %5132 = vmatmul.mubr.f32.gmra.mrb[0].mxu0 %v4770
      %v5133 = vpop.f32.mrb[0].mxu0
      %v5134 = vadd.f32 %v5034, %v5133
      %v5135 = vpop.f32.mrb[0].mxu0
      %5136 = vmatprep.mubr.f32.mxu0 %v4780
      %5137 = vmatmul.mubr.f32.gmra.mrb[0].mxu0 %v4779
      %v5138 = vpop.f32.mrb[0].mxu0
      %v5139 = vadd.f32 %v5039, %v5138
      %v5140 = vpop.f32.mrb[0].mxu0
      %5141 = vmatprep.mubr.f32.mxu0 %v4789
      %5142 = vmatmul.mubr.f32.gmra.mrb[0].mxu0 %v4788
      %v5143 = vpop.f32.mrb[0].mxu0
      %v5144 = vadd.f32 %v5044, %v5143
      %v5145 = vpop.f32.mrb[0].mxu0
      %5146 = vmatprep.mubr.f32.mxu0 %v4798
      %5147 = vmatmul.mubr.f32.gmra.mrb[0].mxu0 %v4797
      %v5148 = vpop.f32.mrb[0].mxu0
      %v5149 = vadd.f32 %v5049, %v5148
      %v5150 = vpop.f32.mrb[0].mxu0
      %5151 = vmatprep.mubr.f32.mxu0 %v4807
      %5152 = vmatmul.mubr.f32.gmra.mrb[0].mxu0 %v4806
      %v5153 = vpop.f32.mrb[0].mxu0
      %v5154 = vadd.f32 %v5054, %v5153
      %v5155 = vpop.f32.mrb[0].mxu0
      %5156 = vdwg.mxu0
      %5157 = vmatprep.subr.mxu0 0.0
      %5158 = vmatpush1.msra.mxu0 %v4877
      %5159 = vmatprep.subr.mxu0 0.0
      %5160 = vmatpush1.msra.mxu0 %v4878
      %5161 = vmatprep.subr.mxu0 0.0
      %5162 = vmatpush1.msra.mxu0 %v4879
      %5163 = vmatprep.subr.mxu0 0.0
      %5164 = vmatpush1.msra.mxu0 %v4880
      %5165 = vmatprep.subr.mxu0 0.0
      %5166 = vmatpush1.msra.mxu0 %v4881
      %5167 = vmatprep.subr.mxu0 0.0
      %5168 = vmatpush1.msra.mxu0 %v4882
      %5169 = vmatprep.subr.mxu0 0.0
      %5170 = vmatpush1.msra.mxu0 %v4883
      %5171 = vmatprep.subr.mxu0 0.0
      %5172 = vmatpush1.msra.mxu0 %v4884
      %5173 = vmatprep.subr.mxu0 0.0
      %5174 = vmatpush1.msra.mxu0 %v4885
      %5175 = vmatprep.subr.mxu0 0.0
      %5176 = vmatpush1.msra.mxu0 %v4886
      %5177 = vmatprep.subr.mxu0 0.0
      %5178 = vmatpush1.msra.mxu0 %v4887
      %5179 = vmatprep.subr.mxu0 0.0
      %5180 = vmatpush1.msra.mxu0 %v4888
      %5181 = vmatprep.subr.mxu0 0.0
      %5182 = vmatpush1.msra.mxu0 %v4889
      %5183 = vmatprep.subr.mxu0 0.0
      %5184 = vmatpush1.msra.mxu0 %v4890
      %5185 = vmatprep.subr.mxu0 0.0
      %5186 = vmatpush1.msra.mxu0 %v4891
      %5187 = vmatprep.subr.mxu0 0.0
      %5188 = vmatpush1.msra.mxu0 %v4892
      %5189 = vmatprep.subr.mxu0 0.0
      %5190 = vmatpush1.msra.mxu0 %v4893
      %5191 = vmatprep.subr.mxu0 0.0
      %5192 = vmatpush1.msra.mxu0 %v4894
      %5193 = vmatprep.subr.mxu0 0.0
      %5194 = vmatpush1.msra.mxu0 %v4895
      %5195 = vmatprep.subr.mxu0 0.0
      %5196 = vmatpush1.msra.mxu0 %v4896
      %5197 = vmatprep.subr.mxu0 0.0
      %5198 = vmatpush1.msra.mxu0 %v4897
      %5199 = vmatprep.subr.mxu0 0.0
      %5200 = vmatpush1.msra.mxu0 %v4898
      %5201 = vmatprep.subr.mxu0 0.0
      %5202 = vmatpush1.msra.mxu0 %v4899
      %5203 = vmatprep.subr.mxu0 0.0
      %5204 = vmatpush1.msra.mxu0 %v4900
      %5205 = vmatprep.subr.mxu0 0.0
      %5206 = vmatpush1.msra.mxu0 %v4901
      %5207 = vmatprep.subr.mxu0 0.0
      %5208 = vmatpush1.msra.mxu0 %v4902
      %5209 = vmatprep.subr.mxu0 0.0
      %5210 = vmatpush1.msra.mxu0 %v4903
      %5211 = vmatprep.subr.mxu0 0.0
      %5212 = vmatpush1.msra.mxu0 %v4904
      %5213 = vmatprep.subr.mxu0 0.0
      %5214 = vmatpush1.msra.mxu0 %v4905
      %5215 = vmatprep.subr.mxu0 0.0
      %5216 = vmatpush1.msra.mxu0 %v4906
      %5217 = vmatprep.subr.mxu0 0.0
      %5218 = vmatpush1.msra.mxu0 %v4907
      %5219 = vmatprep.subr.mxu0 0.0
      %5220 = vmatpush1.msra.mxu0 %v4908
      %5221 = vmatprep.mubr.f32.mxu0 %v4755
      %5222 = vmatmul.mubr.f32.gmra.mrb[0].mxu0 %v4754
      %v5223 = vpop.f32.mrb[0].mxu0
      %v5224 = vadd.f32 %v5124, %v5223
      %v5225 = vpop.f32.mrb[0].mxu0
      %5226 = vmatprep.mubr.f32.mxu0 %v4764
      %5227 = vmatmul.mubr.f32.gmra.mrb[0].mxu0 %v4763
      %v5228 = vpop.f32.mrb[0].mxu0
      %v5229 = vadd.f32 %v5129, %v5228
      %v5230 = vpop.f32.mrb[0].mxu0
      %5231 = vmatprep.mubr.f32.mxu0 %v4773
      %5232 = vmatmul.mubr.f32.gmra.mrb[0].mxu0 %v4772
      %v5233 = vpop.f32.mrb[0].mxu0
      %v5234 = vadd.f32 %v5134, %v5233
      %v5235 = vpop.f32.mrb[0].mxu0
      %5236 = vmatprep.mubr.f32.mxu0 %v4782
      %5237 = vmatmul.mubr.f32.gmra.mrb[0].mxu0 %v4781
      %v5238 = vpop.f32.mrb[0].mxu0
      %v5239 = vadd.f32 %v5139, %v5238
      %v5240 = vpop.f32.mrb[0].mxu0
      %5241 = vmatprep.mubr.f32.mxu0 %v4791
      %5242 = vmatmul.mubr.f32.gmra.mrb[0].mxu0 %v4790
      %v5243 = vpop.f32.mrb[0].mxu0
      %v5244 = vadd.f32 %v5144, %v5243
      %v5245 = vpop.f32.mrb[0].mxu0
      %5246 = vmatprep.mubr.f32.mxu0 %v4800
      %5247 = vmatmul.mubr.f32.gmra.mrb[0].mxu0 %v4799
      %v5248 = vpop.f32.mrb[0].mxu0
      %v5249 = vadd.f32 %v5149, %v5248
      %v5250 = vpop.f32.mrb[0].mxu0
      %5251 = vmatprep.mubr.f32.mxu0 %v4809
      %5252 = vmatmul.mubr.f32.gmra.mrb[0].mxu0 %v4808
      %v5253 = vpop.f32.mrb[0].mxu0
      %v5254 = vadd.f32 %v5154, %v5253
      %v5255 = vpop.f32.mrb[0].mxu0
      %5256 = vdwg.mxu0
      %5257 = vmatprep.subr.mxu0 0.0
      %5258 = vmatpush1.msra.mxu0 %v4909
      %5259 = vmatprep.subr.mxu0 0.0
      %5260 = vmatpush1.msra.mxu0 %v4910
      %5261 = vmatprep.subr.mxu0 0.0
      %5262 = vmatpush1.msra.mxu0 %v4911
      %5263 = vmatprep.subr.mxu0 0.0
      %5264 = vmatpush1.msra.mxu0 %v4912
      %5265 = vmatprep.subr.mxu0 0.0
      %5266 = vmatpush1.msra.mxu0 %v4913
      %5267 = vmatprep.subr.mxu0 0.0
      %5268 = vmatpush1.msra.mxu0 %v4914
      %5269 = vmatprep.subr.mxu0 0.0
      %5270 = vmatpush1.msra.mxu0 %v4915
      %5271 = vmatprep.subr.mxu0 0.0
      %5272 = vmatpush1.msra.mxu0 %v4916
      %5273 = vmatprep.subr.mxu0 0.0
      %5274 = vmatpush1.msra.mxu0 %v4917
      %5275 = vmatprep.subr.mxu0 0.0
      %5276 = vmatpush1.msra.mxu0 %v4918
      %5277 = vmatprep.subr.mxu0 0.0
      %5278 = vmatpush1.msra.mxu0 %v4919
      %5279 = vmatprep.subr.mxu0 0.0
      %5280 = vmatpush1.msra.mxu0 %v4920
      %5281 = vmatprep.subr.mxu0 0.0
      %5282 = vmatpush1.msra.mxu0 %v4921
      %5283 = vmatprep.subr.mxu0 0.0
      %5284 = vmatpush1.msra.mxu0 %v4922
      %5285 = vmatprep.subr.mxu0 0.0
      %5286 = vmatpush1.msra.mxu0 %v4923
      %5287 = vmatprep.subr.mxu0 0.0
      %5288 = vmatpush1.msra.mxu0 %v4924
      %5289 = vmatprep.subr.mxu0 0.0
      %5290 = vmatpush1.msra.mxu0 %v4925
      %5291 = vmatprep.subr.mxu0 0.0
      %5292 = vmatpush1.msra.mxu0 %v4926
      %5293 = vmatprep.subr.mxu0 0.0
      %5294 = vmatpush1.msra.mxu0 %v4927
      %5295 = vmatprep.subr.mxu0 0.0
      %5296 = vmatpush1.msra.mxu0 %v4928
      %5297 = vmatprep.subr.mxu0 0.0
      %5298 = vmatpush1.msra.mxu0 %v4929
      %5299 = vmatprep.subr.mxu0 0.0
      %5300 = vmatpush1.msra.mxu0 %v4930
      %5301 = vmatprep.subr.mxu0 0.0
      %5302 = vmatpush1.msra.mxu0 %v4931
      %5303 = vmatprep.subr.mxu0 0.0
      %5304 = vmatpush1.msra.mxu0 %v4932
      %5305 = vmatprep.subr.mxu0 0.0
      %5306 = vmatpush1.msra.mxu0 %v4933
      %5307 = vmatprep.subr.mxu0 0.0
      %5308 = vmatpush1.msra.mxu0 %v4934
      %5309 = vmatprep.subr.mxu0 0.0
      %5310 = vmatpush1.msra.mxu0 %v4935
      %5311 = vmatprep.subr.mxu0 0.0
      %5312 = vmatpush1.msra.mxu0 %v4936
      %5313 = vmatprep.subr.mxu0 0.0
      %5314 = vmatpush1.msra.mxu0 %v4937
      %5315 = vmatprep.subr.mxu0 0.0
      %5316 = vmatpush1.msra.mxu0 %v4938
      %5317 = vmatprep.subr.mxu0 0.0
      %5318 = vmatpush1.msra.mxu0 %v4939
      %5319 = vmatprep.subr.mxu0 0.0
      %5320 = vmatpush1.msra.mxu0 %v4940
      %5321 = vmatprep.mubr.f32.mxu0 %v4757
      %5322 = vmatmul.mubr.f32.gmra.mrb[0].mxu0 %v4756
      %v5323 = vpop.f32.mrb[0].mxu0
      %v5324 = vadd.f32 %v5224, %v5323
      %v5325 = vpop.f32.mrb[0].mxu0
      %5326 = vmatprep.mubr.f32.mxu0 %v4766
      %5327 = vmatmul.mubr.f32.gmra.mrb[0].mxu0 %v4765
      %v5328 = vpop.f32.mrb[0].mxu0
      %v5329 = vadd.f32 %v5229, %v5328
      %v5330 = vpop.f32.mrb[0].mxu0
      %5331 = vmatprep.mubr.f32.mxu0 %v4775
      %5332 = vmatmul.mubr.f32.gmra.mrb[0].mxu0 %v4774
      %v5333 = vpop.f32.mrb[0].mxu0
      %v5334 = vadd.f32 %v5234, %v5333
      %v5335 = vpop.f32.mrb[0].mxu0
      %5336 = vmatprep.mubr.f32.mxu0 %v4784
      %5337 = vmatmul.mubr.f32.gmra.mrb[0].mxu0 %v4783
      %v5338 = vpop.f32.mrb[0].mxu0
      %v5339 = vadd.f32 %v5239, %v5338
      %v5340 = vpop.f32.mrb[0].mxu0
      %5341 = vmatprep.mubr.f32.mxu0 %v4793
      %5342 = vmatmul.mubr.f32.gmra.mrb[0].mxu0 %v4792
      %v5343 = vpop.f32.mrb[0].mxu0
      %v5344 = vadd.f32 %v5244, %v5343
      %v5345 = vpop.f32.mrb[0].mxu0
      %5346 = vmatprep.mubr.f32.mxu0 %v4802
      %5347 = vmatmul.mubr.f32.gmra.mrb[0].mxu0 %v4801
      %v5348 = vpop.f32.mrb[0].mxu0
      %v5349 = vadd.f32 %v5249, %v5348
      %v5350 = vpop.f32.mrb[0].mxu0
      %5351 = vmatprep.mubr.f32.mxu0 %v4811
      %5352 = vmatmul.mubr.f32.gmra.mrb[0].mxu0 %v4810
      %v5353 = vpop.f32.mrb[0].mxu0
      %v5354 = vadd.f32 %v5254, %v5353
      %v5355 = vpop.f32.mrb[0].mxu0
      %5356 = vdwg.mxu0
      %5357 = vmatprep.subr.mxu0 0.0
      %5358 = vmatpush1.msra.mxu0 %v4941
      %5359 = vmatprep.subr.mxu0 0.0
      %5360 = vmatpush1.msra.mxu0 %v4942
      %5361 = vmatprep.subr.mxu0 0.0
      %5362 = vmatpush1.msra.mxu0 %v4943
      %5363 = vmatprep.subr.mxu0 0.0
      %5364 = vmatpush1.msra.mxu0 %v4944
      %5365 = vmatprep.subr.mxu0 0.0
      %5366 = vmatpush1.msra.mxu0 %v4945
      %5367 = vmatprep.subr.mxu0 0.0
      %5368 = vmatpush1.msra.mxu0 %v4946
      %5369 = vmatprep.subr.mxu0 0.0
      %5370 = vmatpush1.msra.mxu0 %v4947
      %5371 = vmatprep.subr.mxu0 0.0
      %5372 = vmatpush1.msra.mxu0 %v4948
      %5373 = vmatprep.subr.mxu0 0.0
      %5374 = vmatpush1.msra.mxu0 %v4949
      %5375 = vmatprep.subr.mxu0 0.0
      %5376 = vmatpush1.msra.mxu0 %v4950
      %5377 = vmatprep.subr.mxu0 0.0
      %5378 = vmatpush1.msra.mxu0 %v4951
      %5379 = vmatprep.subr.mxu0 0.0
      %5380 = vmatpush1.msra.mxu0 %v4952
      %5381 = vmatprep.subr.mxu0 0.0
      %5382 = vmatpush1.msra.mxu0 %v4953
      %5383 = vmatprep.subr.mxu0 0.0
      %5384 = vmatpush1.msra.mxu0 %v4954
      %5385 = vmatprep.subr.mxu0 0.0
      %5386 = vmatpush1.msra.mxu0 %v4955
      %5387 = vmatprep.subr.mxu0 0.0
      %5388 = vmatpush1.msra.mxu0 %v4956
      %5389 = vmatprep.subr.mxu0 0.0
      %5390 = vmatpush1.msra.mxu0 0.0
      %5391 = vmatprep.subr.mxu0 0.0
      %5392 = vmatpush1.msra.mxu0 0.0
      %5393 = vmatprep.subr.mxu0 0.0
      %5394 = vmatpush1.msra.mxu0 0.0
      %5395 = vmatprep.subr.mxu0 0.0
      %5396 = vmatpush1.msra.mxu0 0.0
      %5397 = vmatprep.subr.mxu0 0.0
      %5398 = vmatpush1.msra.mxu0 0.0
      %5399 = vmatprep.subr.mxu0 0.0
      %5400 = vmatpush1.msra.mxu0 0.0
      %5401 = vmatprep.subr.mxu0 0.0
      %5402 = vmatpush1.msra.mxu0 0.0
      %5403 = vmatprep.subr.mxu0 0.0
      %5404 = vmatpush1.msra.mxu0 0.0
      %5405 = vmatprep.subr.mxu0 0.0
      %5406 = vmatpush1.msra.mxu0 0.0
      %5407 = vmatprep.subr.mxu0 0.0
      %5408 = vmatpush1.msra.mxu0 0.0
      %5409 = vmatprep.subr.mxu0 0.0
      %5410 = vmatpush1.msra.mxu0 0.0
      %5411 = vmatprep.subr.mxu0 0.0
      %5412 = vmatpush1.msra.mxu0 0.0
      %5413 = vmatprep.subr.mxu0 0.0
      %5414 = vmatpush1.msra.mxu0 0.0
      %5415 = vmatprep.subr.mxu0 0.0
      %5416 = vmatpush1.msra.mxu0 0.0
      %5417 = vmatprep.subr.mxu0 0.0
      %5418 = vmatpush1.msra.mxu0 0.0
      %5419 = vmatprep.subr.mxu0 0.0
      %5420 = vmatpush1.msra.mxu0 0.0
      %5421 = vmatprep.mubr.f32.mxu0 0.0
      %5422 = vmatmul.mubr.f32.gmra.mrb[0].mxu0 %v4758
      %v5423 = vpop.f32.mrb[0].mxu0
      %v5424 = vadd.f32 %v5324, %v5423
      %v5425 = vpop.f32.mrb[0].mxu0
      %5426 = vmatprep.mubr.f32.mxu0 0.0
      %5427 = vmatmul.mubr.f32.gmra.mrb[0].mxu0 %v4767
      %v5428 = vpop.f32.mrb[0].mxu0
      %v5429 = vadd.f32 %v5329, %v5428
      %v5430 = vpop.f32.mrb[0].mxu0
      %5431 = vmatprep.mubr.f32.mxu0 0.0
      %5432 = vmatmul.mubr.f32.gmra.mrb[0].mxu0 %v4776
      %v5433 = vpop.f32.mrb[0].mxu0
      %v5434 = vadd.f32 %v5334, %v5433
      %v5435 = vpop.f32.mrb[0].mxu0
      %5436 = vmatprep.mubr.f32.mxu0 0.0
      %5437 = vmatmul.mubr.f32.gmra.mrb[0].mxu0 %v4785
      %v5438 = vpop.f32.mrb[0].mxu0
      %v5439 = vadd.f32 %v5339, %v5438
      %v5440 = vpop.f32.mrb[0].mxu0
      %5441 = vmatprep.mubr.f32.mxu0 0.0
      %5442 = vmatmul.mubr.f32.gmra.mrb[0].mxu0 %v4794
      %v5443 = vpop.f32.mrb[0].mxu0
      %v5444 = vadd.f32 %v5344, %v5443
      %v5445 = vpop.f32.mrb[0].mxu0
      %5446 = vmatprep.mubr.f32.mxu0 0.0
      %5447 = vmatmul.mubr.f32.gmra.mrb[0].mxu0 %v4803
      %v5448 = vpop.f32.mrb[0].mxu0
      %v5449 = vadd.f32 %v5349, %v5448
      %v5450 = vpop.f32.mrb[0].mxu0
      %5451 = vmatprep.mubr.f32.mxu0 0.0
      %5452 = vmatmul.mubr.f32.gmra.mrb[0].mxu0 %v4812
      %v5453 = vpop.f32.mrb[0].mxu0
      %v5454 = vadd.f32 %v5354, %v5453
      %v5455 = vpop.f32.mrb[0].mxu0
      %5456 = vdwg.mxu0
      %v5457 = vsel %vm2061, %v5424, 0.0
      %v5458 = vsel %vm2061, %v5429, 0.0
      %v5459 = vadd.f32 %v5457, %v5458
      %v5460 = vsel %vm2061, %v5434, 0.0
      %v5461 = vadd.f32 %v5459, %v5460
      %v5462 = vsel %vm2061, %v5439, 0.0
      %v5463 = vadd.f32 %v5461, %v5462
      %v5464 = vsel %vm2061, %v5444, 0.0
      %v5465 = vadd.f32 %v5463, %v5464
      %v5466 = vsel %vm2061, %v5449, 0.0
      %v5467 = vadd.f32 %v5465, %v5466
      %vm5468 = vcmask 517120
      %v5469 = vsel %vm5468, %v5454, 0.0
      %v5470 = vadd.f32 %v5467, %v5469
      %v5471 = vrot.slane %v5470, 4
      %v5472 = vadd.f32 %v5470, %v5471
      %v5473 = vrot.slane %v5472, 2
      %v5474 = vadd.f32 %v5472, %v5473
      %v5475 = vrot.slane %v5474, 1
      %v5476 = vadd.f32 %v5474, %v5475
      %v5477 = vrcp.pop 50.0
      %v5478 = vmul.f32 %v5476, %v5477
      %v5479 = vmul.f32 %v5424, %v5424
      %v5480 = vmul.f32 %v5429, %v5429
      %v5481 = vmul.f32 %v5434, %v5434
      %v5482 = vmul.f32 %v5439, %v5439
      %v5483 = vmul.f32 %v5444, %v5444
      %v5484 = vmul.f32 %v5449, %v5449
      %v5485 = vmul.f32 %v5454, %v5454
      %v5486 = vsel %vm2061, %v5479, 0.0
      %v5487 = vsel %vm2061, %v5480, 0.0
      %v5488 = vadd.f32 %v5486, %v5487
      %v5489 = vsel %vm2061, %v5481, 0.0
      %v5490 = vadd.f32 %v5488, %v5489
      %v5491 = vsel %vm2061, %v5482, 0.0
      %v5492 = vadd.f32 %v5490, %v5491
      %v5493 = vsel %vm2061, %v5483, 0.0
      %v5494 = vadd.f32 %v5492, %v5493
      %v5495 = vsel %vm2061, %v5484, 0.0
      %v5496 = vadd.f32 %v5494, %v5495
      %v5497 = vsel %vm5468, %v5485, 0.0
      %v5498 = vadd.f32 %v5496, %v5497
      %v5499 = vrot.slane %v5498, 4
      %v5500 = vadd.f32 %v5498, %v5499
      %v5501 = vrot.slane %v5500, 2
      %v5502 = vadd.f32 %v5500, %v5501
      %v5503 = vrot.slane %v5502, 1
      %v5504 = vadd.f32 %v5502, %v5503
      %v5505 = vmul.f32 %v5504, %v5477
      %v5506 = vmul.f32 %v5478, %v5478
      %v5507 = vsub.f32 %v5505, %v5506
      %v5508 = vld [vmem:[%s6] sm:$0x1]
      %v5509 = vadd.f32 %v5507, 1e-05
      %v5510 = vrsqrt.pop %v5509
      %v5511 = vmul.f32 %v5508, %v5510
      %v5512 = vld [vmem:[%s7] sm:$0x1]
      %v5513 = vmul.f32 %v5478, %v5511
      %v5514 = vsub.f32 %v5512, %v5513
      %v5516 = vlaneseq
      %v5517 = vshrl.u32 %v5516, 7
      %v5518 = vsub.s32 0, %v5517
      %v5519 = vrot.slane %v5511, %v5518
      %v5521 = vmul.f32 %v5424, %v5519
      %v5522 = vmul.f32 %v5429, %v5519
      %v5523 = vmul.f32 %v5434, %v5519
      %v5524 = vmul.f32 %v5439, %v5519
      %v5525 = vmul.f32 %v5444, %v5519
      %v5526 = vmul.f32 %v5449, %v5519
      %v5527 = vmul.f32 %v5454, %v5519
      %v5529 = vlaneseq
      %v5530 = vshrl.u32 %v5529, 7
      %v5531 = vsub.s32 0, %v5530
      %v5532 = vrot.slane %v5514, %v5531
      %v5534 = vadd.f32 %v5521, %v5532
      %v5535 = vadd.f32 %v5522, %v5532
      %v5536 = vadd.f32 %v5523, %v5532
      %v5537 = vadd.f32 %v5524, %v5532
      %v5538 = vadd.f32 %v5525, %v5532
      %v5539 = vadd.f32 %v5526, %v5532
      %v5540 = vadd.f32 %v5527, %v5532
      %v5541 = vmax.f32 %v5534, 0.0
      %v5542 = vmax.f32 %v5535, 0.0
      %v5543 = vmax.f32 %v5536, 0.0
      %v5544 = vmax.f32 %v5537, 0.0
      %v5545 = vmax.f32 %v5538, 0.0
      %v5546 = vmax.f32 %v5539, 0.0
      %v5547 = vmax.f32 %v5540, 0.0
      %5548 = vst.msk [vmem:[#allocation5] sm:$0xff] %vm2061, %v5541
      %5549 = vst.msk [vmem:[#allocation5 + $0x8] sm:$0xff] %vm2061, %v5542
      %5550 = vst.msk [vmem:[#allocation5 + $0x10] sm:$0xff] %vm2061, %v5543
      %5551 = vst.msk [vmem:[#allocation5 + $0x18] sm:$0xff] %vm2061, %v5544
      %5552 = vst.msk [vmem:[#allocation5 + $0x20] sm:$0xff] %vm2061, %v5545
      %5553 = vst.msk [vmem:[#allocation5 + $0x28] sm:$0xff] %vm2061, %v5546
      %5554 = vst.msk [vmem:[#allocation5 + $0x30] sm:$0x3] %vm5468, %v5547
      %v5555 = vld [vmem:[#allocation5] sm:$0x3]
      %5556 = vst.msk [vmem:[#allocation6] sm:$0x3] %vm5468, %v5555
      %v5557 = vld [vmem:[#allocation5 + $0x2] sm:$0x3]
      %v5560 = vunpack.c.l.s4 1983009808
      %v5561 = vunpack.c.0.s8 %v5560
      %v5562 = vlaneseq
      %v5563 = vshrl.u32 %v5562, 7
      %v5564 = vsub.s32 %v5561, %v5563
      %v5565 = vrot.slane %v5557, %v5564
      %5566 = vrot.lane.b32.xlu0 %v5565, 64
      %v5567 = vpop.permute.xlu0 %5566
      %vm5569 = vcmask 1041920
      %5570 = vst.msk [vmem:[#allocation6] sm:$0x3] %vm5569, %v5567
      %v5571 = vld [vmem:[#allocation5 + $0x4] sm:$0x3]
      %5572 = vst.msk [vmem:[#allocation6 + $0x2] sm:$0x3] %vm5468, %v5571
      %v5573 = vld [vmem:[#allocation5 + $0x6] sm:$0x3]
      %v5576 = vunpack.c.l.s4 1983009808
      %v5577 = vunpack.c.0.s8 %v5576
      %v5578 = vlaneseq
      %v5579 = vshrl.u32 %v5578, 7
      %v5580 = vsub.s32 %v5577, %v5579
      %v5581 = vrot.slane %v5573, %v5580
      %5582 = vrot.lane.b32.xlu0 %v5581, 64
      %v5583 = vpop.permute.xlu0 %5582
      %5585 = vst.msk [vmem:[#allocation6 + $0x2] sm:$0x3] %vm5569, %v5583
      %v5586 = vld [vmem:[#allocation5 + $0x8] sm:$0x3]
      %5587 = vst.msk [vmem:[#allocation6 + $0x4] sm:$0x3] %vm5468, %v5586
      %v5588 = vld [vmem:[#allocation5 + $0xa] sm:$0x3]
      %v5591 = vunpack.c.l.s4 1983009808
      %v5592 = vunpack.c.0.s8 %v5591
      %v5593 = vlaneseq
      %v5594 = vshrl.u32 %v5593, 7
      %v5595 = vsub.s32 %v5592, %v5594
      %v5596 = vrot.slane %v5588, %v5595
      %5597 = vrot.lane.b32.xlu0 %v5596, 64
      %v5598 = vpop.permute.xlu0 %5597
      %5600 = vst.msk [vmem:[#allocation6 + $0x4] sm:$0x3] %vm5569, %v5598
      %v5601 = vld [vmem:[#allocation5 + $0xc] sm:$0x3]
      %5602 = vst.msk [vmem:[#allocation6 + $0x6] sm:$0x3] %vm5468, %v5601
      %v5603 = vld [vmem:[#allocation5 + $0xe] sm:$0x3]
      %v5606 = vunpack.c.l.s4 1983009808
      %v5607 = vunpack.c.0.s8 %v5606
      %v5608 = vlaneseq
      %v5609 = vshrl.u32 %v5608, 7
      %v5610 = vsub.s32 %v5607, %v5609
      %v5611 = vrot.slane %v5603, %v5610
      %5612 = vrot.lane.b32.xlu0 %v5611, 64
      %v5613 = vpop.permute.xlu0 %5612
      %5615 = vst.msk [vmem:[#allocation6 + $0x6] sm:$0x3] %vm5569, %v5613
      %v5616 = vld [vmem:[#allocation5 + $0x10] sm:$0x3]
      %5617 = vst.msk [vmem:[#allocation6 + $0x8] sm:$0x3] %vm5468, %v5616
      %v5618 = vld [vmem:[#allocation5 + $0x12] sm:$0x3]
      %v5621 = vunpack.c.l.s4 1983009808
      %v5622 = vunpack.c.0.s8 %v5621
      %v5623 = vlaneseq
      %v5624 = vshrl.u32 %v5623, 7
      %v5625 = vsub.s32 %v5622, %v5624
      %v5626 = vrot.slane %v5618, %v5625
      %5627 = vrot.lane.b32.xlu0 %v5626, 64
      %v5628 = vpop.permute.xlu0 %5627
      %5630 = vst.msk [vmem:[#allocation6 + $0x8] sm:$0x3] %vm5569, %v5628
      %v5631 = vld [vmem:[#allocation5 + $0x14] sm:$0x3]
      %5632 = vst.msk [vmem:[#allocation6 + $0xa] sm:$0x3] %vm5468, %v5631
      %v5633 = vld [vmem:[#allocation5 + $0x16] sm:$0x3]
      %v5636 = vunpack.c.l.s4 1983009808
      %v5637 = vunpack.c.0.s8 %v5636
      %v5638 = vlaneseq
      %v5639 = vshrl.u32 %v5638, 7
      %v5640 = vsub.s32 %v5637, %v5639
      %v5641 = vrot.slane %v5633, %v5640
      %5642 = vrot.lane.b32.xlu0 %v5641, 64
      %v5643 = vpop.permute.xlu0 %5642
      %5645 = vst.msk [vmem:[#allocation6 + $0xa] sm:$0x3] %vm5569, %v5643
      %v5646 = vld [vmem:[#allocation5 + $0x18] sm:$0x3]
      %5647 = vst.msk [vmem:[#allocation6 + $0xc] sm:$0x3] %vm5468, %v5646
      %v5648 = vld [vmem:[#allocation5 + $0x1a] sm:$0x3]
      %v5651 = vunpack.c.l.s4 1983009808
      %v5652 = vunpack.c.0.s8 %v5651
      %v5653 = vlaneseq
      %v5654 = vshrl.u32 %v5653, 7
      %v5655 = vsub.s32 %v5652, %v5654
      %v5656 = vrot.slane %v5648, %v5655
      %5657 = vrot.lane.b32.xlu0 %v5656, 64
      %v5658 = vpop.permute.xlu0 %5657
      %5660 = vst.msk [vmem:[#allocation6 + $0xc] sm:$0x3] %vm5569, %v5658
      %v5661 = vld [vmem:[#allocation5 + $0x1c] sm:$0x3]
      %5662 = vst.msk [vmem:[#allocation6 + $0xe] sm:$0x3] %vm5468, %v5661
      %v5663 = vld [vmem:[#allocation5 + $0x1e] sm:$0x3]
      %v5666 = vunpack.c.l.s4 1983009808
      %v5667 = vunpack.c.0.s8 %v5666
      %v5668 = vlaneseq
      %v5669 = vshrl.u32 %v5668, 7
      %v5670 = vsub.s32 %v5667, %v5669
      %v5671 = vrot.slane %v5663, %v5670
      %5672 = vrot.lane.b32.xlu0 %v5671, 64
      %v5673 = vpop.permute.xlu0 %5672
      %5675 = vst.msk [vmem:[#allocation6 + $0xe] sm:$0x3] %vm5569, %v5673
      %v5676 = vld [vmem:[#allocation5 + $0x20] sm:$0x3]
      %5677 = vst.msk [vmem:[#allocation6 + $0x10] sm:$0x3] %vm5468, %v5676
      %v5678 = vld [vmem:[#allocation5 + $0x22] sm:$0x3]
      %v5681 = vunpack.c.l.s4 1983009808
      %v5682 = vunpack.c.0.s8 %v5681
      %v5683 = vlaneseq
      %v5684 = vshrl.u32 %v5683, 7
      %v5685 = vsub.s32 %v5682, %v5684
      %v5686 = vrot.slane %v5678, %v5685
      %5687 = vrot.lane.b32.xlu0 %v5686, 64
      %v5688 = vpop.permute.xlu0 %5687
      %5690 = vst.msk [vmem:[#allocation6 + $0x10] sm:$0x3] %vm5569, %v5688
      %v5691 = vld [vmem:[#allocation5 + $0x24] sm:$0x3]
      %5692 = vst.msk [vmem:[#allocation6 + $0x12] sm:$0x3] %vm5468, %v5691
      %v5693 = vld [vmem:[#allocation5 + $0x26] sm:$0x3]
      %v5696 = vunpack.c.l.s4 1983009808
      %v5697 = vunpack.c.0.s8 %v5696
      %v5698 = vlaneseq
      %v5699 = vshrl.u32 %v5698, 7
      %v5700 = vsub.s32 %v5697, %v5699
      %v5701 = vrot.slane %v5693, %v5700
      %5702 = vrot.lane.b32.xlu0 %v5701, 64
      %v5703 = vpop.permute.xlu0 %5702
      %5705 = vst.msk [vmem:[#allocation6 + $0x12] sm:$0x3] %vm5569, %v5703
      %v5706 = vld [vmem:[#allocation5 + $0x28] sm:$0x3]
      %5707 = vst.msk [vmem:[#allocation6 + $0x14] sm:$0x3] %vm5468, %v5706
      %v5708 = vld [vmem:[#allocation5 + $0x2a] sm:$0x3]
      %v5711 = vunpack.c.l.s4 1983009808
      %v5712 = vunpack.c.0.s8 %v5711
      %v5713 = vlaneseq
      %v5714 = vshrl.u32 %v5713, 7
      %v5715 = vsub.s32 %v5712, %v5714
      %v5716 = vrot.slane %v5708, %v5715
      %5717 = vrot.lane.b32.xlu0 %v5716, 64
      %v5718 = vpop.permute.xlu0 %5717
      %5720 = vst.msk [vmem:[#allocation6 + $0x14] sm:$0x3] %vm5569, %v5718
      %v5721 = vld [vmem:[#allocation5 + $0x2c] sm:$0x3]
      %5722 = vst.msk [vmem:[#allocation6 + $0x16] sm:$0x3] %vm5468, %v5721
      %v5723 = vld [vmem:[#allocation5 + $0x2e] sm:$0x3]
      %v5726 = vunpack.c.l.s4 1983009808
      %v5727 = vunpack.c.0.s8 %v5726
      %v5728 = vlaneseq
      %v5729 = vshrl.u32 %v5728, 7
      %v5730 = vsub.s32 %v5727, %v5729
      %v5731 = vrot.slane %v5723, %v5730
      %5732 = vrot.lane.b32.xlu0 %v5731, 64
      %v5733 = vpop.permute.xlu0 %5732
      %5735 = vst.msk [vmem:[#allocation6 + $0x16] sm:$0x3] %vm5569, %v5733
      %v5736 = vld [vmem:[#allocation5 + $0x30] sm:$0x3]
      %5737 = vst.msk [vmem:[#allocation6 + $0x18] sm:$0x3] %vm5468, %v5736
      %v5738 = vld [vmem:[#allocation6] sm:$0xff]
      %v5739 = vld [vmem:[#allocation6 + $0x8] sm:$0xff]
      %v5740 = vld [vmem:[#allocation6 + $0x10] sm:$0xff]
      %v5741 = vld [vmem:[#allocation6 + $0x18] sm:$0x3]
      %v5742 = vld [vmem:[%s3] sm:$0xff]
      %v5743 = vld [vmem:[%s3 + $0x8] sm:$0xff]
      %v5744 = vld [vmem:[%s3 + $0x10] sm:$0xff]
      %v5745 = vld [vmem:[%s3 + $0x18] sm:$0xff]
      %v5746 = vld [vmem:[%s3 + $0x20] sm:$0xff]
      %v5747 = vld [vmem:[%s3 + $0x28] sm:$0xff]
      %v5748 = vld [vmem:[%s3 + $0x30] sm:$0xff]
      %v5749 = vld [vmem:[%s3 + $0x38] sm:$0xff]
      %v5750 = vld [vmem:[%s3 + $0x40] sm:$0xff]
      %v5751 = vld [vmem:[%s3 + $0x48] sm:$0xff]
      %v5752 = vld [vmem:[%s3 + $0x50] sm:$0xff]
      %v5753 = vld [vmem:[%s3 + $0x58] sm:$0xff]
      %v5754 = vld [vmem:[%s3 + $0x60] sm:$0xff]
      %v5755 = vld [vmem:[%s3 + $0x68] sm:$0xff]
      %v5756 = vld [vmem:[%s3 + $0x70] sm:$0xff]
      %v5757 = vld [vmem:[%s3 + $0x78] sm:$0xff]
      %v5758 = vld [vmem:[%s3 + $0x80] sm:$0xff]
      %v5759 = vld [vmem:[%s3 + $0x88] sm:$0xff]
      %v5760 = vld [vmem:[%s3 + $0x90] sm:$0xff]
      %v5761 = vld [vmem:[%s3 + $0x98] sm:$0xff]
      %v5762 = vld [vmem:[%s3 + $0xa0] sm:$0xff]
      %v5763 = vld [vmem:[%s3 + $0xa8] sm:$0xff]
      %v5764 = vld [vmem:[%s3 + $0xb0] sm:$0xff]
      %v5765 = vld [vmem:[%s3 + $0xb8] sm:$0xff]
      %v5766 = vld [vmem:[%s3 + $0xc0] sm:$0xff]
      %v5767 = vld [vmem:[%s3 + $0xc8] sm:$0xff]
      %v5768 = vld [vmem:[%s3 + $0xd0] sm:$0xff]
      %v5769 = vld [vmem:[%s3 + $0xd8] sm:$0xff]
      %v5770 = vld [vmem:[%s3 + $0xe0] sm:$0xff]
      %v5771 = vld [vmem:[%s3 + $0xe8] sm:$0xff]
      %v5772 = vld [vmem:[%s3 + $0xf0] sm:$0xff]
      %v5773 = vld [vmem:[%s3 + $0xf8] sm:$0xff]
      %v5774 = vld [vmem:[%s3 + $0x100] sm:$0xff]
      %v5775 = vld [vmem:[%s3 + $0x108] sm:$0xff]
      %v5776 = vld [vmem:[%s3 + $0x110] sm:$0xff]
      %v5777 = vld [vmem:[%s3 + $0x118] sm:$0xff]
      %v5778 = vld [vmem:[%s3 + $0x120] sm:$0xff]
      %v5779 = vld [vmem:[%s3 + $0x128] sm:$0xff]
      %v5780 = vld [vmem:[%s3 + $0x130] sm:$0xff]
      %v5781 = vld [vmem:[%s3 + $0x138] sm:$0xff]
      %v5782 = vld [vmem:[%s3 + $0x140] sm:$0xff]
      %v5783 = vld [vmem:[%s3 + $0x148] sm:$0xff]
      %v5784 = vld [vmem:[%s3 + $0x150] sm:$0xff]
      %v5785 = vld [vmem:[%s3 + $0x158] sm:$0xff]
      %v5786 = vld [vmem:[%s3 + $0x160] sm:$0xff]
      %v5787 = vld [vmem:[%s3 + $0x168] sm:$0xff]
      %v5788 = vld [vmem:[%s3 + $0x170] sm:$0xff]
      %v5789 = vld [vmem:[%s3 + $0x178] sm:$0xff]
      %v5790 = vld [vmem:[%s3 + $0x180] sm:$0xff]
      %v5791 = vld [vmem:[%s3 + $0x188] sm:$0xff]
      %v5792 = vld [vmem:[%s3 + $0x190] sm:$0xff]
      %v5793 = vld [vmem:[%s3 + $0x198] sm:$0xff]
      %v5794 = vld [vmem:[%s3 + $0x1a0] sm:$0xff]
      %v5795 = vld [vmem:[%s3 + $0x1a8] sm:$0xff]
      %v5796 = vld [vmem:[%s3 + $0x1b0] sm:$0xff]
      %v5797 = vld [vmem:[%s3 + $0x1b8] sm:$0xff]
      %v5798 = vld [vmem:[%s3 + $0x1c0] sm:$0xff]
      %v5799 = vld [vmem:[%s3 + $0x1c8] sm:$0xff]
      %v5800 = vld [vmem:[%s3 + $0x1d0] sm:$0xff]
      %v5801 = vld [vmem:[%s3 + $0x1d8] sm:$0xff]
      %v5802 = vld [vmem:[%s3 + $0x1e0] sm:$0xff]
      %v5803 = vld [vmem:[%s3 + $0x1e8] sm:$0xff]
      %v5804 = vld [vmem:[%s3 + $0x1f0] sm:$0xff]
      %v5805 = vld [vmem:[%s3 + $0x1f8] sm:$0xff]
      %v5806 = vld [vmem:[%s3 + $0x200] sm:$0xff]
      %v5807 = vld [vmem:[%s3 + $0x208] sm:$0xff]
      %v5808 = vld [vmem:[%s3 + $0x210] sm:$0xff]
      %v5809 = vld [vmem:[%s3 + $0x218] sm:$0xff]
      %v5810 = vld [vmem:[%s3 + $0x220] sm:$0xff]
      %v5811 = vld [vmem:[%s3 + $0x228] sm:$0xff]
      %v5812 = vld [vmem:[%s3 + $0x230] sm:$0xff]
      %v5813 = vld [vmem:[%s3 + $0x238] sm:$0xff]
      %v5814 = vld [vmem:[%s3 + $0x240] sm:$0xff]
      %v5815 = vld [vmem:[%s3 + $0x248] sm:$0xff]
      %v5816 = vld [vmem:[%s3 + $0x250] sm:$0xff]
      %v5817 = vld [vmem:[%s3 + $0x258] sm:$0xff]
      %v5818 = vld [vmem:[%s3 + $0x260] sm:$0xff]
      %v5819 = vld [vmem:[%s3 + $0x268] sm:$0xff]
      %v5820 = vld [vmem:[%s3 + $0x270] sm:$0xff]
      %v5821 = vld [vmem:[%s3 + $0x278] sm:$0xff]
      %v5822 = vld [vmem:[%s3 + $0x280] sm:$0xff]
      %v5823 = vld [vmem:[%s3 + $0x288] sm:$0xff]
      %v5824 = vld [vmem:[%s3 + $0x290] sm:$0xff]
      %v5825 = vld [vmem:[%s3 + $0x298] sm:$0xff]
      %v5826 = vld [vmem:[%s3 + $0x2a0] sm:$0xff]
      %v5827 = vld [vmem:[%s3 + $0x2a8] sm:$0xff]
      %v5828 = vld [vmem:[%s3 + $0x2b0] sm:$0xff]
      %v5829 = vld [vmem:[%s3 + $0x2b8] sm:$0xff]
      %v5830 = vld [vmem:[%s3 + $0x2c0] sm:$0xff]
      %v5831 = vld [vmem:[%s3 + $0x2c8] sm:$0xff]
      %v5832 = vld [vmem:[%s3 + $0x2d0] sm:$0xff]
      %v5833 = vld [vmem:[%s3 + $0x2d8] sm:$0xff]
      %v5834 = vld [vmem:[%s3 + $0x2e0] sm:$0xff]
      %v5835 = vld [vmem:[%s3 + $0x2e8] sm:$0xff]
      %v5836 = vld [vmem:[%s3 + $0x2f0] sm:$0xff]
      %v5837 = vld [vmem:[%s3 + $0x2f8] sm:$0xff]
      %v5838 = vld [vmem:[%s3 + $0x300] sm:$0xff]
      %v5839 = vld [vmem:[%s3 + $0x308] sm:$0xff]
      %v5840 = vld [vmem:[%s3 + $0x310] sm:$0xff]
      %v5841 = vld [vmem:[%s3 + $0x318] sm:$0xff]
      %v5842 = vld [vmem:[%s3 + $0x320] sm:$0xff]
      %v5843 = vld [vmem:[%s3 + $0x328] sm:$0xff]
      %v5844 = vld [vmem:[%s3 + $0x330] sm:$0xff]
      %v5845 = vld [vmem:[%s3 + $0x338] sm:$0xff]
      %v5846 = vld [vmem:[%s3 + $0x340] sm:$0xff]
      %v5847 = vld [vmem:[%s3 + $0x348] sm:$0xff]
      %v5848 = vld [vmem:[%s3 + $0x350] sm:$0xff]
      %v5849 = vld [vmem:[%s3 + $0x358] sm:$0xff]
      %v5850 = vld [vmem:[%s3 + $0x360] sm:$0xff]
      %v5851 = vld [vmem:[%s3 + $0x368] sm:$0xff]
      %v5852 = vld [vmem:[%s3 + $0x370] sm:$0xff]
      %v5853 = vld [vmem:[%s3 + $0x378] sm:$0xff]
      %v5854 = vld [vmem:[%s3 + $0x380] sm:$0xff]
      %v5855 = vld [vmem:[%s3 + $0x388] sm:$0xff]
      %v5856 = vld [vmem:[%s3 + $0x390] sm:$0xff]
      %v5857 = vld [vmem:[%s3 + $0x398] sm:$0xff]
      %v5858 = vld [vmem:[%s3 + $0x3a0] sm:$0xff]
      %v5859 = vld [vmem:[%s3 + $0x3a8] sm:$0xff]
      %v5860 = vld [vmem:[%s3 + $0x3b0] sm:$0xff]
      %v5861 = vld [vmem:[%s3 + $0x3b8] sm:$0xff]
      %v5862 = vld [vmem:[%s3 + $0x3c0] sm:$0xff]
      %v5863 = vld [vmem:[%s3 + $0x3c8] sm:$0xff]
      %v5864 = vld [vmem:[%s3 + $0x3d0] sm:$0xff]
      %v5865 = vld [vmem:[%s3 + $0x3d8] sm:$0xff]
      %v5866 = vld [vmem:[%s3 + $0x3e0] sm:$0xff]
      %v5867 = vld [vmem:[%s3 + $0x3e8] sm:$0xff]
      %v5868 = vld [vmem:[%s3 + $0x3f0] sm:$0xff]
      %v5869 = vld [vmem:[%s3 + $0x3f8] sm:$0xff]
      %v5870 = vld [vmem:[%s3 + $0x400] sm:$0xff]
      %v5871 = vld [vmem:[%s3 + $0x408] sm:$0xff]
      %v5872 = vld [vmem:[%s3 + $0x410] sm:$0xff]
      %v5873 = vld [vmem:[%s3 + $0x418] sm:$0xff]
      %v5874 = vld [vmem:[%s3 + $0x420] sm:$0xff]
      %v5875 = vld [vmem:[%s3 + $0x428] sm:$0xff]
      %v5876 = vld [vmem:[%s3 + $0x430] sm:$0xff]
      %v5877 = vld [vmem:[%s3 + $0x438] sm:$0xff]
      %v5878 = vld [vmem:[%s3 + $0x440] sm:$0xff]
      %v5879 = vld [vmem:[%s3 + $0x448] sm:$0xff]
      %v5880 = vld [vmem:[%s3 + $0x450] sm:$0xff]
      %v5881 = vld [vmem:[%s3 + $0x458] sm:$0xff]
      %v5882 = vld [vmem:[%s3 + $0x460] sm:$0xff]
      %v5883 = vld [vmem:[%s3 + $0x468] sm:$0xff]
      %v5884 = vld [vmem:[%s3 + $0x470] sm:$0xff]
      %v5885 = vld [vmem:[%s3 + $0x478] sm:$0xff]
      %v5886 = vld [vmem:[%s3 + $0x480] sm:$0xff]
      %v5887 = vld [vmem:[%s3 + $0x488] sm:$0xff]
      %v5888 = vld [vmem:[%s3 + $0x490] sm:$0xff]
      %v5889 = vld [vmem:[%s3 + $0x498] sm:$0xff]
      %v5890 = vld [vmem:[%s3 + $0x4a0] sm:$0xff]
      %v5891 = vld [vmem:[%s3 + $0x4a8] sm:$0xff]
      %v5892 = vld [vmem:[%s3 + $0x4b0] sm:$0xff]
      %v5893 = vld [vmem:[%s3 + $0x4b8] sm:$0xff]
      %v5894 = vld [vmem:[%s3 + $0x4c0] sm:$0xff]
      %v5895 = vld [vmem:[%s3 + $0x4c8] sm:$0xff]
      %v5896 = vld [vmem:[%s3 + $0x4d0] sm:$0xff]
      %v5897 = vld [vmem:[%s3 + $0x4d8] sm:$0xff]
      %v5898 = vld [vmem:[%s3 + $0x4e0] sm:$0xff]
      %v5899 = vld [vmem:[%s3 + $0x4e8] sm:$0xff]
      %v5900 = vld [vmem:[%s3 + $0x4f0] sm:$0xff]
      %v5901 = vld [vmem:[%s3 + $0x4f8] sm:$0xff]
      %v5902 = vld [vmem:[%s3 + $0x500] sm:$0xff]
      %v5903 = vld [vmem:[%s3 + $0x508] sm:$0xff]
      %v5904 = vld [vmem:[%s3 + $0x510] sm:$0xff]
      %v5905 = vld [vmem:[%s3 + $0x518] sm:$0xff]
      %v5906 = vld [vmem:[%s3 + $0x520] sm:$0xff]
      %v5907 = vld [vmem:[%s3 + $0x528] sm:$0xff]
      %v5908 = vld [vmem:[%s3 + $0x530] sm:$0xff]
      %v5909 = vld [vmem:[%s3 + $0x538] sm:$0xff]
      %v5910 = vld [vmem:[%s3 + $0x540] sm:$0xff]
      %v5911 = vld [vmem:[%s3 + $0x548] sm:$0xff]
      %v5912 = vld [vmem:[%s3 + $0x550] sm:$0xff]
      %v5913 = vld [vmem:[%s3 + $0x558] sm:$0xff]
      %v5914 = vld [vmem:[%s3 + $0x560] sm:$0xff]
      %v5915 = vld [vmem:[%s3 + $0x568] sm:$0xff]
      %v5916 = vld [vmem:[%s3 + $0x570] sm:$0xff]
      %v5917 = vld [vmem:[%s3 + $0x578] sm:$0xff]
      %v5918 = vld [vmem:[%s3 + $0x580] sm:$0xff]
      %v5919 = vld [vmem:[%s3 + $0x588] sm:$0xff]
      %v5920 = vld [vmem:[%s3 + $0x590] sm:$0xff]
      %v5921 = vld [vmem:[%s3 + $0x598] sm:$0xff]
      %v5922 = vld [vmem:[%s3 + $0x5a0] sm:$0xff]
      %v5923 = vld [vmem:[%s3 + $0x5a8] sm:$0xff]
      %v5924 = vld [vmem:[%s3 + $0x5b0] sm:$0xff]
      %v5925 = vld [vmem:[%s3 + $0x5b8] sm:$0xff]
      %v5926 = vld [vmem:[%s3 + $0x5c0] sm:$0xff]
      %v5927 = vld [vmem:[%s3 + $0x5c8] sm:$0xff]
      %v5928 = vld [vmem:[%s3 + $0x5d0] sm:$0xff]
      %v5929 = vld [vmem:[%s3 + $0x5d8] sm:$0xff]
      %v5930 = vld [vmem:[%s3 + $0x5e0] sm:$0xff]
      %v5931 = vld [vmem:[%s3 + $0x5e8] sm:$0xff]
      %v5932 = vld [vmem:[%s3 + $0x5f0] sm:$0xff]
      %v5933 = vld [vmem:[%s3 + $0x5f8] sm:$0xff]
      %v5934 = vld [vmem:[%s3 + $0x600] sm:$0xff]
      %v5935 = vld [vmem:[%s3 + $0x608] sm:$0xff]
      %v5936 = vld [vmem:[%s3 + $0x610] sm:$0xff]
      %v5937 = vld [vmem:[%s3 + $0x618] sm:$0xff]
      %v5938 = vld [vmem:[%s3 + $0x620] sm:$0xff]
      %v5939 = vld [vmem:[%s3 + $0x628] sm:$0xff]
      %v5940 = vld [vmem:[%s3 + $0x630] sm:$0xff]
      %v5941 = vld [vmem:[%s3 + $0x638] sm:$0xff]
      %v5942 = vld [vmem:[%s8] sm:$0x1]
      %v5944 = vlaneseq
      %v5945 = vshrl.u32 %v5944, 7
      %v5946 = vsub.s32 0, %v5945
      %v5947 = vrot.slane %v5942, %v5946
      %v5953 = vcombine.high %v5738, %v5738
      %v5955 = vunpack.c.l.s4 1983009808
      %v5956 = vunpack.c.0.s8 %v5955
      %v5957 = vlaneseq
      %v5958 = vshrl.u32 %v5957, 7
      %v5959 = vsub.s32 %v5956, %v5958
      %v5960 = vrot.slane %v5738, %v5959
      %v5962 = vunpack.c.l.s4 1983009808
      %v5963 = vunpack.c.0.s8 %v5962
      %v5964 = vlaneseq
      %v5965 = vshrl.u32 %v5964, 7
      %v5966 = vsub.s32 %v5963, %v5965
      %v5967 = vrot.slane %v5953, %v5966
      %v5968 = vcombine.high %v5960, %v5960
      %v5969 = vcombine.high %v5967, %v5967
      %v5970 = vcombine.high %v5739, %v5739
      %v5972 = vunpack.c.l.s4 1983009808
      %v5973 = vunpack.c.0.s8 %v5972
      %v5974 = vlaneseq
      %v5975 = vshrl.u32 %v5974, 7
      %v5976 = vsub.s32 %v5973, %v5975
      %v5977 = vrot.slane %v5739, %v5976
      %v5979 = vunpack.c.l.s4 1983009808
      %v5980 = vunpack.c.0.s8 %v5979
      %v5981 = vlaneseq
      %v5982 = vshrl.u32 %v5981, 7
      %v5983 = vsub.s32 %v5980, %v5982
      %v5984 = vrot.slane %v5970, %v5983
      %v5985 = vcombine.high %v5977, %v5977
      %v5986 = vcombine.high %v5984, %v5984
      %v5987 = vcombine.high %v5740, %v5740
      %v5989 = vunpack.c.l.s4 1983009808
      %v5990 = vunpack.c.0.s8 %v5989
      %v5991 = vlaneseq
      %v5992 = vshrl.u32 %v5991, 7
      %v5993 = vsub.s32 %v5990, %v5992
      %v5994 = vrot.slane %v5740, %v5993
      %v5996 = vunpack.c.l.s4 1983009808
      %v5997 = vunpack.c.0.s8 %v5996
      %v5998 = vlaneseq
      %v5999 = vshrl.u32 %v5998, 7
      %v6000 = vsub.s32 %v5997, %v5999
      %v6001 = vrot.slane %v5987, %v6000
      %v6002 = vcombine.high %v5994, %v5994
      %v6003 = vcombine.high %v6001, %v6001
      %v6005 = vunpack.c.l.s4 1983009808
      %v6006 = vunpack.c.0.s8 %v6005
      %v6007 = vlaneseq
      %v6008 = vshrl.u32 %v6007, 7
      %v6009 = vsub.s32 %v6006, %v6008
      %v6010 = vrot.slane %v5741, %v6009
      %v6023 = vsel %vm2061, %v6010, 0
      %6025 = vmatprep.subr.mxu0 0.0
      %6026 = vmatpush1.msra.mxu0 %v5742
      %6027 = vmatprep.subr.mxu0 0.0
      %6028 = vmatpush1.msra.mxu0 %v5743
      %6029 = vmatprep.subr.mxu0 0.0
      %6030 = vmatpush1.msra.mxu0 %v5744
      %6031 = vmatprep.subr.mxu0 0.0
      %6032 = vmatpush1.msra.mxu0 %v5745
      %6033 = vmatprep.subr.mxu0 0.0
      %6034 = vmatpush1.msra.mxu0 %v5746
      %6035 = vmatprep.subr.mxu0 0.0
      %6036 = vmatpush1.msra.mxu0 %v5747
      %6037 = vmatprep.subr.mxu0 0.0
      %6038 = vmatpush1.msra.mxu0 %v5748
      %6039 = vmatprep.subr.mxu0 0.0
      %6040 = vmatpush1.msra.mxu0 %v5749
      %6041 = vmatprep.subr.mxu0 0.0
      %6042 = vmatpush1.msra.mxu0 %v5750
      %6043 = vmatprep.subr.mxu0 0.0
      %6044 = vmatpush1.msra.mxu0 %v5751
      %6045 = vmatprep.subr.mxu0 0.0
      %6046 = vmatpush1.msra.mxu0 %v5752
      %6047 = vmatprep.subr.mxu0 0.0
      %6048 = vmatpush1.msra.mxu0 %v5753
      %6049 = vmatprep.subr.mxu0 0.0
      %6050 = vmatpush1.msra.mxu0 %v5754
      %6051 = vmatprep.subr.mxu0 0.0
      %6052 = vmatpush1.msra.mxu0 %v5755
      %6053 = vmatprep.subr.mxu0 0.0
      %6054 = vmatpush1.msra.mxu0 %v5756
      %6055 = vmatprep.subr.mxu0 0.0
      %6056 = vmatpush1.msra.mxu0 %v5757
      %6057 = vmatprep.subr.mxu0 0.0
      %6058 = vmatpush1.msra.mxu0 %v5758
      %6059 = vmatprep.subr.mxu0 0.0
      %6060 = vmatpush1.msra.mxu0 %v5759
      %6061 = vmatprep.subr.mxu0 0.0
      %6062 = vmatpush1.msra.mxu0 %v5760
      %6063 = vmatprep.subr.mxu0 0.0
      %6064 = vmatpush1.msra.mxu0 %v5761
      %6065 = vmatprep.subr.mxu0 0.0
      %6066 = vmatpush1.msra.mxu0 %v5762
      %6067 = vmatprep.subr.mxu0 0.0
      %6068 = vmatpush1.msra.mxu0 %v5763
      %6069 = vmatprep.subr.mxu0 0.0
      %6070 = vmatpush1.msra.mxu0 %v5764
      %6071 = vmatprep.subr.mxu0 0.0
      %6072 = vmatpush1.msra.mxu0 %v5765
      %6073 = vmatprep.subr.mxu0 0.0
      %6074 = vmatpush1.msra.mxu0 %v5766
      %6075 = vmatprep.subr.mxu0 0.0
      %6076 = vmatpush1.msra.mxu0 %v5767
      %6077 = vmatprep.subr.mxu0 0.0
      %6078 = vmatpush1.msra.mxu0 %v5768
      %6079 = vmatprep.subr.mxu0 0.0
      %6080 = vmatpush1.msra.mxu0 %v5769
      %6081 = vmatprep.subr.mxu0 0.0
      %6082 = vmatpush1.msra.mxu0 %v5770
      %6083 = vmatprep.subr.mxu0 0.0
      %6084 = vmatpush1.msra.mxu0 %v5771
      %6085 = vmatprep.subr.mxu0 0.0
      %6086 = vmatpush1.msra.mxu0 %v5772
      %6087 = vmatprep.subr.mxu0 0.0
      %6088 = vmatpush1.msra.mxu0 %v5773
      %6089 = vmatprep.mubr.f32.mxu0 %v5968
      %6090 = vmatmul.mubr.f32.gmra.mrb[0].mxu0 %v5960
      %v6091 = vpop.f32.mrb[0].mxu0
      %v6092 = vadd.f32 %v5947, %v6091
      %v6093 = vpop.f32.mrb[0].mxu0
      %6094 = vdwg.mxu0
      %6095 = vmatprep.subr.mxu0 0.0
      %6096 = vmatpush1.msra.mxu0 %v5774
      %6097 = vmatprep.subr.mxu0 0.0
      %6098 = vmatpush1.msra.mxu0 %v5775
      %6099 = vmatprep.subr.mxu0 0.0
      %6100 = vmatpush1.msra.mxu0 %v5776
      %6101 = vmatprep.subr.mxu0 0.0
      %6102 = vmatpush1.msra.mxu0 %v5777
      %6103 = vmatprep.subr.mxu0 0.0
      %6104 = vmatpush1.msra.mxu0 %v5778
      %6105 = vmatprep.subr.mxu0 0.0
      %6106 = vmatpush1.msra.mxu0 %v5779
      %6107 = vmatprep.subr.mxu0 0.0
      %6108 = vmatpush1.msra.mxu0 %v5780
      %6109 = vmatprep.subr.mxu0 0.0
      %6110 = vmatpush1.msra.mxu0 %v5781
      %6111 = vmatprep.subr.mxu0 0.0
      %6112 = vmatpush1.msra.mxu0 %v5782
      %6113 = vmatprep.subr.mxu0 0.0
      %6114 = vmatpush1.msra.mxu0 %v5783
      %6115 = vmatprep.subr.mxu0 0.0
      %6116 = vmatpush1.msra.mxu0 %v5784
      %6117 = vmatprep.subr.mxu0 0.0
      %6118 = vmatpush1.msra.mxu0 %v5785
      %6119 = vmatprep.subr.mxu0 0.0
      %6120 = vmatpush1.msra.mxu0 %v5786
      %6121 = vmatprep.subr.mxu0 0.0
      %6122 = vmatpush1.msra.mxu0 %v5787
      %6123 = vmatprep.subr.mxu0 0.0
      %6124 = vmatpush1.msra.mxu0 %v5788
      %6125 = vmatprep.subr.mxu0 0.0
      %6126 = vmatpush1.msra.mxu0 %v5789
      %6127 = vmatprep.subr.mxu0 0.0
      %6128 = vmatpush1.msra.mxu0 %v5790
      %6129 = vmatprep.subr.mxu0 0.0
      %6130 = vmatpush1.msra.mxu0 %v5791
      %6131 = vmatprep.subr.mxu0 0.0
      %6132 = vmatpush1.msra.mxu0 %v5792
      %6133 = vmatprep.subr.mxu0 0.0
      %6134 = vmatpush1.msra.mxu0 %v5793
      %6135 = vmatprep.subr.mxu0 0.0
      %6136 = vmatpush1.msra.mxu0 %v5794
      %6137 = vmatprep.subr.mxu0 0.0
      %6138 = vmatpush1.msra.mxu0 %v5795
      %6139 = vmatprep.subr.mxu0 0.0
      %6140 = vmatpush1.msra.mxu0 %v5796
      %6141 = vmatprep.subr.mxu0 0.0
      %6142 = vmatpush1.msra.mxu0 %v5797
      %6143 = vmatprep.subr.mxu0 0.0
      %6144 = vmatpush1.msra.mxu0 %v5798
      %6145 = vmatprep.subr.mxu0 0.0
      %6146 = vmatpush1.msra.mxu0 %v5799
      %6147 = vmatprep.subr.mxu0 0.0
      %6148 = vmatpush1.msra.mxu0 %v5800
      %6149 = vmatprep.subr.mxu0 0.0
      %6150 = vmatpush1.msra.mxu0 %v5801
      %6151 = vmatprep.subr.mxu0 0.0
      %6152 = vmatpush1.msra.mxu0 %v5802
      %6153 = vmatprep.subr.mxu0 0.0
      %6154 = vmatpush1.msra.mxu0 %v5803
      %6155 = vmatprep.subr.mxu0 0.0
      %6156 = vmatpush1.msra.mxu0 %v5804
      %6157 = vmatprep.subr.mxu0 0.0
      %6158 = vmatpush1.msra.mxu0 %v5805
      %6159 = vmatprep.mubr.f32.mxu0 %v5969
      %6160 = vmatmul.mubr.f32.gmra.mrb[0].mxu0 %v5967
      %v6161 = vpop.f32.mrb[0].mxu0
      %v6162 = vadd.f32 %v6092, %v6161
      %v6163 = vpop.f32.mrb[0].mxu0
      %6164 = vdwg.mxu0
      %6165 = vmatprep.subr.mxu0 0.0
      %6166 = vmatpush1.msra.mxu0 %v5806
      %6167 = vmatprep.subr.mxu0 0.0
      %6168 = vmatpush1.msra.mxu0 %v5807
      %6169 = vmatprep.subr.mxu0 0.0
      %6170 = vmatpush1.msra.mxu0 %v5808
      %6171 = vmatprep.subr.mxu0 0.0
      %6172 = vmatpush1.msra.mxu0 %v5809
      %6173 = vmatprep.subr.mxu0 0.0
      %6174 = vmatpush1.msra.mxu0 %v5810
      %6175 = vmatprep.subr.mxu0 0.0
      %6176 = vmatpush1.msra.mxu0 %v5811
      %6177 = vmatprep.subr.mxu0 0.0
      %6178 = vmatpush1.msra.mxu0 %v5812
      %6179 = vmatprep.subr.mxu0 0.0
      %6180 = vmatpush1.msra.mxu0 %v5813
      %6181 = vmatprep.subr.mxu0 0.0
      %6182 = vmatpush1.msra.mxu0 %v5814
      %6183 = vmatprep.subr.mxu0 0.0
      %6184 = vmatpush1.msra.mxu0 %v5815
      %6185 = vmatprep.subr.mxu0 0.0
      %6186 = vmatpush1.msra.mxu0 %v5816
      %6187 = vmatprep.subr.mxu0 0.0
      %6188 = vmatpush1.msra.mxu0 %v5817
      %6189 = vmatprep.subr.mxu0 0.0
      %6190 = vmatpush1.msra.mxu0 %v5818
      %6191 = vmatprep.subr.mxu0 0.0
      %6192 = vmatpush1.msra.mxu0 %v5819
      %6193 = vmatprep.subr.mxu0 0.0
      %6194 = vmatpush1.msra.mxu0 %v5820
      %6195 = vmatprep.subr.mxu0 0.0
      %6196 = vmatpush1.msra.mxu0 %v5821
      %6197 = vmatprep.subr.mxu0 0.0
      %6198 = vmatpush1.msra.mxu0 %v5822
      %6199 = vmatprep.subr.mxu0 0.0
      %6200 = vmatpush1.msra.mxu0 %v5823
      %6201 = vmatprep.subr.mxu0 0.0
      %6202 = vmatpush1.msra.mxu0 %v5824
      %6203 = vmatprep.subr.mxu0 0.0
      %6204 = vmatpush1.msra.mxu0 %v5825
      %6205 = vmatprep.subr.mxu0 0.0
      %6206 = vmatpush1.msra.mxu0 %v5826
      %6207 = vmatprep.subr.mxu0 0.0
      %6208 = vmatpush1.msra.mxu0 %v5827
      %6209 = vmatprep.subr.mxu0 0.0
      %6210 = vmatpush1.msra.mxu0 %v5828
      %6211 = vmatprep.subr.mxu0 0.0
      %6212 = vmatpush1.msra.mxu0 %v5829
      %6213 = vmatprep.subr.mxu0 0.0
      %6214 = vmatpush1.msra.mxu0 %v5830
      %6215 = vmatprep.subr.mxu0 0.0
      %6216 = vmatpush1.msra.mxu0 %v5831
      %6217 = vmatprep.subr.mxu0 0.0
      %6218 = vmatpush1.msra.mxu0 %v5832
      %6219 = vmatprep.subr.mxu0 0.0
      %6220 = vmatpush1.msra.mxu0 %v5833
      %6221 = vmatprep.subr.mxu0 0.0
      %6222 = vmatpush1.msra.mxu0 %v5834
      %6223 = vmatprep.subr.mxu0 0.0
      %6224 = vmatpush1.msra.mxu0 %v5835
      %6225 = vmatprep.subr.mxu0 0.0
      %6226 = vmatpush1.msra.mxu0 %v5836
      %6227 = vmatprep.subr.mxu0 0.0
      %6228 = vmatpush1.msra.mxu0 %v5837
      %6229 = vmatprep.mubr.f32.mxu0 %v5985
      %6230 = vmatmul.mubr.f32.gmra.mrb[0].mxu0 %v5977
      %v6231 = vpop.f32.mrb[0].mxu0
      %v6232 = vadd.f32 %v6162, %v6231
      %v6233 = vpop.f32.mrb[0].mxu0
      %6234 = vdwg.mxu0
      %6235 = vmatprep.subr.mxu0 0.0
      %6236 = vmatpush1.msra.mxu0 %v5838
      %6237 = vmatprep.subr.mxu0 0.0
      %6238 = vmatpush1.msra.mxu0 %v5839
      %6239 = vmatprep.subr.mxu0 0.0
      %6240 = vmatpush1.msra.mxu0 %v5840
      %6241 = vmatprep.subr.mxu0 0.0
      %6242 = vmatpush1.msra.mxu0 %v5841
      %6243 = vmatprep.subr.mxu0 0.0
      %6244 = vmatpush1.msra.mxu0 %v5842
      %6245 = vmatprep.subr.mxu0 0.0
      %6246 = vmatpush1.msra.mxu0 %v5843
      %6247 = vmatprep.subr.mxu0 0.0
      %6248 = vmatpush1.msra.mxu0 %v5844
      %6249 = vmatprep.subr.mxu0 0.0
      %6250 = vmatpush1.msra.mxu0 %v5845
      %6251 = vmatprep.subr.mxu0 0.0
      %6252 = vmatpush1.msra.mxu0 %v5846
      %6253 = vmatprep.subr.mxu0 0.0
      %6254 = vmatpush1.msra.mxu0 %v5847
      %6255 = vmatprep.subr.mxu0 0.0
      %6256 = vmatpush1.msra.mxu0 %v5848
      %6257 = vmatprep.subr.mxu0 0.0
      %6258 = vmatpush1.msra.mxu0 %v5849
      %6259 = vmatprep.subr.mxu0 0.0
      %6260 = vmatpush1.msra.mxu0 %v5850
      %6261 = vmatprep.subr.mxu0 0.0
      %6262 = vmatpush1.msra.mxu0 %v5851
      %6263 = vmatprep.subr.mxu0 0.0
      %6264 = vmatpush1.msra.mxu0 %v5852
      %6265 = vmatprep.subr.mxu0 0.0
      %6266 = vmatpush1.msra.mxu0 %v5853
      %6267 = vmatprep.subr.mxu0 0.0
      %6268 = vmatpush1.msra.mxu0 %v5854
      %6269 = vmatprep.subr.mxu0 0.0
      %6270 = vmatpush1.msra.mxu0 %v5855
      %6271 = vmatprep.subr.mxu0 0.0
      %6272 = vmatpush1.msra.mxu0 %v5856
      %6273 = vmatprep.subr.mxu0 0.0
      %6274 = vmatpush1.msra.mxu0 %v5857
      %6275 = vmatprep.subr.mxu0 0.0
      %6276 = vmatpush1.msra.mxu0 %v5858
      %6277 = vmatprep.subr.mxu0 0.0
      %6278 = vmatpush1.msra.mxu0 %v5859
      %6279 = vmatprep.subr.mxu0 0.0
      %6280 = vmatpush1.msra.mxu0 %v5860
      %6281 = vmatprep.subr.mxu0 0.0
      %6282 = vmatpush1.msra.mxu0 %v5861
      %6283 = vmatprep.subr.mxu0 0.0
      %6284 = vmatpush1.msra.mxu0 %v5862
      %6285 = vmatprep.subr.mxu0 0.0
      %6286 = vmatpush1.msra.mxu0 %v5863
      %6287 = vmatprep.subr.mxu0 0.0
      %6288 = vmatpush1.msra.mxu0 %v5864
      %6289 = vmatprep.subr.mxu0 0.0
      %6290 = vmatpush1.msra.mxu0 %v5865
      %6291 = vmatprep.subr.mxu0 0.0
      %6292 = vmatpush1.msra.mxu0 %v5866
      %6293 = vmatprep.subr.mxu0 0.0
      %6294 = vmatpush1.msra.mxu0 %v5867
      %6295 = vmatprep.subr.mxu0 0.0
      %6296 = vmatpush1.msra.mxu0 %v5868
      %6297 = vmatprep.subr.mxu0 0.0
      %6298 = vmatpush1.msra.mxu0 %v5869
      %6299 = vmatprep.mubr.f32.mxu0 %v5986
      %6300 = vmatmul.mubr.f32.gmra.mrb[0].mxu0 %v5984
      %v6301 = vpop.f32.mrb[0].mxu0
      %v6302 = vadd.f32 %v6232, %v6301
      %v6303 = vpop.f32.mrb[0].mxu0
      %6304 = vdwg.mxu0
      %6305 = vmatprep.subr.mxu0 0.0
      %6306 = vmatpush1.msra.mxu0 %v5870
      %6307 = vmatprep.subr.mxu0 0.0
      %6308 = vmatpush1.msra.mxu0 %v5871
      %6309 = vmatprep.subr.mxu0 0.0
      %6310 = vmatpush1.msra.mxu0 %v5872
      %6311 = vmatprep.subr.mxu0 0.0
      %6312 = vmatpush1.msra.mxu0 %v5873
      %6313 = vmatprep.subr.mxu0 0.0
      %6314 = vmatpush1.msra.mxu0 %v5874
      %6315 = vmatprep.subr.mxu0 0.0
      %6316 = vmatpush1.msra.mxu0 %v5875
      %6317 = vmatprep.subr.mxu0 0.0
      %6318 = vmatpush1.msra.mxu0 %v5876
      %6319 = vmatprep.subr.mxu0 0.0
      %6320 = vmatpush1.msra.mxu0 %v5877
      %6321 = vmatprep.subr.mxu0 0.0
      %6322 = vmatpush1.msra.mxu0 %v5878
      %6323 = vmatprep.subr.mxu0 0.0
      %6324 = vmatpush1.msra.mxu0 %v5879
      %6325 = vmatprep.subr.mxu0 0.0
      %6326 = vmatpush1.msra.mxu0 %v5880
      %6327 = vmatprep.subr.mxu0 0.0
      %6328 = vmatpush1.msra.mxu0 %v5881
      %6329 = vmatprep.subr.mxu0 0.0
      %6330 = vmatpush1.msra.mxu0 %v5882
      %6331 = vmatprep.subr.mxu0 0.0
      %6332 = vmatpush1.msra.mxu0 %v5883
      %6333 = vmatprep.subr.mxu0 0.0
      %6334 = vmatpush1.msra.mxu0 %v5884
      %6335 = vmatprep.subr.mxu0 0.0
      %6336 = vmatpush1.msra.mxu0 %v5885
      %6337 = vmatprep.subr.mxu0 0.0
      %6338 = vmatpush1.msra.mxu0 %v5886
      %6339 = vmatprep.subr.mxu0 0.0
      %6340 = vmatpush1.msra.mxu0 %v5887
      %6341 = vmatprep.subr.mxu0 0.0
      %6342 = vmatpush1.msra.mxu0 %v5888
      %6343 = vmatprep.subr.mxu0 0.0
      %6344 = vmatpush1.msra.mxu0 %v5889
      %6345 = vmatprep.subr.mxu0 0.0
      %6346 = vmatpush1.msra.mxu0 %v5890
      %6347 = vmatprep.subr.mxu0 0.0
      %6348 = vmatpush1.msra.mxu0 %v5891
      %6349 = vmatprep.subr.mxu0 0.0
      %6350 = vmatpush1.msra.mxu0 %v5892
      %6351 = vmatprep.subr.mxu0 0.0
      %6352 = vmatpush1.msra.mxu0 %v5893
      %6353 = vmatprep.subr.mxu0 0.0
      %6354 = vmatpush1.msra.mxu0 %v5894
      %6355 = vmatprep.subr.mxu0 0.0
      %6356 = vmatpush1.msra.mxu0 %v5895
      %6357 = vmatprep.subr.mxu0 0.0
      %6358 = vmatpush1.msra.mxu0 %v5896
      %6359 = vmatprep.subr.mxu0 0.0
      %6360 = vmatpush1.msra.mxu0 %v5897
      %6361 = vmatprep.subr.mxu0 0.0
      %6362 = vmatpush1.msra.mxu0 %v5898
      %6363 = vmatprep.subr.mxu0 0.0
      %6364 = vmatpush1.msra.mxu0 %v5899
      %6365 = vmatprep.subr.mxu0 0.0
      %6366 = vmatpush1.msra.mxu0 %v5900
      %6367 = vmatprep.subr.mxu0 0.0
      %6368 = vmatpush1.msra.mxu0 %v5901
      %6369 = vmatprep.mubr.f32.mxu0 %v6002
      %6370 = vmatmul.mubr.f32.gmra.mrb[0].mxu0 %v5994
      %v6371 = vpop.f32.mrb[0].mxu0
      %v6372 = vadd.f32 %v6302, %v6371
      %v6373 = vpop.f32.mrb[0].mxu0
      %6374 = vdwg.mxu0
      %6375 = vmatprep.subr.mxu0 0.0
      %6376 = vmatpush1.msra.mxu0 %v5902
      %6377 = vmatprep.subr.mxu0 0.0
      %6378 = vmatpush1.msra.mxu0 %v5903
      %6379 = vmatprep.subr.mxu0 0.0
      %6380 = vmatpush1.msra.mxu0 %v5904
      %6381 = vmatprep.subr.mxu0 0.0
      %6382 = vmatpush1.msra.mxu0 %v5905
      %6383 = vmatprep.subr.mxu0 0.0
      %6384 = vmatpush1.msra.mxu0 %v5906
      %6385 = vmatprep.subr.mxu0 0.0
      %6386 = vmatpush1.msra.mxu0 %v5907
      %6387 = vmatprep.subr.mxu0 0.0
      %6388 = vmatpush1.msra.mxu0 %v5908
      %6389 = vmatprep.subr.mxu0 0.0
      %6390 = vmatpush1.msra.mxu0 %v5909
      %6391 = vmatprep.subr.mxu0 0.0
      %6392 = vmatpush1.msra.mxu0 %v5910
      %6393 = vmatprep.subr.mxu0 0.0
      %6394 = vmatpush1.msra.mxu0 %v5911
      %6395 = vmatprep.subr.mxu0 0.0
      %6396 = vmatpush1.msra.mxu0 %v5912
      %6397 = vmatprep.subr.mxu0 0.0
      %6398 = vmatpush1.msra.mxu0 %v5913
      %6399 = vmatprep.subr.mxu0 0.0
      %6400 = vmatpush1.msra.mxu0 %v5914
      %6401 = vmatprep.subr.mxu0 0.0
      %6402 = vmatpush1.msra.mxu0 %v5915
      %6403 = vmatprep.subr.mxu0 0.0
      %6404 = vmatpush1.msra.mxu0 %v5916
      %6405 = vmatprep.subr.mxu0 0.0
      %6406 = vmatpush1.msra.mxu0 %v5917
      %6407 = vmatprep.subr.mxu0 0.0
      %6408 = vmatpush1.msra.mxu0 %v5918
      %6409 = vmatprep.subr.mxu0 0.0
      %6410 = vmatpush1.msra.mxu0 %v5919
      %6411 = vmatprep.subr.mxu0 0.0
      %6412 = vmatpush1.msra.mxu0 %v5920
      %6413 = vmatprep.subr.mxu0 0.0
      %6414 = vmatpush1.msra.mxu0 %v5921
      %6415 = vmatprep.subr.mxu0 0.0
      %6416 = vmatpush1.msra.mxu0 %v5922
      %6417 = vmatprep.subr.mxu0 0.0
      %6418 = vmatpush1.msra.mxu0 %v5923
      %6419 = vmatprep.subr.mxu0 0.0
      %6420 = vmatpush1.msra.mxu0 %v5924
      %6421 = vmatprep.subr.mxu0 0.0
      %6422 = vmatpush1.msra.mxu0 %v5925
      %6423 = vmatprep.subr.mxu0 0.0
      %6424 = vmatpush1.msra.mxu0 %v5926
      %6425 = vmatprep.subr.mxu0 0.0
      %6426 = vmatpush1.msra.mxu0 %v5927
      %6427 = vmatprep.subr.mxu0 0.0
      %6428 = vmatpush1.msra.mxu0 %v5928
      %6429 = vmatprep.subr.mxu0 0.0
      %6430 = vmatpush1.msra.mxu0 %v5929
      %6431 = vmatprep.subr.mxu0 0.0
      %6432 = vmatpush1.msra.mxu0 %v5930
      %6433 = vmatprep.subr.mxu0 0.0
      %6434 = vmatpush1.msra.mxu0 %v5931
      %6435 = vmatprep.subr.mxu0 0.0
      %6436 = vmatpush1.msra.mxu0 %v5932
      %6437 = vmatprep.subr.mxu0 0.0
      %6438 = vmatpush1.msra.mxu0 %v5933
      %6439 = vmatprep.mubr.f32.mxu0 %v6003
      %6440 = vmatmul.mubr.f32.gmra.mrb[0].mxu0 %v6001
      %v6441 = vpop.f32.mrb[0].mxu0
      %v6442 = vadd.f32 %v6372, %v6441
      %v6443 = vpop.f32.mrb[0].mxu0
      %6444 = vdwg.mxu0
      %6445 = vmatprep.subr.mxu0 0.0
      %6446 = vmatpush1.msra.mxu0 %v5934
      %6447 = vmatprep.subr.mxu0 0.0
      %6448 = vmatpush1.msra.mxu0 %v5935
      %6449 = vmatprep.subr.mxu0 0.0
      %6450 = vmatpush1.msra.mxu0 %v5936
      %6451 = vmatprep.subr.mxu0 0.0
      %6452 = vmatpush1.msra.mxu0 %v5937
      %6453 = vmatprep.subr.mxu0 0.0
      %6454 = vmatpush1.msra.mxu0 %v5938
      %6455 = vmatprep.subr.mxu0 0.0
      %6456 = vmatpush1.msra.mxu0 %v5939
      %6457 = vmatprep.subr.mxu0 0.0
      %6458 = vmatpush1.msra.mxu0 %v5940
      %6459 = vmatprep.subr.mxu0 0.0
      %6460 = vmatpush1.msra.mxu0 %v5941
      %6461 = vmatprep.subr.mxu0 0.0
      %6462 = vmatpush1.msra.mxu0 0.0
      %6463 = vmatprep.subr.mxu0 0.0
      %6464 = vmatpush1.msra.mxu0 0.0
      %6465 = vmatprep.subr.mxu0 0.0
      %6466 = vmatpush1.msra.mxu0 0.0
      %6467 = vmatprep.subr.mxu0 0.0
      %6468 = vmatpush1.msra.mxu0 0.0
      %6469 = vmatprep.subr.mxu0 0.0
      %6470 = vmatpush1.msra.mxu0 0.0
      %6471 = vmatprep.subr.mxu0 0.0
      %6472 = vmatpush1.msra.mxu0 0.0
      %6473 = vmatprep.subr.mxu0 0.0
      %6474 = vmatpush1.msra.mxu0 0.0
      %6475 = vmatprep.subr.mxu0 0.0
      %6476 = vmatpush1.msra.mxu0 0.0
      %6477 = vmatprep.subr.mxu0 0.0
      %6478 = vmatpush1.msra.mxu0 0.0
      %6479 = vmatprep.subr.mxu0 0.0
      %6480 = vmatpush1.msra.mxu0 0.0
      %6481 = vmatprep.subr.mxu0 0.0
      %6482 = vmatpush1.msra.mxu0 0.0
      %6483 = vmatprep.subr.mxu0 0.0
      %6484 = vmatpush1.msra.mxu0 0.0
      %6485 = vmatprep.subr.mxu0 0.0
      %6486 = vmatpush1.msra.mxu0 0.0
      %6487 = vmatprep.subr.mxu0 0.0
      %6488 = vmatpush1.msra.mxu0 0.0
      %6489 = vmatprep.subr.mxu0 0.0
      %6490 = vmatpush1.msra.mxu0 0.0
      %6491 = vmatprep.subr.mxu0 0.0
      %6492 = vmatpush1.msra.mxu0 0.0
      %6493 = vmatprep.subr.mxu0 0.0
      %6494 = vmatpush1.msra.mxu0 0.0
      %6495 = vmatprep.subr.mxu0 0.0
      %6496 = vmatpush1.msra.mxu0 0.0
      %6497 = vmatprep.subr.mxu0 0.0
      %6498 = vmatpush1.msra.mxu0 0.0
      %6499 = vmatprep.subr.mxu0 0.0
      %6500 = vmatpush1.msra.mxu0 0.0
      %6501 = vmatprep.subr.mxu0 0.0
      %6502 = vmatpush1.msra.mxu0 0.0
      %6503 = vmatprep.subr.mxu0 0.0
      %6504 = vmatpush1.msra.mxu0 0.0
      %6505 = vmatprep.subr.mxu0 0.0
      %6506 = vmatpush1.msra.mxu0 0.0
      %6507 = vmatprep.subr.mxu0 0.0
      %6508 = vmatpush1.msra.mxu0 0.0
      %6509 = vmatprep.mubr.f32.mxu0 0.0
      %6510 = vmatmul.mubr.f32.gmra.mrb[0].mxu0 %v6023
      %v6511 = vpop.f32.mrb[0].mxu0
      %v6512 = vadd.f32 %v6442, %v6511
      %v6513 = vpop.f32.mrb[0].mxu0
      %6514 = vdwg.mxu0
      %6515 = vst [vmem:[%s330] sm:$0x3] %v6512
      %p6516 = scmp.lt.s32.totalorder %s20, 1
      %s6517 = scalar_select %p6516, %s20, 1
      %s6518 = smul.addr %s6517, 2
      %s6519 = scalar_lea.vmem %s9, %s6518
      // Predicated region
      $region57: #{siamese_forward.1} parent=55 // pred_check
        %p6520 = pneg %p232
      $region58: #{siamese_forward.1} parent=55 // pred_check_branch
        %6522 = sbr.rel (%p6520) target = $region60
      $region59: #{siamese_forward.1} parent=55 // pred_region
        _
      $region60: #{siamese_forward.1} parent=55 // pred_fallthru
        _
    $region56: #{siamese_forward.1} parent=5 // pred_fallthru
      _
    %p6523 = scmp.le.s32.totalorder 2, %s15
    // Predicated region
    $region61: #{siamese_forward.1} parent=5 // pred_check
      %p6524 = pneg %p6523
    $region62: #{siamese_forward.1} parent=5 // pred_check_branch
      %6526 = sbr.rel (%p6524) target = $region64
    $region63: #{siamese_forward.1} parent=5 // pred_region
      %s6527 = ssub.s32 %s15, 2
      // Predicated region
      $region65: #{siamese_forward.1} parent=63 // pred_check
        %p6528 = pneg %p238
      $region66: #{siamese_forward.1} parent=63 // pred_check_branch
        %6530 = sbr.rel (%p6528) target = $region68
      $region67: #{siamese_forward.1} parent=63 // pred_region
        %p6531 = scmp.lt.s32.totalorder %s21, 1
        %s6532 = scalar_select %p6531, %s21, 1
        %s6533 = smul.addr %s6532, 2
        %s6534 = scalar_lea.vmem %s9, %s6533
      $region68: #{siamese_forward.1} parent=63 // pred_fallthru
        _
    $region64: #{siamese_forward.1} parent=5 // pred_fallthru
      _
  $region6: #{siamese_forward.1} parent=0 // loop_footer
    %s19 = sadd.s32 1, %s15
  $region7: #{siamese_forward.1} parent=0 // loop_footer_branch
    %14 = sbr.rel target = $region3
  $region8: #{siamese_forward.1} parent=0 // loop_exit
    _

</llo_original>
